<compile_context>
chip_gen: v6e
topology: v6e:2x2x1
jax: 0.10.0
libtpu: 0.0.40
codegen_flags: <defaults>
</compile_context>

<pallas_src>
import functools

import jax
import jax.numpy as jnp
from jax.experimental import pallas as pl
from jax.experimental.pallas import tpu as pltpu

# ---------------- small synthetic config (ViT-L scaled down) ----------------
PATCH = 4          # patch size
IMG = 16           # image H = W
IN_CHANS = 3       # RGB, like fmow SatMAE
EMBED_DIM = 128    # lane-dense feature dim (1024 in ViT-L)
DEPTH = 2          # (24 in ViT-L)
NUM_HEADS = 4      # (16 in ViT-L)
MLP_RATIO = 4
EPS = 1e-6         # timm ViT LayerNorm eps

N_PATCH = (IMG // PATCH) ** 2       # 16 patch tokens
SEQ = N_PATCH + 1                   # 17 real tokens (patches + CLS)
SEQ_PAD = 24                        # padded to a multiple of 8 sublanes
CPP = IN_CHANS * PATCH * PATCH      # 48
CPP_PAD = 128                       # lane-dense padded patch feature dim


# ------------------------------- kernel helpers ------------------------------
def _layernorm(x, g, b):
    mu = jnp.mean(x, axis=-1, keepdims=True)
    var = jnp.mean((x - mu) ** 2, axis=-1, keepdims=True)
    return (x - mu) * jax.lax.rsqrt(var + EPS) * g + b


def _gelu_tanh(x):
    # TODO(synk): timm nn.GELU() is the exact erf formulation; tanh
    # approximation used here for guaranteed Mosaic lowering.
    c = 0.7978845608028654  # sqrt(2/pi)
    return 0.5 * x * (1.0 + jnp.tanh(c * (x + 0.044715 * x * x * x)))


# ------------------------------- fused kernel --------------------------------
def satmae_fused_kernel(patches_ref, patch_w_ref, patch_b_ref,
                        pos_patch_ref, tail_ref,
                        ln1_g_ref, ln1_b_ref, qkv_w_ref, qkv_b_ref,
                        proj_w_ref, proj_b_ref, ln2_g_ref, ln2_b_ref,
                        fc1_w_ref, fc1_b_ref, fc2_w_ref, fc2_b_ref,
                        norm_g_ref, norm_b_ref,
                        out_ref, seq_ref, *,
                        b_blk, depth, num_heads, seq_pad, n_patch):
    """One grid step = one batch block; all layers run inside (weights resident)."""
    D = EMBED_DIM
    hd = D // num_heads
    scale = hd ** -0.5
    bf16 = jnp.bfloat16

    # ---- patch embed + CLS token + positional embedding (one batched matmul) --
    patches2d = patches_ref[...].reshape(b_blk * n_patch, CPP_PAD)      # bf16
    tok = jnp.dot(patches2d, patch_w_ref[...],
                  preferred_element_type=jnp.float32) + patch_b_ref[...]
    # mask_ratio=0.0: MAE's random_masking keeps all tokens (just permutes them);
    # the downstream mean over patch tokens is permutation invariant, so the
    # shuffle is skipped without changing the result.
    pos_p = pos_patch_ref[...]          # (n_patch, D) patch positional embedding
    tail = tail_ref[...]                # row 0: cls + pos[0]; rows 1..: zero pads
    for b in range(b_blk):
        base = b * seq_pad
        seq_ref[base:base + n_patch, :] = tok[b * n_patch:(b + 1) * n_patch, :] + pos_p
        seq_ref[base + n_patch:base + seq_pad, :] = tail

    # Static key-padding bias: per sequence, valid keys are rows [0, n_patch]
    # (patches + CLS); rows beyond that are padding and get -1e30 before softmax.
    col = jax.lax.broadcasted_iota(jnp.int32, (seq_pad, seq_pad), 1)
    key_bias = jnp.where(col <= n_patch, 0.0, -1e30).astype(jnp.float32)

    # ---- transformer blocks (unrolled; activations stay resident in VMEM) ----
    for l in range(depth):
        x = seq_ref[...]                                              # (M, D) f32

        xn = _layernorm(x, ln1_g_ref[l], ln1_b_ref[l])
        qkv = jnp.dot(xn.astype(bf16), qkv_w_ref[l],
                      preferred_element_type=jnp.float32) + qkv_b_ref[l]   # (M, 3D)

        proj_w_l = proj_w_ref[l]                                      # (D, D) bf16
        for b in range(b_blk):
            r0, r1 = b * seq_pad, (b + 1) * seq_pad
            q_b = qkv[r0:r1, :]                                       # (S_PAD, 3D)
            acc = jnp.zeros((seq_pad, D), jnp.float32)
            for h in range(num_heads):
                qh = q_b[:, h * hd:(h + 1) * hd].astype(bf16)
                kh = q_b[:, D + h * hd:D + (h + 1) * hd].astype(bf16)
                vh = q_b[:, 2 * D + h * hd:2 * D + (h + 1) * hd].astype(bf16)
                s = jax.lax.dot_general(qh, kh, (((1,), (1,)), ((), ())),
                                        preferred_element_type=jnp.float32) * scale
                s = s + key_bias
                s = s - jnp.max(s, axis=-1, keepdims=True)
                p = jnp.exp(s)
                p = p * pl.reciprocal(jnp.sum(p, axis=-1, keepdims=True), approx=True)
                o_h = jnp.dot(p.astype(bf16), vh, preferred_element_type=jnp.float32)
                # fold the output projection per head (no concat / lane shuffles)
                acc = acc + jnp.dot(o_h.astype(bf16), proj_w_l[h * hd:(h + 1) * hd, :],
                                    preferred_element_type=jnp.float32)
            seq_ref[r0:r1, :] = x[r0:r1, :] + acc + proj_b_ref[l]

        x = seq_ref[...]
        xn2 = _layernorm(x, ln2_g_ref[l], ln2_b_ref[l])
        hid = jnp.dot(xn2.astype(bf16), fc1_w_ref[l],
                      preferred_element_type=jnp.float32) + fc1_b_ref[l]
        hid = _gelu_tanh(hid)
        x = x + jnp.dot(hid.astype(bf16), fc2_w_ref[l],
                        preferred_element_type=jnp.float32) + fc2_b_ref[l]
        seq_ref[...] = x

    # ---- final LayerNorm + mean over patch tokens (rows [0:n_patch) per seq) --
    zn = _layernorm(seq_ref[...], norm_g_ref[...], norm_b_ref[...])
    for b in range(b_blk):
        base = b * seq_pad
        # == batch_tensors[:, 1:, :].mean(dim=1) (CLS row excluded, pads excluded)
        out_ref[b] = jnp.mean(zn[base:base + n_patch, :], axis=0, keepdims=True)


# ------------------------------ forward wrapper -------------------------------
def satmae_raw_forward(x, params, *, b_blk=None):
    """x: NCHW float32 [B, C, H, W]  ->  pooled features [B, EMBED_DIM]."""
    B, C, H, W = x.shape
    p = PATCH
    nh, nw = H // p, W // p
    N = nh * nw
    D = EMBED_DIM
    cpp = C * p * p

    if b_blk is None:
        # Largest divisor of B that is <= 8.  (On v7x with large B, pick b_blk so
        # the parallel grid extent B // b_blk is even and >= 2 to fill both TCs.)
        b_blk = max(d for d in range(1, min(B, 8) + 1) if B % d == 0)
    assert B % b_blk == 0

    # im2col patchify (matches Conv2d(kernel=stride=patch) weight flattening
    # order (C, ph, pw)); zero-pad CPP 48 -> 128 for a lane-dense K dim; bf16.
    patches = x.reshape(B, C, nh, p, nw, p)
    patches = patches.transpose(0, 2, 4, 1, 3, 5).reshape(B, N, cpp)
    patches = jnp.pad(patches, ((0, 0), (0, 0), (0, CPP_PAD - cpp))).astype(jnp.bfloat16)

    patch_w = jnp.pad(params['patch_w'],
                      ((0, CPP_PAD - params['patch_w'].shape[0]), (0, 0)))  # bf16

    # Positional embedding rearranged into the kernel's padded token layout:
    #   rows [0:N)       -> patch tokens (pos[1:]),
    #   row  N           -> CLS token (cls + pos[0]),
    #   rows (N:SEQ_PAD) -> zero padding (masked out of attention / pooling).
    pos = params['pos_embed']
    pos_patch = pos[1:N + 1]
    tail = jnp.zeros((SEQ_PAD - N, D), jnp.float32)
    tail = tail.at[0].set(params['cls_token'][0] + pos[0])

    const2 = lambda arr: pl.BlockSpec(arr.shape, lambda i: (0, 0))
    const3 = lambda arr: pl.BlockSpec(arr.shape, lambda i: (0, 0, 0))

    in_specs = [
        pl.BlockSpec((b_blk, N, CPP_PAD), lambda i: (i, 0, 0)),    # patches (per block)
        const2(patch_w), const2(params['patch_b']),
        const2(pos_patch), const2(tail),
        const3(params['ln1_g']), const3(params['ln1_b']),
        const3(params['qkv_w']), const3(params['qkv_b']),
        const3(params['proj_w']), const3(params['proj_b']),
        const3(params['ln2_g']), const3(params['ln2_b']),
        const3(params['fc1_w']), const3(params['fc1_b']),
        const3(params['fc2_w']), const3(params['fc2_b']),
        const2(params['norm_g']), const2(params['norm_b']),
    ]

    kernel = functools.partial(
        satmae_fused_kernel, b_blk=b_blk, depth=DEPTH, num_heads=NUM_HEADS,
        seq_pad=SEQ_PAD, n_patch=N)

    out = pl.pallas_call(
        kernel,
        out_shape=jax.ShapeDtypeStruct((B, 1, D), jnp.float32),
        grid=(B // b_blk,),
        in_specs=in_specs,
        out_specs=pl.BlockSpec((b_blk, 1, D), lambda i: (i, 0, 0)),
        scratch_shapes=[pltpu.VMEM((b_blk * SEQ_PAD, D), jnp.float32)],  # resident acts
        compiler_params=pltpu.CompilerParams(dimension_semantics=("parallel",)),
    )(patches, patch_w, params['patch_b'], pos_patch, tail,
      params['ln1_g'], params['ln1_b'], params['qkv_w'], params['qkv_b'],
      params['proj_w'], params['proj_b'], params['ln2_g'], params['ln2_b'],
      params['fc1_w'], params['fc1_b'], params['fc2_w'], params['fc2_b'],
      params['norm_g'], params['norm_b'])
    return out[:, 0, :]


# ----------------------------- synthetic parameters ---------------------------
def init_params(key):
    D = EMBED_DIM
    Hm = MLP_RATIO * D
    N = N_PATCH
    L = DEPTH
    ks = jax.random.split(key, 8)

    def nrm(k, shape, std=0.02, dtype=jnp.bfloat16):
        return (std * jax.random.normal(k, shape)).astype(dtype)

    return {
        # Conv2d(kernel=stride=patch) weight [D, C, p, p] stored flattened+transposed, bf16.
        'patch_w': nrm(ks[0], (CPP, D)),
        'patch_b': jnp.zeros((1, D), jnp.float32),
        # TODO(synk): real SatMAE uses a fixed 2D sin-cos positional embedding.
        'pos_embed': nrm(ks[1], (N + 1, D), dtype=jnp.float32),
        'cls_token': nrm(ks[2], (1, D), dtype=jnp.float32),
        'norm_g': jnp.ones((1, D), jnp.float32),
        'norm_b': jnp.zeros((1, D), jnp.float32),
        # per-layer weights stacked along a leading DEPTH axis; matmul weights bf16.
        'ln1_g': jnp.ones((L, 1, D), jnp.float32),
        'ln1_b': jnp.zeros((L, 1, D), jnp.float32),
        'qkv_w': nrm(ks[3], (L, D, 3 * D)),
        'qkv_b': jnp.zeros((L, 1, 3 * D), jnp.float32),
        'proj_w': nrm(ks[4], (L, D, D)),
        'proj_b': jnp.zeros((L, 1, D), jnp.float32),
        'ln2_g': jnp.ones((L, 1, D), jnp.float32),
        'ln2_b': jnp.zeros((L, 1, D), jnp.float32),
        'fc1_w': nrm(ks[5], (L, D, Hm)),
        'fc1_b': jnp.zeros((L, 1, Hm), jnp.float32),
        'fc2_w': nrm(ks[6], (L, Hm, D)),
        'fc2_b': jnp.zeros((L, 1, D), jnp.float32),
    }


if __name__ == "__main__":
    key = jax.random.PRNGKey(0)
    kx, kp = jax.random.split(key)
    x = jax.random.normal(kx, (2, IN_CHANS, IMG, IMG), dtype=jnp.float32)
    params = init_params(kp)

    out = satmae_raw_forward(x, params)
    jax.block_until_ready(out)
    assert out.shape == (2, EMBED_DIM)
    assert bool(jnp.all(jnp.isfinite(out)))
    print("KERNEL_OK")
</pallas_src>

<mosaic_0001>
module attributes {stable_mosaic.version = 11 : i64} {
  func.func @satmae_fused_kernel(%arg0: i32, %arg1: memref<2x16x128xbf16, #tpu.memory_space<vmem>>, %arg2: memref<128x128xbf16, #tpu.memory_space<vmem>>, %arg3: memref<1x128xf32, #tpu.memory_space<vmem>>, %arg4: memref<16x128xf32, #tpu.memory_space<vmem>>, %arg5: memref<8x128xf32, #tpu.memory_space<vmem>>, %arg6: memref<2x1x128xf32, #tpu.memory_space<vmem>>, %arg7: memref<2x1x128xf32, #tpu.memory_space<vmem>>, %arg8: memref<2x128x384xbf16, #tpu.memory_space<vmem>>, %arg9: memref<2x1x384xf32, #tpu.memory_space<vmem>>, %arg10: memref<2x128x128xbf16, #tpu.memory_space<vmem>>, %arg11: memref<2x1x128xf32, #tpu.memory_space<vmem>>, %arg12: memref<2x1x128xf32, #tpu.memory_space<vmem>>, %arg13: memref<2x1x128xf32, #tpu.memory_space<vmem>>, %arg14: memref<2x128x512xbf16, #tpu.memory_space<vmem>>, %arg15: memref<2x1x512xf32, #tpu.memory_space<vmem>>, %arg16: memref<2x512x128xbf16, #tpu.memory_space<vmem>>, %arg17: memref<2x1x128xf32, #tpu.memory_space<vmem>>, %arg18: memref<1x128xf32, #tpu.memory_space<vmem>>, %arg19: memref<1x128xf32, #tpu.memory_space<vmem>>, %arg20: memref<2x1x128xf32, #tpu.memory_space<vmem>>, %arg21: memref<48x128xf32, #tpu.memory_space<vmem>>) attributes {dimension_semantics = [#tpu.dimension_semantics<parallel>], iteration_bounds = array<i64: 1>, scalar_prefetch = 0 : i64, scratch_operands = 1 : i64, tpu.core_type = #tpu.core_type<tc>, window_params = [{transform_indices = @transform_0, window_bounds = array<i64: 2, 16, 128>}, {pipeline_mode = #tpu.pipeline_mode<synchronous>, transform_indices = @transform_1, window_bounds = array<i64: 128, 128>}, {pipeline_mode = #tpu.pipeline_mode<synchronous>, transform_indices = @transform_2, window_bounds = array<i64: 1, 128>}, {pipeline_mode = #tpu.pipeline_mode<synchronous>, transform_indices = @transform_3, window_bounds = array<i64: 16, 128>}, {pipeline_mode = #tpu.pipeline_mode<synchronous>, transform_indices = @transform_4, window_bounds = array<i64: 8, 128>}, {pipeline_mode = #tpu.pipeline_mode<synchronous>, transform_indices = @transform_5, window_bounds = array<i64: 2, 1, 128>}, {pipeline_mode = #tpu.pipeline_mode<synchronous>, transform_indices = @transform_6, window_bounds = array<i64: 2, 1, 128>}, {pipeline_mode = #tpu.pipeline_mode<synchronous>, transform_indices = @transform_7, window_bounds = array<i64: 2, 128, 384>}, {pipeline_mode = #tpu.pipeline_mode<synchronous>, transform_indices = @transform_8, window_bounds = array<i64: 2, 1, 384>}, {pipeline_mode = #tpu.pipeline_mode<synchronous>, transform_indices = @transform_9, window_bounds = array<i64: 2, 128, 128>}, {pipeline_mode = #tpu.pipeline_mode<synchronous>, transform_indices = @transform_10, window_bounds = array<i64: 2, 1, 128>}, {pipeline_mode = #tpu.pipeline_mode<synchronous>, transform_indices = @transform_11, window_bounds = array<i64: 2, 1, 128>}, {pipeline_mode = #tpu.pipeline_mode<synchronous>, transform_indices = @transform_12, window_bounds = array<i64: 2, 1, 128>}, {pipeline_mode = #tpu.pipeline_mode<synchronous>, transform_indices = @transform_13, window_bounds = array<i64: 2, 128, 512>}, {pipeline_mode = #tpu.pipeline_mode<synchronous>, transform_indices = @transform_14, window_bounds = array<i64: 2, 1, 512>}, {pipeline_mode = #tpu.pipeline_mode<synchronous>, transform_indices = @transform_15, window_bounds = array<i64: 2, 512, 128>}, {pipeline_mode = #tpu.pipeline_mode<synchronous>, transform_indices = @transform_16, window_bounds = array<i64: 2, 1, 128>}, {pipeline_mode = #tpu.pipeline_mode<synchronous>, transform_indices = @transform_17, window_bounds = array<i64: 1, 128>}, {pipeline_mode = #tpu.pipeline_mode<synchronous>, transform_indices = @transform_18, window_bounds = array<i64: 1, 128>}, {transform_indices = @transform_19, window_bounds = array<i64: 2, 1, 128>}]} {
    %c0 = arith.constant 0 : index
    %c0_0 = arith.constant 0 : index
    %c0_1 = arith.constant 0 : index
    %0 = vector.load %arg1[%c0, %c0_0, %c0_1] : memref<2x16x128xbf16, #tpu.memory_space<vmem>>, vector<2x16x128xbf16>
    %1 = vector.shape_cast %0 : vector<2x16x128xbf16> to vector<32x128xbf16>
    %c0_2 = arith.constant 0 : index
    %c0_3 = arith.constant 0 : index
    %2 = vector.load %arg2[%c0_2, %c0_3] : memref<128x128xbf16, #tpu.memory_space<vmem>>, vector<128x128xbf16>
    %cst = arith.constant dense<0.000000e+00> : vector<32x128xf32>
    %3 = tpu.matmul %1, %2, %cst {dimension_numbers = #tpu.dot_dimension_numbers<[1], [0], [0], [1], [0, 0, 1, 1], [], []>} : vector<32x128xbf16>, vector<128x128xbf16>, vector<32x128xf32> -> vector<32x128xf32>
    %c0_4 = arith.constant 0 : index
    %c0_5 = arith.constant 0 : index
    %4 = vector.load %arg3[%c0_4, %c0_5] : memref<1x128xf32, #tpu.memory_space<vmem>>, vector<1x128xf32>
    %5 = vector.broadcast %4 : vector<1x128xf32> to vector<32x128xf32>
    %6 = arith.addf %3, %5 : vector<32x128xf32>
    %c0_6 = arith.constant 0 : index
    %c0_7 = arith.constant 0 : index
    %7 = vector.load %arg4[%c0_6, %c0_7] : memref<16x128xf32, #tpu.memory_space<vmem>>, vector<16x128xf32>
    %c0_8 = arith.constant 0 : index
    %c0_9 = arith.constant 0 : index
    %8 = vector.load %arg5[%c0_8, %c0_9] : memref<8x128xf32, #tpu.memory_space<vmem>>, vector<8x128xf32>
    %9 = vector.extract_strided_slice %6 {offsets = [0, 0], sizes = [16, 128], strides = [1, 1]} : vector<32x128xf32> to vector<16x128xf32>
    %10 = arith.addf %9, %7 : vector<16x128xf32>
    %c0_10 = arith.constant 0 : index
    %c0_11 = arith.constant 0 : index
    %11 = vector.load %arg21[%c0_10, %c0_11] : memref<48x128xf32, #tpu.memory_space<vmem>>, vector<16x128xf32>
    tpu.vector_store %arg21[%c0_10, %c0_11], %10 {strides = array<i32>} : memref<48x128xf32, #tpu.memory_space<vmem>>, vector<16x128xf32>,
    %c16 = arith.constant 16 : index
    %c0_12 = arith.constant 0 : index
    %12 = vector.load %arg21[%c16, %c0_12] : memref<48x128xf32, #tpu.memory_space<vmem>>, vector<8x128xf32>
    tpu.vector_store %arg21[%c16, %c0_12], %8 {strides = array<i32>} : memref<48x128xf32, #tpu.memory_space<vmem>>, vector<8x128xf32>,
    %13 = vector.extract_strided_slice %6 {offsets = [16, 0], sizes = [16, 128], strides = [1, 1]} : vector<32x128xf32> to vector<16x128xf32>
    %14 = arith.addf %13, %7 : vector<16x128xf32>
    %c24 = arith.constant 24 : index
    %c0_13 = arith.constant 0 : index
    %15 = vector.load %arg21[%c24, %c0_13] : memref<48x128xf32, #tpu.memory_space<vmem>>, vector<16x128xf32>
    tpu.vector_store %arg21[%c24, %c0_13], %14 {strides = array<i32>} : memref<48x128xf32, #tpu.memory_space<vmem>>, vector<16x128xf32>,
    %c40 = arith.constant 40 : index
    %c0_14 = arith.constant 0 : index
    %16 = vector.load %arg21[%c40, %c0_14] : memref<48x128xf32, #tpu.memory_space<vmem>>, vector<8x128xf32>
    tpu.vector_store %arg21[%c40, %c0_14], %8 {strides = array<i32>} : memref<48x128xf32, #tpu.memory_space<vmem>>, vector<8x128xf32>,
    %17 = tpu.iota {dimensions = array<i32: 1>} : vector<24x24xi32>
    %c16_i32 = arith.constant 16 : i32
    %18 = vector.broadcast %c16_i32 : i32 to vector<24x24xi32>
    %19 = arith.cmpi sle, %17, %18 : vector<24x24xi32>
    %cst_15 = arith.constant 0.000000e+00 : f32
    %cst_16 = arith.constant -1.000000e+30 : f32
    %20 = vector.broadcast %cst_15 : f32 to vector<24x24xf32>
    %21 = vector.broadcast %cst_16 : f32 to vector<24x24xf32>
    %22 = arith.select %19, %20, %21 : vector<24x24xi1>, vector<24x24xf32>
    %c0_17 = arith.constant 0 : index
    %c0_18 = arith.constant 0 : index
    %23 = vector.load %arg21[%c0_17, %c0_18] : memref<48x128xf32, #tpu.memory_space<vmem>>, vector<48x128xf32>
    %c0_19 = arith.constant 0 : index
    %c0_20 = arith.constant 0 : index
    %c0_21 = arith.constant 0 : index
    %24 = vector.load %arg6[%c0_19, %c0_20, %c0_21] : memref<2x1x128xf32, #tpu.memory_space<vmem>>, vector<1x1x128xf32>
    %25 = vector.shape_cast %24 : vector<1x1x128xf32> to vector<1x128xf32>
    %c0_22 = arith.constant 0 : index
    %c0_23 = arith.constant 0 : index
    %c0_24 = arith.constant 0 : index
    %26 = vector.load %arg7[%c0_22, %c0_23, %c0_24] : memref<2x1x128xf32, #tpu.memory_space<vmem>>, vector<1x1x128xf32>
    %27 = vector.shape_cast %26 : vector<1x1x128xf32> to vector<1x128xf32>
    %cst_25 = arith.constant dense<0.000000e+00> : vector<48xf32>
    %28 = vector.multi_reduction <add>, %23, %cst_25 [1] : vector<48x128xf32> to vector<48xf32>
    %29 = vector.shape_cast %28 : vector<48xf32> to vector<48x1xf32>
    %cst_26 = arith.constant 1.280000e+02 : f32
    %30 = vector.broadcast %cst_26 : f32 to vector<48x1xf32>
    %31 = arith.divf %29, %30 : vector<48x1xf32>
    %32 = vector.broadcast %31 : vector<48x1xf32> to vector<48x128xf32>
    %33 = arith.subf %23, %32 : vector<48x128xf32>
    %34 = arith.mulf %33, %33 : vector<48x128xf32>
    %cst_27 = arith.constant dense<0.000000e+00> : vector<48xf32>
    %35 = vector.multi_reduction <add>, %34, %cst_27 [1] : vector<48x128xf32> to vector<48xf32>
    %36 = vector.shape_cast %35 : vector<48xf32> to vector<48x1xf32>
    %cst_28 = arith.constant 1.280000e+02 : f32
    %37 = vector.broadcast %cst_28 : f32 to vector<48x1xf32>
    %38 = arith.divf %36, %37 : vector<48x1xf32>
    %39 = vector.broadcast %31 : vector<48x1xf32> to vector<48x128xf32>
    %40 = arith.subf %23, %39 : vector<48x128xf32>
    %cst_29 = arith.constant 9.99999997E-7 : f32
    %41 = vector.broadcast %cst_29 : f32 to vector<48x1xf32>
    %42 = arith.addf %38, %41 : vector<48x1xf32>
    %43 = math.rsqrt %42 : vector<48x1xf32>
    %44 = vector.broadcast %43 : vector<48x1xf32> to vector<48x128xf32>
    %45 = arith.mulf %40, %44 : vector<48x128xf32>
    %46 = vector.broadcast %25 : vector<1x128xf32> to vector<48x128xf32>
    %47 = arith.mulf %45, %46 : vector<48x128xf32>
    %48 = vector.broadcast %27 : vector<1x128xf32> to vector<48x128xf32>
    %49 = arith.addf %47, %48 : vector<48x128xf32>
    %50 = arith.truncf %49 : vector<48x128xf32> to vector<48x128xbf16>
    %c0_30 = arith.constant 0 : index
    %c0_31 = arith.constant 0 : index
    %c0_32 = arith.constant 0 : index
    %51 = vector.load %arg8[%c0_30, %c0_31, %c0_32] : memref<2x128x384xbf16, #tpu.memory_space<vmem>>, vector<1x128x384xbf16>
    %52 = vector.shape_cast %51 : vector<1x128x384xbf16> to vector<128x384xbf16>
    %cst_33 = arith.constant dense<0.000000e+00> : vector<48x384xf32>
    %53 = tpu.matmul %50, %52, %cst_33 {dimension_numbers = #tpu.dot_dimension_numbers<[1], [0], [0], [1], [0, 0, 1, 1], [], []>} : vector<48x128xbf16>, vector<128x384xbf16>, vector<48x384xf32> -> vector<48x384xf32>
    %c0_34 = arith.constant 0 : index
    %c0_35 = arith.constant 0 : index
    %c0_36 = arith.constant 0 : index
    %54 = vector.load %arg9[%c0_34, %c0_35, %c0_36] : memref<2x1x384xf32, #tpu.memory_space<vmem>>, vector<1x1x384xf32>
    %55 = vector.shape_cast %54 : vector<1x1x384xf32> to vector<1x384xf32>
    %56 = vector.broadcast %55 : vector<1x384xf32> to vector<48x384xf32>
    %57 = arith.addf %53, %56 : vector<48x384xf32>
    %c0_37 = arith.constant 0 : index
    %c0_38 = arith.constant 0 : index
    %c0_39 = arith.constant 0 : index
    %58 = vector.load %arg10[%c0_37, %c0_38, %c0_39] : memref<2x128x128xbf16, #tpu.memory_space<vmem>>, vector<1x128x128xbf16>
    %59 = vector.shape_cast %58 : vector<1x128x128xbf16> to vector<128x128xbf16>
    %60 = vector.extract_strided_slice %57 {offsets = [0, 0], sizes = [24, 384], strides = [1, 1]} : vector<48x384xf32> to vector<24x384xf32>
    %cst_40 = arith.constant 0.000000e+00 : f32
    %61 = vector.broadcast %cst_40 : f32 to vector<24x128xf32>
    %62 = vector.extract_strided_slice %60 {offsets = [0, 0], sizes = [24, 32], strides = [1, 1]} : vector<24x384xf32> to vector<24x32xf32>
    %63 = arith.truncf %62 : vector<24x32xf32> to vector<24x32xbf16>
    %64 = vector.extract_strided_slice %60 {offsets = [0, 128], sizes = [24, 32], strides = [1, 1]} : vector<24x384xf32> to vector<24x32xf32>
    %65 = arith.truncf %64 : vector<24x32xf32> to vector<24x32xbf16>
    %66 = vector.extract_strided_slice %60 {offsets = [0, 256], sizes = [24, 32], strides = [1, 1]} : vector<24x384xf32> to vector<24x32xf32>
    %67 = arith.truncf %66 : vector<24x32xf32> to vector<24x32xbf16>
    %cst_41 = arith.constant dense<0.000000e+00> : vector<24x24xf32>
    %68 = tpu.matmul %63, %65, %cst_41 {dimension_numbers = #tpu.dot_dimension_numbers<[1], [1], [0], [0], [0, 0, 1, 0], [], []>} : vector<24x32xbf16>, vector<24x32xbf16>, vector<24x24xf32> -> vector<24x24xf32>
    %cst_42 = arith.constant 0.176776692 : f32
    %69 = vector.broadcast %cst_42 : f32 to vector<24x24xf32>
    %70 = arith.mulf %68, %69 : vector<24x24xf32>
    %71 = arith.addf %70, %22 : vector<24x24xf32>
    %cst_43 = arith.constant dense<0xFF800000> : vector<24xf32>
    %72 = vector.multi_reduction <maximumf>, %71, %cst_43 [1] : vector<24x24xf32> to vector<24xf32>
    %73 = vector.shape_cast %72 : vector<24xf32> to vector<24x1xf32>
    %74 = vector.broadcast %73 : vector<24x1xf32> to vector<24x24xf32>
    %75 = arith.subf %71, %74 : vector<24x24xf32>
    %76 = math.exp %75 : vector<24x24xf32>
    %cst_44 = arith.constant dense<0.000000e+00> : vector<24xf32>
    %77 = vector.multi_reduction <add>, %76, %cst_44 [1] : vector<24x24xf32> to vector<24xf32>
    %78 = vector.shape_cast %77 : vector<24xf32> to vector<24x1xf32>
    %79 = tpu.reciprocal %78 {approx = true} : vector<24x1xf32> -> vector<24x1xf32>
    %80 = vector.broadcast %79 : vector<24x1xf32> to vector<24x24xf32>
    %81 = arith.mulf %76, %80 : vector<24x24xf32>
    %82 = arith.truncf %81 : vector<24x24xf32> to vector<24x24xbf16>
    %cst_45 = arith.constant dense<0.000000e+00> : vector<24x32xf32>
    %83 = tpu.matmul %82, %67, %cst_45 {dimension_numbers = #tpu.dot_dimension_numbers<[1], [0], [0], [1], [0, 0, 1, 1], [], []>} : vector<24x24xbf16>, vector<24x32xbf16>, vector<24x32xf32> -> vector<24x32xf32>
    %84 = arith.truncf %83 : vector<24x32xf32> to vector<24x32xbf16>
    %85 = vector.extract_strided_slice %59 {offsets = [0, 0], sizes = [32, 128], strides = [1, 1]} : vector<128x128xbf16> to vector<32x128xbf16>
    %cst_46 = arith.constant dense<0.000000e+00> : vector<24x128xf32>
    %86 = tpu.matmul %84, %85, %cst_46 {dimension_numbers = #tpu.dot_dimension_numbers<[1], [0], [0], [1], [0, 0, 1, 1], [], []>} : vector<24x32xbf16>, vector<32x128xbf16>, vector<24x128xf32> -> vector<24x128xf32>
    %87 = arith.addf %61, %86 : vector<24x128xf32>
    %88 = vector.extract_strided_slice %60 {offsets = [0, 32], sizes = [24, 32], strides = [1, 1]} : vector<24x384xf32> to vector<24x32xf32>
    %89 = arith.truncf %88 : vector<24x32xf32> to vector<24x32xbf16>
    %90 = vector.extract_strided_slice %60 {offsets = [0, 160], sizes = [24, 32], strides = [1, 1]} : vector<24x384xf32> to vector<24x32xf32>
    %91 = arith.truncf %90 : vector<24x32xf32> to vector<24x32xbf16>
    %92 = vector.extract_strided_slice %60 {offsets = [0, 288], sizes = [24, 32], strides = [1, 1]} : vector<24x384xf32> to vector<24x32xf32>
    %93 = arith.truncf %92 : vector<24x32xf32> to vector<24x32xbf16>
    %cst_47 = arith.constant dense<0.000000e+00> : vector<24x24xf32>
    %94 = tpu.matmul %89, %91, %cst_47 {dimension_numbers = #tpu.dot_dimension_numbers<[1], [1], [0], [0], [0, 0, 1, 0], [], []>} : vector<24x32xbf16>, vector<24x32xbf16>, vector<24x24xf32> -> vector<24x24xf32>
    %cst_48 = arith.constant 0.176776692 : f32
    %95 = vector.broadcast %cst_48 : f32 to vector<24x24xf32>
    %96 = arith.mulf %94, %95 : vector<24x24xf32>
    %97 = arith.addf %96, %22 : vector<24x24xf32>
    %cst_49 = arith.constant dense<0xFF800000> : vector<24xf32>
    %98 = vector.multi_reduction <maximumf>, %97, %cst_49 [1] : vector<24x24xf32> to vector<24xf32>
    %99 = vector.shape_cast %98 : vector<24xf32> to vector<24x1xf32>
    %100 = vector.broadcast %99 : vector<24x1xf32> to vector<24x24xf32>
    %101 = arith.subf %97, %100 : vector<24x24xf32>
    %102 = math.exp %101 : vector<24x24xf32>
    %cst_50 = arith.constant dense<0.000000e+00> : vector<24xf32>
    %103 = vector.multi_reduction <add>, %102, %cst_50 [1] : vector<24x24xf32> to vector<24xf32>
    %104 = vector.shape_cast %103 : vector<24xf32> to vector<24x1xf32>
    %105 = tpu.reciprocal %104 {approx = true} : vector<24x1xf32> -> vector<24x1xf32>
    %106 = vector.broadcast %105 : vector<24x1xf32> to vector<24x24xf32>
    %107 = arith.mulf %102, %106 : vector<24x24xf32>
    %108 = arith.truncf %107 : vector<24x24xf32> to vector<24x24xbf16>
    %cst_51 = arith.constant dense<0.000000e+00> : vector<24x32xf32>
    %109 = tpu.matmul %108, %93, %cst_51 {dimension_numbers = #tpu.dot_dimension_numbers<[1], [0], [0], [1], [0, 0, 1, 1], [], []>} : vector<24x24xbf16>, vector<24x32xbf16>, vector<24x32xf32> -> vector<24x32xf32>
    %110 = arith.truncf %109 : vector<24x32xf32> to vector<24x32xbf16>
    %111 = vector.extract_strided_slice %59 {offsets = [32, 0], sizes = [32, 128], strides = [1, 1]} : vector<128x128xbf16> to vector<32x128xbf16>
    %cst_52 = arith.constant dense<0.000000e+00> : vector<24x128xf32>
    %112 = tpu.matmul %110, %111, %cst_52 {dimension_numbers = #tpu.dot_dimension_numbers<[1], [0], [0], [1], [0, 0, 1, 1], [], []>} : vector<24x32xbf16>, vector<32x128xbf16>, vector<24x128xf32> -> vector<24x128xf32>
    %113 = arith.addf %87, %112 : vector<24x128xf32>
    %114 = vector.extract_strided_slice %60 {offsets = [0, 64], sizes = [24, 32], strides = [1, 1]} : vector<24x384xf32> to vector<24x32xf32>
    %115 = arith.truncf %114 : vector<24x32xf32> to vector<24x32xbf16>
    %116 = vector.extract_strided_slice %60 {offsets = [0, 192], sizes = [24, 32], strides = [1, 1]} : vector<24x384xf32> to vector<24x32xf32>
    %117 = arith.truncf %116 : vector<24x32xf32> to vector<24x32xbf16>
    %118 = vector.extract_strided_slice %60 {offsets = [0, 320], sizes = [24, 32], strides = [1, 1]} : vector<24x384xf32> to vector<24x32xf32>
    %119 = arith.truncf %118 : vector<24x32xf32> to vector<24x32xbf16>
    %cst_53 = arith.constant dense<0.000000e+00> : vector<24x24xf32>
    %120 = tpu.matmul %115, %117, %cst_53 {dimension_numbers = #tpu.dot_dimension_numbers<[1], [1], [0], [0], [0, 0, 1, 0], [], []>} : vector<24x32xbf16>, vector<24x32xbf16>, vector<24x24xf32> -> vector<24x24xf32>
    %cst_54 = arith.constant 0.176776692 : f32
    %121 = vector.broadcast %cst_54 : f32 to vector<24x24xf32>
    %122 = arith.mulf %120, %121 : vector<24x24xf32>
    %123 = arith.addf %122, %22 : vector<24x24xf32>
    %cst_55 = arith.constant dense<0xFF800000> : vector<24xf32>
    %124 = vector.multi_reduction <maximumf>, %123, %cst_55 [1] : vector<24x24xf32> to vector<24xf32>
    %125 = vector.shape_cast %124 : vector<24xf32> to vector<24x1xf32>
    %126 = vector.broadcast %125 : vector<24x1xf32> to vector<24x24xf32>
    %127 = arith.subf %123, %126 : vector<24x24xf32>
    %128 = math.exp %127 : vector<24x24xf32>
    %cst_56 = arith.constant dense<0.000000e+00> : vector<24xf32>
    %129 = vector.multi_reduction <add>, %128, %cst_56 [1] : vector<24x24xf32> to vector<24xf32>
    %130 = vector.shape_cast %129 : vector<24xf32> to vector<24x1xf32>
    %131 = tpu.reciprocal %130 {approx = true} : vector<24x1xf32> -> vector<24x1xf32>
    %132 = vector.broadcast %131 : vector<24x1xf32> to vector<24x24xf32>
    %133 = arith.mulf %128, %132 : vector<24x24xf32>
    %134 = arith.truncf %133 : vector<24x24xf32> to vector<24x24xbf16>
    %cst_57 = arith.constant dense<0.000000e+00> : vector<24x32xf32>
    %135 = tpu.matmul %134, %119, %cst_57 {dimension_numbers = #tpu.dot_dimension_numbers<[1], [0], [0], [1], [0, 0, 1, 1], [], []>} : vector<24x24xbf16>, vector<24x32xbf16>, vector<24x32xf32> -> vector<24x32xf32>
    %136 = arith.truncf %135 : vector<24x32xf32> to vector<24x32xbf16>
    %137 = vector.extract_strided_slice %59 {offsets = [64, 0], sizes = [32, 128], strides = [1, 1]} : vector<128x128xbf16> to vector<32x128xbf16>
    %cst_58 = arith.constant dense<0.000000e+00> : vector<24x128xf32>
    %138 = tpu.matmul %136, %137, %cst_58 {dimension_numbers = #tpu.dot_dimension_numbers<[1], [0], [0], [1], [0, 0, 1, 1], [], []>} : vector<24x32xbf16>, vector<32x128xbf16>, vector<24x128xf32> -> vector<24x128xf32>
    %139 = arith.addf %113, %138 : vector<24x128xf32>
    %140 = vector.extract_strided_slice %60 {offsets = [0, 96], sizes = [24, 32], strides = [1, 1]} : vector<24x384xf32> to vector<24x32xf32>
    %141 = arith.truncf %140 : vector<24x32xf32> to vector<24x32xbf16>
    %142 = vector.extract_strided_slice %60 {offsets = [0, 224], sizes = [24, 32], strides = [1, 1]} : vector<24x384xf32> to vector<24x32xf32>
    %143 = arith.truncf %142 : vector<24x32xf32> to vector<24x32xbf16>
    %144 = vector.extract_strided_slice %60 {offsets = [0, 352], sizes = [24, 32], strides = [1, 1]} : vector<24x384xf32> to vector<24x32xf32>
    %145 = arith.truncf %144 : vector<24x32xf32> to vector<24x32xbf16>
    %cst_59 = arith.constant dense<0.000000e+00> : vector<24x24xf32>
    %146 = tpu.matmul %141, %143, %cst_59 {dimension_numbers = #tpu.dot_dimension_numbers<[1], [1], [0], [0], [0, 0, 1, 0], [], []>} : vector<24x32xbf16>, vector<24x32xbf16>, vector<24x24xf32> -> vector<24x24xf32>
    %cst_60 = arith.constant 0.176776692 : f32
    %147 = vector.broadcast %cst_60 : f32 to vector<24x24xf32>
    %148 = arith.mulf %146, %147 : vector<24x24xf32>
    %149 = arith.addf %148, %22 : vector<24x24xf32>
    %cst_61 = arith.constant dense<0xFF800000> : vector<24xf32>
    %150 = vector.multi_reduction <maximumf>, %149, %cst_61 [1] : vector<24x24xf32> to vector<24xf32>
    %151 = vector.shape_cast %150 : vector<24xf32> to vector<24x1xf32>
    %152 = vector.broadcast %151 : vector<24x1xf32> to vector<24x24xf32>
    %153 = arith.subf %149, %152 : vector<24x24xf32>
    %154 = math.exp %153 : vector<24x24xf32>
    %cst_62 = arith.constant dense<0.000000e+00> : vector<24xf32>
    %155 = vector.multi_reduction <add>, %154, %cst_62 [1] : vector<24x24xf32> to vector<24xf32>
    %156 = vector.shape_cast %155 : vector<24xf32> to vector<24x1xf32>
    %157 = tpu.reciprocal %156 {approx = true} : vector<24x1xf32> -> vector<24x1xf32>
    %158 = vector.broadcast %157 : vector<24x1xf32> to vector<24x24xf32>
    %159 = arith.mulf %154, %158 : vector<24x24xf32>
    %160 = arith.truncf %159 : vector<24x24xf32> to vector<24x24xbf16>
    %cst_63 = arith.constant dense<0.000000e+00> : vector<24x32xf32>
    %161 = tpu.matmul %160, %145, %cst_63 {dimension_numbers = #tpu.dot_dimension_numbers<[1], [0], [0], [1], [0, 0, 1, 1], [], []>} : vector<24x24xbf16>, vector<24x32xbf16>, vector<24x32xf32> -> vector<24x32xf32>
    %162 = arith.truncf %161 : vector<24x32xf32> to vector<24x32xbf16>
    %163 = vector.extract_strided_slice %59 {offsets = [96, 0], sizes = [32, 128], strides = [1, 1]} : vector<128x128xbf16> to vector<32x128xbf16>
    %cst_64 = arith.constant dense<0.000000e+00> : vector<24x128xf32>
    %164 = tpu.matmul %162, %163, %cst_64 {dimension_numbers = #tpu.dot_dimension_numbers<[1], [0], [0], [1], [0, 0, 1, 1], [], []>} : vector<24x32xbf16>, vector<32x128xbf16>, vector<24x128xf32> -> vector<24x128xf32>
    %165 = arith.addf %139, %164 : vector<24x128xf32>
    %166 = vector.extract_strided_slice %23 {offsets = [0, 0], sizes = [24, 128], strides = [1, 1]} : vector<48x128xf32> to vector<24x128xf32>
    %167 = arith.addf %166, %165 : vector<24x128xf32>
    %c0_65 = arith.constant 0 : index
    %c0_66 = arith.constant 0 : index
    %c0_67 = arith.constant 0 : index
    %168 = vector.load %arg11[%c0_65, %c0_66, %c0_67] : memref<2x1x128xf32, #tpu.memory_space<vmem>>, vector<1x1x128xf32>
    %169 = vector.shape_cast %168 : vector<1x1x128xf32> to vector<1x128xf32>
    %170 = vector.broadcast %169 : vector<1x128xf32> to vector<24x128xf32>
    %171 = arith.addf %167, %170 : vector<24x128xf32>
    %c0_68 = arith.constant 0 : index
    %c0_69 = arith.constant 0 : index
    %172 = vector.load %arg21[%c0_68, %c0_69] : memref<48x128xf32, #tpu.memory_space<vmem>>, vector<24x128xf32>
    tpu.vector_store %arg21[%c0_68, %c0_69], %171 {strides = array<i32>} : memref<48x128xf32, #tpu.memory_space<vmem>>, vector<24x128xf32>,
    %173 = vector.extract_strided_slice %57 {offsets = [24, 0], sizes = [24, 384], strides = [1, 1]} : vector<48x384xf32> to vector<24x384xf32>
    %cst_70 = arith.constant 0.000000e+00 : f32
    %174 = vector.broadcast %cst_70 : f32 to vector<24x128xf32>
    %175 = vector.extract_strided_slice %173 {offsets = [0, 0], sizes = [24, 32], strides = [1, 1]} : vector<24x384xf32> to vector<24x32xf32>
    %176 = arith.truncf %175 : vector<24x32xf32> to vector<24x32xbf16>
    %177 = vector.extract_strided_slice %173 {offsets = [0, 128], sizes = [24, 32], strides = [1, 1]} : vector<24x384xf32> to vector<24x32xf32>
    %178 = arith.truncf %177 : vector<24x32xf32> to vector<24x32xbf16>
    %179 = vector.extract_strided_slice %173 {offsets = [0, 256], sizes = [24, 32], strides = [1, 1]} : vector<24x384xf32> to vector<24x32xf32>
    %180 = arith.truncf %179 : vector<24x32xf32> to vector<24x32xbf16>
    %cst_71 = arith.constant dense<0.000000e+00> : vector<24x24xf32>
    %181 = tpu.matmul %176, %178, %cst_71 {dimension_numbers = #tpu.dot_dimension_numbers<[1], [1], [0], [0], [0, 0, 1, 0], [], []>} : vector<24x32xbf16>, vector<24x32xbf16>, vector<24x24xf32> -> vector<24x24xf32>
    %cst_72 = arith.constant 0.176776692 : f32
    %182 = vector.broadcast %cst_72 : f32 to vector<24x24xf32>
    %183 = arith.mulf %181, %182 : vector<24x24xf32>
    %184 = arith.addf %183, %22 : vector<24x24xf32>
    %cst_73 = arith.constant dense<0xFF800000> : vector<24xf32>
    %185 = vector.multi_reduction <maximumf>, %184, %cst_73 [1] : vector<24x24xf32> to vector<24xf32>
    %186 = vector.shape_cast %185 : vector<24xf32> to vector<24x1xf32>
    %187 = vector.broadcast %186 : vector<24x1xf32> to vector<24x24xf32>
    %188 = arith.subf %184, %187 : vector<24x24xf32>
    %189 = math.exp %188 : vector<24x24xf32>
    %cst_74 = arith.constant dense<0.000000e+00> : vector<24xf32>
    %190 = vector.multi_reduction <add>, %189, %cst_74 [1] : vector<24x24xf32> to vector<24xf32>
    %191 = vector.shape_cast %190 : vector<24xf32> to vector<24x1xf32>
    %192 = tpu.reciprocal %191 {approx = true} : vector<24x1xf32> -> vector<24x1xf32>
    %193 = vector.broadcast %192 : vector<24x1xf32> to vector<24x24xf32>
    %194 = arith.mulf %189, %193 : vector<24x24xf32>
    %195 = arith.truncf %194 : vector<24x24xf32> to vector<24x24xbf16>
    %cst_75 = arith.constant dense<0.000000e+00> : vector<24x32xf32>
    %196 = tpu.matmul %195, %180, %cst_75 {dimension_numbers = #tpu.dot_dimension_numbers<[1], [0], [0], [1], [0, 0, 1, 1], [], []>} : vector<24x24xbf16>, vector<24x32xbf16>, vector<24x32xf32> -> vector<24x32xf32>
    %197 = arith.truncf %196 : vector<24x32xf32> to vector<24x32xbf16>
    %198 = vector.extract_strided_slice %59 {offsets = [0, 0], sizes = [32, 128], strides = [1, 1]} : vector<128x128xbf16> to vector<32x128xbf16>
    %cst_76 = arith.constant dense<0.000000e+00> : vector<24x128xf32>
    %199 = tpu.matmul %197, %198, %cst_76 {dimension_numbers = #tpu.dot_dimension_numbers<[1], [0], [0], [1], [0, 0, 1, 1], [], []>} : vector<24x32xbf16>, vector<32x128xbf16>, vector<24x128xf32> -> vector<24x128xf32>
    %200 = arith.addf %174, %199 : vector<24x128xf32>
    %201 = vector.extract_strided_slice %173 {offsets = [0, 32], sizes = [24, 32], strides = [1, 1]} : vector<24x384xf32> to vector<24x32xf32>
    %202 = arith.truncf %201 : vector<24x32xf32> to vector<24x32xbf16>
    %203 = vector.extract_strided_slice %173 {offsets = [0, 160], sizes = [24, 32], strides = [1, 1]} : vector<24x384xf32> to vector<24x32xf32>
    %204 = arith.truncf %203 : vector<24x32xf32> to vector<24x32xbf16>
    %205 = vector.extract_strided_slice %173 {offsets = [0, 288], sizes = [24, 32], strides = [1, 1]} : vector<24x384xf32> to vector<24x32xf32>
    %206 = arith.truncf %205 : vector<24x32xf32> to vector<24x32xbf16>
    %cst_77 = arith.constant dense<0.000000e+00> : vector<24x24xf32>
    %207 = tpu.matmul %202, %204, %cst_77 {dimension_numbers = #tpu.dot_dimension_numbers<[1], [1], [0], [0], [0, 0, 1, 0], [], []>} : vector<24x32xbf16>, vector<24x32xbf16>, vector<24x24xf32> -> vector<24x24xf32>
    %cst_78 = arith.constant 0.176776692 : f32
    %208 = vector.broadcast %cst_78 : f32 to vector<24x24xf32>
    %209 = arith.mulf %207, %208 : vector<24x24xf32>
    %210 = arith.addf %209, %22 : vector<24x24xf32>
    %cst_79 = arith.constant dense<0xFF800000> : vector<24xf32>
    %211 = vector.multi_reduction <maximumf>, %210, %cst_79 [1] : vector<24x24xf32> to vector<24xf32>
    %212 = vector.shape_cast %211 : vector<24xf32> to vector<24x1xf32>
    %213 = vector.broadcast %212 : vector<24x1xf32> to vector<24x24xf32>
    %214 = arith.subf %210, %213 : vector<24x24xf32>
    %215 = math.exp %214 : vector<24x24xf32>
    %cst_80 = arith.constant dense<0.000000e+00> : vector<24xf32>
    %216 = vector.multi_reduction <add>, %215, %cst_80 [1] : vector<24x24xf32> to vector<24xf32>
    %217 = vector.shape_cast %216 : vector<24xf32> to vector<24x1xf32>
    %218 = tpu.reciprocal %217 {approx = true} : vector<24x1xf32> -> vector<24x1xf32>
    %219 = vector.broadcast %218 : vector<24x1xf32> to vector<24x24xf32>
    %220 = arith.mulf %215, %219 : vector<24x24xf32>
    %221 = arith.truncf %220 : vector<24x24xf32> to vector<24x24xbf16>
    %cst_81 = arith.constant dense<0.000000e+00> : vector<24x32xf32>
    %222 = tpu.matmul %221, %206, %cst_81 {dimension_numbers = #tpu.dot_dimension_numbers<[1], [0], [0], [1], [0, 0, 1, 1], [], []>} : vector<24x24xbf16>, vector<24x32xbf16>, vector<24x32xf32> -> vector<24x32xf32>
    %223 = arith.truncf %222 : vector<24x32xf32> to vector<24x32xbf16>
    %224 = vector.extract_strided_slice %59 {offsets = [32, 0], sizes = [32, 128], strides = [1, 1]} : vector<128x128xbf16> to vector<32x128xbf16>
    %cst_82 = arith.constant dense<0.000000e+00> : vector<24x128xf32>
    %225 = tpu.matmul %223, %224, %cst_82 {dimension_numbers = #tpu.dot_dimension_numbers<[1], [0], [0], [1], [0, 0, 1, 1], [], []>} : vector<24x32xbf16>, vector<32x128xbf16>, vector<24x128xf32> -> vector<24x128xf32>
    %226 = arith.addf %200, %225 : vector<24x128xf32>
    %227 = vector.extract_strided_slice %173 {offsets = [0, 64], sizes = [24, 32], strides = [1, 1]} : vector<24x384xf32> to vector<24x32xf32>
    %228 = arith.truncf %227 : vector<24x32xf32> to vector<24x32xbf16>
    %229 = vector.extract_strided_slice %173 {offsets = [0, 192], sizes = [24, 32], strides = [1, 1]} : vector<24x384xf32> to vector<24x32xf32>
    %230 = arith.truncf %229 : vector<24x32xf32> to vector<24x32xbf16>
    %231 = vector.extract_strided_slice %173 {offsets = [0, 320], sizes = [24, 32], strides = [1, 1]} : vector<24x384xf32> to vector<24x32xf32>
    %232 = arith.truncf %231 : vector<24x32xf32> to vector<24x32xbf16>
    %cst_83 = arith.constant dense<0.000000e+00> : vector<24x24xf32>
    %233 = tpu.matmul %228, %230, %cst_83 {dimension_numbers = #tpu.dot_dimension_numbers<[1], [1], [0], [0], [0, 0, 1, 0], [], []>} : vector<24x32xbf16>, vector<24x32xbf16>, vector<24x24xf32> -> vector<24x24xf32>
    %cst_84 = arith.constant 0.176776692 : f32
    %234 = vector.broadcast %cst_84 : f32 to vector<24x24xf32>
    %235 = arith.mulf %233, %234 : vector<24x24xf32>
    %236 = arith.addf %235, %22 : vector<24x24xf32>
    %cst_85 = arith.constant dense<0xFF800000> : vector<24xf32>
    %237 = vector.multi_reduction <maximumf>, %236, %cst_85 [1] : vector<24x24xf32> to vector<24xf32>
    %238 = vector.shape_cast %237 : vector<24xf32> to vector<24x1xf32>
    %239 = vector.broadcast %238 : vector<24x1xf32> to vector<24x24xf32>
    %240 = arith.subf %236, %239 : vector<24x24xf32>
    %241 = math.exp %240 : vector<24x24xf32>
    %cst_86 = arith.constant dense<0.000000e+00> : vector<24xf32>
    %242 = vector.multi_reduction <add>, %241, %cst_86 [1] : vector<24x24xf32> to vector<24xf32>
    %243 = vector.shape_cast %242 : vector<24xf32> to vector<24x1xf32>
    %244 = tpu.reciprocal %243 {approx = true} : vector<24x1xf32> -> vector<24x1xf32>
    %245 = vector.broadcast %244 : vector<24x1xf32> to vector<24x24xf32>
    %246 = arith.mulf %241, %245 : vector<24x24xf32>
    %247 = arith.truncf %246 : vector<24x24xf32> to vector<24x24xbf16>
    %cst_87 = arith.constant dense<0.000000e+00> : vector<24x32xf32>
    %248 = tpu.matmul %247, %232, %cst_87 {dimension_numbers = #tpu.dot_dimension_numbers<[1], [0], [0], [1], [0, 0, 1, 1], [], []>} : vector<24x24xbf16>, vector<24x32xbf16>, vector<24x32xf32> -> vector<24x32xf32>
    %249 = arith.truncf %248 : vector<24x32xf32> to vector<24x32xbf16>
    %250 = vector.extract_strided_slice %59 {offsets = [64, 0], sizes = [32, 128], strides = [1, 1]} : vector<128x128xbf16> to vector<32x128xbf16>
    %cst_88 = arith.constant dense<0.000000e+00> : vector<24x128xf32>
    %251 = tpu.matmul %249, %250, %cst_88 {dimension_numbers = #tpu.dot_dimension_numbers<[1], [0], [0], [1], [0, 0, 1, 1], [], []>} : vector<24x32xbf16>, vector<32x128xbf16>, vector<24x128xf32> -> vector<24x128xf32>
    %252 = arith.addf %226, %251 : vector<24x128xf32>
    %253 = vector.extract_strided_slice %173 {offsets = [0, 96], sizes = [24, 32], strides = [1, 1]} : vector<24x384xf32> to vector<24x32xf32>
    %254 = arith.truncf %253 : vector<24x32xf32> to vector<24x32xbf16>
    %255 = vector.extract_strided_slice %173 {offsets = [0, 224], sizes = [24, 32], strides = [1, 1]} : vector<24x384xf32> to vector<24x32xf32>
    %256 = arith.truncf %255 : vector<24x32xf32> to vector<24x32xbf16>
    %257 = vector.extract_strided_slice %173 {offsets = [0, 352], sizes = [24, 32], strides = [1, 1]} : vector<24x384xf32> to vector<24x32xf32>
    %258 = arith.truncf %257 : vector<24x32xf32> to vector<24x32xbf16>
    %cst_89 = arith.constant dense<0.000000e+00> : vector<24x24xf32>
    %259 = tpu.matmul %254, %256, %cst_89 {dimension_numbers = #tpu.dot_dimension_numbers<[1], [1], [0], [0], [0, 0, 1, 0], [], []>} : vector<24x32xbf16>, vector<24x32xbf16>, vector<24x24xf32> -> vector<24x24xf32>
    %cst_90 = arith.constant 0.176776692 : f32
    %260 = vector.broadcast %cst_90 : f32 to vector<24x24xf32>
    %261 = arith.mulf %259, %260 : vector<24x24xf32>
    %262 = arith.addf %261, %22 : vector<24x24xf32>
    %cst_91 = arith.constant dense<0xFF800000> : vector<24xf32>
    %263 = vector.multi_reduction <maximumf>, %262, %cst_91 [1] : vector<24x24xf32> to vector<24xf32>
    %264 = vector.shape_cast %263 : vector<24xf32> to vector<24x1xf32>
    %265 = vector.broadcast %264 : vector<24x1xf32> to vector<24x24xf32>
    %266 = arith.subf %262, %265 : vector<24x24xf32>
    %267 = math.exp %266 : vector<24x24xf32>
    %cst_92 = arith.constant dense<0.000000e+00> : vector<24xf32>
    %268 = vector.multi_reduction <add>, %267, %cst_92 [1] : vector<24x24xf32> to vector<24xf32>
    %269 = vector.shape_cast %268 : vector<24xf32> to vector<24x1xf32>
    %270 = tpu.reciprocal %269 {approx = true} : vector<24x1xf32> -> vector<24x1xf32>
    %271 = vector.broadcast %270 : vector<24x1xf32> to vector<24x24xf32>
    %272 = arith.mulf %267, %271 : vector<24x24xf32>
    %273 = arith.truncf %272 : vector<24x24xf32> to vector<24x24xbf16>
    %cst_93 = arith.constant dense<0.000000e+00> : vector<24x32xf32>
    %274 = tpu.matmul %273, %258, %cst_93 {dimension_numbers = #tpu.dot_dimension_numbers<[1], [0], [0], [1], [0, 0, 1, 1], [], []>} : vector<24x24xbf16>, vector<24x32xbf16>, vector<24x32xf32> -> vector<24x32xf32>
    %275 = arith.truncf %274 : vector<24x32xf32> to vector<24x32xbf16>
    %276 = vector.extract_strided_slice %59 {offsets = [96, 0], sizes = [32, 128], strides = [1, 1]} : vector<128x128xbf16> to vector<32x128xbf16>
    %cst_94 = arith.constant dense<0.000000e+00> : vector<24x128xf32>
    %277 = tpu.matmul %275, %276, %cst_94 {dimension_numbers = #tpu.dot_dimension_numbers<[1], [0], [0], [1], [0, 0, 1, 1], [], []>} : vector<24x32xbf16>, vector<32x128xbf16>, vector<24x128xf32> -> vector<24x128xf32>
    %278 = arith.addf %252, %277 : vector<24x128xf32>
    %279 = vector.extract_strided_slice %23 {offsets = [24, 0], sizes = [24, 128], strides = [1, 1]} : vector<48x128xf32> to vector<24x128xf32>
    %280 = arith.addf %279, %278 : vector<24x128xf32>
    %c0_95 = arith.constant 0 : index
    %c0_96 = arith.constant 0 : index
    %c0_97 = arith.constant 0 : index
    %281 = vector.load %arg11[%c0_95, %c0_96, %c0_97] : memref<2x1x128xf32, #tpu.memory_space<vmem>>, vector<1x1x128xf32>
    %282 = vector.shape_cast %281 : vector<1x1x128xf32> to vector<1x128xf32>
    %283 = vector.broadcast %282 : vector<1x128xf32> to vector<24x128xf32>
    %284 = arith.addf %280, %283 : vector<24x128xf32>
    %c24_98 = arith.constant 24 : index
    %c0_99 = arith.constant 0 : index
    %285 = vector.load %arg21[%c24_98, %c0_99] : memref<48x128xf32, #tpu.memory_space<vmem>>, vector<24x128xf32>
    tpu.vector_store %arg21[%c24_98, %c0_99], %284 {strides = array<i32>} : memref<48x128xf32, #tpu.memory_space<vmem>>, vector<24x128xf32>,
    %c0_100 = arith.constant 0 : index
    %c0_101 = arith.constant 0 : index
    %286 = vector.load %arg21[%c0_100, %c0_101] : memref<48x128xf32, #tpu.memory_space<vmem>>, vector<48x128xf32>
    %c0_102 = arith.constant 0 : index
    %c0_103 = arith.constant 0 : index
    %c0_104 = arith.constant 0 : index
    %287 = vector.load %arg12[%c0_102, %c0_103, %c0_104] : memref<2x1x128xf32, #tpu.memory_space<vmem>>, vector<1x1x128xf32>
    %288 = vector.shape_cast %287 : vector<1x1x128xf32> to vector<1x128xf32>
    %c0_105 = arith.constant 0 : index
    %c0_106 = arith.constant 0 : index
    %c0_107 = arith.constant 0 : index
    %289 = vector.load %arg13[%c0_105, %c0_106, %c0_107] : memref<2x1x128xf32, #tpu.memory_space<vmem>>, vector<1x1x128xf32>
    %290 = vector.shape_cast %289 : vector<1x1x128xf32> to vector<1x128xf32>
    %cst_108 = arith.constant dense<0.000000e+00> : vector<48xf32>
    %291 = vector.multi_reduction <add>, %286, %cst_108 [1] : vector<48x128xf32> to vector<48xf32>
    %292 = vector.shape_cast %291 : vector<48xf32> to vector<48x1xf32>
    %cst_109 = arith.constant 1.280000e+02 : f32
    %293 = vector.broadcast %cst_109 : f32 to vector<48x1xf32>
    %294 = arith.divf %292, %293 : vector<48x1xf32>
    %295 = vector.broadcast %294 : vector<48x1xf32> to vector<48x128xf32>
    %296 = arith.subf %286, %295 : vector<48x128xf32>
    %297 = arith.mulf %296, %296 : vector<48x128xf32>
    %cst_110 = arith.constant dense<0.000000e+00> : vector<48xf32>
    %298 = vector.multi_reduction <add>, %297, %cst_110 [1] : vector<48x128xf32> to vector<48xf32>
    %299 = vector.shape_cast %298 : vector<48xf32> to vector<48x1xf32>
    %cst_111 = arith.constant 1.280000e+02 : f32
    %300 = vector.broadcast %cst_111 : f32 to vector<48x1xf32>
    %301 = arith.divf %299, %300 : vector<48x1xf32>
    %302 = vector.broadcast %294 : vector<48x1xf32> to vector<48x128xf32>
    %303 = arith.subf %286, %302 : vector<48x128xf32>
    %cst_112 = arith.constant 9.99999997E-7 : f32
    %304 = vector.broadcast %cst_112 : f32 to vector<48x1xf32>
    %305 = arith.addf %301, %304 : vector<48x1xf32>
    %306 = math.rsqrt %305 : vector<48x1xf32>
    %307 = vector.broadcast %306 : vector<48x1xf32> to vector<48x128xf32>
    %308 = arith.mulf %303, %307 : vector<48x128xf32>
    %309 = vector.broadcast %288 : vector<1x128xf32> to vector<48x128xf32>
    %310 = arith.mulf %308, %309 : vector<48x128xf32>
    %311 = vector.broadcast %290 : vector<1x128xf32> to vector<48x128xf32>
    %312 = arith.addf %310, %311 : vector<48x128xf32>
    %313 = arith.truncf %312 : vector<48x128xf32> to vector<48x128xbf16>
    %c0_113 = arith.constant 0 : index
    %c0_114 = arith.constant 0 : index
    %c0_115 = arith.constant 0 : index
    %314 = vector.load %arg14[%c0_113, %c0_114, %c0_115] : memref<2x128x512xbf16, #tpu.memory_space<vmem>>, vector<1x128x512xbf16>
    %315 = vector.shape_cast %314 : vector<1x128x512xbf16> to vector<128x512xbf16>
    %cst_116 = arith.constant dense<0.000000e+00> : vector<48x512xf32>
    %316 = tpu.matmul %313, %315, %cst_116 {dimension_numbers = #tpu.dot_dimension_numbers<[1], [0], [0], [1], [0, 0, 1, 1], [], []>} : vector<48x128xbf16>, vector<128x512xbf16>, vector<48x512xf32> -> vector<48x512xf32>
    %c0_117 = arith.constant 0 : index
    %c0_118 = arith.constant 0 : index
    %c0_119 = arith.constant 0 : index
    %317 = vector.load %arg15[%c0_117, %c0_118, %c0_119] : memref<2x1x512xf32, #tpu.memory_space<vmem>>, vector<1x1x512xf32>
    %318 = vector.shape_cast %317 : vector<1x1x512xf32> to vector<1x512xf32>
    %319 = vector.broadcast %318 : vector<1x512xf32> to vector<48x512xf32>
    %320 = arith.addf %316, %319 : vector<48x512xf32>
    %cst_120 = arith.constant 5.000000e-01 : f32
    %321 = vector.broadcast %cst_120 : f32 to vector<48x512xf32>
    %322 = arith.mulf %321, %320 : vector<48x512xf32>
    %cst_121 = arith.constant 4.471500e-02 : f32
    %323 = vector.broadcast %cst_121 : f32 to vector<48x512xf32>
    %324 = arith.mulf %323, %320 : vector<48x512xf32>
    %325 = arith.mulf %324, %320 : vector<48x512xf32>
    %326 = arith.mulf %325, %320 : vector<48x512xf32>
    %327 = arith.addf %320, %326 : vector<48x512xf32>
    %cst_122 = arith.constant 0.797884583 : f32
    %328 = vector.broadcast %cst_122 : f32 to vector<48x512xf32>
    %329 = arith.mulf %328, %327 : vector<48x512xf32>
    %330 = math.tanh %329 : vector<48x512xf32>
    %cst_123 = arith.constant 1.000000e+00 : f32
    %331 = vector.broadcast %cst_123 : f32 to vector<48x512xf32>
    %332 = arith.addf %331, %330 : vector<48x512xf32>
    %333 = arith.mulf %322, %332 : vector<48x512xf32>
    %334 = arith.truncf %333 : vector<48x512xf32> to vector<48x512xbf16>
    %c0_124 = arith.constant 0 : index
    %c0_125 = arith.constant 0 : index
    %c0_126 = arith.constant 0 : index
    %335 = vector.load %arg16[%c0_124, %c0_125, %c0_126] : memref<2x512x128xbf16, #tpu.memory_space<vmem>>, vector<1x512x128xbf16>
    %336 = vector.shape_cast %335 : vector<1x512x128xbf16> to vector<512x128xbf16>
    %cst_127 = arith.constant dense<0.000000e+00> : vector<48x128xf32>
    %337 = tpu.matmul %334, %336, %cst_127 {dimension_numbers = #tpu.dot_dimension_numbers<[1], [0], [0], [1], [0, 0, 1, 1], [], []>} : vector<48x512xbf16>, vector<512x128xbf16>, vector<48x128xf32> -> vector<48x128xf32>
    %338 = arith.addf %286, %337 : vector<48x128xf32>
    %c0_128 = arith.constant 0 : index
    %c0_129 = arith.constant 0 : index
    %c0_130 = arith.constant 0 : index
    %339 = vector.load %arg17[%c0_128, %c0_129, %c0_130] : memref<2x1x128xf32, #tpu.memory_space<vmem>>, vector<1x1x128xf32>
    %340 = vector.shape_cast %339 : vector<1x1x128xf32> to vector<1x128xf32>
    %341 = vector.broadcast %340 : vector<1x128xf32> to vector<48x128xf32>
    %342 = arith.addf %338, %341 : vector<48x128xf32>
    %c0_131 = arith.constant 0 : index
    %c0_132 = arith.constant 0 : index
    %343 = vector.load %arg21[%c0_131, %c0_132] : memref<48x128xf32, #tpu.memory_space<vmem>>, vector<48x128xf32>
    tpu.vector_store %arg21[%c0_131, %c0_132], %342 {strides = array<i32>} : memref<48x128xf32, #tpu.memory_space<vmem>>, vector<48x128xf32>,
    %c0_133 = arith.constant 0 : index
    %c0_134 = arith.constant 0 : index
    %344 = vector.load %arg21[%c0_133, %c0_134] : memref<48x128xf32, #tpu.memory_space<vmem>>, vector<48x128xf32>
    %c1 = arith.constant 1 : index
    %c0_135 = arith.constant 0 : index
    %c0_136 = arith.constant 0 : index
    %345 = vector.load %arg6[%c1, %c0_135, %c0_136] : memref<2x1x128xf32, #tpu.memory_space<vmem>>, vector<1x1x128xf32>
    %346 = vector.shape_cast %345 : vector<1x1x128xf32> to vector<1x128xf32>
    %c1_137 = arith.constant 1 : index
    %c0_138 = arith.constant 0 : index
    %c0_139 = arith.constant 0 : index
    %347 = vector.load %arg7[%c1_137, %c0_138, %c0_139] : memref<2x1x128xf32, #tpu.memory_space<vmem>>, vector<1x1x128xf32>
    %348 = vector.shape_cast %347 : vector<1x1x128xf32> to vector<1x128xf32>
    %cst_140 = arith.constant dense<0.000000e+00> : vector<48xf32>
    %349 = vector.multi_reduction <add>, %344, %cst_140 [1] : vector<48x128xf32> to vector<48xf32>
    %350 = vector.shape_cast %349 : vector<48xf32> to vector<48x1xf32>
    %cst_141 = arith.constant 1.280000e+02 : f32
    %351 = vector.broadcast %cst_141 : f32 to vector<48x1xf32>
    %352 = arith.divf %350, %351 : vector<48x1xf32>
    %353 = vector.broadcast %352 : vector<48x1xf32> to vector<48x128xf32>
    %354 = arith.subf %344, %353 : vector<48x128xf32>
    %355 = arith.mulf %354, %354 : vector<48x128xf32>
    %cst_142 = arith.constant dense<0.000000e+00> : vector<48xf32>
    %356 = vector.multi_reduction <add>, %355, %cst_142 [1] : vector<48x128xf32> to vector<48xf32>
    %357 = vector.shape_cast %356 : vector<48xf32> to vector<48x1xf32>
    %cst_143 = arith.constant 1.280000e+02 : f32
    %358 = vector.broadcast %cst_143 : f32 to vector<48x1xf32>
    %359 = arith.divf %357, %358 : vector<48x1xf32>
    %360 = vector.broadcast %352 : vector<48x1xf32> to vector<48x128xf32>
    %361 = arith.subf %344, %360 : vector<48x128xf32>
    %cst_144 = arith.constant 9.99999997E-7 : f32
    %362 = vector.broadcast %cst_144 : f32 to vector<48x1xf32>
    %363 = arith.addf %359, %362 : vector<48x1xf32>
    %364 = math.rsqrt %363 : vector<48x1xf32>
    %365 = vector.broadcast %364 : vector<48x1xf32> to vector<48x128xf32>
    %366 = arith.mulf %361, %365 : vector<48x128xf32>
    %367 = vector.broadcast %346 : vector<1x128xf32> to vector<48x128xf32>
    %368 = arith.mulf %366, %367 : vector<48x128xf32>
    %369 = vector.broadcast %348 : vector<1x128xf32> to vector<48x128xf32>
    %370 = arith.addf %368, %369 : vector<48x128xf32>
    %371 = arith.truncf %370 : vector<48x128xf32> to vector<48x128xbf16>
    %c1_145 = arith.constant 1 : index
    %c0_146 = arith.constant 0 : index
    %c0_147 = arith.constant 0 : index
    %372 = vector.load %arg8[%c1_145, %c0_146, %c0_147] : memref<2x128x384xbf16, #tpu.memory_space<vmem>>, vector<1x128x384xbf16>
    %373 = vector.shape_cast %372 : vector<1x128x384xbf16> to vector<128x384xbf16>
    %cst_148 = arith.constant dense<0.000000e+00> : vector<48x384xf32>
    %374 = tpu.matmul %371, %373, %cst_148 {dimension_numbers = #tpu.dot_dimension_numbers<[1], [0], [0], [1], [0, 0, 1, 1], [], []>} : vector<48x128xbf16>, vector<128x384xbf16>, vector<48x384xf32> -> vector<48x384xf32>
    %c1_149 = arith.constant 1 : index
    %c0_150 = arith.constant 0 : index
    %c0_151 = arith.constant 0 : index
    %375 = vector.load %arg9[%c1_149, %c0_150, %c0_151] : memref<2x1x384xf32, #tpu.memory_space<vmem>>, vector<1x1x384xf32>
    %376 = vector.shape_cast %375 : vector<1x1x384xf32> to vector<1x384xf32>
    %377 = vector.broadcast %376 : vector<1x384xf32> to vector<48x384xf32>
    %378 = arith.addf %374, %377 : vector<48x384xf32>
    %c1_152 = arith.constant 1 : index
    %c0_153 = arith.constant 0 : index
    %c0_154 = arith.constant 0 : index
    %379 = vector.load %arg10[%c1_152, %c0_153, %c0_154] : memref<2x128x128xbf16, #tpu.memory_space<vmem>>, vector<1x128x128xbf16>
    %380 = vector.shape_cast %379 : vector<1x128x128xbf16> to vector<128x128xbf16>
    %381 = vector.extract_strided_slice %378 {offsets = [0, 0], sizes = [24, 384], strides = [1, 1]} : vector<48x384xf32> to vector<24x384xf32>
    %cst_155 = arith.constant 0.000000e+00 : f32
    %382 = vector.broadcast %cst_155 : f32 to vector<24x128xf32>
    %383 = vector.extract_strided_slice %381 {offsets = [0, 0], sizes = [24, 32], strides = [1, 1]} : vector<24x384xf32> to vector<24x32xf32>
    %384 = arith.truncf %383 : vector<24x32xf32> to vector<24x32xbf16>
    %385 = vector.extract_strided_slice %381 {offsets = [0, 128], sizes = [24, 32], strides = [1, 1]} : vector<24x384xf32> to vector<24x32xf32>
    %386 = arith.truncf %385 : vector<24x32xf32> to vector<24x32xbf16>
    %387 = vector.extract_strided_slice %381 {offsets = [0, 256], sizes = [24, 32], strides = [1, 1]} : vector<24x384xf32> to vector<24x32xf32>
    %388 = arith.truncf %387 : vector<24x32xf32> to vector<24x32xbf16>
    %cst_156 = arith.constant dense<0.000000e+00> : vector<24x24xf32>
    %389 = tpu.matmul %384, %386, %cst_156 {dimension_numbers = #tpu.dot_dimension_numbers<[1], [1], [0], [0], [0, 0, 1, 0], [], []>} : vector<24x32xbf16>, vector<24x32xbf16>, vector<24x24xf32> -> vector<24x24xf32>
    %cst_157 = arith.constant 0.176776692 : f32
    %390 = vector.broadcast %cst_157 : f32 to vector<24x24xf32>
    %391 = arith.mulf %389, %390 : vector<24x24xf32>
    %392 = arith.addf %391, %22 : vector<24x24xf32>
    %cst_158 = arith.constant dense<0xFF800000> : vector<24xf32>
    %393 = vector.multi_reduction <maximumf>, %392, %cst_158 [1] : vector<24x24xf32> to vector<24xf32>
    %394 = vector.shape_cast %393 : vector<24xf32> to vector<24x1xf32>
    %395 = vector.broadcast %394 : vector<24x1xf32> to vector<24x24xf32>
    %396 = arith.subf %392, %395 : vector<24x24xf32>
    %397 = math.exp %396 : vector<24x24xf32>
    %cst_159 = arith.constant dense<0.000000e+00> : vector<24xf32>
    %398 = vector.multi_reduction <add>, %397, %cst_159 [1] : vector<24x24xf32> to vector<24xf32>
    %399 = vector.shape_cast %398 : vector<24xf32> to vector<24x1xf32>
    %400 = tpu.reciprocal %399 {approx = true} : vector<24x1xf32> -> vector<24x1xf32>
    %401 = vector.broadcast %400 : vector<24x1xf32> to vector<24x24xf32>
    %402 = arith.mulf %397, %401 : vector<24x24xf32>
    %403 = arith.truncf %402 : vector<24x24xf32> to vector<24x24xbf16>
    %cst_160 = arith.constant dense<0.000000e+00> : vector<24x32xf32>
    %404 = tpu.matmul %403, %388, %cst_160 {dimension_numbers = #tpu.dot_dimension_numbers<[1], [0], [0], [1], [0, 0, 1, 1], [], []>} : vector<24x24xbf16>, vector<24x32xbf16>, vector<24x32xf32> -> vector<24x32xf32>
    %405 = arith.truncf %404 : vector<24x32xf32> to vector<24x32xbf16>
    %406 = vector.extract_strided_slice %380 {offsets = [0, 0], sizes = [32, 128], strides = [1, 1]} : vector<128x128xbf16> to vector<32x128xbf16>
    %cst_161 = arith.constant dense<0.000000e+00> : vector<24x128xf32>
    %407 = tpu.matmul %405, %406, %cst_161 {dimension_numbers = #tpu.dot_dimension_numbers<[1], [0], [0], [1], [0, 0, 1, 1], [], []>} : vector<24x32xbf16>, vector<32x128xbf16>, vector<24x128xf32> -> vector<24x128xf32>
    %408 = arith.addf %382, %407 : vector<24x128xf32>
    %409 = vector.extract_strided_slice %381 {offsets = [0, 32], sizes = [24, 32], strides = [1, 1]} : vector<24x384xf32> to vector<24x32xf32>
    %410 = arith.truncf %409 : vector<24x32xf32> to vector<24x32xbf16>
    %411 = vector.extract_strided_slice %381 {offsets = [0, 160], sizes = [24, 32], strides = [1, 1]} : vector<24x384xf32> to vector<24x32xf32>
    %412 = arith.truncf %411 : vector<24x32xf32> to vector<24x32xbf16>
    %413 = vector.extract_strided_slice %381 {offsets = [0, 288], sizes = [24, 32], strides = [1, 1]} : vector<24x384xf32> to vector<24x32xf32>
    %414 = arith.truncf %413 : vector<24x32xf32> to vector<24x32xbf16>
    %cst_162 = arith.constant dense<0.000000e+00> : vector<24x24xf32>
    %415 = tpu.matmul %410, %412, %cst_162 {dimension_numbers = #tpu.dot_dimension_numbers<[1], [1], [0], [0], [0, 0, 1, 0], [], []>} : vector<24x32xbf16>, vector<24x32xbf16>, vector<24x24xf32> -> vector<24x24xf32>
    %cst_163 = arith.constant 0.176776692 : f32
    %416 = vector.broadcast %cst_163 : f32 to vector<24x24xf32>
    %417 = arith.mulf %415, %416 : vector<24x24xf32>
    %418 = arith.addf %417, %22 : vector<24x24xf32>
    %cst_164 = arith.constant dense<0xFF800000> : vector<24xf32>
    %419 = vector.multi_reduction <maximumf>, %418, %cst_164 [1] : vector<24x24xf32> to vector<24xf32>
    %420 = vector.shape_cast %419 : vector<24xf32> to vector<24x1xf32>
    %421 = vector.broadcast %420 : vector<24x1xf32> to vector<24x24xf32>
    %422 = arith.subf %418, %421 : vector<24x24xf32>
    %423 = math.exp %422 : vector<24x24xf32>
    %cst_165 = arith.constant dense<0.000000e+00> : vector<24xf32>
    %424 = vector.multi_reduction <add>, %423, %cst_165 [1] : vector<24x24xf32> to vector<24xf32>
    %425 = vector.shape_cast %424 : vector<24xf32> to vector<24x1xf32>
    %426 = tpu.reciprocal %425 {approx = true} : vector<24x1xf32> -> vector<24x1xf32>
    %427 = vector.broadcast %426 : vector<24x1xf32> to vector<24x24xf32>
    %428 = arith.mulf %423, %427 : vector<24x24xf32>
    %429 = arith.truncf %428 : vector<24x24xf32> to vector<24x24xbf16>
    %cst_166 = arith.constant dense<0.000000e+00> : vector<24x32xf32>
    %430 = tpu.matmul %429, %414, %cst_166 {dimension_numbers = #tpu.dot_dimension_numbers<[1], [0], [0], [1], [0, 0, 1, 1], [], []>} : vector<24x24xbf16>, vector<24x32xbf16>, vector<24x32xf32> -> vector<24x32xf32>
    %431 = arith.truncf %430 : vector<24x32xf32> to vector<24x32xbf16>
    %432 = vector.extract_strided_slice %380 {offsets = [32, 0], sizes = [32, 128], strides = [1, 1]} : vector<128x128xbf16> to vector<32x128xbf16>
    %cst_167 = arith.constant dense<0.000000e+00> : vector<24x128xf32>
    %433 = tpu.matmul %431, %432, %cst_167 {dimension_numbers = #tpu.dot_dimension_numbers<[1], [0], [0], [1], [0, 0, 1, 1], [], []>} : vector<24x32xbf16>, vector<32x128xbf16>, vector<24x128xf32> -> vector<24x128xf32>
    %434 = arith.addf %408, %433 : vector<24x128xf32>
    %435 = vector.extract_strided_slice %381 {offsets = [0, 64], sizes = [24, 32], strides = [1, 1]} : vector<24x384xf32> to vector<24x32xf32>
    %436 = arith.truncf %435 : vector<24x32xf32> to vector<24x32xbf16>
    %437 = vector.extract_strided_slice %381 {offsets = [0, 192], sizes = [24, 32], strides = [1, 1]} : vector<24x384xf32> to vector<24x32xf32>
    %438 = arith.truncf %437 : vector<24x32xf32> to vector<24x32xbf16>
    %439 = vector.extract_strided_slice %381 {offsets = [0, 320], sizes = [24, 32], strides = [1, 1]} : vector<24x384xf32> to vector<24x32xf32>
    %440 = arith.truncf %439 : vector<24x32xf32> to vector<24x32xbf16>
    %cst_168 = arith.constant dense<0.000000e+00> : vector<24x24xf32>
    %441 = tpu.matmul %436, %438, %cst_168 {dimension_numbers = #tpu.dot_dimension_numbers<[1], [1], [0], [0], [0, 0, 1, 0], [], []>} : vector<24x32xbf16>, vector<24x32xbf16>, vector<24x24xf32> -> vector<24x24xf32>
    %cst_169 = arith.constant 0.176776692 : f32
    %442 = vector.broadcast %cst_169 : f32 to vector<24x24xf32>
    %443 = arith.mulf %441, %442 : vector<24x24xf32>
    %444 = arith.addf %443, %22 : vector<24x24xf32>
    %cst_170 = arith.constant dense<0xFF800000> : vector<24xf32>
    %445 = vector.multi_reduction <maximumf>, %444, %cst_170 [1] : vector<24x24xf32> to vector<24xf32>
    %446 = vector.shape_cast %445 : vector<24xf32> to vector<24x1xf32>
    %447 = vector.broadcast %446 : vector<24x1xf32> to vector<24x24xf32>
    %448 = arith.subf %444, %447 : vector<24x24xf32>
    %449 = math.exp %448 : vector<24x24xf32>
    %cst_171 = arith.constant dense<0.000000e+00> : vector<24xf32>
    %450 = vector.multi_reduction <add>, %449, %cst_171 [1] : vector<24x24xf32> to vector<24xf32>
    %451 = vector.shape_cast %450 : vector<24xf32> to vector<24x1xf32>
    %452 = tpu.reciprocal %451 {approx = true} : vector<24x1xf32> -> vector<24x1xf32>
    %453 = vector.broadcast %452 : vector<24x1xf32> to vector<24x24xf32>
    %454 = arith.mulf %449, %453 : vector<24x24xf32>
    %455 = arith.truncf %454 : vector<24x24xf32> to vector<24x24xbf16>
    %cst_172 = arith.constant dense<0.000000e+00> : vector<24x32xf32>
    %456 = tpu.matmul %455, %440, %cst_172 {dimension_numbers = #tpu.dot_dimension_numbers<[1], [0], [0], [1], [0, 0, 1, 1], [], []>} : vector<24x24xbf16>, vector<24x32xbf16>, vector<24x32xf32> -> vector<24x32xf32>
    %457 = arith.truncf %456 : vector<24x32xf32> to vector<24x32xbf16>
    %458 = vector.extract_strided_slice %380 {offsets = [64, 0], sizes = [32, 128], strides = [1, 1]} : vector<128x128xbf16> to vector<32x128xbf16>
    %cst_173 = arith.constant dense<0.000000e+00> : vector<24x128xf32>
    %459 = tpu.matmul %457, %458, %cst_173 {dimension_numbers = #tpu.dot_dimension_numbers<[1], [0], [0], [1], [0, 0, 1, 1], [], []>} : vector<24x32xbf16>, vector<32x128xbf16>, vector<24x128xf32> -> vector<24x128xf32>
    %460 = arith.addf %434, %459 : vector<24x128xf32>
    %461 = vector.extract_strided_slice %381 {offsets = [0, 96], sizes = [24, 32], strides = [1, 1]} : vector<24x384xf32> to vector<24x32xf32>
    %462 = arith.truncf %461 : vector<24x32xf32> to vector<24x32xbf16>
    %463 = vector.extract_strided_slice %381 {offsets = [0, 224], sizes = [24, 32], strides = [1, 1]} : vector<24x384xf32> to vector<24x32xf32>
    %464 = arith.truncf %463 : vector<24x32xf32> to vector<24x32xbf16>
    %465 = vector.extract_strided_slice %381 {offsets = [0, 352], sizes = [24, 32], strides = [1, 1]} : vector<24x384xf32> to vector<24x32xf32>
    %466 = arith.truncf %465 : vector<24x32xf32> to vector<24x32xbf16>
    %cst_174 = arith.constant dense<0.000000e+00> : vector<24x24xf32>
    %467 = tpu.matmul %462, %464, %cst_174 {dimension_numbers = #tpu.dot_dimension_numbers<[1], [1], [0], [0], [0, 0, 1, 0], [], []>} : vector<24x32xbf16>, vector<24x32xbf16>, vector<24x24xf32> -> vector<24x24xf32>
    %cst_175 = arith.constant 0.176776692 : f32
    %468 = vector.broadcast %cst_175 : f32 to vector<24x24xf32>
    %469 = arith.mulf %467, %468 : vector<24x24xf32>
    %470 = arith.addf %469, %22 : vector<24x24xf32>
    %cst_176 = arith.constant dense<0xFF800000> : vector<24xf32>
    %471 = vector.multi_reduction <maximumf>, %470, %cst_176 [1] : vector<24x24xf32> to vector<24xf32>
    %472 = vector.shape_cast %471 : vector<24xf32> to vector<24x1xf32>
    %473 = vector.broadcast %472 : vector<24x1xf32> to vector<24x24xf32>
    %474 = arith.subf %470, %473 : vector<24x24xf32>
    %475 = math.exp %474 : vector<24x24xf32>
    %cst_177 = arith.constant dense<0.000000e+00> : vector<24xf32>
    %476 = vector.multi_reduction <add>, %475, %cst_177 [1] : vector<24x24xf32> to vector<24xf32>
    %477 = vector.shape_cast %476 : vector<24xf32> to vector<24x1xf32>
    %478 = tpu.reciprocal %477 {approx = true} : vector<24x1xf32> -> vector<24x1xf32>
    %479 = vector.broadcast %478 : vector<24x1xf32> to vector<24x24xf32>
    %480 = arith.mulf %475, %479 : vector<24x24xf32>
    %481 = arith.truncf %480 : vector<24x24xf32> to vector<24x24xbf16>
    %cst_178 = arith.constant dense<0.000000e+00> : vector<24x32xf32>
    %482 = tpu.matmul %481, %466, %cst_178 {dimension_numbers = #tpu.dot_dimension_numbers<[1], [0], [0], [1], [0, 0, 1, 1], [], []>} : vector<24x24xbf16>, vector<24x32xbf16>, vector<24x32xf32> -> vector<24x32xf32>
    %483 = arith.truncf %482 : vector<24x32xf32> to vector<24x32xbf16>
    %484 = vector.extract_strided_slice %380 {offsets = [96, 0], sizes = [32, 128], strides = [1, 1]} : vector<128x128xbf16> to vector<32x128xbf16>
    %cst_179 = arith.constant dense<0.000000e+00> : vector<24x128xf32>
    %485 = tpu.matmul %483, %484, %cst_179 {dimension_numbers = #tpu.dot_dimension_numbers<[1], [0], [0], [1], [0, 0, 1, 1], [], []>} : vector<24x32xbf16>, vector<32x128xbf16>, vector<24x128xf32> -> vector<24x128xf32>
    %486 = arith.addf %460, %485 : vector<24x128xf32>
    %487 = vector.extract_strided_slice %344 {offsets = [0, 0], sizes = [24, 128], strides = [1, 1]} : vector<48x128xf32> to vector<24x128xf32>
    %488 = arith.addf %487, %486 : vector<24x128xf32>
    %c1_180 = arith.constant 1 : index
    %c0_181 = arith.constant 0 : index
    %c0_182 = arith.constant 0 : index
    %489 = vector.load %arg11[%c1_180, %c0_181, %c0_182] : memref<2x1x128xf32, #tpu.memory_space<vmem>>, vector<1x1x128xf32>
    %490 = vector.shape_cast %489 : vector<1x1x128xf32> to vector<1x128xf32>
    %491 = vector.broadcast %490 : vector<1x128xf32> to vector<24x128xf32>
    %492 = arith.addf %488, %491 : vector<24x128xf32>
    %c0_183 = arith.constant 0 : index
    %c0_184 = arith.constant 0 : index
    %493 = vector.load %arg21[%c0_183, %c0_184] : memref<48x128xf32, #tpu.memory_space<vmem>>, vector<24x128xf32>
    tpu.vector_store %arg21[%c0_183, %c0_184], %492 {strides = array<i32>} : memref<48x128xf32, #tpu.memory_space<vmem>>, vector<24x128xf32>,
    %494 = vector.extract_strided_slice %378 {offsets = [24, 0], sizes = [24, 384], strides = [1, 1]} : vector<48x384xf32> to vector<24x384xf32>
    %cst_185 = arith.constant 0.000000e+00 : f32
    %495 = vector.broadcast %cst_185 : f32 to vector<24x128xf32>
    %496 = vector.extract_strided_slice %494 {offsets = [0, 0], sizes = [24, 32], strides = [1, 1]} : vector<24x384xf32> to vector<24x32xf32>
    %497 = arith.truncf %496 : vector<24x32xf32> to vector<24x32xbf16>
    %498 = vector.extract_strided_slice %494 {offsets = [0, 128], sizes = [24, 32], strides = [1, 1]} : vector<24x384xf32> to vector<24x32xf32>
    %499 = arith.truncf %498 : vector<24x32xf32> to vector<24x32xbf16>
    %500 = vector.extract_strided_slice %494 {offsets = [0, 256], sizes = [24, 32], strides = [1, 1]} : vector<24x384xf32> to vector<24x32xf32>
    %501 = arith.truncf %500 : vector<24x32xf32> to vector<24x32xbf16>
    %cst_186 = arith.constant dense<0.000000e+00> : vector<24x24xf32>
    %502 = tpu.matmul %497, %499, %cst_186 {dimension_numbers = #tpu.dot_dimension_numbers<[1], [1], [0], [0], [0, 0, 1, 0], [], []>} : vector<24x32xbf16>, vector<24x32xbf16>, vector<24x24xf32> -> vector<24x24xf32>
    %cst_187 = arith.constant 0.176776692 : f32
    %503 = vector.broadcast %cst_187 : f32 to vector<24x24xf32>
    %504 = arith.mulf %502, %503 : vector<24x24xf32>
    %505 = arith.addf %504, %22 : vector<24x24xf32>
    %cst_188 = arith.constant dense<0xFF800000> : vector<24xf32>
    %506 = vector.multi_reduction <maximumf>, %505, %cst_188 [1] : vector<24x24xf32> to vector<24xf32>
    %507 = vector.shape_cast %506 : vector<24xf32> to vector<24x1xf32>
    %508 = vector.broadcast %507 : vector<24x1xf32> to vector<24x24xf32>
    %509 = arith.subf %505, %508 : vector<24x24xf32>
    %510 = math.exp %509 : vector<24x24xf32>
    %cst_189 = arith.constant dense<0.000000e+00> : vector<24xf32>
    %511 = vector.multi_reduction <add>, %510, %cst_189 [1] : vector<24x24xf32> to vector<24xf32>
    %512 = vector.shape_cast %511 : vector<24xf32> to vector<24x1xf32>
    %513 = tpu.reciprocal %512 {approx = true} : vector<24x1xf32> -> vector<24x1xf32>
    %514 = vector.broadcast %513 : vector<24x1xf32> to vector<24x24xf32>
    %515 = arith.mulf %510, %514 : vector<24x24xf32>
    %516 = arith.truncf %515 : vector<24x24xf32> to vector<24x24xbf16>
    %cst_190 = arith.constant dense<0.000000e+00> : vector<24x32xf32>
    %517 = tpu.matmul %516, %501, %cst_190 {dimension_numbers = #tpu.dot_dimension_numbers<[1], [0], [0], [1], [0, 0, 1, 1], [], []>} : vector<24x24xbf16>, vector<24x32xbf16>, vector<24x32xf32> -> vector<24x32xf32>
    %518 = arith.truncf %517 : vector<24x32xf32> to vector<24x32xbf16>
    %519 = vector.extract_strided_slice %380 {offsets = [0, 0], sizes = [32, 128], strides = [1, 1]} : vector<128x128xbf16> to vector<32x128xbf16>
    %cst_191 = arith.constant dense<0.000000e+00> : vector<24x128xf32>
    %520 = tpu.matmul %518, %519, %cst_191 {dimension_numbers = #tpu.dot_dimension_numbers<[1], [0], [0], [1], [0, 0, 1, 1], [], []>} : vector<24x32xbf16>, vector<32x128xbf16>, vector<24x128xf32> -> vector<24x128xf32>
    %521 = arith.addf %495, %520 : vector<24x128xf32>
    %522 = vector.extract_strided_slice %494 {offsets = [0, 32], sizes = [24, 32], strides = [1, 1]} : vector<24x384xf32> to vector<24x32xf32>
    %523 = arith.truncf %522 : vector<24x32xf32> to vector<24x32xbf16>
    %524 = vector.extract_strided_slice %494 {offsets = [0, 160], sizes = [24, 32], strides = [1, 1]} : vector<24x384xf32> to vector<24x32xf32>
    %525 = arith.truncf %524 : vector<24x32xf32> to vector<24x32xbf16>
    %526 = vector.extract_strided_slice %494 {offsets = [0, 288], sizes = [24, 32], strides = [1, 1]} : vector<24x384xf32> to vector<24x32xf32>
    %527 = arith.truncf %526 : vector<24x32xf32> to vector<24x32xbf16>
    %cst_192 = arith.constant dense<0.000000e+00> : vector<24x24xf32>
    %528 = tpu.matmul %523, %525, %cst_192 {dimension_numbers = #tpu.dot_dimension_numbers<[1], [1], [0], [0], [0, 0, 1, 0], [], []>} : vector<24x32xbf16>, vector<24x32xbf16>, vector<24x24xf32> -> vector<24x24xf32>
    %cst_193 = arith.constant 0.176776692 : f32
    %529 = vector.broadcast %cst_193 : f32 to vector<24x24xf32>
    %530 = arith.mulf %528, %529 : vector<24x24xf32>
    %531 = arith.addf %530, %22 : vector<24x24xf32>
    %cst_194 = arith.constant dense<0xFF800000> : vector<24xf32>
    %532 = vector.multi_reduction <maximumf>, %531, %cst_194 [1] : vector<24x24xf32> to vector<24xf32>
    %533 = vector.shape_cast %532 : vector<24xf32> to vector<24x1xf32>
    %534 = vector.broadcast %533 : vector<24x1xf32> to vector<24x24xf32>
    %535 = arith.subf %531, %534 : vector<24x24xf32>
    %536 = math.exp %535 : vector<24x24xf32>
    %cst_195 = arith.constant dense<0.000000e+00> : vector<24xf32>
    %537 = vector.multi_reduction <add>, %536, %cst_195 [1] : vector<24x24xf32> to vector<24xf32>
    %538 = vector.shape_cast %537 : vector<24xf32> to vector<24x1xf32>
    %539 = tpu.reciprocal %538 {approx = true} : vector<24x1xf32> -> vector<24x1xf32>
    %540 = vector.broadcast %539 : vector<24x1xf32> to vector<24x24xf32>
    %541 = arith.mulf %536, %540 : vector<24x24xf32>
    %542 = arith.truncf %541 : vector<24x24xf32> to vector<24x24xbf16>
    %cst_196 = arith.constant dense<0.000000e+00> : vector<24x32xf32>
    %543 = tpu.matmul %542, %527, %cst_196 {dimension_numbers = #tpu.dot_dimension_numbers<[1], [0], [0], [1], [0, 0, 1, 1], [], []>} : vector<24x24xbf16>, vector<24x32xbf16>, vector<24x32xf32> -> vector<24x32xf32>
    %544 = arith.truncf %543 : vector<24x32xf32> to vector<24x32xbf16>
    %545 = vector.extract_strided_slice %380 {offsets = [32, 0], sizes = [32, 128], strides = [1, 1]} : vector<128x128xbf16> to vector<32x128xbf16>
    %cst_197 = arith.constant dense<0.000000e+00> : vector<24x128xf32>
    %546 = tpu.matmul %544, %545, %cst_197 {dimension_numbers = #tpu.dot_dimension_numbers<[1], [0], [0], [1], [0, 0, 1, 1], [], []>} : vector<24x32xbf16>, vector<32x128xbf16>, vector<24x128xf32> -> vector<24x128xf32>
    %547 = arith.addf %521, %546 : vector<24x128xf32>
    %548 = vector.extract_strided_slice %494 {offsets = [0, 64], sizes = [24, 32], strides = [1, 1]} : vector<24x384xf32> to vector<24x32xf32>
    %549 = arith.truncf %548 : vector<24x32xf32> to vector<24x32xbf16>
    %550 = vector.extract_strided_slice %494 {offsets = [0, 192], sizes = [24, 32], strides = [1, 1]} : vector<24x384xf32> to vector<24x32xf32>
    %551 = arith.truncf %550 : vector<24x32xf32> to vector<24x32xbf16>
    %552 = vector.extract_strided_slice %494 {offsets = [0, 320], sizes = [24, 32], strides = [1, 1]} : vector<24x384xf32> to vector<24x32xf32>
    %553 = arith.truncf %552 : vector<24x32xf32> to vector<24x32xbf16>
    %cst_198 = arith.constant dense<0.000000e+00> : vector<24x24xf32>
    %554 = tpu.matmul %549, %551, %cst_198 {dimension_numbers = #tpu.dot_dimension_numbers<[1], [1], [0], [0], [0, 0, 1, 0], [], []>} : vector<24x32xbf16>, vector<24x32xbf16>, vector<24x24xf32> -> vector<24x24xf32>
    %cst_199 = arith.constant 0.176776692 : f32
    %555 = vector.broadcast %cst_199 : f32 to vector<24x24xf32>
    %556 = arith.mulf %554, %555 : vector<24x24xf32>
    %557 = arith.addf %556, %22 : vector<24x24xf32>
    %cst_200 = arith.constant dense<0xFF800000> : vector<24xf32>
    %558 = vector.multi_reduction <maximumf>, %557, %cst_200 [1] : vector<24x24xf32> to vector<24xf32>
    %559 = vector.shape_cast %558 : vector<24xf32> to vector<24x1xf32>
    %560 = vector.broadcast %559 : vector<24x1xf32> to vector<24x24xf32>
    %561 = arith.subf %557, %560 : vector<24x24xf32>
    %562 = math.exp %561 : vector<24x24xf32>
    %cst_201 = arith.constant dense<0.000000e+00> : vector<24xf32>
    %563 = vector.multi_reduction <add>, %562, %cst_201 [1] : vector<24x24xf32> to vector<24xf32>
    %564 = vector.shape_cast %563 : vector<24xf32> to vector<24x1xf32>
    %565 = tpu.reciprocal %564 {approx = true} : vector<24x1xf32> -> vector<24x1xf32>
    %566 = vector.broadcast %565 : vector<24x1xf32> to vector<24x24xf32>
    %567 = arith.mulf %562, %566 : vector<24x24xf32>
    %568 = arith.truncf %567 : vector<24x24xf32> to vector<24x24xbf16>
    %cst_202 = arith.constant dense<0.000000e+00> : vector<24x32xf32>
    %569 = tpu.matmul %568, %553, %cst_202 {dimension_numbers = #tpu.dot_dimension_numbers<[1], [0], [0], [1], [0, 0, 1, 1], [], []>} : vector<24x24xbf16>, vector<24x32xbf16>, vector<24x32xf32> -> vector<24x32xf32>
    %570 = arith.truncf %569 : vector<24x32xf32> to vector<24x32xbf16>
    %571 = vector.extract_strided_slice %380 {offsets = [64, 0], sizes = [32, 128], strides = [1, 1]} : vector<128x128xbf16> to vector<32x128xbf16>
    %cst_203 = arith.constant dense<0.000000e+00> : vector<24x128xf32>
    %572 = tpu.matmul %570, %571, %cst_203 {dimension_numbers = #tpu.dot_dimension_numbers<[1], [0], [0], [1], [0, 0, 1, 1], [], []>} : vector<24x32xbf16>, vector<32x128xbf16>, vector<24x128xf32> -> vector<24x128xf32>
    %573 = arith.addf %547, %572 : vector<24x128xf32>
    %574 = vector.extract_strided_slice %494 {offsets = [0, 96], sizes = [24, 32], strides = [1, 1]} : vector<24x384xf32> to vector<24x32xf32>
    %575 = arith.truncf %574 : vector<24x32xf32> to vector<24x32xbf16>
    %576 = vector.extract_strided_slice %494 {offsets = [0, 224], sizes = [24, 32], strides = [1, 1]} : vector<24x384xf32> to vector<24x32xf32>
    %577 = arith.truncf %576 : vector<24x32xf32> to vector<24x32xbf16>
    %578 = vector.extract_strided_slice %494 {offsets = [0, 352], sizes = [24, 32], strides = [1, 1]} : vector<24x384xf32> to vector<24x32xf32>
    %579 = arith.truncf %578 : vector<24x32xf32> to vector<24x32xbf16>
    %cst_204 = arith.constant dense<0.000000e+00> : vector<24x24xf32>
    %580 = tpu.matmul %575, %577, %cst_204 {dimension_numbers = #tpu.dot_dimension_numbers<[1], [1], [0], [0], [0, 0, 1, 0], [], []>} : vector<24x32xbf16>, vector<24x32xbf16>, vector<24x24xf32> -> vector<24x24xf32>
    %cst_205 = arith.constant 0.176776692 : f32
    %581 = vector.broadcast %cst_205 : f32 to vector<24x24xf32>
    %582 = arith.mulf %580, %581 : vector<24x24xf32>
    %583 = arith.addf %582, %22 : vector<24x24xf32>
    %cst_206 = arith.constant dense<0xFF800000> : vector<24xf32>
    %584 = vector.multi_reduction <maximumf>, %583, %cst_206 [1] : vector<24x24xf32> to vector<24xf32>
    %585 = vector.shape_cast %584 : vector<24xf32> to vector<24x1xf32>
    %586 = vector.broadcast %585 : vector<24x1xf32> to vector<24x24xf32>
    %587 = arith.subf %583, %586 : vector<24x24xf32>
    %588 = math.exp %587 : vector<24x24xf32>
    %cst_207 = arith.constant dense<0.000000e+00> : vector<24xf32>
    %589 = vector.multi_reduction <add>, %588, %cst_207 [1] : vector<24x24xf32> to vector<24xf32>
    %590 = vector.shape_cast %589 : vector<24xf32> to vector<24x1xf32>
    %591 = tpu.reciprocal %590 {approx = true} : vector<24x1xf32> -> vector<24x1xf32>
    %592 = vector.broadcast %591 : vector<24x1xf32> to vector<24x24xf32>
    %593 = arith.mulf %588, %592 : vector<24x24xf32>
    %594 = arith.truncf %593 : vector<24x24xf32> to vector<24x24xbf16>
    %cst_208 = arith.constant dense<0.000000e+00> : vector<24x32xf32>
    %595 = tpu.matmul %594, %579, %cst_208 {dimension_numbers = #tpu.dot_dimension_numbers<[1], [0], [0], [1], [0, 0, 1, 1], [], []>} : vector<24x24xbf16>, vector<24x32xbf16>, vector<24x32xf32> -> vector<24x32xf32>
    %596 = arith.truncf %595 : vector<24x32xf32> to vector<24x32xbf16>
    %597 = vector.extract_strided_slice %380 {offsets = [96, 0], sizes = [32, 128], strides = [1, 1]} : vector<128x128xbf16> to vector<32x128xbf16>
    %cst_209 = arith.constant dense<0.000000e+00> : vector<24x128xf32>
    %598 = tpu.matmul %596, %597, %cst_209 {dimension_numbers = #tpu.dot_dimension_numbers<[1], [0], [0], [1], [0, 0, 1, 1], [], []>} : vector<24x32xbf16>, vector<32x128xbf16>, vector<24x128xf32> -> vector<24x128xf32>
    %599 = arith.addf %573, %598 : vector<24x128xf32>
    %600 = vector.extract_strided_slice %344 {offsets = [24, 0], sizes = [24, 128], strides = [1, 1]} : vector<48x128xf32> to vector<24x128xf32>
    %601 = arith.addf %600, %599 : vector<24x128xf32>
    %c1_210 = arith.constant 1 : index
    %c0_211 = arith.constant 0 : index
    %c0_212 = arith.constant 0 : index
    %602 = vector.load %arg11[%c1_210, %c0_211, %c0_212] : memref<2x1x128xf32, #tpu.memory_space<vmem>>, vector<1x1x128xf32>
    %603 = vector.shape_cast %602 : vector<1x1x128xf32> to vector<1x128xf32>
    %604 = vector.broadcast %603 : vector<1x128xf32> to vector<24x128xf32>
    %605 = arith.addf %601, %604 : vector<24x128xf32>
    %c24_213 = arith.constant 24 : index
    %c0_214 = arith.constant 0 : index
    %606 = vector.load %arg21[%c24_213, %c0_214] : memref<48x128xf32, #tpu.memory_space<vmem>>, vector<24x128xf32>
    tpu.vector_store %arg21[%c24_213, %c0_214], %605 {strides = array<i32>} : memref<48x128xf32, #tpu.memory_space<vmem>>, vector<24x128xf32>,
    %c0_215 = arith.constant 0 : index
    %c0_216 = arith.constant 0 : index
    %607 = vector.load %arg21[%c0_215, %c0_216] : memref<48x128xf32, #tpu.memory_space<vmem>>, vector<48x128xf32>
    %c1_217 = arith.constant 1 : index
    %c0_218 = arith.constant 0 : index
    %c0_219 = arith.constant 0 : index
    %608 = vector.load %arg12[%c1_217, %c0_218, %c0_219] : memref<2x1x128xf32, #tpu.memory_space<vmem>>, vector<1x1x128xf32>
    %609 = vector.shape_cast %608 : vector<1x1x128xf32> to vector<1x128xf32>
    %c1_220 = arith.constant 1 : index
    %c0_221 = arith.constant 0 : index
    %c0_222 = arith.constant 0 : index
    %610 = vector.load %arg13[%c1_220, %c0_221, %c0_222] : memref<2x1x128xf32, #tpu.memory_space<vmem>>, vector<1x1x128xf32>
    %611 = vector.shape_cast %610 : vector<1x1x128xf32> to vector<1x128xf32>
    %cst_223 = arith.constant dense<0.000000e+00> : vector<48xf32>
    %612 = vector.multi_reduction <add>, %607, %cst_223 [1] : vector<48x128xf32> to vector<48xf32>
    %613 = vector.shape_cast %612 : vector<48xf32> to vector<48x1xf32>
    %cst_224 = arith.constant 1.280000e+02 : f32
    %614 = vector.broadcast %cst_224 : f32 to vector<48x1xf32>
    %615 = arith.divf %613, %614 : vector<48x1xf32>
    %616 = vector.broadcast %615 : vector<48x1xf32> to vector<48x128xf32>
    %617 = arith.subf %607, %616 : vector<48x128xf32>
    %618 = arith.mulf %617, %617 : vector<48x128xf32>
    %cst_225 = arith.constant dense<0.000000e+00> : vector<48xf32>
    %619 = vector.multi_reduction <add>, %618, %cst_225 [1] : vector<48x128xf32> to vector<48xf32>
    %620 = vector.shape_cast %619 : vector<48xf32> to vector<48x1xf32>
    %cst_226 = arith.constant 1.280000e+02 : f32
    %621 = vector.broadcast %cst_226 : f32 to vector<48x1xf32>
    %622 = arith.divf %620, %621 : vector<48x1xf32>
    %623 = vector.broadcast %615 : vector<48x1xf32> to vector<48x128xf32>
    %624 = arith.subf %607, %623 : vector<48x128xf32>
    %cst_227 = arith.constant 9.99999997E-7 : f32
    %625 = vector.broadcast %cst_227 : f32 to vector<48x1xf32>
    %626 = arith.addf %622, %625 : vector<48x1xf32>
    %627 = math.rsqrt %626 : vector<48x1xf32>
    %628 = vector.broadcast %627 : vector<48x1xf32> to vector<48x128xf32>
    %629 = arith.mulf %624, %628 : vector<48x128xf32>
    %630 = vector.broadcast %609 : vector<1x128xf32> to vector<48x128xf32>
    %631 = arith.mulf %629, %630 : vector<48x128xf32>
    %632 = vector.broadcast %611 : vector<1x128xf32> to vector<48x128xf32>
    %633 = arith.addf %631, %632 : vector<48x128xf32>
    %634 = arith.truncf %633 : vector<48x128xf32> to vector<48x128xbf16>
    %c1_228 = arith.constant 1 : index
    %c0_229 = arith.constant 0 : index
    %c0_230 = arith.constant 0 : index
    %635 = vector.load %arg14[%c1_228, %c0_229, %c0_230] : memref<2x128x512xbf16, #tpu.memory_space<vmem>>, vector<1x128x512xbf16>
    %636 = vector.shape_cast %635 : vector<1x128x512xbf16> to vector<128x512xbf16>
    %cst_231 = arith.constant dense<0.000000e+00> : vector<48x512xf32>
    %637 = tpu.matmul %634, %636, %cst_231 {dimension_numbers = #tpu.dot_dimension_numbers<[1], [0], [0], [1], [0, 0, 1, 1], [], []>} : vector<48x128xbf16>, vector<128x512xbf16>, vector<48x512xf32> -> vector<48x512xf32>
    %c1_232 = arith.constant 1 : index
    %c0_233 = arith.constant 0 : index
    %c0_234 = arith.constant 0 : index
    %638 = vector.load %arg15[%c1_232, %c0_233, %c0_234] : memref<2x1x512xf32, #tpu.memory_space<vmem>>, vector<1x1x512xf32>
    %639 = vector.shape_cast %638 : vector<1x1x512xf32> to vector<1x512xf32>
    %640 = vector.broadcast %639 : vector<1x512xf32> to vector<48x512xf32>
    %641 = arith.addf %637, %640 : vector<48x512xf32>
    %cst_235 = arith.constant 5.000000e-01 : f32
    %642 = vector.broadcast %cst_235 : f32 to vector<48x512xf32>
    %643 = arith.mulf %642, %641 : vector<48x512xf32>
    %cst_236 = arith.constant 4.471500e-02 : f32
    %644 = vector.broadcast %cst_236 : f32 to vector<48x512xf32>
    %645 = arith.mulf %644, %641 : vector<48x512xf32>
    %646 = arith.mulf %645, %641 : vector<48x512xf32>
    %647 = arith.mulf %646, %641 : vector<48x512xf32>
    %648 = arith.addf %641, %647 : vector<48x512xf32>
    %cst_237 = arith.constant 0.797884583 : f32
    %649 = vector.broadcast %cst_237 : f32 to vector<48x512xf32>
    %650 = arith.mulf %649, %648 : vector<48x512xf32>
    %651 = math.tanh %650 : vector<48x512xf32>
    %cst_238 = arith.constant 1.000000e+00 : f32
    %652 = vector.broadcast %cst_238 : f32 to vector<48x512xf32>
    %653 = arith.addf %652, %651 : vector<48x512xf32>
    %654 = arith.mulf %643, %653 : vector<48x512xf32>
    %655 = arith.truncf %654 : vector<48x512xf32> to vector<48x512xbf16>
    %c1_239 = arith.constant 1 : index
    %c0_240 = arith.constant 0 : index
    %c0_241 = arith.constant 0 : index
    %656 = vector.load %arg16[%c1_239, %c0_240, %c0_241] : memref<2x512x128xbf16, #tpu.memory_space<vmem>>, vector<1x512x128xbf16>
    %657 = vector.shape_cast %656 : vector<1x512x128xbf16> to vector<512x128xbf16>
    %cst_242 = arith.constant dense<0.000000e+00> : vector<48x128xf32>
    %658 = tpu.matmul %655, %657, %cst_242 {dimension_numbers = #tpu.dot_dimension_numbers<[1], [0], [0], [1], [0, 0, 1, 1], [], []>} : vector<48x512xbf16>, vector<512x128xbf16>, vector<48x128xf32> -> vector<48x128xf32>
    %659 = arith.addf %607, %658 : vector<48x128xf32>
    %c1_243 = arith.constant 1 : index
    %c0_244 = arith.constant 0 : index
    %c0_245 = arith.constant 0 : index
    %660 = vector.load %arg17[%c1_243, %c0_244, %c0_245] : memref<2x1x128xf32, #tpu.memory_space<vmem>>, vector<1x1x128xf32>
    %661 = vector.shape_cast %660 : vector<1x1x128xf32> to vector<1x128xf32>
    %662 = vector.broadcast %661 : vector<1x128xf32> to vector<48x128xf32>
    %663 = arith.addf %659, %662 : vector<48x128xf32>
    %c0_246 = arith.constant 0 : index
    %c0_247 = arith.constant 0 : index
    %664 = vector.load %arg21[%c0_246, %c0_247] : memref<48x128xf32, #tpu.memory_space<vmem>>, vector<48x128xf32>
    tpu.vector_store %arg21[%c0_246, %c0_247], %663 {strides = array<i32>} : memref<48x128xf32, #tpu.memory_space<vmem>>, vector<48x128xf32>,
    %c0_248 = arith.constant 0 : index
    %c0_249 = arith.constant 0 : index
    %665 = vector.load %arg21[%c0_248, %c0_249] : memref<48x128xf32, #tpu.memory_space<vmem>>, vector<48x128xf32>
    %c0_250 = arith.constant 0 : index
    %c0_251 = arith.constant 0 : index
    %666 = vector.load %arg18[%c0_250, %c0_251] : memref<1x128xf32, #tpu.memory_space<vmem>>, vector<1x128xf32>
    %c0_252 = arith.constant 0 : index
    %c0_253 = arith.constant 0 : index
    %667 = vector.load %arg19[%c0_252, %c0_253] : memref<1x128xf32, #tpu.memory_space<vmem>>, vector<1x128xf32>
    %cst_254 = arith.constant dense<0.000000e+00> : vector<48xf32>
    %668 = vector.multi_reduction <add>, %665, %cst_254 [1] : vector<48x128xf32> to vector<48xf32>
    %669 = vector.shape_cast %668 : vector<48xf32> to vector<48x1xf32>
    %cst_255 = arith.constant 1.280000e+02 : f32
    %670 = vector.broadcast %cst_255 : f32 to vector<48x1xf32>
    %671 = arith.divf %669, %670 : vector<48x1xf32>
    %672 = vector.broadcast %671 : vector<48x1xf32> to vector<48x128xf32>
    %673 = arith.subf %665, %672 : vector<48x128xf32>
    %674 = arith.mulf %673, %673 : vector<48x128xf32>
    %cst_256 = arith.constant dense<0.000000e+00> : vector<48xf32>
    %675 = vector.multi_reduction <add>, %674, %cst_256 [1] : vector<48x128xf32> to vector<48xf32>
    %676 = vector.shape_cast %675 : vector<48xf32> to vector<48x1xf32>
    %cst_257 = arith.constant 1.280000e+02 : f32
    %677 = vector.broadcast %cst_257 : f32 to vector<48x1xf32>
    %678 = arith.divf %676, %677 : vector<48x1xf32>
    %679 = vector.broadcast %671 : vector<48x1xf32> to vector<48x128xf32>
    %680 = arith.subf %665, %679 : vector<48x128xf32>
    %cst_258 = arith.constant 9.99999997E-7 : f32
    %681 = vector.broadcast %cst_258 : f32 to vector<48x1xf32>
    %682 = arith.addf %678, %681 : vector<48x1xf32>
    %683 = math.rsqrt %682 : vector<48x1xf32>
    %684 = vector.broadcast %683 : vector<48x1xf32> to vector<48x128xf32>
    %685 = arith.mulf %680, %684 : vector<48x128xf32>
    %686 = vector.broadcast %666 : vector<1x128xf32> to vector<48x128xf32>
    %687 = arith.mulf %685, %686 : vector<48x128xf32>
    %688 = vector.broadcast %667 : vector<1x128xf32> to vector<48x128xf32>
    %689 = arith.addf %687, %688 : vector<48x128xf32>
    %690 = vector.extract_strided_slice %689 {offsets = [0, 0], sizes = [16, 128], strides = [1, 1]} : vector<48x128xf32> to vector<16x128xf32>
    %cst_259 = arith.constant dense<0.000000e+00> : vector<128xf32>
    %691 = vector.multi_reduction <add>, %690, %cst_259 [0] : vector<16x128xf32> to vector<128xf32>
    %692 = vector.shape_cast %691 : vector<128xf32> to vector<1x128xf32>
    %cst_260 = arith.constant 1.600000e+01 : f32
    %693 = vector.broadcast %cst_260 : f32 to vector<1x128xf32>
    %694 = arith.divf %692, %693 : vector<1x128xf32>
    %c0_261 = arith.constant 0 : index
    %c0_262 = arith.constant 0 : index
    %c0_263 = arith.constant 0 : index
    %695 = vector.load %arg20[%c0_261, %c0_262, %c0_263] : memref<2x1x128xf32, #tpu.memory_space<vmem>>, vector<1x1x128xf32>
    %696 = vector.shape_cast %695 : vector<1x1x128xf32> to vector<1x128xf32>
    %697 = vector.shape_cast %694 : vector<1x128xf32> to vector<1x1x128xf32>
    tpu.vector_store %arg20[%c0_261, %c0_262, %c0_263], %697 {strides = array<i32>} : memref<2x1x128xf32, #tpu.memory_space<vmem>>, vector<1x1x128xf32>,
    %698 = vector.extract_strided_slice %689 {offsets = [24, 0], sizes = [16, 128], strides = [1, 1]} : vector<48x128xf32> to vector<16x128xf32>
    %cst_264 = arith.constant dense<0.000000e+00> : vector<128xf32>
    %699 = vector.multi_reduction <add>, %698, %cst_264 [0] : vector<16x128xf32> to vector<128xf32>
    %700 = vector.shape_cast %699 : vector<128xf32> to vector<1x128xf32>
    %cst_265 = arith.constant 1.600000e+01 : f32
    %701 = vector.broadcast %cst_265 : f32 to vector<1x128xf32>
    %702 = arith.divf %700, %701 : vector<1x128xf32>
    %c1_266 = arith.constant 1 : index
    %c0_267 = arith.constant 0 : index
    %c0_268 = arith.constant 0 : index
    %703 = vector.load %arg20[%c1_266, %c0_267, %c0_268] : memref<2x1x128xf32, #tpu.memory_space<vmem>>, vector<1x1x128xf32>
    %704 = vector.shape_cast %703 : vector<1x1x128xf32> to vector<1x128xf32>
    %705 = vector.shape_cast %702 : vector<1x128xf32> to vector<1x1x128xf32>
    tpu.vector_store %arg20[%c1_266, %c0_267, %c0_268], %705 {strides = array<i32>} : memref<2x1x128xf32, #tpu.memory_space<vmem>>, vector<1x1x128xf32>,
    return
  }
  func.func @transform_0(%arg0: i32) -> (i32, i32, i32) {
    %c0_i32 = arith.constant 0 : i32
    %c0_i32_0 = arith.constant 0 : i32
    %c0_i32_1 = arith.constant 0 : i32
    return %arg0, %c0_i32, %c0_i32_0 : i32, i32, i32
  }
  func.func @transform_1(%arg0: i32) -> (i32, i32) {
    %c0_i32 = arith.constant 0 : i32
    %c0_i32_0 = arith.constant 0 : i32
    %c0_i32_1 = arith.constant 0 : i32
    return %c0_i32, %c0_i32_0 : i32, i32
  }
  func.func @transform_2(%arg0: i32) -> (i32, i32) {
    %c0_i32 = arith.constant 0 : i32
    %c0_i32_0 = arith.constant 0 : i32
    %c0_i32_1 = arith.constant 0 : i32
    return %c0_i32, %c0_i32_0 : i32, i32
  }
  func.func @transform_3(%arg0: i32) -> (i32, i32) {
    %c0_i32 = arith.constant 0 : i32
    %c0_i32_0 = arith.constant 0 : i32
    %c0_i32_1 = arith.constant 0 : i32
    return %c0_i32, %c0_i32_0 : i32, i32
  }
  func.func @transform_4(%arg0: i32) -> (i32, i32) {
    %c0_i32 = arith.constant 0 : i32
    %c0_i32_0 = arith.constant 0 : i32
    %c0_i32_1 = arith.constant 0 : i32
    return %c0_i32, %c0_i32_0 : i32, i32
  }
  func.func @transform_5(%arg0: i32) -> (i32, i32, i32) {
    %c0_i32 = arith.constant 0 : i32
    %c0_i32_0 = arith.constant 0 : i32
    %c0_i32_1 = arith.constant 0 : i32
    %c0_i32_2 = arith.constant 0 : i32
    return %c0_i32, %c0_i32_0, %c0_i32_1 : i32, i32, i32
  }
  func.func @transform_6(%arg0: i32) -> (i32, i32, i32) {
    %c0_i32 = arith.constant 0 : i32
    %c0_i32_0 = arith.constant 0 : i32
    %c0_i32_1 = arith.constant 0 : i32
    %c0_i32_2 = arith.constant 0 : i32
    return %c0_i32, %c0_i32_0, %c0_i32_1 : i32, i32, i32
  }
  func.func @transform_7(%arg0: i32) -> (i32, i32, i32) {
    %c0_i32 = arith.constant 0 : i32
    %c0_i32_0 = arith.constant 0 : i32
    %c0_i32_1 = arith.constant 0 : i32
    %c0_i32_2 = arith.constant 0 : i32
    return %c0_i32, %c0_i32_0, %c0_i32_1 : i32, i32, i32
  }
  func.func @transform_8(%arg0: i32) -> (i32, i32, i32) {
    %c0_i32 = arith.constant 0 : i32
    %c0_i32_0 = arith.constant 0 : i32
    %c0_i32_1 = arith.constant 0 : i32
    %c0_i32_2 = arith.constant 0 : i32
    return %c0_i32, %c0_i32_0, %c0_i32_1 : i32, i32, i32
  }
  func.func @transform_9(%arg0: i32) -> (i32, i32, i32) {
    %c0_i32 = arith.constant 0 : i32
    %c0_i32_0 = arith.constant 0 : i32
    %c0_i32_1 = arith.constant 0 : i32
    %c0_i32_2 = arith.constant 0 : i32
    return %c0_i32, %c0_i32_0, %c0_i32_1 : i32, i32, i32
  }
  func.func @transform_10(%arg0: i32) -> (i32, i32, i32) {
    %c0_i32 = arith.constant 0 : i32
    %c0_i32_0 = arith.constant 0 : i32
    %c0_i32_1 = arith.constant 0 : i32
    %c0_i32_2 = arith.constant 0 : i32
    return %c0_i32, %c0_i32_0, %c0_i32_1 : i32, i32, i32
  }
  func.func @transform_11(%arg0: i32) -> (i32, i32, i32) {
    %c0_i32 = arith.constant 0 : i32
    %c0_i32_0 = arith.constant 0 : i32
    %c0_i32_1 = arith.constant 0 : i32
    %c0_i32_2 = arith.constant 0 : i32
    return %c0_i32, %c0_i32_0, %c0_i32_1 : i32, i32, i32
  }
  func.func @transform_12(%arg0: i32) -> (i32, i32, i32) {
    %c0_i32 = arith.constant 0 : i32
    %c0_i32_0 = arith.constant 0 : i32
    %c0_i32_1 = arith.constant 0 : i32
    %c0_i32_2 = arith.constant 0 : i32
    return %c0_i32, %c0_i32_0, %c0_i32_1 : i32, i32, i32
  }
  func.func @transform_13(%arg0: i32) -> (i32, i32, i32) {
    %c0_i32 = arith.constant 0 : i32
    %c0_i32_0 = arith.constant 0 : i32
    %c0_i32_1 = arith.constant 0 : i32
    %c0_i32_2 = arith.constant 0 : i32
    return %c0_i32, %c0_i32_0, %c0_i32_1 : i32, i32, i32
  }
  func.func @transform_14(%arg0: i32) -> (i32, i32, i32) {
    %c0_i32 = arith.constant 0 : i32
    %c0_i32_0 = arith.constant 0 : i32
    %c0_i32_1 = arith.constant 0 : i32
    %c0_i32_2 = arith.constant 0 : i32
    return %c0_i32, %c0_i32_0, %c0_i32_1 : i32, i32, i32
  }
  func.func @transform_15(%arg0: i32) -> (i32, i32, i32) {
    %c0_i32 = arith.constant 0 : i32
    %c0_i32_0 = arith.constant 0 : i32
    %c0_i32_1 = arith.constant 0 : i32
    %c0_i32_2 = arith.constant 0 : i32
    return %c0_i32, %c0_i32_0, %c0_i32_1 : i32, i32, i32
  }
  func.func @transform_16(%arg0: i32) -> (i32, i32, i32) {
    %c0_i32 = arith.constant 0 : i32
    %c0_i32_0 = arith.constant 0 : i32
    %c0_i32_1 = arith.constant 0 : i32
    %c0_i32_2 = arith.constant 0 : i32
    return %c0_i32, %c0_i32_0, %c0_i32_1 : i32, i32, i32
  }
  func.func @transform_17(%arg0: i32) -> (i32, i32) {
    %c0_i32 = arith.constant 0 : i32
    %c0_i32_0 = arith.constant 0 : i32
    %c0_i32_1 = arith.constant 0 : i32
    return %c0_i32, %c0_i32_0 : i32, i32
  }
  func.func @transform_18(%arg0: i32) -> (i32, i32) {
    %c0_i32 = arith.constant 0 : i32
    %c0_i32_0 = arith.constant 0 : i32
    %c0_i32_1 = arith.constant 0 : i32
    return %c0_i32, %c0_i32_0 : i32, i32
  }
  func.func @transform_19(%arg0: i32) -> (i32, i32, i32) {
    %c0_i32 = arith.constant 0 : i32
    %c0_i32_0 = arith.constant 0 : i32
    %c0_i32_1 = arith.constant 0 : i32
    return %arg0, %c0_i32, %c0_i32_0 : i32, i32, i32
  }
}

</mosaic_0001>

<llo_original>
// kernel: tpu_custom_call.1
$region0: #{tpu_custom_call.1}
  #allocation0 [shape = 'u32[]', space=smem, size = 0x4, offset = 0x4, fixed_abs, tag = 'smem constant byte address 0x4 - core index']
  #allocation1 [shape = 'u32[144,128]{1,0:T(1,128)}', space=vmem, size = 0x12000, scoped, tag = 'internal scratch']
  #allocation2 [shape = 'f32[48,128]{1,0:T(8,128)}', space=vmem, size = 0x6000, scoped, tag = 'scratch operand']
  %s0 = inlined_call_operand.hbm [shape: bf16[2,16,128], index: 0, kind: input, shape index: {}]
  %s1 = inlined_call_operand.hbm [shape: bf16[128,128], index: 1, kind: input, shape index: {}]
  %s2 = inlined_call_operand.hbm [shape: f32[1,128], index: 2, kind: input, shape index: {}]
  %s3 = inlined_call_operand.hbm [shape: f32[16,128], index: 3, kind: input, shape index: {}]
  %s4 = inlined_call_operand.hbm [shape: f32[8,128], index: 4, kind: input, shape index: {}]
  %s5 = inlined_call_operand.vmem [shape: f32[2,1,128], index: 5, kind: input, shape index: {}]
  %s6 = inlined_call_operand.hbm [shape: f32[2,1,128], index: 6, kind: input, shape index: {}]
  %s7 = inlined_call_operand.hbm [shape: bf16[2,128,384], index: 7, kind: input, shape index: {}]
  %s8 = inlined_call_operand.vmem [shape: f32[2,1,384], index: 8, kind: input, shape index: {}]
  %s9 = inlined_call_operand.hbm [shape: bf16[2,128,128], index: 9, kind: input, shape index: {}]
  %s10 = inlined_call_operand.vmem [shape: f32[2,1,128], index: 10, kind: input, shape index: {}]
  %s11 = inlined_call_operand.vmem [shape: f32[2,1,128], index: 11, kind: input, shape index: {}]
  %s12 = inlined_call_operand.hbm [shape: f32[2,1,128], index: 12, kind: input, shape index: {}]
  %s13 = inlined_call_operand.hbm [shape: bf16[2,128,512], index: 13, kind: input, shape index: {}]
  %s14 = inlined_call_operand.vmem [shape: f32[2,1,512], index: 14, kind: input, shape index: {}]
  %s15 = inlined_call_operand.hbm [shape: bf16[2,512,128], index: 15, kind: input, shape index: {}]
  %s16 = inlined_call_operand.vmem [shape: f32[2,1,128], index: 16, kind: input, shape index: {}]
  %s17 = inlined_call_operand.vmem [shape: f32[1,128], index: 17, kind: input, shape index: {}]
  %s18 = inlined_call_operand.vmem [shape: f32[1,128], index: 18, kind: input, shape index: {}]
  %s19 = inlined_call_operand.hbm [shape: f32[2,1,128], index: 19, kind: output, shape index: {}]
  %s20 = sld [smem:[#allocation0]]
  $region130: #{tpu_custom_call.1} parent=0
    _
  %s22 = ssub.s32 1, %s20
  %s23 = scalar_select 0, %s22, %s20
  $region1: #{tpu_custom_call.1} parent=0
    #allocation3 [shape = 'u8[8192]{0}', space=vmem, size = 0x2000, scoped, tag = 'input window, operand 0, single buffered']
    #allocation4 [shape = 's32[1]{0}', space=sflag, size = 0x4, scoped, tag = 'scoped memory for tpu_custom_call.1']
    #allocation5 [shape = 's32[1]{0}', space=sflag, size = 0x4, scoped, tag = 'scoped memory for tpu_custom_call.1']
    #allocation6 [shape = 'u8[32768]{0}', space=vmem, size = 0x8000, scoped, tag = 'input window, operand 1, single buffered']
    #allocation7 [shape = 's32[1]{0}', space=sflag, size = 0x4, scoped, tag = 'scoped memory for tpu_custom_call.1']
    #allocation8 [shape = 'u8[512]{0}', space=vmem, size = 0x400, scoped, tag = 'input window, operand 2, single buffered']
    #allocation9 [shape = 'u8[8192]{0}', space=vmem, size = 0x2000, scoped, tag = 'input window, operand 3, single buffered']
    #allocation10 [shape = 's32[1]{0}', space=sflag, size = 0x4, scoped, tag = 'scoped memory for tpu_custom_call.1']
    #allocation11 [shape = 'u8[4096]{0}', space=vmem, size = 0x1000, scoped, tag = 'input window, operand 4, single buffered']
    #allocation12 [shape = 'u8[1024]{0}', space=vmem, size = 0x400, scoped, tag = 'input window, operand 6, single buffered']
    #allocation13 [shape = 's32[1]{0}', space=sflag, size = 0x4, scoped, tag = 'scoped memory for tpu_custom_call.1']
    #allocation14 [shape = 'u8[196608]{0}', space=vmem, size = 0x30000, scoped, tag = 'input window, operand 7, single buffered']
    #allocation15 [shape = 'u8[65536]{0}', space=vmem, size = 0x10000, scoped, tag = 'input window, operand 9, single buffered']
    #allocation16 [shape = 's32[1]{0}', space=sflag, size = 0x4, scoped, tag = 'scoped memory for tpu_custom_call.1']
    #allocation17 [shape = 'u8[1024]{0}', space=vmem, size = 0x400, scoped, tag = 'input window, operand 12, single buffered']
    #allocation18 [shape = 'u8[262144]{0}', space=vmem, size = 0x40000, scoped, tag = 'input window, operand 13, single buffered']
    #allocation19 [shape = 's32[1]{0}', space=sflag, size = 0x4, scoped, tag = 'scoped memory for tpu_custom_call.1']
    #allocation20 [shape = 'u8[262144]{0}', space=vmem, size = 0x40000, scoped, tag = 'input window, operand 15, single buffered']
    #allocation21 [shape = 'u8[1024]{0}', space=vmem, size = 0x400, scoped, tag = 'output window, operand 0, single buffered']
    %24 = vsyncpa [#allocation4], 0
    %25 = vsyncpa [#allocation7], 0
    %26 = vsyncpa [#allocation10], 0
    %27 = vsyncpa [#allocation13], 0
    %28 = vsyncpa [#allocation16], 0
    %29 = vsyncpa [#allocation19], 0
    %30 = vsyncpa [#allocation5], 0
    // Predicated region
    $region2: #{tpu_custom_call.1} parent=1 // pred_check
      _
    $region3: #{tpu_custom_call.1} parent=1 // pred_check_branch
      %32 = sbr.rel (0) target = $region5
    $region4: #{tpu_custom_call.1} parent=1 // pred_region
      %s34 = ssub.s32 256, 256
      %35 = vsyncadd [#allocation4], %s34
      %s36 = sshll.u32 [#allocation3], 4
      %s37 = int_to_ptr.vmem [resolvable:$true] %s36
      %42 = dma.hbm_to_vmem [thread:$0]  %s0, 256, %s37, [#allocation4], 64, 64, 4
    $region5: #{tpu_custom_call.1} parent=1 // pred_fallthru
      _
    // Predicated region
    $region6: #{tpu_custom_call.1} parent=1 // pred_check
      _
    $region7: #{tpu_custom_call.1} parent=1 // pred_check_branch
      %44 = sbr.rel (0) target = $region9
    $region8: #{tpu_custom_call.1} parent=1 // pred_region
      %s46 = ssub.s32 1024, 1024
      %47 = vsyncadd [#allocation7], %s46
      %s48 = sshll.u32 [#allocation6], 4
      %s49 = int_to_ptr.vmem [resolvable:$true] %s48
      %54 = dma.hbm_to_vmem [thread:$0]  %s1, 1024, %s49, [#allocation7], 64, 64, 4
    $region9: #{tpu_custom_call.1} parent=1 // pred_fallthru
      _
    // Predicated region
    $region10: #{tpu_custom_call.1} parent=1 // pred_check
      _
    $region11: #{tpu_custom_call.1} parent=1 // pred_check_branch
      %56 = sbr.rel (0) target = $region13
    $region12: #{tpu_custom_call.1} parent=1 // pred_region
      %s58 = ssub.s32 16, 16
      %59 = vsyncadd [#allocation7], %s58
      %s61 = sshll.u32 [#allocation8], 4
      %s62 = int_to_ptr.vmem [resolvable:$true] %s61
      %64 = dma.hbm_to_vmem [thread:$0]  %s2, 16, %s62, [#allocation7]
    $region13: #{tpu_custom_call.1} parent=1 // pred_fallthru
      _
    // Predicated region
    $region14: #{tpu_custom_call.1} parent=1 // pred_check
      _
    $region15: #{tpu_custom_call.1} parent=1 // pred_check_branch
      %66 = sbr.rel (0) target = $region17
    $region16: #{tpu_custom_call.1} parent=1 // pred_region
      %s68 = ssub.s32 256, 256
      %69 = vsyncadd [#allocation10], %s68
      %s70 = sshll.u32 [#allocation9], 4
      %s71 = int_to_ptr.vmem [resolvable:$true] %s70
      %76 = dma.hbm_to_vmem [thread:$0]  %s3, 256, %s71, [#allocation10], 128, 128, 8
    $region17: #{tpu_custom_call.1} parent=1 // pred_fallthru
      _
    // Predicated region
    $region18: #{tpu_custom_call.1} parent=1 // pred_check
      _
    $region19: #{tpu_custom_call.1} parent=1 // pred_check_branch
      %78 = sbr.rel (0) target = $region21
    $region20: #{tpu_custom_call.1} parent=1 // pred_region
      %s80 = ssub.s32 128, 128
      %81 = vsyncadd [#allocation10], %s80
      %s83 = sshll.u32 [#allocation11], 4
      %s84 = int_to_ptr.vmem [resolvable:$true] %s83
      %86 = dma.hbm_to_vmem [thread:$0]  %s4, 128, %s84, [#allocation10]
    $region21: #{tpu_custom_call.1} parent=1 // pred_fallthru
      _
    // Predicated region
    $region22: #{tpu_custom_call.1} parent=1 // pred_check
      _
    $region23: #{tpu_custom_call.1} parent=1 // pred_check_branch
      %88 = sbr.rel (0) target = $region25
    $region24: #{tpu_custom_call.1} parent=1 // pred_region
      _
    $region25: #{tpu_custom_call.1} parent=1 // pred_fallthru
      _
    // Predicated region
    $region26: #{tpu_custom_call.1} parent=1 // pred_check
      _
    $region27: #{tpu_custom_call.1} parent=1 // pred_check_branch
      %90 = sbr.rel (0) target = $region29
    $region28: #{tpu_custom_call.1} parent=1 // pred_region
      %s92 = ssub.s32 32, 32
      %93 = vsyncadd [#allocation13], %s92
      %s94 = sshll.u32 [#allocation12], 4
      %s95 = int_to_ptr.vmem [resolvable:$true] %s94
      %100 = dma.hbm_to_vmem [thread:$0]  %s6, 32, %s95, [#allocation13], 16, 16, 1
    $region29: #{tpu_custom_call.1} parent=1 // pred_fallthru
      _
    // Predicated region
    $region30: #{tpu_custom_call.1} parent=1 // pred_check
      _
    $region31: #{tpu_custom_call.1} parent=1 // pred_check_branch
      %102 = sbr.rel (0) target = $region33
    $region32: #{tpu_custom_call.1} parent=1 // pred_region
      %s104 = ssub.s32 6144, 6144
      %105 = vsyncadd [#allocation13], %s104
      %s106 = sshll.u32 [#allocation14], 4
      %s107 = int_to_ptr.vmem [resolvable:$true] %s106
      %112 = dma.hbm_to_vmem [thread:$0]  %s7, 6144, %s107, [#allocation13], 192, 192, 12
    $region33: #{tpu_custom_call.1} parent=1 // pred_fallthru
      _
    // Predicated region
    $region34: #{tpu_custom_call.1} parent=1 // pred_check
      _
    $region35: #{tpu_custom_call.1} parent=1 // pred_check_branch
      %114 = sbr.rel (0) target = $region37
    $region36: #{tpu_custom_call.1} parent=1 // pred_region
      _
    $region37: #{tpu_custom_call.1} parent=1 // pred_fallthru
      _
    // Predicated region
    $region38: #{tpu_custom_call.1} parent=1 // pred_check
      _
    $region39: #{tpu_custom_call.1} parent=1 // pred_check_branch
      %116 = sbr.rel (0) target = $region41
    $region40: #{tpu_custom_call.1} parent=1 // pred_region
      %s118 = ssub.s32 2048, 2048
      %119 = vsyncadd [#allocation16], %s118
      %s120 = sshll.u32 [#allocation15], 4
      %s121 = int_to_ptr.vmem [resolvable:$true] %s120
      %126 = dma.hbm_to_vmem [thread:$0]  %s9, 2048, %s121, [#allocation16], 64, 64, 4
    $region41: #{tpu_custom_call.1} parent=1 // pred_fallthru
      _
    // Predicated region
    $region42: #{tpu_custom_call.1} parent=1 // pred_check
      _
    $region43: #{tpu_custom_call.1} parent=1 // pred_check_branch
      %128 = sbr.rel (0) target = $region45
    $region44: #{tpu_custom_call.1} parent=1 // pred_region
      _
    $region45: #{tpu_custom_call.1} parent=1 // pred_fallthru
      _
    // Predicated region
    $region46: #{tpu_custom_call.1} parent=1 // pred_check
      _
    $region47: #{tpu_custom_call.1} parent=1 // pred_check_branch
      %130 = sbr.rel (0) target = $region49
    $region48: #{tpu_custom_call.1} parent=1 // pred_region
      _
    $region49: #{tpu_custom_call.1} parent=1 // pred_fallthru
      _
    // Predicated region
    $region50: #{tpu_custom_call.1} parent=1 // pred_check
      _
    $region51: #{tpu_custom_call.1} parent=1 // pred_check_branch
      %132 = sbr.rel (0) target = $region53
    $region52: #{tpu_custom_call.1} parent=1 // pred_region
      %s134 = ssub.s32 32, 32
      %135 = vsyncadd [#allocation16], %s134
      %s136 = sshll.u32 [#allocation17], 4
      %s137 = int_to_ptr.vmem [resolvable:$true] %s136
      %142 = dma.hbm_to_vmem [thread:$0]  %s12, 32, %s137, [#allocation16], 16, 16, 1
    $region53: #{tpu_custom_call.1} parent=1 // pred_fallthru
      _
    // Predicated region
    $region54: #{tpu_custom_call.1} parent=1 // pred_check
      _
    $region55: #{tpu_custom_call.1} parent=1 // pred_check_branch
      %144 = sbr.rel (0) target = $region57
    $region56: #{tpu_custom_call.1} parent=1 // pred_region
      %s146 = ssub.s32 8192, 8192
      %147 = vsyncadd [#allocation19], %s146
      %s148 = sshll.u32 [#allocation18], 4
      %s149 = int_to_ptr.vmem [resolvable:$true] %s148
      %154 = dma.hbm_to_vmem [thread:$0]  %s13, 8192, %s149, [#allocation19], 256, 256, 16
    $region57: #{tpu_custom_call.1} parent=1 // pred_fallthru
      _
    // Predicated region
    $region58: #{tpu_custom_call.1} parent=1 // pred_check
      _
    $region59: #{tpu_custom_call.1} parent=1 // pred_check_branch
      %156 = sbr.rel (0) target = $region61
    $region60: #{tpu_custom_call.1} parent=1 // pred_region
      _
    $region61: #{tpu_custom_call.1} parent=1 // pred_fallthru
      _
    // Predicated region
    $region62: #{tpu_custom_call.1} parent=1 // pred_check
      _
    $region63: #{tpu_custom_call.1} parent=1 // pred_check_branch
      %158 = sbr.rel (0) target = $region65
    $region64: #{tpu_custom_call.1} parent=1 // pred_region
      %s160 = ssub.s32 8192, 8192
      %161 = vsyncadd [#allocation19], %s160
      %s162 = sshll.u32 [#allocation20], 4
      %s163 = int_to_ptr.vmem [resolvable:$true] %s162
      %168 = dma.hbm_to_vmem [thread:$0]  %s15, 8192, %s163, [#allocation19], 64, 64, 4
    $region65: #{tpu_custom_call.1} parent=1 // pred_fallthru
      _
    // Predicated region
    $region66: #{tpu_custom_call.1} parent=1 // pred_check
      _
    $region67: #{tpu_custom_call.1} parent=1 // pred_check_branch
      %170 = sbr.rel (0) target = $region69
    $region68: #{tpu_custom_call.1} parent=1 // pred_region
      _
    $region69: #{tpu_custom_call.1} parent=1 // pred_fallthru
      _
    // Predicated region
    $region70: #{tpu_custom_call.1} parent=1 // pred_check
      _
    $region71: #{tpu_custom_call.1} parent=1 // pred_check_branch
      %172 = sbr.rel (0) target = $region73
    $region72: #{tpu_custom_call.1} parent=1 // pred_region
      _
    $region73: #{tpu_custom_call.1} parent=1 // pred_fallthru
      _
    // Predicated region
    $region74: #{tpu_custom_call.1} parent=1 // pred_check
      _
    $region75: #{tpu_custom_call.1} parent=1 // pred_check_branch
      %174 = sbr.rel (0) target = $region77
    $region76: #{tpu_custom_call.1} parent=1 // pred_region
      _
    $region77: #{tpu_custom_call.1} parent=1 // pred_fallthru
      _
    // Predicated region
    $region78: #{tpu_custom_call.1} parent=1 // pred_check
      _
    $region79: #{tpu_custom_call.1} parent=1 // pred_check_branch
      %176 = sbr.rel (0) target = $region81
    $region80: #{tpu_custom_call.1} parent=1 // pred_region
      %177 = dma.done [#allocation4], 256
    $region81: #{tpu_custom_call.1} parent=1 // pred_fallthru
      _
    // Predicated region
    $region82: #{tpu_custom_call.1} parent=1 // pred_check
      _
    $region83: #{tpu_custom_call.1} parent=1 // pred_check_branch
      %179 = sbr.rel (0) target = $region85
    $region84: #{tpu_custom_call.1} parent=1 // pred_region
      %180 = dma.done [#allocation7], 1024
    $region85: #{tpu_custom_call.1} parent=1 // pred_fallthru
      _
    // Predicated region
    $region86: #{tpu_custom_call.1} parent=1 // pred_check
      _
    $region87: #{tpu_custom_call.1} parent=1 // pred_check_branch
      %182 = sbr.rel (0) target = $region89
    $region88: #{tpu_custom_call.1} parent=1 // pred_region
      %183 = dma.done [#allocation7], 16
    $region89: #{tpu_custom_call.1} parent=1 // pred_fallthru
      _
    // Predicated region
    $region90: #{tpu_custom_call.1} parent=1 // pred_check
      _
    $region91: #{tpu_custom_call.1} parent=1 // pred_check_branch
      %185 = sbr.rel (0) target = $region93
    $region92: #{tpu_custom_call.1} parent=1 // pred_region
      %186 = dma.done [#allocation10], 256
    $region93: #{tpu_custom_call.1} parent=1 // pred_fallthru
      _
    // Predicated region
    $region94: #{tpu_custom_call.1} parent=1 // pred_check
      _
    $region95: #{tpu_custom_call.1} parent=1 // pred_check_branch
      %188 = sbr.rel (0) target = $region97
    $region96: #{tpu_custom_call.1} parent=1 // pred_region
      %189 = dma.done [#allocation10], 128
    $region97: #{tpu_custom_call.1} parent=1 // pred_fallthru
      _
    // Predicated region
    $region98: #{tpu_custom_call.1} parent=1 // pred_check
      _
    $region99: #{tpu_custom_call.1} parent=1 // pred_check_branch
      %191 = sbr.rel (0) target = $region101
    $region100: #{tpu_custom_call.1} parent=1 // pred_region
      %192 = dma.done [#allocation13], 32
    $region101: #{tpu_custom_call.1} parent=1 // pred_fallthru
      _
    // Predicated region
    $region102: #{tpu_custom_call.1} parent=1 // pred_check
      _
    $region103: #{tpu_custom_call.1} parent=1 // pred_check_branch
      %194 = sbr.rel (0) target = $region105
    $region104: #{tpu_custom_call.1} parent=1 // pred_region
      %195 = dma.done [#allocation13], 6144
    $region105: #{tpu_custom_call.1} parent=1 // pred_fallthru
      _
    // Predicated region
    $region106: #{tpu_custom_call.1} parent=1 // pred_check
      _
    $region107: #{tpu_custom_call.1} parent=1 // pred_check_branch
      %197 = sbr.rel (0) target = $region109
    $region108: #{tpu_custom_call.1} parent=1 // pred_region
      %198 = dma.done [#allocation16], 2048
    $region109: #{tpu_custom_call.1} parent=1 // pred_fallthru
      _
    // Predicated region
    $region110: #{tpu_custom_call.1} parent=1 // pred_check
      _
    $region111: #{tpu_custom_call.1} parent=1 // pred_check_branch
      %200 = sbr.rel (0) target = $region113
    $region112: #{tpu_custom_call.1} parent=1 // pred_region
      %201 = dma.done [#allocation16], 32
    $region113: #{tpu_custom_call.1} parent=1 // pred_fallthru
      _
    // Predicated region
    $region114: #{tpu_custom_call.1} parent=1 // pred_check
      _
    $region115: #{tpu_custom_call.1} parent=1 // pred_check_branch
      %203 = sbr.rel (0) target = $region117
    $region116: #{tpu_custom_call.1} parent=1 // pred_region
      %204 = dma.done [#allocation19], 8192
    $region117: #{tpu_custom_call.1} parent=1 // pred_fallthru
      _
    // Predicated region
    $region118: #{tpu_custom_call.1} parent=1 // pred_check
      _
    $region119: #{tpu_custom_call.1} parent=1 // pred_check_branch
      %206 = sbr.rel (0) target = $region121
    $region120: #{tpu_custom_call.1} parent=1 // pred_region
      %207 = dma.done [#allocation19], 8192
    $region121: #{tpu_custom_call.1} parent=1 // pred_fallthru
      _
    %v209 = vld [vmem:[#allocation3] sm:$0xf]
    %v210 = vld [vmem:[#allocation3 + $0x4] sm:$0xf]
    %v211 = vld [vmem:[#allocation3 + $0x8] sm:$0xf]
    %v212 = vld [vmem:[#allocation3 + $0xc] sm:$0xf]
    %v213 = vld [vmem:[#allocation6] sm:$0xf]
    %v214 = vld [vmem:[#allocation6 + $0x4] sm:$0xf]
    %v215 = vld [vmem:[#allocation6 + $0x8] sm:$0xf]
    %v216 = vld [vmem:[#allocation6 + $0xc] sm:$0xf]
    %v217 = vld [vmem:[#allocation6 + $0x10] sm:$0xf]
    %v218 = vld [vmem:[#allocation6 + $0x14] sm:$0xf]
    %v219 = vld [vmem:[#allocation6 + $0x18] sm:$0xf]
    %v220 = vld [vmem:[#allocation6 + $0x1c] sm:$0xf]
    %v221 = vld [vmem:[#allocation6 + $0x20] sm:$0xf]
    %v222 = vld [vmem:[#allocation6 + $0x24] sm:$0xf]
    %v223 = vld [vmem:[#allocation6 + $0x28] sm:$0xf]
    %v224 = vld [vmem:[#allocation6 + $0x2c] sm:$0xf]
    %v225 = vld [vmem:[#allocation6 + $0x30] sm:$0xf]
    %v226 = vld [vmem:[#allocation6 + $0x34] sm:$0xf]
    %v227 = vld [vmem:[#allocation6 + $0x38] sm:$0xf]
    %v228 = vld [vmem:[#allocation6 + $0x3c] sm:$0xf]
    %v229 = vld [vmem:[#allocation8] sm:$0x1]
    %v231 = vlaneseq
    %v232 = vshrl.u32 %v231, 7
    %v233 = vsub.s32 0, %v232
    %v234 = vrot.slane %v229, %v233
    %v240 = vunpack.c.l.b16 %v209
    %v241 = vunpack.c.l.b16 %v210
    %v242 = vunpack.c.l.b16 %v211
    %v243 = vunpack.c.l.b16 %v212
    %v244 = vpack.c.b16 %v241, %v240
    %v245 = vpack.c.b16 %v243, %v242
    %v264 = vunpack.c.l.b16 %v213
    %v265 = vunpack.c.l.b16 %v214
    %v266 = vunpack.c.l.b16 %v215
    %v267 = vunpack.c.l.b16 %v216
    %v268 = vunpack.c.l.b16 %v217
    %v269 = vunpack.c.l.b16 %v218
    %v270 = vunpack.c.l.b16 %v219
    %v271 = vunpack.c.l.b16 %v220
    %v272 = vunpack.c.l.b16 %v221
    %v273 = vunpack.c.l.b16 %v222
    %v274 = vunpack.c.l.b16 %v223
    %v275 = vunpack.c.l.b16 %v224
    %v276 = vunpack.c.l.b16 %v225
    %v277 = vunpack.c.l.b16 %v226
    %v278 = vunpack.c.l.b16 %v227
    %v279 = vunpack.c.l.b16 %v228
    %v280 = vpack.c.b16 %v265, %v264
    %v281 = vpack.c.b16 %v267, %v266
    %v282 = vpack.c.b16 %v269, %v268
    %v283 = vpack.c.b16 %v271, %v270
    %v284 = vpack.c.b16 %v273, %v272
    %v285 = vpack.c.b16 %v275, %v274
    %v286 = vpack.c.b16 %v277, %v276
    %v287 = vpack.c.b16 %v279, %v278
    %296 = vmatprep.subr.bf16.mxu0 0
    %297 = vmatpush1.bf16.msra.mxu0 %v287
    %298 = vmatprep.subr.bf16.mxu0 0
    %299 = vmatpush1.bf16.msra.mxu0 %v286
    %300 = vmatprep.subr.bf16.mxu0 0
    %301 = vmatpush1.bf16.msra.mxu0 %v285
    %302 = vmatprep.subr.bf16.mxu0 0
    %303 = vmatpush1.bf16.msra.mxu0 %v284
    %304 = vmatprep.subr.bf16.mxu0 0
    %305 = vmatpush1.bf16.msra.mxu0 %v283
    %306 = vmatprep.subr.bf16.mxu0 0
    %307 = vmatpush1.bf16.msra.mxu0 %v282
    %308 = vmatprep.subr.bf16.mxu0 0
    %309 = vmatpush1.bf16.msra.mxu0 %v281
    %310 = vmatprep.subr.bf16.mxu0 0
    %311 = vmatpush1.bf16.msra.mxu0 %v280
    %312 = vmatprep.subr.bf16.mxu0 0
    %313 = vmatpush2.bf16.msra.mxu0 0
    %314 = vmatprep.subr.bf16.mxu0 0
    %315 = vmatpush2.bf16.msra.mxu0 0
    %316 = vmatprep.subr.bf16.mxu0 0
    %317 = vmatpush2.bf16.msra.mxu0 0
    %318 = vmatprep.subr.bf16.mxu0 0
    %319 = vmatpush2.bf16.msra.mxu0 0
    %320 = vmatprep.subr.bf16.mxu0 0
    %321 = vmatpush2.bf16.msra.mxu0 0
    %322 = vmatprep.subr.bf16.mxu0 0
    %323 = vmatpush2.bf16.msra.mxu0 0
    %324 = vmatprep.subr.bf16.mxu0 0
    %325 = vmatpush2.bf16.msra.mxu0 0
    %326 = vmatprep.subr.bf16.mxu0 0
    %327 = vmatpush2.bf16.msra.mxu0 0
    %328 = vmatprep.mubr.bf16.mxu0 0
    %329 = vmatmul.mubr.bf16.gmra.mxu0 %v244
    %v330 = vpop.f32.mrf.mxu0
    %v331 = vadd.f32 %v234, %v330
    %v332 = vpop.f32.mrf.mxu0
    %v333 = vpop.f32.mrf.mxu0
    %v334 = vadd.f32 %v234, %v333
    %v335 = vpop.f32.mrf.mxu0
    %336 = vmatprep.mubr.bf16.mxu0 0
    %337 = vmatmul.mubr.bf16.gmra.mxu0 %v245
    %v338 = vpop.f32.mrf.mxu0
    %v339 = vadd.f32 %v234, %v338
    %v340 = vpop.f32.mrf.mxu0
    %v341 = vpop.f32.mrf.mxu0
    %v342 = vadd.f32 %v234, %v341
    %v343 = vpop.f32.mrf.mxu0
    %344 = vdwg.mxu0
    %v345 = vld [vmem:[#allocation9] sm:$0xff]
    %v346 = vld [vmem:[#allocation9 + $0x8] sm:$0xff]
    %v347 = vld [vmem:[#allocation11] sm:$0xff]
    %v348 = vadd.f32 %v331, %v345
    %v349 = vadd.f32 %v334, %v346
    %350 = vst [vmem:[#allocation2] sm:$0xff] %v348
    %351 = vst [vmem:[#allocation2 + $0x8] sm:$0xff] %v349
    %352 = vst [vmem:[#allocation2 + $0x10] sm:$0xff] %v347
    %v353 = vadd.f32 %v339, %v345
    %v354 = vadd.f32 %v342, %v346
    %355 = vst [vmem:[#allocation2 + $0x18] sm:$0xff] %v353
    %356 = vst [vmem:[#allocation2 + $0x20] sm:$0xff] %v354
    %357 = vst [vmem:[#allocation2 + $0x28] sm:$0xff] %v347
    %v358 = vlaneseq
    %v359 = vand.u32 %v358, 127
    %vm360 = vcmp.le.s32.totalorder %v359, 16
    %v361 = vsel %vm360, 0.0, -1e+30
    %v362 = vld [vmem:[#allocation2] sm:$0xff]
    %v363 = vld [vmem:[#allocation2 + $0x8] sm:$0xff]
    %v364 = vld [vmem:[#allocation2 + $0x10] sm:$0xff]
    %v365 = vld [vmem:[#allocation2 + $0x18] sm:$0xff]
    %v366 = vld [vmem:[#allocation2 + $0x20] sm:$0xff]
    %v367 = vld [vmem:[#allocation2 + $0x28] sm:$0xff]
    %v368 = vld [vmem:[%s5] sm:$0x1]
    %v369 = vld [vmem:[#allocation12] sm:$0x1]
    %370 = vadd.xlane.f32.xlu0 %v362
    %v371 = vpop.xlane.xlu0 %370
    %372 = vadd.xlane.f32.xlu0 %v363
    %v373 = vpop.xlane.xlu0 %372
    %374 = vadd.xlane.f32.xlu0 %v364
    %v375 = vpop.xlane.xlu0 %374
    %376 = vadd.xlane.f32.xlu0 %v365
    %v377 = vpop.xlane.xlu0 %376
    %378 = vadd.xlane.f32.xlu0 %v366
    %v379 = vpop.xlane.xlu0 %378
    %380 = vadd.xlane.f32.xlu0 %v367
    %v381 = vpop.xlane.xlu0 %380
    %v382 = vrcp.pop 128.0
    %v383 = vmul.f32 %v371, %v382
    %v384 = vmul.f32 %v373, %v382
    %v385 = vmul.f32 %v375, %v382
    %v386 = vmul.f32 %v377, %v382
    %v387 = vmul.f32 %v379, %v382
    %v388 = vmul.f32 %v381, %v382
    %v389 = vsub.f32 %v362, %v383
    %v390 = vsub.f32 %v363, %v384
    %v391 = vsub.f32 %v364, %v385
    %v392 = vsub.f32 %v365, %v386
    %v393 = vsub.f32 %v366, %v387
    %v394 = vsub.f32 %v367, %v388
    %v395 = vmul.f32 %v389, %v389
    %v396 = vmul.f32 %v390, %v390
    %v397 = vmul.f32 %v391, %v391
    %v398 = vmul.f32 %v392, %v392
    %v399 = vmul.f32 %v393, %v393
    %v400 = vmul.f32 %v394, %v394
    %401 = vadd.xlane.f32.xlu0 %v395
    %v402 = vpop.xlane.xlu0 %401
    %403 = vadd.xlane.f32.xlu0 %v396
    %v404 = vpop.xlane.xlu0 %403
    %405 = vadd.xlane.f32.xlu0 %v397
    %v406 = vpop.xlane.xlu0 %405
    %407 = vadd.xlane.f32.xlu0 %v398
    %v408 = vpop.xlane.xlu0 %407
    %409 = vadd.xlane.f32.xlu0 %v399
    %v410 = vpop.xlane.xlu0 %409
    %411 = vadd.xlane.f32.xlu0 %v400
    %v412 = vpop.xlane.xlu0 %411
    %v413 = vmul.f32 %v402, %v382
    %v414 = vmul.f32 %v404, %v382
    %v415 = vmul.f32 %v406, %v382
    %v416 = vmul.f32 %v408, %v382
    %v417 = vmul.f32 %v410, %v382
    %v418 = vmul.f32 %v412, %v382
    %v419 = vadd.f32 %v413, 1e-06
    %v420 = vadd.f32 %v414, 1e-06
    %v421 = vadd.f32 %v415, 1e-06
    %v422 = vadd.f32 %v416, 1e-06
    %v423 = vadd.f32 %v417, 1e-06
    %v424 = vadd.f32 %v418, 1e-06
    %v425 = vrsqrt.pop %v419
    %v426 = vrsqrt.pop %v420
    %v427 = vrsqrt.pop %v421
    %v428 = vrsqrt.pop %v422
    %v429 = vrsqrt.pop %v423
    %v430 = vrsqrt.pop %v424
    %v431 = vmul.f32 %v389, %v425
    %v432 = vmul.f32 %v390, %v426
    %v433 = vmul.f32 %v391, %v427
    %v434 = vmul.f32 %v392, %v428
    %v435 = vmul.f32 %v393, %v429
    %v436 = vmul.f32 %v394, %v430
    %v438 = vlaneseq
    %v439 = vshrl.u32 %v438, 7
    %v440 = vsub.s32 0, %v439
    %v441 = vrot.slane %v368, %v440
    %v443 = vmul.f32 %v431, %v441
    %v444 = vmul.f32 %v432, %v441
    %v445 = vmul.f32 %v433, %v441
    %v446 = vmul.f32 %v434, %v441
    %v447 = vmul.f32 %v435, %v441
    %v448 = vmul.f32 %v436, %v441
    %v450 = vlaneseq
    %v451 = vshrl.u32 %v450, 7
    %v452 = vsub.s32 0, %v451
    %v453 = vrot.slane %v369, %v452
    %v455 = vadd.f32 %v443, %v453
    %v456 = vadd.f32 %v444, %v453
    %v457 = vadd.f32 %v445, %v453
    %v458 = vadd.f32 %v446, %v453
    %v459 = vadd.f32 %v447, %v453
    %v460 = vadd.f32 %v448, %v453
    %v461 = vpack.c.bf16 %v456, %v455
    %v462 = vpack.c.bf16 %v458, %v457
    %v463 = vpack.c.bf16 %v460, %v459
    %v464 = vld [vmem:[#allocation14] sm:$0xff]
    %v465 = vld [vmem:[#allocation14 + $0x8] sm:$0xf]
    %v466 = vld [vmem:[#allocation14 + $0xc] sm:$0xff]
    %v467 = vld [vmem:[#allocation14 + $0x14] sm:$0xf]
    %v468 = vld [vmem:[#allocation14 + $0x18] sm:$0xff]
    %v469 = vld [vmem:[#allocation14 + $0x20] sm:$0xf]
    %v470 = vld [vmem:[#allocation14 + $0x24] sm:$0xff]
    %v471 = vld [vmem:[#allocation14 + $0x2c] sm:$0xf]
    %v472 = vld [vmem:[#allocation14 + $0x30] sm:$0xff]
    %v473 = vld [vmem:[#allocation14 + $0x38] sm:$0xf]
    %v474 = vld [vmem:[#allocation14 + $0x3c] sm:$0xff]
    %v475 = vld [vmem:[#allocation14 + $0x44] sm:$0xf]
    %v476 = vld [vmem:[#allocation14 + $0x48] sm:$0xff]
    %v477 = vld [vmem:[#allocation14 + $0x50] sm:$0xf]
    %v478 = vld [vmem:[#allocation14 + $0x54] sm:$0xff]
    %v479 = vld [vmem:[#allocation14 + $0x5c] sm:$0xf]
    %v480 = vld [vmem:[#allocation14 + $0x60] sm:$0xff]
    %v481 = vld [vmem:[#allocation14 + $0x68] sm:$0xf]
    %v482 = vld [vmem:[#allocation14 + $0x6c] sm:$0xff]
    %v483 = vld [vmem:[#allocation14 + $0x74] sm:$0xf]
    %v484 = vld [vmem:[#allocation14 + $0x78] sm:$0xff]
    %v485 = vld [vmem:[#allocation14 + $0x80] sm:$0xf]
    %v486 = vld [vmem:[#allocation14 + $0x84] sm:$0xff]
    %v487 = vld [vmem:[#allocation14 + $0x8c] sm:$0xf]
    %v488 = vld [vmem:[#allocation14 + $0x90] sm:$0xff]
    %v489 = vld [vmem:[#allocation14 + $0x98] sm:$0xf]
    %v490 = vld [vmem:[#allocation14 + $0x9c] sm:$0xff]
    %v491 = vld [vmem:[#allocation14 + $0xa4] sm:$0xf]
    %v492 = vld [vmem:[#allocation14 + $0xa8] sm:$0xff]
    %v493 = vld [vmem:[#allocation14 + $0xb0] sm:$0xf]
    %v494 = vld [vmem:[#allocation14 + $0xb4] sm:$0xff]
    %v495 = vld [vmem:[#allocation14 + $0xbc] sm:$0xf]
    %v496 = vld [vmem:[%s8] sm:$0x7]
    %v498 = vlaneseq
    %v499 = vshrl.u32 %v498, 7
    %v500 = vsub.s32 0, %v499
    %v501 = vrot.slane %v496, %v500
    %v502 = vlaneseq
    %v503 = vshrl.u32 %v502, 7
    %v504 = vsub.s32 1, %v503
    %v505 = vrot.slane %v496, %v504
    %v506 = vlaneseq
    %v507 = vshrl.u32 %v506, 7
    %v508 = vsub.s32 2, %v507
    %v509 = vrot.slane %v496, %v508
    %v545 = vunpack.c.l.b16 %v464
    %v546 = vunpack.c.h.b16 %v464
    %v547 = vunpack.c.l.b16 %v465
    %v548 = vunpack.c.l.b16 %v466
    %v549 = vunpack.c.h.b16 %v466
    %v550 = vunpack.c.l.b16 %v467
    %v551 = vunpack.c.l.b16 %v468
    %v552 = vunpack.c.h.b16 %v468
    %v553 = vunpack.c.l.b16 %v469
    %v554 = vunpack.c.l.b16 %v470
    %v555 = vunpack.c.h.b16 %v470
    %v556 = vunpack.c.l.b16 %v471
    %v557 = vunpack.c.l.b16 %v472
    %v558 = vunpack.c.h.b16 %v472
    %v559 = vunpack.c.l.b16 %v473
    %v560 = vunpack.c.l.b16 %v474
    %v561 = vunpack.c.h.b16 %v474
    %v562 = vunpack.c.l.b16 %v475
    %v563 = vunpack.c.l.b16 %v476
    %v564 = vunpack.c.h.b16 %v476
    %v565 = vunpack.c.l.b16 %v477
    %v566 = vunpack.c.l.b16 %v478
    %v567 = vunpack.c.h.b16 %v478
    %v568 = vunpack.c.l.b16 %v479
    %v569 = vunpack.c.l.b16 %v480
    %v570 = vunpack.c.h.b16 %v480
    %v571 = vunpack.c.l.b16 %v481
    %v572 = vunpack.c.l.b16 %v482
    %v573 = vunpack.c.h.b16 %v482
    %v574 = vunpack.c.l.b16 %v483
    %v575 = vunpack.c.l.b16 %v484
    %v576 = vunpack.c.h.b16 %v484
    %v577 = vunpack.c.l.b16 %v485
    %v578 = vunpack.c.l.b16 %v486
    %v579 = vunpack.c.h.b16 %v486
    %v580 = vunpack.c.l.b16 %v487
    %v581 = vunpack.c.l.b16 %v488
    %v582 = vunpack.c.h.b16 %v488
    %v583 = vunpack.c.l.b16 %v489
    %v584 = vunpack.c.l.b16 %v490
    %v585 = vunpack.c.h.b16 %v490
    %v586 = vunpack.c.l.b16 %v491
    %v587 = vunpack.c.l.b16 %v492
    %v588 = vunpack.c.h.b16 %v492
    %v589 = vunpack.c.l.b16 %v493
    %v590 = vunpack.c.l.b16 %v494
    %v591 = vunpack.c.h.b16 %v494
    %v592 = vunpack.c.l.b16 %v495
    %v593 = vpack.c.b16 %v548, %v545
    %v594 = vpack.c.b16 %v549, %v546
    %v595 = vpack.c.b16 %v550, %v547
    %v596 = vpack.c.b16 %v554, %v551
    %v597 = vpack.c.b16 %v555, %v552
    %v598 = vpack.c.b16 %v556, %v553
    %v599 = vpack.c.b16 %v560, %v557
    %v600 = vpack.c.b16 %v561, %v558
    %v601 = vpack.c.b16 %v562, %v559
    %v602 = vpack.c.b16 %v566, %v563
    %v603 = vpack.c.b16 %v567, %v564
    %v604 = vpack.c.b16 %v568, %v565
    %v605 = vpack.c.b16 %v572, %v569
    %v606 = vpack.c.b16 %v573, %v570
    %v607 = vpack.c.b16 %v574, %v571
    %v608 = vpack.c.b16 %v578, %v575
    %v609 = vpack.c.b16 %v579, %v576
    %v610 = vpack.c.b16 %v580, %v577
    %v611 = vpack.c.b16 %v584, %v581
    %v612 = vpack.c.b16 %v585, %v582
    %v613 = vpack.c.b16 %v586, %v583
    %v614 = vpack.c.b16 %v590, %v587
    %v615 = vpack.c.b16 %v591, %v588
    %v616 = vpack.c.b16 %v592, %v589
    %641 = vmatprep.subr.bf16.mxu0 %v615
    %642 = vmatpush1.bf16.msra.mxu0 %v614
    %643 = vmatprep.subr.bf16.mxu0 %v612
    %644 = vmatpush1.bf16.msra.mxu0 %v611
    %645 = vmatprep.subr.bf16.mxu0 %v609
    %646 = vmatpush1.bf16.msra.mxu0 %v608
    %647 = vmatprep.subr.bf16.mxu0 %v606
    %648 = vmatpush1.bf16.msra.mxu0 %v605
    %649 = vmatprep.subr.bf16.mxu0 %v603
    %650 = vmatpush1.bf16.msra.mxu0 %v602
    %651 = vmatprep.subr.bf16.mxu0 %v600
    %652 = vmatpush1.bf16.msra.mxu0 %v599
    %653 = vmatprep.subr.bf16.mxu0 %v597
    %654 = vmatpush1.bf16.msra.mxu0 %v596
    %655 = vmatprep.subr.bf16.mxu0 %v594
    %656 = vmatpush1.bf16.msra.mxu0 %v593
    %657 = vmatprep.subr.bf16.mxu0 0
    %658 = vmatpush2.bf16.msra.mxu0 0
    %659 = vmatprep.subr.bf16.mxu0 0
    %660 = vmatpush2.bf16.msra.mxu0 0
    %661 = vmatprep.subr.bf16.mxu0 0
    %662 = vmatpush2.bf16.msra.mxu0 0
    %663 = vmatprep.subr.bf16.mxu0 0
    %664 = vmatpush2.bf16.msra.mxu0 0
    %665 = vmatprep.subr.bf16.mxu0 0
    %666 = vmatpush2.bf16.msra.mxu0 0
    %667 = vmatprep.subr.bf16.mxu0 0
    %668 = vmatpush2.bf16.msra.mxu0 0
    %669 = vmatprep.subr.bf16.mxu0 0
    %670 = vmatpush2.bf16.msra.mxu0 0
    %671 = vmatprep.subr.bf16.mxu0 0
    %672 = vmatpush2.bf16.msra.mxu0 0
    %673 = vmatprep.mubr.bf16.mxu0 0
    %674 = vmatmul.mubr.bf16.gmra.mxu0 %v461
    %v675 = vpop.f32.mrf.mxu0
    %v676 = vadd.f32 %v501, %v675
    %v677 = vpop.f32.mrf.mxu0
    %v678 = vadd.f32 %v505, %v677
    %v679 = vpop.f32.mrf.mxu0
    %v680 = vadd.f32 %v501, %v679
    %v681 = vpop.f32.mrf.mxu0
    %v682 = vadd.f32 %v505, %v681
    %683 = vmatprep.mubr.bf16.mxu0 0
    %684 = vmatmul.mubr.bf16.gmra.mxu0 %v462
    %v685 = vpop.f32.mrf.mxu0
    %v686 = vadd.f32 %v501, %v685
    %v687 = vpop.f32.mrf.mxu0
    %v688 = vadd.f32 %v505, %v687
    %v689 = vpop.f32.mrf.mxu0
    %v690 = vadd.f32 %v501, %v689
    %v691 = vpop.f32.mrf.mxu0
    %v692 = vadd.f32 %v505, %v691
    %693 = vmatprep.mubr.bf16.mxu0 0
    %694 = vmatmul.mubr.bf16.gmra.mxu0 %v463
    %v695 = vpop.f32.mrf.mxu0
    %v696 = vadd.f32 %v501, %v695
    %v697 = vpop.f32.mrf.mxu0
    %v698 = vadd.f32 %v505, %v697
    %v699 = vpop.f32.mrf.mxu0
    %v700 = vadd.f32 %v501, %v699
    %v701 = vpop.f32.mrf.mxu0
    %v702 = vadd.f32 %v505, %v701
    %703 = vdwg.mxu0
    %704 = vmatprep.subr.bf16.mxu0 0
    %705 = vmatpush1.bf16.msra.mxu0 %v616
    %706 = vmatprep.subr.bf16.mxu0 0
    %707 = vmatpush1.bf16.msra.mxu0 %v613
    %708 = vmatprep.subr.bf16.mxu0 0
    %709 = vmatpush1.bf16.msra.mxu0 %v610
    %710 = vmatprep.subr.bf16.mxu0 0
    %711 = vmatpush1.bf16.msra.mxu0 %v607
    %712 = vmatprep.subr.bf16.mxu0 0
    %713 = vmatpush1.bf16.msra.mxu0 %v604
    %714 = vmatprep.subr.bf16.mxu0 0
    %715 = vmatpush1.bf16.msra.mxu0 %v601
    %716 = vmatprep.subr.bf16.mxu0 0
    %717 = vmatpush1.bf16.msra.mxu0 %v598
    %718 = vmatprep.subr.bf16.mxu0 0
    %719 = vmatpush1.bf16.msra.mxu0 %v595
    %720 = vmatprep.subr.bf16.mxu0 0
    %721 = vmatpush2.bf16.msra.mxu0 0
    %722 = vmatprep.subr.bf16.mxu0 0
    %723 = vmatpush2.bf16.msra.mxu0 0
    %724 = vmatprep.subr.bf16.mxu0 0
    %725 = vmatpush2.bf16.msra.mxu0 0
    %726 = vmatprep.subr.bf16.mxu0 0
    %727 = vmatpush2.bf16.msra.mxu0 0
    %728 = vmatprep.subr.bf16.mxu0 0
    %729 = vmatpush2.bf16.msra.mxu0 0
    %730 = vmatprep.subr.bf16.mxu0 0
    %731 = vmatpush2.bf16.msra.mxu0 0
    %732 = vmatprep.subr.bf16.mxu0 0
    %733 = vmatpush2.bf16.msra.mxu0 0
    %734 = vmatprep.subr.bf16.mxu0 0
    %735 = vmatpush2.bf16.msra.mxu0 0
    %736 = vmatprep.mubr.bf16.mxu0 0
    %737 = vmatmul.mubr.bf16.gmra.mxu0 %v461
    %v738 = vpop.f32.mrf.mxu0
    %v739 = vadd.f32 %v509, %v738
    %v740 = vpop.f32.mrf.mxu0
    %v741 = vpop.f32.mrf.mxu0
    %v742 = vadd.f32 %v509, %v741
    %v743 = vpop.f32.mrf.mxu0
    %744 = vmatprep.mubr.bf16.mxu0 0
    %745 = vmatmul.mubr.bf16.gmra.mxu0 %v462
    %v746 = vpop.f32.mrf.mxu0
    %v747 = vadd.f32 %v509, %v746
    %v748 = vpop.f32.mrf.mxu0
    %v749 = vpop.f32.mrf.mxu0
    %v750 = vadd.f32 %v509, %v749
    %v751 = vpop.f32.mrf.mxu0
    %752 = vmatprep.mubr.bf16.mxu0 0
    %753 = vmatmul.mubr.bf16.gmra.mxu0 %v463
    %v754 = vpop.f32.mrf.mxu0
    %v755 = vadd.f32 %v509, %v754
    %v756 = vpop.f32.mrf.mxu0
    %v757 = vpop.f32.mrf.mxu0
    %v758 = vadd.f32 %v509, %v757
    %v759 = vpop.f32.mrf.mxu0
    %760 = vdwg.mxu0
    %v761 = vld [vmem:[#allocation15] sm:$0xf]
    %v762 = vld [vmem:[#allocation15 + $0x4] sm:$0xf]
    %v763 = vld [vmem:[#allocation15 + $0x8] sm:$0xf]
    %v764 = vld [vmem:[#allocation15 + $0xc] sm:$0xf]
    %v765 = vld [vmem:[#allocation15 + $0x10] sm:$0xf]
    %v766 = vld [vmem:[#allocation15 + $0x14] sm:$0xf]
    %v767 = vld [vmem:[#allocation15 + $0x18] sm:$0xf]
    %v768 = vld [vmem:[#allocation15 + $0x1c] sm:$0xf]
    %v769 = vld [vmem:[#allocation15 + $0x20] sm:$0xf]
    %v770 = vld [vmem:[#allocation15 + $0x24] sm:$0xf]
    %v771 = vld [vmem:[#allocation15 + $0x28] sm:$0xf]
    %v772 = vld [vmem:[#allocation15 + $0x2c] sm:$0xf]
    %v773 = vld [vmem:[#allocation15 + $0x30] sm:$0xf]
    %v774 = vld [vmem:[#allocation15 + $0x34] sm:$0xf]
    %v775 = vld [vmem:[#allocation15 + $0x38] sm:$0xf]
    %v776 = vld [vmem:[#allocation15 + $0x3c] sm:$0xf]
    %v777 = vpack.c.bf16 %v680, %v676
    %v778 = vpack.c.bf16 %v686, %v686
    %v779 = vpack.c.bf16 %v682, %v678
    %v780 = vpack.c.bf16 %v688, %v688
    %v781 = vpack.c.bf16 %v742, %v739
    %v782 = vpack.c.bf16 %v747, %v747
    %vm783 = vcmask 261120
    %v785 = vsel %vm783, %v777, 0
    %v788 = vsel %vm783, %v778, 0
    %v791 = vsel %vm783, %v779, 0
    %v794 = vsel %vm783, %v780, 0
    %796 = vmatprep.subr.bf16.mxu0 0
    %797 = vmatpush1.bf16.xpose.msra.mxu0 0
    %798 = vmatprep.subr.bf16.mxu0 0
    %799 = vmatpush1.bf16.xpose.msra.mxu0 0
    %800 = vmatprep.subr.bf16.mxu0 0
    %801 = vmatpush1.bf16.xpose.msra.mxu0 0
    %802 = vmatprep.subr.bf16.mxu0 0
    %803 = vmatpush1.bf16.xpose.msra.mxu0 0
    %804 = vmatprep.subr.bf16.mxu0 0
    %805 = vmatpush1.bf16.xpose.msra.mxu0 0
    %806 = vmatprep.subr.bf16.mxu0 0
    %807 = vmatpush1.bf16.xpose.msra.mxu0 0
    %808 = vmatprep.subr.bf16.mxu0 0
    %809 = vmatpush1.bf16.xpose.msra.mxu0 %v794
    %810 = vmatprep.subr.bf16.mxu0 0
    %811 = vmatpush1.bf16.xpose.msra.mxu0 %v791
    %812 = vmatprep.subr.bf16.mxu0 0
    %813 = vmatpush2.bf16.xpose.msra.mxu0 0
    %814 = vmatprep.subr.bf16.mxu0 0
    %815 = vmatpush2.bf16.xpose.msra.mxu0 0
    %816 = vmatprep.subr.bf16.mxu0 0
    %817 = vmatpush2.bf16.xpose.msra.mxu0 0
    %818 = vmatprep.subr.bf16.mxu0 0
    %819 = vmatpush2.bf16.xpose.msra.mxu0 0
    %820 = vmatprep.subr.bf16.mxu0 0
    %821 = vmatpush2.bf16.xpose.msra.mxu0 0
    %822 = vmatprep.subr.bf16.mxu0 0
    %823 = vmatpush2.bf16.xpose.msra.mxu0 0
    %824 = vmatprep.subr.bf16.mxu0 0
    %825 = vmatpush2.bf16.xpose.msra.mxu0 0
    %826 = vmatprep.subr.bf16.mxu0 0
    %827 = vmatpush2.bf16.xpose.msra.mxu0 0
    %828 = vmatprep.mubr.bf16.mxu0 0
    %829 = vmatmul.mubr.bf16.gmra.mxu0 %v785
    %v830 = vpop.f32.mrf.mxu0
    %v831 = vadd.f32 0.0, %v830
    %v832 = vpop.f32.mrf.mxu0
    %v833 = vpop.f32.mrf.mxu0
    %v834 = vadd.f32 0.0, %v833
    %v835 = vpop.f32.mrf.mxu0
    %836 = vmatprep.mubr.bf16.mxu0 0
    %837 = vmatmul.mubr.bf16.gmra.mxu0 %v788
    %v838 = vpop.f32.mrf.mxu0
    %v839 = vadd.f32 0.0, %v838
    %v840 = vpop.f32.mrf.mxu0
    %v841 = vpop.f32.mrf.mxu0
    %v842 = vpop.f32.mrf.mxu0
    %843 = vdwg.mxu0
    %v844 = vmul.f32 %v831, 0.17677669
    %v845 = vmul.f32 %v834, 0.17677669
    %v846 = vmul.f32 %v839, 0.17677669
    %v847 = vadd.f32 %v844, %v361
    %v848 = vadd.f32 %v845, %v361
    %v849 = vadd.f32 %v846, %v361
    %vm850 = vcmask 195584
    %v851 = vsel %vm850, %v847, -inf
    %852 = vmax.xlane.f32.xlu0 %v851
    %v853 = vpop.xlane.xlu0 %852
    %v854 = vsel %vm850, %v848, -inf
    %855 = vmax.xlane.f32.xlu0 %v854
    %v856 = vpop.xlane.xlu0 %855
    %v857 = vsel %vm850, %v849, -inf
    %858 = vmax.xlane.f32.xlu0 %v857
    %v859 = vpop.xlane.xlu0 %858
    %v860 = vsub.f32 %v847, %v853
    %v861 = vsub.f32 %v848, %v856
    %v862 = vsub.f32 %v849, %v859
    %v863 = vmul.f32 %v860, 1.442695
    %v864 = vpow.pop %v863
    %v865 = vmul.f32 %v861, 1.442695
    %v866 = vpow.pop %v865
    %v867 = vmul.f32 %v862, 1.442695
    %v868 = vpow.pop %v867
    %v869 = vsel %vm850, %v864, 0.0
    %870 = vadd.xlane.f32.xlu0 %v869
    %v871 = vpop.xlane.xlu0 %870
    %v872 = vsel %vm850, %v866, 0.0
    %873 = vadd.xlane.f32.xlu0 %v872
    %v874 = vpop.xlane.xlu0 %873
    %v875 = vsel %vm850, %v868, 0.0
    %876 = vadd.xlane.f32.xlu0 %v875
    %v877 = vpop.xlane.xlu0 %876
    %v878 = vrcp.pop %v871
    %v879 = vrcp.pop %v874
    %v880 = vrcp.pop %v877
    %v881 = vmul.f32 %v864, %v878
    %v882 = vmul.f32 %v866, %v879
    %v883 = vmul.f32 %v868, %v880
    %v884 = vpack.c.bf16 %v882, %v881
    %v885 = vpack.c.bf16 %v883, %v883
    %v887 = vsel %vm850, %v884, 0
    %v890 = vsel %vm850, %v885, 0
    %vm892 = vcmask 1043456
    %v894 = vsel %vm892, %v782, 0
    %896 = vmatprep.subr.bf16.mxu0 0
    %897 = vmatpush1.bf16.msra.mxu0 0
    %898 = vmatprep.subr.bf16.mxu0 0
    %899 = vmatpush1.bf16.msra.mxu0 0
    %900 = vmatprep.subr.bf16.mxu0 0
    %901 = vmatpush1.bf16.msra.mxu0 0
    %902 = vmatprep.subr.bf16.mxu0 0
    %903 = vmatpush1.bf16.msra.mxu0 0
    %904 = vmatprep.subr.bf16.mxu0 0
    %905 = vmatpush1.bf16.msra.mxu0 0
    %906 = vmatprep.subr.bf16.mxu0 0
    %907 = vmatpush1.bf16.msra.mxu0 0
    %908 = vmatprep.subr.bf16.mxu0 0
    %909 = vmatpush1.bf16.msra.mxu0 %v894
    %910 = vmatprep.subr.bf16.mxu0 0
    %911 = vmatpush1.bf16.msra.mxu0 %v781
    %912 = vmatprep.subr.bf16.mxu0 0
    %913 = vmatpush2.bf16.msra.mxu0 0
    %914 = vmatprep.subr.bf16.mxu0 0
    %915 = vmatpush2.bf16.msra.mxu0 0
    %916 = vmatprep.subr.bf16.mxu0 0
    %917 = vmatpush2.bf16.msra.mxu0 0
    %918 = vmatprep.subr.bf16.mxu0 0
    %919 = vmatpush2.bf16.msra.mxu0 0
    %920 = vmatprep.subr.bf16.mxu0 0
    %921 = vmatpush2.bf16.msra.mxu0 0
    %922 = vmatprep.subr.bf16.mxu0 0
    %923 = vmatpush2.bf16.msra.mxu0 0
    %924 = vmatprep.subr.bf16.mxu0 0
    %925 = vmatpush2.bf16.msra.mxu0 0
    %926 = vmatprep.subr.bf16.mxu0 0
    %927 = vmatpush2.bf16.msra.mxu0 0
    %928 = vmatprep.mubr.bf16.mxu0 0
    %929 = vmatmul.mubr.bf16.gmra.mxu0 %v887
    %v930 = vpop.f32.mrf.mxu0
    %v931 = vadd.f32 0.0, %v930
    %v932 = vpop.f32.mrf.mxu0
    %v933 = vpop.f32.mrf.mxu0
    %v934 = vadd.f32 0.0, %v933
    %v935 = vpop.f32.mrf.mxu0
    %936 = vmatprep.mubr.bf16.mxu0 0
    %937 = vmatmul.mubr.bf16.gmra.mxu0 %v890
    %v938 = vpop.f32.mrf.mxu0
    %v939 = vadd.f32 0.0, %v938
    %v940 = vpop.f32.mrf.mxu0
    %v941 = vpop.f32.mrf.mxu0
    %v942 = vpop.f32.mrf.mxu0
    %943 = vdwg.mxu0
    %v944 = vpack.c.bf16 %v934, %v931
    %v945 = vpack.c.bf16 %v939, %v939
    %948 = vrot.lane.b32.xlu0 %v777, 96
    %v949 = vpop.permute.xlu0 %948
    %950 = vrot.lane.b32.xlu0 %v778, 96
    %v951 = vpop.permute.xlu0 %950
    %954 = vrot.lane.b32.xlu0 %v779, 96
    %v955 = vpop.permute.xlu0 %954
    %956 = vrot.lane.b32.xlu0 %v780, 96
    %v957 = vpop.permute.xlu0 %956
    %v959 = vsel %vm783, %v949, 0
    %v962 = vsel %vm783, %v951, 0
    %v965 = vsel %vm783, %v955, 0
    %v968 = vsel %vm783, %v957, 0
    %970 = vmatprep.subr.bf16.mxu0 0
    %971 = vmatpush1.bf16.xpose.msra.mxu0 0
    %972 = vmatprep.subr.bf16.mxu0 0
    %973 = vmatpush1.bf16.xpose.msra.mxu0 0
    %974 = vmatprep.subr.bf16.mxu0 0
    %975 = vmatpush1.bf16.xpose.msra.mxu0 0
    %976 = vmatprep.subr.bf16.mxu0 0
    %977 = vmatpush1.bf16.xpose.msra.mxu0 0
    %978 = vmatprep.subr.bf16.mxu0 0
    %979 = vmatpush1.bf16.xpose.msra.mxu0 0
    %980 = vmatprep.subr.bf16.mxu0 0
    %981 = vmatpush1.bf16.xpose.msra.mxu0 0
    %982 = vmatprep.subr.bf16.mxu0 0
    %983 = vmatpush1.bf16.xpose.msra.mxu0 %v968
    %984 = vmatprep.subr.bf16.mxu0 0
    %985 = vmatpush1.bf16.xpose.msra.mxu0 %v965
    %986 = vmatprep.subr.bf16.mxu0 0
    %987 = vmatpush2.bf16.xpose.msra.mxu0 0
    %988 = vmatprep.subr.bf16.mxu0 0
    %989 = vmatpush2.bf16.xpose.msra.mxu0 0
    %990 = vmatprep.subr.bf16.mxu0 0
    %991 = vmatpush2.bf16.xpose.msra.mxu0 0
    %992 = vmatprep.subr.bf16.mxu0 0
    %993 = vmatpush2.bf16.xpose.msra.mxu0 0
    %994 = vmatprep.subr.bf16.mxu0 0
    %995 = vmatpush2.bf16.xpose.msra.mxu0 0
    %996 = vmatprep.subr.bf16.mxu0 0
    %997 = vmatpush2.bf16.xpose.msra.mxu0 0
    %998 = vmatprep.subr.bf16.mxu0 0
    %999 = vmatpush2.bf16.xpose.msra.mxu0 0
    %1000 = vmatprep.subr.bf16.mxu0 0
    %1001 = vmatpush2.bf16.xpose.msra.mxu0 0
    %1002 = vmatprep.mubr.bf16.mxu0 0
    %1003 = vmatmul.mubr.bf16.gmra.mxu0 %v959
    %v1004 = vpop.f32.mrf.mxu0
    %v1005 = vadd.f32 0.0, %v1004
    %v1006 = vpop.f32.mrf.mxu0
    %v1007 = vpop.f32.mrf.mxu0
    %v1008 = vadd.f32 0.0, %v1007
    %v1009 = vpop.f32.mrf.mxu0
    %1010 = vmatprep.mubr.bf16.mxu0 0
    %1011 = vmatmul.mubr.bf16.gmra.mxu0 %v962
    %v1012 = vpop.f32.mrf.mxu0
    %v1013 = vadd.f32 0.0, %v1012
    %v1014 = vpop.f32.mrf.mxu0
    %v1015 = vpop.f32.mrf.mxu0
    %v1016 = vpop.f32.mrf.mxu0
    %1017 = vdwg.mxu0
    %v1018 = vmul.f32 %v1005, 0.17677669
    %v1019 = vmul.f32 %v1008, 0.17677669
    %v1020 = vmul.f32 %v1013, 0.17677669
    %v1021 = vadd.f32 %v1018, %v361
    %v1022 = vadd.f32 %v1019, %v361
    %v1023 = vadd.f32 %v1020, %v361
    %v1024 = vsel %vm850, %v1021, -inf
    %1025 = vmax.xlane.f32.xlu0 %v1024
    %v1026 = vpop.xlane.xlu0 %1025
    %v1027 = vsel %vm850, %v1022, -inf
    %1028 = vmax.xlane.f32.xlu0 %v1027
    %v1029 = vpop.xlane.xlu0 %1028
    %v1030 = vsel %vm850, %v1023, -inf
    %1031 = vmax.xlane.f32.xlu0 %v1030
    %v1032 = vpop.xlane.xlu0 %1031
    %v1033 = vsub.f32 %v1021, %v1026
    %v1034 = vsub.f32 %v1022, %v1029
    %v1035 = vsub.f32 %v1023, %v1032
    %v1036 = vmul.f32 %v1033, 1.442695
    %v1037 = vpow.pop %v1036
    %v1038 = vmul.f32 %v1034, 1.442695
    %v1039 = vpow.pop %v1038
    %v1040 = vmul.f32 %v1035, 1.442695
    %v1041 = vpow.pop %v1040
    %v1042 = vsel %vm850, %v1037, 0.0
    %1043 = vadd.xlane.f32.xlu0 %v1042
    %v1044 = vpop.xlane.xlu0 %1043
    %v1045 = vsel %vm850, %v1039, 0.0
    %1046 = vadd.xlane.f32.xlu0 %v1045
    %v1047 = vpop.xlane.xlu0 %1046
    %v1048 = vsel %vm850, %v1041, 0.0
    %1049 = vadd.xlane.f32.xlu0 %v1048
    %v1050 = vpop.xlane.xlu0 %1049
    %v1051 = vrcp.pop %v1044
    %v1052 = vrcp.pop %v1047
    %v1053 = vrcp.pop %v1050
    %v1054 = vmul.f32 %v1037, %v1051
    %v1055 = vmul.f32 %v1039, %v1052
    %v1056 = vmul.f32 %v1041, %v1053
    %v1057 = vpack.c.bf16 %v1055, %v1054
    %v1058 = vpack.c.bf16 %v1056, %v1056
    %1061 = vrot.lane.b32.xlu0 %v781, 96
    %v1062 = vpop.permute.xlu0 %1061
    %1063 = vrot.lane.b32.xlu0 %v782, 96
    %v1064 = vpop.permute.xlu0 %1063
    %v1067 = vsel %vm850, %v1057, 0
    %v1070 = vsel %vm850, %v1058, 0
    %v1073 = vsel %vm892, %v1064, 0
    %1075 = vmatprep.subr.bf16.mxu0 0
    %1076 = vmatpush1.bf16.msra.mxu0 0
    %1077 = vmatprep.subr.bf16.mxu0 0
    %1078 = vmatpush1.bf16.msra.mxu0 0
    %1079 = vmatprep.subr.bf16.mxu0 0
    %1080 = vmatpush1.bf16.msra.mxu0 0
    %1081 = vmatprep.subr.bf16.mxu0 0
    %1082 = vmatpush1.bf16.msra.mxu0 0
    %1083 = vmatprep.subr.bf16.mxu0 0
    %1084 = vmatpush1.bf16.msra.mxu0 0
    %1085 = vmatprep.subr.bf16.mxu0 0
    %1086 = vmatpush1.bf16.msra.mxu0 0
    %1087 = vmatprep.subr.bf16.mxu0 0
    %1088 = vmatpush1.bf16.msra.mxu0 %v1073
    %1089 = vmatprep.subr.bf16.mxu0 0
    %1090 = vmatpush1.bf16.msra.mxu0 %v1062
    %1091 = vmatprep.subr.bf16.mxu0 0
    %1092 = vmatpush2.bf16.msra.mxu0 0
    %1093 = vmatprep.subr.bf16.mxu0 0
    %1094 = vmatpush2.bf16.msra.mxu0 0
    %1095 = vmatprep.subr.bf16.mxu0 0
    %1096 = vmatpush2.bf16.msra.mxu0 0
    %1097 = vmatprep.subr.bf16.mxu0 0
    %1098 = vmatpush2.bf16.msra.mxu0 0
    %1099 = vmatprep.subr.bf16.mxu0 0
    %1100 = vmatpush2.bf16.msra.mxu0 0
    %1101 = vmatprep.subr.bf16.mxu0 0
    %1102 = vmatpush2.bf16.msra.mxu0 0
    %1103 = vmatprep.subr.bf16.mxu0 0
    %1104 = vmatpush2.bf16.msra.mxu0 0
    %1105 = vmatprep.subr.bf16.mxu0 0
    %1106 = vmatpush2.bf16.msra.mxu0 0
    %1107 = vmatprep.mubr.bf16.mxu0 0
    %1108 = vmatmul.mubr.bf16.gmra.mxu0 %v1067
    %v1109 = vpop.f32.mrf.mxu0
    %v1110 = vadd.f32 0.0, %v1109
    %v1111 = vpop.f32.mrf.mxu0
    %v1112 = vpop.f32.mrf.mxu0
    %v1113 = vadd.f32 0.0, %v1112
    %v1114 = vpop.f32.mrf.mxu0
    %1115 = vmatprep.mubr.bf16.mxu0 0
    %1116 = vmatmul.mubr.bf16.gmra.mxu0 %v1070
    %v1117 = vpop.f32.mrf.mxu0
    %v1118 = vadd.f32 0.0, %v1117
    %v1119 = vpop.f32.mrf.mxu0
    %v1120 = vpop.f32.mrf.mxu0
    %v1121 = vpop.f32.mrf.mxu0
    %1122 = vdwg.mxu0
    %v1123 = vpack.c.bf16 %v1113, %v1110
    %v1124 = vpack.c.bf16 %v1118, %v1118
    %v1129 = vunpack.c.l.b16 %v765
    %v1130 = vunpack.c.l.b16 %v766
    %v1131 = vunpack.c.l.b16 %v767
    %v1132 = vunpack.c.l.b16 %v768
    %v1133 = vpack.c.b16 %v1130, %v1129
    %v1134 = vpack.c.b16 %v1132, %v1131
    %v1138 = vsel %vm783, %v1123, 0
    %v1141 = vsel %vm783, %v1124, 0
    %1143 = vmatprep.subr.bf16.mxu0 0
    %1144 = vmatpush1.bf16.msra.mxu0 0
    %1145 = vmatprep.subr.bf16.mxu0 0
    %1146 = vmatpush1.bf16.msra.mxu0 0
    %1147 = vmatprep.subr.bf16.mxu0 0
    %1148 = vmatpush1.bf16.msra.mxu0 0
    %1149 = vmatprep.subr.bf16.mxu0 0
    %1150 = vmatpush1.bf16.msra.mxu0 0
    %1151 = vmatprep.subr.bf16.mxu0 0
    %1152 = vmatpush1.bf16.msra.mxu0 0
    %1153 = vmatprep.subr.bf16.mxu0 0
    %1154 = vmatpush1.bf16.msra.mxu0 0
    %1155 = vmatprep.subr.bf16.mxu0 0
    %1156 = vmatpush1.bf16.msra.mxu0 %v1134
    %1157 = vmatprep.subr.bf16.mxu0 0
    %1158 = vmatpush1.bf16.msra.mxu0 %v1133
    %1159 = vmatprep.subr.bf16.mxu0 0
    %1160 = vmatpush2.bf16.msra.mxu0 0
    %1161 = vmatprep.subr.bf16.mxu0 0
    %1162 = vmatpush2.bf16.msra.mxu0 0
    %1163 = vmatprep.subr.bf16.mxu0 0
    %1164 = vmatpush2.bf16.msra.mxu0 0
    %1165 = vmatprep.subr.bf16.mxu0 0
    %1166 = vmatpush2.bf16.msra.mxu0 0
    %1167 = vmatprep.subr.bf16.mxu0 0
    %1168 = vmatpush2.bf16.msra.mxu0 0
    %1169 = vmatprep.subr.bf16.mxu0 0
    %1170 = vmatpush2.bf16.msra.mxu0 0
    %1171 = vmatprep.subr.bf16.mxu0 0
    %1172 = vmatpush2.bf16.msra.mxu0 0
    %1173 = vmatprep.subr.bf16.mxu0 0
    %1174 = vmatpush2.bf16.msra.mxu0 0
    %1175 = vmatprep.mubr.bf16.mxu0 0
    %1176 = vmatmul.mubr.bf16.gmra.mxu0 %v1138
    %v1177 = vpop.f32.mrf.mxu0
    %v1178 = vadd.f32 0.0, %v1177
    %v1179 = vpop.f32.mrf.mxu0
    %v1180 = vpop.f32.mrf.mxu0
    %v1181 = vadd.f32 0.0, %v1180
    %v1182 = vpop.f32.mrf.mxu0
    %1183 = vmatprep.mubr.bf16.mxu0 0
    %1184 = vmatmul.mubr.bf16.gmra.mxu0 %v1141
    %v1185 = vpop.f32.mrf.mxu0
    %v1186 = vadd.f32 0.0, %v1185
    %v1187 = vpop.f32.mrf.mxu0
    %v1188 = vpop.f32.mrf.mxu0
    %v1189 = vpop.f32.mrf.mxu0
    %1190 = vdwg.mxu0
    %v1195 = vunpack.c.l.b16 %v761
    %v1196 = vunpack.c.l.b16 %v762
    %v1197 = vunpack.c.l.b16 %v763
    %v1198 = vunpack.c.l.b16 %v764
    %v1199 = vpack.c.b16 %v1196, %v1195
    %v1200 = vpack.c.b16 %v1198, %v1197
    %v1204 = vsel %vm783, %v944, 0
    %v1207 = vsel %vm783, %v945, 0
    %1209 = vmatprep.subr.bf16.mxu0 0
    %1210 = vmatpush1.bf16.msra.mxu0 0
    %1211 = vmatprep.subr.bf16.mxu0 0
    %1212 = vmatpush1.bf16.msra.mxu0 0
    %1213 = vmatprep.subr.bf16.mxu0 0
    %1214 = vmatpush1.bf16.msra.mxu0 0
    %1215 = vmatprep.subr.bf16.mxu0 0
    %1216 = vmatpush1.bf16.msra.mxu0 0
    %1217 = vmatprep.subr.bf16.mxu0 0
    %1218 = vmatpush1.bf16.msra.mxu0 0
    %1219 = vmatprep.subr.bf16.mxu0 0
    %1220 = vmatpush1.bf16.msra.mxu0 0
    %1221 = vmatprep.subr.bf16.mxu0 0
    %1222 = vmatpush1.bf16.msra.mxu0 %v1200
    %1223 = vmatprep.subr.bf16.mxu0 0
    %1224 = vmatpush1.bf16.msra.mxu0 %v1199
    %1225 = vmatprep.subr.bf16.mxu0 0
    %1226 = vmatpush2.bf16.msra.mxu0 0
    %1227 = vmatprep.subr.bf16.mxu0 0
    %1228 = vmatpush2.bf16.msra.mxu0 0
    %1229 = vmatprep.subr.bf16.mxu0 0
    %1230 = vmatpush2.bf16.msra.mxu0 0
    %1231 = vmatprep.subr.bf16.mxu0 0
    %1232 = vmatpush2.bf16.msra.mxu0 0
    %1233 = vmatprep.subr.bf16.mxu0 0
    %1234 = vmatpush2.bf16.msra.mxu0 0
    %1235 = vmatprep.subr.bf16.mxu0 0
    %1236 = vmatpush2.bf16.msra.mxu0 0
    %1237 = vmatprep.subr.bf16.mxu0 0
    %1238 = vmatpush2.bf16.msra.mxu0 0
    %1239 = vmatprep.subr.bf16.mxu0 0
    %1240 = vmatpush2.bf16.msra.mxu0 0
    %1241 = vmatprep.mubr.bf16.mxu0 0
    %1242 = vmatmul.mubr.bf16.gmra.mxu0 %v1204
    %v1243 = vpop.f32.mrf.mxu0
    %v1244 = vadd.f32 %v1178, %v1243
    %v1245 = vpop.f32.mrf.mxu0
    %v1246 = vpop.f32.mrf.mxu0
    %v1247 = vadd.f32 %v1181, %v1246
    %v1248 = vpop.f32.mrf.mxu0
    %1249 = vmatprep.mubr.bf16.mxu0 0
    %1250 = vmatmul.mubr.bf16.gmra.mxu0 %v1207
    %v1251 = vpop.f32.mrf.mxu0
    %v1252 = vadd.f32 %v1186, %v1251
    %v1253 = vpop.f32.mrf.mxu0
    %v1254 = vpop.f32.mrf.mxu0
    %v1255 = vpop.f32.mrf.mxu0
    %1256 = vdwg.mxu0
    %1257 = vrot.lane.b32.xlu0 %v777, 64
    %v1258 = vpop.permute.xlu0 %1257
    %1259 = vrot.lane.b32.xlu0 %v778, 64
    %v1260 = vpop.permute.xlu0 %1259
    %1261 = vrot.lane.b32.xlu0 %v779, 64
    %v1262 = vpop.permute.xlu0 %1261
    %1263 = vrot.lane.b32.xlu0 %v780, 64
    %v1264 = vpop.permute.xlu0 %1263
    %v1266 = vsel %vm783, %v1258, 0
    %v1269 = vsel %vm783, %v1260, 0
    %v1272 = vsel %vm783, %v1262, 0
    %v1275 = vsel %vm783, %v1264, 0
    %1277 = vmatprep.subr.bf16.mxu0 0
    %1278 = vmatpush1.bf16.xpose.msra.mxu0 0
    %1279 = vmatprep.subr.bf16.mxu0 0
    %1280 = vmatpush1.bf16.xpose.msra.mxu0 0
    %1281 = vmatprep.subr.bf16.mxu0 0
    %1282 = vmatpush1.bf16.xpose.msra.mxu0 0
    %1283 = vmatprep.subr.bf16.mxu0 0
    %1284 = vmatpush1.bf16.xpose.msra.mxu0 0
    %1285 = vmatprep.subr.bf16.mxu0 0
    %1286 = vmatpush1.bf16.xpose.msra.mxu0 0
    %1287 = vmatprep.subr.bf16.mxu0 0
    %1288 = vmatpush1.bf16.xpose.msra.mxu0 0
    %1289 = vmatprep.subr.bf16.mxu0 0
    %1290 = vmatpush1.bf16.xpose.msra.mxu0 %v1275
    %1291 = vmatprep.subr.bf16.mxu0 0
    %1292 = vmatpush1.bf16.xpose.msra.mxu0 %v1272
    %1293 = vmatprep.subr.bf16.mxu0 0
    %1294 = vmatpush2.bf16.xpose.msra.mxu0 0
    %1295 = vmatprep.subr.bf16.mxu0 0
    %1296 = vmatpush2.bf16.xpose.msra.mxu0 0
    %1297 = vmatprep.subr.bf16.mxu0 0
    %1298 = vmatpush2.bf16.xpose.msra.mxu0 0
    %1299 = vmatprep.subr.bf16.mxu0 0
    %1300 = vmatpush2.bf16.xpose.msra.mxu0 0
    %1301 = vmatprep.subr.bf16.mxu0 0
    %1302 = vmatpush2.bf16.xpose.msra.mxu0 0
    %1303 = vmatprep.subr.bf16.mxu0 0
    %1304 = vmatpush2.bf16.xpose.msra.mxu0 0
    %1305 = vmatprep.subr.bf16.mxu0 0
    %1306 = vmatpush2.bf16.xpose.msra.mxu0 0
    %1307 = vmatprep.subr.bf16.mxu0 0
    %1308 = vmatpush2.bf16.xpose.msra.mxu0 0
    %1309 = vmatprep.mubr.bf16.mxu0 0
    %1310 = vmatmul.mubr.bf16.gmra.mxu0 %v1266
    %v1311 = vpop.f32.mrf.mxu0
    %v1312 = vadd.f32 0.0, %v1311
    %v1313 = vpop.f32.mrf.mxu0
    %v1314 = vpop.f32.mrf.mxu0
    %v1315 = vadd.f32 0.0, %v1314
    %v1316 = vpop.f32.mrf.mxu0
    %1317 = vmatprep.mubr.bf16.mxu0 0
    %1318 = vmatmul.mubr.bf16.gmra.mxu0 %v1269
    %v1319 = vpop.f32.mrf.mxu0
    %v1320 = vadd.f32 0.0, %v1319
    %v1321 = vpop.f32.mrf.mxu0
    %v1322 = vpop.f32.mrf.mxu0
    %v1323 = vpop.f32.mrf.mxu0
    %1324 = vdwg.mxu0
    %v1325 = vmul.f32 %v1312, 0.17677669
    %v1326 = vmul.f32 %v1315, 0.17677669
    %v1327 = vmul.f32 %v1320, 0.17677669
    %v1328 = vadd.f32 %v1325, %v361
    %v1329 = vadd.f32 %v1326, %v361
    %v1330 = vadd.f32 %v1327, %v361
    %v1331 = vsel %vm850, %v1328, -inf
    %1332 = vmax.xlane.f32.xlu0 %v1331
    %v1333 = vpop.xlane.xlu0 %1332
    %v1334 = vsel %vm850, %v1329, -inf
    %1335 = vmax.xlane.f32.xlu0 %v1334
    %v1336 = vpop.xlane.xlu0 %1335
    %v1337 = vsel %vm850, %v1330, -inf
    %1338 = vmax.xlane.f32.xlu0 %v1337
    %v1339 = vpop.xlane.xlu0 %1338
    %v1340 = vsub.f32 %v1328, %v1333
    %v1341 = vsub.f32 %v1329, %v1336
    %v1342 = vsub.f32 %v1330, %v1339
    %v1343 = vmul.f32 %v1340, 1.442695
    %v1344 = vpow.pop %v1343
    %v1345 = vmul.f32 %v1341, 1.442695
    %v1346 = vpow.pop %v1345
    %v1347 = vmul.f32 %v1342, 1.442695
    %v1348 = vpow.pop %v1347
    %v1349 = vsel %vm850, %v1344, 0.0
    %1350 = vadd.xlane.f32.xlu0 %v1349
    %v1351 = vpop.xlane.xlu0 %1350
    %v1352 = vsel %vm850, %v1346, 0.0
    %1353 = vadd.xlane.f32.xlu0 %v1352
    %v1354 = vpop.xlane.xlu0 %1353
    %v1355 = vsel %vm850, %v1348, 0.0
    %1356 = vadd.xlane.f32.xlu0 %v1355
    %v1357 = vpop.xlane.xlu0 %1356
    %v1358 = vrcp.pop %v1351
    %v1359 = vrcp.pop %v1354
    %v1360 = vrcp.pop %v1357
    %v1361 = vmul.f32 %v1344, %v1358
    %v1362 = vmul.f32 %v1346, %v1359
    %v1363 = vmul.f32 %v1348, %v1360
    %v1364 = vpack.c.bf16 %v1362, %v1361
    %v1365 = vpack.c.bf16 %v1363, %v1363
    %1366 = vrot.lane.b32.xlu0 %v781, 64
    %v1367 = vpop.permute.xlu0 %1366
    %1368 = vrot.lane.b32.xlu0 %v782, 64
    %v1369 = vpop.permute.xlu0 %1368
    %v1372 = vsel %vm850, %v1364, 0
    %v1375 = vsel %vm850, %v1365, 0
    %v1378 = vsel %vm892, %v1369, 0
    %1380 = vmatprep.subr.bf16.mxu0 0
    %1381 = vmatpush1.bf16.msra.mxu0 0
    %1382 = vmatprep.subr.bf16.mxu0 0
    %1383 = vmatpush1.bf16.msra.mxu0 0
    %1384 = vmatprep.subr.bf16.mxu0 0
    %1385 = vmatpush1.bf16.msra.mxu0 0
    %1386 = vmatprep.subr.bf16.mxu0 0
    %1387 = vmatpush1.bf16.msra.mxu0 0
    %1388 = vmatprep.subr.bf16.mxu0 0
    %1389 = vmatpush1.bf16.msra.mxu0 0
    %1390 = vmatprep.subr.bf16.mxu0 0
    %1391 = vmatpush1.bf16.msra.mxu0 0
    %1392 = vmatprep.subr.bf16.mxu0 0
    %1393 = vmatpush1.bf16.msra.mxu0 %v1378
    %1394 = vmatprep.subr.bf16.mxu0 0
    %1395 = vmatpush1.bf16.msra.mxu0 %v1367
    %1396 = vmatprep.subr.bf16.mxu0 0
    %1397 = vmatpush2.bf16.msra.mxu0 0
    %1398 = vmatprep.subr.bf16.mxu0 0
    %1399 = vmatpush2.bf16.msra.mxu0 0
    %1400 = vmatprep.subr.bf16.mxu0 0
    %1401 = vmatpush2.bf16.msra.mxu0 0
    %1402 = vmatprep.subr.bf16.mxu0 0
    %1403 = vmatpush2.bf16.msra.mxu0 0
    %1404 = vmatprep.subr.bf16.mxu0 0
    %1405 = vmatpush2.bf16.msra.mxu0 0
    %1406 = vmatprep.subr.bf16.mxu0 0
    %1407 = vmatpush2.bf16.msra.mxu0 0
    %1408 = vmatprep.subr.bf16.mxu0 0
    %1409 = vmatpush2.bf16.msra.mxu0 0
    %1410 = vmatprep.subr.bf16.mxu0 0
    %1411 = vmatpush2.bf16.msra.mxu0 0
    %1412 = vmatprep.mubr.bf16.mxu0 0
    %1413 = vmatmul.mubr.bf16.gmra.mxu0 %v1372
    %v1414 = vpop.f32.mrf.mxu0
    %v1415 = vadd.f32 0.0, %v1414
    %v1416 = vpop.f32.mrf.mxu0
    %v1417 = vpop.f32.mrf.mxu0
    %v1418 = vadd.f32 0.0, %v1417
    %v1419 = vpop.f32.mrf.mxu0
    %1420 = vmatprep.mubr.bf16.mxu0 0
    %1421 = vmatmul.mubr.bf16.gmra.mxu0 %v1375
    %v1422 = vpop.f32.mrf.mxu0
    %v1423 = vadd.f32 0.0, %v1422
    %v1424 = vpop.f32.mrf.mxu0
    %v1425 = vpop.f32.mrf.mxu0
    %v1426 = vpop.f32.mrf.mxu0
    %1427 = vdwg.mxu0
    %v1428 = vpack.c.bf16 %v1418, %v1415
    %v1429 = vpack.c.bf16 %v1423, %v1423
    %v1434 = vunpack.c.l.b16 %v769
    %v1435 = vunpack.c.l.b16 %v770
    %v1436 = vunpack.c.l.b16 %v771
    %v1437 = vunpack.c.l.b16 %v772
    %v1438 = vpack.c.b16 %v1435, %v1434
    %v1439 = vpack.c.b16 %v1437, %v1436
    %v1443 = vsel %vm783, %v1428, 0
    %v1446 = vsel %vm783, %v1429, 0
    %1448 = vmatprep.subr.bf16.mxu0 0
    %1449 = vmatpush1.bf16.msra.mxu0 0
    %1450 = vmatprep.subr.bf16.mxu0 0
    %1451 = vmatpush1.bf16.msra.mxu0 0
    %1452 = vmatprep.subr.bf16.mxu0 0
    %1453 = vmatpush1.bf16.msra.mxu0 0
    %1454 = vmatprep.subr.bf16.mxu0 0
    %1455 = vmatpush1.bf16.msra.mxu0 0
    %1456 = vmatprep.subr.bf16.mxu0 0
    %1457 = vmatpush1.bf16.msra.mxu0 0
    %1458 = vmatprep.subr.bf16.mxu0 0
    %1459 = vmatpush1.bf16.msra.mxu0 0
    %1460 = vmatprep.subr.bf16.mxu0 0
    %1461 = vmatpush1.bf16.msra.mxu0 %v1439
    %1462 = vmatprep.subr.bf16.mxu0 0
    %1463 = vmatpush1.bf16.msra.mxu0 %v1438
    %1464 = vmatprep.subr.bf16.mxu0 0
    %1465 = vmatpush2.bf16.msra.mxu0 0
    %1466 = vmatprep.subr.bf16.mxu0 0
    %1467 = vmatpush2.bf16.msra.mxu0 0
    %1468 = vmatprep.subr.bf16.mxu0 0
    %1469 = vmatpush2.bf16.msra.mxu0 0
    %1470 = vmatprep.subr.bf16.mxu0 0
    %1471 = vmatpush2.bf16.msra.mxu0 0
    %1472 = vmatprep.subr.bf16.mxu0 0
    %1473 = vmatpush2.bf16.msra.mxu0 0
    %1474 = vmatprep.subr.bf16.mxu0 0
    %1475 = vmatpush2.bf16.msra.mxu0 0
    %1476 = vmatprep.subr.bf16.mxu0 0
    %1477 = vmatpush2.bf16.msra.mxu0 0
    %1478 = vmatprep.subr.bf16.mxu0 0
    %1479 = vmatpush2.bf16.msra.mxu0 0
    %1480 = vmatprep.mubr.bf16.mxu0 0
    %1481 = vmatmul.mubr.bf16.gmra.mxu0 %v1443
    %v1482 = vpop.f32.mrf.mxu0
    %v1483 = vadd.f32 0.0, %v1482
    %v1484 = vpop.f32.mrf.mxu0
    %v1485 = vpop.f32.mrf.mxu0
    %v1486 = vadd.f32 0.0, %v1485
    %v1487 = vpop.f32.mrf.mxu0
    %1488 = vmatprep.mubr.bf16.mxu0 0
    %1489 = vmatmul.mubr.bf16.gmra.mxu0 %v1446
    %v1490 = vpop.f32.mrf.mxu0
    %v1491 = vadd.f32 0.0, %v1490
    %v1492 = vpop.f32.mrf.mxu0
    %v1493 = vpop.f32.mrf.mxu0
    %v1494 = vpop.f32.mrf.mxu0
    %1495 = vdwg.mxu0
    %v1496 = vadd.f32 %v1244, %v1483
    %v1497 = vadd.f32 %v1247, %v1486
    %v1498 = vadd.f32 %v1252, %v1491
    %1499 = vrot.lane.b32.xlu0 %v777, 32
    %v1500 = vpop.permute.xlu0 %1499
    %1501 = vrot.lane.b32.xlu0 %v778, 32
    %v1502 = vpop.permute.xlu0 %1501
    %1503 = vrot.lane.b32.xlu0 %v779, 32
    %v1504 = vpop.permute.xlu0 %1503
    %1505 = vrot.lane.b32.xlu0 %v780, 32
    %v1506 = vpop.permute.xlu0 %1505
    %v1508 = vsel %vm783, %v1500, 0
    %v1511 = vsel %vm783, %v1502, 0
    %v1514 = vsel %vm783, %v1504, 0
    %v1517 = vsel %vm783, %v1506, 0
    %1519 = vmatprep.subr.bf16.mxu0 0
    %1520 = vmatpush1.bf16.xpose.msra.mxu0 0
    %1521 = vmatprep.subr.bf16.mxu0 0
    %1522 = vmatpush1.bf16.xpose.msra.mxu0 0
    %1523 = vmatprep.subr.bf16.mxu0 0
    %1524 = vmatpush1.bf16.xpose.msra.mxu0 0
    %1525 = vmatprep.subr.bf16.mxu0 0
    %1526 = vmatpush1.bf16.xpose.msra.mxu0 0
    %1527 = vmatprep.subr.bf16.mxu0 0
    %1528 = vmatpush1.bf16.xpose.msra.mxu0 0
    %1529 = vmatprep.subr.bf16.mxu0 0
    %1530 = vmatpush1.bf16.xpose.msra.mxu0 0
    %1531 = vmatprep.subr.bf16.mxu0 0
    %1532 = vmatpush1.bf16.xpose.msra.mxu0 %v1517
    %1533 = vmatprep.subr.bf16.mxu0 0
    %1534 = vmatpush1.bf16.xpose.msra.mxu0 %v1514
    %1535 = vmatprep.subr.bf16.mxu0 0
    %1536 = vmatpush2.bf16.xpose.msra.mxu0 0
    %1537 = vmatprep.subr.bf16.mxu0 0
    %1538 = vmatpush2.bf16.xpose.msra.mxu0 0
    %1539 = vmatprep.subr.bf16.mxu0 0
    %1540 = vmatpush2.bf16.xpose.msra.mxu0 0
    %1541 = vmatprep.subr.bf16.mxu0 0
    %1542 = vmatpush2.bf16.xpose.msra.mxu0 0
    %1543 = vmatprep.subr.bf16.mxu0 0
    %1544 = vmatpush2.bf16.xpose.msra.mxu0 0
    %1545 = vmatprep.subr.bf16.mxu0 0
    %1546 = vmatpush2.bf16.xpose.msra.mxu0 0
    %1547 = vmatprep.subr.bf16.mxu0 0
    %1548 = vmatpush2.bf16.xpose.msra.mxu0 0
    %1549 = vmatprep.subr.bf16.mxu0 0
    %1550 = vmatpush2.bf16.xpose.msra.mxu0 0
    %1551 = vmatprep.mubr.bf16.mxu0 0
    %1552 = vmatmul.mubr.bf16.gmra.mxu0 %v1508
    %v1553 = vpop.f32.mrf.mxu0
    %v1554 = vadd.f32 0.0, %v1553
    %v1555 = vpop.f32.mrf.mxu0
    %v1556 = vpop.f32.mrf.mxu0
    %v1557 = vadd.f32 0.0, %v1556
    %v1558 = vpop.f32.mrf.mxu0
    %1559 = vmatprep.mubr.bf16.mxu0 0
    %1560 = vmatmul.mubr.bf16.gmra.mxu0 %v1511
    %v1561 = vpop.f32.mrf.mxu0
    %v1562 = vadd.f32 0.0, %v1561
    %v1563 = vpop.f32.mrf.mxu0
    %v1564 = vpop.f32.mrf.mxu0
    %v1565 = vpop.f32.mrf.mxu0
    %1566 = vdwg.mxu0
    %v1567 = vmul.f32 %v1554, 0.17677669
    %v1568 = vmul.f32 %v1557, 0.17677669
    %v1569 = vmul.f32 %v1562, 0.17677669
    %v1570 = vadd.f32 %v1567, %v361
    %v1571 = vadd.f32 %v1568, %v361
    %v1572 = vadd.f32 %v1569, %v361
    %v1573 = vsel %vm850, %v1570, -inf
    %1574 = vmax.xlane.f32.xlu0 %v1573
    %v1575 = vpop.xlane.xlu0 %1574
    %v1576 = vsel %vm850, %v1571, -inf
    %1577 = vmax.xlane.f32.xlu0 %v1576
    %v1578 = vpop.xlane.xlu0 %1577
    %v1579 = vsel %vm850, %v1572, -inf
    %1580 = vmax.xlane.f32.xlu0 %v1579
    %v1581 = vpop.xlane.xlu0 %1580
    %v1582 = vsub.f32 %v1570, %v1575
    %v1583 = vsub.f32 %v1571, %v1578
    %v1584 = vsub.f32 %v1572, %v1581
    %v1585 = vmul.f32 %v1582, 1.442695
    %v1586 = vpow.pop %v1585
    %v1587 = vmul.f32 %v1583, 1.442695
    %v1588 = vpow.pop %v1587
    %v1589 = vmul.f32 %v1584, 1.442695
    %v1590 = vpow.pop %v1589
    %v1591 = vsel %vm850, %v1586, 0.0
    %1592 = vadd.xlane.f32.xlu0 %v1591
    %v1593 = vpop.xlane.xlu0 %1592
    %v1594 = vsel %vm850, %v1588, 0.0
    %1595 = vadd.xlane.f32.xlu0 %v1594
    %v1596 = vpop.xlane.xlu0 %1595
    %v1597 = vsel %vm850, %v1590, 0.0
    %1598 = vadd.xlane.f32.xlu0 %v1597
    %v1599 = vpop.xlane.xlu0 %1598
    %v1600 = vrcp.pop %v1593
    %v1601 = vrcp.pop %v1596
    %v1602 = vrcp.pop %v1599
    %v1603 = vmul.f32 %v1586, %v1600
    %v1604 = vmul.f32 %v1588, %v1601
    %v1605 = vmul.f32 %v1590, %v1602
    %v1606 = vpack.c.bf16 %v1604, %v1603
    %v1607 = vpack.c.bf16 %v1605, %v1605
    %1608 = vrot.lane.b32.xlu0 %v781, 32
    %v1609 = vpop.permute.xlu0 %1608
    %1610 = vrot.lane.b32.xlu0 %v782, 32
    %v1611 = vpop.permute.xlu0 %1610
    %v1614 = vsel %vm850, %v1606, 0
    %v1617 = vsel %vm850, %v1607, 0
    %v1620 = vsel %vm892, %v1611, 0
    %1622 = vmatprep.subr.bf16.mxu0 0
    %1623 = vmatpush1.bf16.msra.mxu0 0
    %1624 = vmatprep.subr.bf16.mxu0 0
    %1625 = vmatpush1.bf16.msra.mxu0 0
    %1626 = vmatprep.subr.bf16.mxu0 0
    %1627 = vmatpush1.bf16.msra.mxu0 0
    %1628 = vmatprep.subr.bf16.mxu0 0
    %1629 = vmatpush1.bf16.msra.mxu0 0
    %1630 = vmatprep.subr.bf16.mxu0 0
    %1631 = vmatpush1.bf16.msra.mxu0 0
    %1632 = vmatprep.subr.bf16.mxu0 0
    %1633 = vmatpush1.bf16.msra.mxu0 0
    %1634 = vmatprep.subr.bf16.mxu0 0
    %1635 = vmatpush1.bf16.msra.mxu0 %v1620
    %1636 = vmatprep.subr.bf16.mxu0 0
    %1637 = vmatpush1.bf16.msra.mxu0 %v1609
    %1638 = vmatprep.subr.bf16.mxu0 0
    %1639 = vmatpush2.bf16.msra.mxu0 0
    %1640 = vmatprep.subr.bf16.mxu0 0
    %1641 = vmatpush2.bf16.msra.mxu0 0
    %1642 = vmatprep.subr.bf16.mxu0 0
    %1643 = vmatpush2.bf16.msra.mxu0 0
    %1644 = vmatprep.subr.bf16.mxu0 0
    %1645 = vmatpush2.bf16.msra.mxu0 0
    %1646 = vmatprep.subr.bf16.mxu0 0
    %1647 = vmatpush2.bf16.msra.mxu0 0
    %1648 = vmatprep.subr.bf16.mxu0 0
    %1649 = vmatpush2.bf16.msra.mxu0 0
    %1650 = vmatprep.subr.bf16.mxu0 0
    %1651 = vmatpush2.bf16.msra.mxu0 0
    %1652 = vmatprep.subr.bf16.mxu0 0
    %1653 = vmatpush2.bf16.msra.mxu0 0
    %1654 = vmatprep.mubr.bf16.mxu0 0
    %1655 = vmatmul.mubr.bf16.gmra.mxu0 %v1614
    %v1656 = vpop.f32.mrf.mxu0
    %v1657 = vadd.f32 0.0, %v1656
    %v1658 = vpop.f32.mrf.mxu0
    %v1659 = vpop.f32.mrf.mxu0
    %v1660 = vadd.f32 0.0, %v1659
    %v1661 = vpop.f32.mrf.mxu0
    %1662 = vmatprep.mubr.bf16.mxu0 0
    %1663 = vmatmul.mubr.bf16.gmra.mxu0 %v1617
    %v1664 = vpop.f32.mrf.mxu0
    %v1665 = vadd.f32 0.0, %v1664
    %v1666 = vpop.f32.mrf.mxu0
    %v1667 = vpop.f32.mrf.mxu0
    %v1668 = vpop.f32.mrf.mxu0
    %1669 = vdwg.mxu0
    %v1670 = vpack.c.bf16 %v1660, %v1657
    %v1671 = vpack.c.bf16 %v1665, %v1665
    %v1676 = vunpack.c.l.b16 %v773
    %v1677 = vunpack.c.l.b16 %v774
    %v1678 = vunpack.c.l.b16 %v775
    %v1679 = vunpack.c.l.b16 %v776
    %v1680 = vpack.c.b16 %v1677, %v1676
    %v1681 = vpack.c.b16 %v1679, %v1678
    %v1685 = vsel %vm783, %v1670, 0
    %v1688 = vsel %vm783, %v1671, 0
    %1690 = vmatprep.subr.bf16.mxu0 0
    %1691 = vmatpush1.bf16.msra.mxu0 0
    %1692 = vmatprep.subr.bf16.mxu0 0
    %1693 = vmatpush1.bf16.msra.mxu0 0
    %1694 = vmatprep.subr.bf16.mxu0 0
    %1695 = vmatpush1.bf16.msra.mxu0 0
    %1696 = vmatprep.subr.bf16.mxu0 0
    %1697 = vmatpush1.bf16.msra.mxu0 0
    %1698 = vmatprep.subr.bf16.mxu0 0
    %1699 = vmatpush1.bf16.msra.mxu0 0
    %1700 = vmatprep.subr.bf16.mxu0 0
    %1701 = vmatpush1.bf16.msra.mxu0 0
    %1702 = vmatprep.subr.bf16.mxu0 0
    %1703 = vmatpush1.bf16.msra.mxu0 %v1681
    %1704 = vmatprep.subr.bf16.mxu0 0
    %1705 = vmatpush1.bf16.msra.mxu0 %v1680
    %1706 = vmatprep.subr.bf16.mxu0 0
    %1707 = vmatpush2.bf16.msra.mxu0 0
    %1708 = vmatprep.subr.bf16.mxu0 0
    %1709 = vmatpush2.bf16.msra.mxu0 0
    %1710 = vmatprep.subr.bf16.mxu0 0
    %1711 = vmatpush2.bf16.msra.mxu0 0
    %1712 = vmatprep.subr.bf16.mxu0 0
    %1713 = vmatpush2.bf16.msra.mxu0 0
    %1714 = vmatprep.subr.bf16.mxu0 0
    %1715 = vmatpush2.bf16.msra.mxu0 0
    %1716 = vmatprep.subr.bf16.mxu0 0
    %1717 = vmatpush2.bf16.msra.mxu0 0
    %1718 = vmatprep.subr.bf16.mxu0 0
    %1719 = vmatpush2.bf16.msra.mxu0 0
    %1720 = vmatprep.subr.bf16.mxu0 0
    %1721 = vmatpush2.bf16.msra.mxu0 0
    %1722 = vmatprep.mubr.bf16.mxu0 0
    %1723 = vmatmul.mubr.bf16.gmra.mxu0 %v1685
    %v1724 = vpop.f32.mrf.mxu0
    %v1725 = vadd.f32 0.0, %v1724
    %v1726 = vpop.f32.mrf.mxu0
    %v1727 = vpop.f32.mrf.mxu0
    %v1728 = vadd.f32 0.0, %v1727
    %v1729 = vpop.f32.mrf.mxu0
    %1730 = vmatprep.mubr.bf16.mxu0 0
    %1731 = vmatmul.mubr.bf16.gmra.mxu0 %v1688
    %v1732 = vpop.f32.mrf.mxu0
    %v1733 = vadd.f32 0.0, %v1732
    %v1734 = vpop.f32.mrf.mxu0
    %v1735 = vpop.f32.mrf.mxu0
    %v1736 = vpop.f32.mrf.mxu0
    %1737 = vdwg.mxu0
    %v1738 = vadd.f32 %v1496, %v1725
    %v1739 = vadd.f32 %v1497, %v1728
    %v1740 = vadd.f32 %v1498, %v1733
    %v1741 = vadd.f32 %v362, %v1738
    %v1742 = vadd.f32 %v363, %v1739
    %v1743 = vadd.f32 %v364, %v1740
    %v1744 = vld [vmem:[%s10] sm:$0x1]
    %v1746 = vlaneseq
    %v1747 = vshrl.u32 %v1746, 7
    %v1748 = vsub.s32 0, %v1747
    %v1749 = vrot.slane %v1744, %v1748
    %v1751 = vadd.f32 %v1741, %v1749
    %v1752 = vadd.f32 %v1742, %v1749
    %v1753 = vadd.f32 %v1743, %v1749
    %1754 = vst [vmem:[#allocation2] sm:$0xff] %v1751
    %1755 = vst [vmem:[#allocation2 + $0x8] sm:$0xff] %v1752
    %1756 = vst [vmem:[#allocation2 + $0x10] sm:$0xff] %v1753
    %v1757 = vpack.c.bf16 %v696, %v690
    %v1758 = vpack.c.bf16 %v700, %v700
    %v1759 = vpack.c.bf16 %v698, %v692
    %v1760 = vpack.c.bf16 %v702, %v702
    %v1761 = vpack.c.bf16 %v755, %v750
    %v1762 = vpack.c.bf16 %v758, %v758
    %v1764 = vsel %vm783, %v1757, 0
    %v1767 = vsel %vm783, %v1758, 0
    %v1770 = vsel %vm783, %v1759, 0
    %v1773 = vsel %vm783, %v1760, 0
    %1775 = vmatprep.subr.bf16.mxu0 0
    %1776 = vmatpush1.bf16.xpose.msra.mxu0 0
    %1777 = vmatprep.subr.bf16.mxu0 0
    %1778 = vmatpush1.bf16.xpose.msra.mxu0 0
    %1779 = vmatprep.subr.bf16.mxu0 0
    %1780 = vmatpush1.bf16.xpose.msra.mxu0 0
    %1781 = vmatprep.subr.bf16.mxu0 0
    %1782 = vmatpush1.bf16.xpose.msra.mxu0 0
    %1783 = vmatprep.subr.bf16.mxu0 0
    %1784 = vmatpush1.bf16.xpose.msra.mxu0 0
    %1785 = vmatprep.subr.bf16.mxu0 0
    %1786 = vmatpush1.bf16.xpose.msra.mxu0 0
    %1787 = vmatprep.subr.bf16.mxu0 0
    %1788 = vmatpush1.bf16.xpose.msra.mxu0 %v1773
    %1789 = vmatprep.subr.bf16.mxu0 0
    %1790 = vmatpush1.bf16.xpose.msra.mxu0 %v1770
    %1791 = vmatprep.subr.bf16.mxu0 0
    %1792 = vmatpush2.bf16.xpose.msra.mxu0 0
    %1793 = vmatprep.subr.bf16.mxu0 0
    %1794 = vmatpush2.bf16.xpose.msra.mxu0 0
    %1795 = vmatprep.subr.bf16.mxu0 0
    %1796 = vmatpush2.bf16.xpose.msra.mxu0 0
    %1797 = vmatprep.subr.bf16.mxu0 0
    %1798 = vmatpush2.bf16.xpose.msra.mxu0 0
    %1799 = vmatprep.subr.bf16.mxu0 0
    %1800 = vmatpush2.bf16.xpose.msra.mxu0 0
    %1801 = vmatprep.subr.bf16.mxu0 0
    %1802 = vmatpush2.bf16.xpose.msra.mxu0 0
    %1803 = vmatprep.subr.bf16.mxu0 0
    %1804 = vmatpush2.bf16.xpose.msra.mxu0 0
    %1805 = vmatprep.subr.bf16.mxu0 0
    %1806 = vmatpush2.bf16.xpose.msra.mxu0 0
    %1807 = vmatprep.mubr.bf16.mxu0 0
    %1808 = vmatmul.mubr.bf16.gmra.mxu0 %v1764
    %v1809 = vpop.f32.mrf.mxu0
    %v1810 = vadd.f32 0.0, %v1809
    %v1811 = vpop.f32.mrf.mxu0
    %v1812 = vpop.f32.mrf.mxu0
    %v1813 = vadd.f32 0.0, %v1812
    %v1814 = vpop.f32.mrf.mxu0
    %1815 = vmatprep.mubr.bf16.mxu0 0
    %1816 = vmatmul.mubr.bf16.gmra.mxu0 %v1767
    %v1817 = vpop.f32.mrf.mxu0
    %v1818 = vadd.f32 0.0, %v1817
    %v1819 = vpop.f32.mrf.mxu0
    %v1820 = vpop.f32.mrf.mxu0
    %v1821 = vpop.f32.mrf.mxu0
    %1822 = vdwg.mxu0
    %v1823 = vmul.f32 %v1810, 0.17677669
    %v1824 = vmul.f32 %v1813, 0.17677669
    %v1825 = vmul.f32 %v1818, 0.17677669
    %v1826 = vadd.f32 %v1823, %v361
    %v1827 = vadd.f32 %v1824, %v361
    %v1828 = vadd.f32 %v1825, %v361
    %v1829 = vsel %vm850, %v1826, -inf
    %1830 = vmax.xlane.f32.xlu0 %v1829
    %v1831 = vpop.xlane.xlu0 %1830
    %v1832 = vsel %vm850, %v1827, -inf
    %1833 = vmax.xlane.f32.xlu0 %v1832
    %v1834 = vpop.xlane.xlu0 %1833
    %v1835 = vsel %vm850, %v1828, -inf
    %1836 = vmax.xlane.f32.xlu0 %v1835
    %v1837 = vpop.xlane.xlu0 %1836
    %v1838 = vsub.f32 %v1826, %v1831
    %v1839 = vsub.f32 %v1827, %v1834
    %v1840 = vsub.f32 %v1828, %v1837
    %v1841 = vmul.f32 %v1838, 1.442695
    %v1842 = vpow.pop %v1841
    %v1843 = vmul.f32 %v1839, 1.442695
    %v1844 = vpow.pop %v1843
    %v1845 = vmul.f32 %v1840, 1.442695
    %v1846 = vpow.pop %v1845
    %v1847 = vsel %vm850, %v1842, 0.0
    %1848 = vadd.xlane.f32.xlu0 %v1847
    %v1849 = vpop.xlane.xlu0 %1848
    %v1850 = vsel %vm850, %v1844, 0.0
    %1851 = vadd.xlane.f32.xlu0 %v1850
    %v1852 = vpop.xlane.xlu0 %1851
    %v1853 = vsel %vm850, %v1846, 0.0
    %1854 = vadd.xlane.f32.xlu0 %v1853
    %v1855 = vpop.xlane.xlu0 %1854
    %v1856 = vrcp.pop %v1849
    %v1857 = vrcp.pop %v1852
    %v1858 = vrcp.pop %v1855
    %v1859 = vmul.f32 %v1842, %v1856
    %v1860 = vmul.f32 %v1844, %v1857
    %v1861 = vmul.f32 %v1846, %v1858
    %v1862 = vpack.c.bf16 %v1860, %v1859
    %v1863 = vpack.c.bf16 %v1861, %v1861
    %v1865 = vsel %vm850, %v1862, 0
    %v1868 = vsel %vm850, %v1863, 0
    %v1871 = vsel %vm892, %v1762, 0
    %1873 = vmatprep.subr.bf16.mxu0 0
    %1874 = vmatpush1.bf16.msra.mxu0 0
    %1875 = vmatprep.subr.bf16.mxu0 0
    %1876 = vmatpush1.bf16.msra.mxu0 0
    %1877 = vmatprep.subr.bf16.mxu0 0
    %1878 = vmatpush1.bf16.msra.mxu0 0
    %1879 = vmatprep.subr.bf16.mxu0 0
    %1880 = vmatpush1.bf16.msra.mxu0 0
    %1881 = vmatprep.subr.bf16.mxu0 0
    %1882 = vmatpush1.bf16.msra.mxu0 0
    %1883 = vmatprep.subr.bf16.mxu0 0
    %1884 = vmatpush1.bf16.msra.mxu0 0
    %1885 = vmatprep.subr.bf16.mxu0 0
    %1886 = vmatpush1.bf16.msra.mxu0 %v1871
    %1887 = vmatprep.subr.bf16.mxu0 0
    %1888 = vmatpush1.bf16.msra.mxu0 %v1761
    %1889 = vmatprep.subr.bf16.mxu0 0
    %1890 = vmatpush2.bf16.msra.mxu0 0
    %1891 = vmatprep.subr.bf16.mxu0 0
    %1892 = vmatpush2.bf16.msra.mxu0 0
    %1893 = vmatprep.subr.bf16.mxu0 0
    %1894 = vmatpush2.bf16.msra.mxu0 0
    %1895 = vmatprep.subr.bf16.mxu0 0
    %1896 = vmatpush2.bf16.msra.mxu0 0
    %1897 = vmatprep.subr.bf16.mxu0 0
    %1898 = vmatpush2.bf16.msra.mxu0 0
    %1899 = vmatprep.subr.bf16.mxu0 0
    %1900 = vmatpush2.bf16.msra.mxu0 0
    %1901 = vmatprep.subr.bf16.mxu0 0
    %1902 = vmatpush2.bf16.msra.mxu0 0
    %1903 = vmatprep.subr.bf16.mxu0 0
    %1904 = vmatpush2.bf16.msra.mxu0 0
    %1905 = vmatprep.mubr.bf16.mxu0 0
    %1906 = vmatmul.mubr.bf16.gmra.mxu0 %v1865
    %v1907 = vpop.f32.mrf.mxu0
    %v1908 = vadd.f32 0.0, %v1907
    %v1909 = vpop.f32.mrf.mxu0
    %v1910 = vpop.f32.mrf.mxu0
    %v1911 = vadd.f32 0.0, %v1910
    %v1912 = vpop.f32.mrf.mxu0
    %1913 = vmatprep.mubr.bf16.mxu0 0
    %1914 = vmatmul.mubr.bf16.gmra.mxu0 %v1868
    %v1915 = vpop.f32.mrf.mxu0
    %v1916 = vadd.f32 0.0, %v1915
    %v1917 = vpop.f32.mrf.mxu0
    %v1918 = vpop.f32.mrf.mxu0
    %v1919 = vpop.f32.mrf.mxu0
    %1920 = vdwg.mxu0
    %v1921 = vpack.c.bf16 %v1911, %v1908
    %v1922 = vpack.c.bf16 %v1916, %v1916
    %1925 = vrot.lane.b32.xlu0 %v1757, 96
    %v1926 = vpop.permute.xlu0 %1925
    %1927 = vrot.lane.b32.xlu0 %v1758, 96
    %v1928 = vpop.permute.xlu0 %1927
    %1931 = vrot.lane.b32.xlu0 %v1759, 96
    %v1932 = vpop.permute.xlu0 %1931
    %1933 = vrot.lane.b32.xlu0 %v1760, 96
    %v1934 = vpop.permute.xlu0 %1933
    %v1936 = vsel %vm783, %v1926, 0
    %v1939 = vsel %vm783, %v1928, 0
    %v1942 = vsel %vm783, %v1932, 0
    %v1945 = vsel %vm783, %v1934, 0
    %1947 = vmatprep.subr.bf16.mxu0 0
    %1948 = vmatpush1.bf16.xpose.msra.mxu0 0
    %1949 = vmatprep.subr.bf16.mxu0 0
    %1950 = vmatpush1.bf16.xpose.msra.mxu0 0
    %1951 = vmatprep.subr.bf16.mxu0 0
    %1952 = vmatpush1.bf16.xpose.msra.mxu0 0
    %1953 = vmatprep.subr.bf16.mxu0 0
    %1954 = vmatpush1.bf16.xpose.msra.mxu0 0
    %1955 = vmatprep.subr.bf16.mxu0 0
    %1956 = vmatpush1.bf16.xpose.msra.mxu0 0
    %1957 = vmatprep.subr.bf16.mxu0 0
    %1958 = vmatpush1.bf16.xpose.msra.mxu0 0
    %1959 = vmatprep.subr.bf16.mxu0 0
    %1960 = vmatpush1.bf16.xpose.msra.mxu0 %v1945
    %1961 = vmatprep.subr.bf16.mxu0 0
    %1962 = vmatpush1.bf16.xpose.msra.mxu0 %v1942
    %1963 = vmatprep.subr.bf16.mxu0 0
    %1964 = vmatpush2.bf16.xpose.msra.mxu0 0
    %1965 = vmatprep.subr.bf16.mxu0 0
    %1966 = vmatpush2.bf16.xpose.msra.mxu0 0
    %1967 = vmatprep.subr.bf16.mxu0 0
    %1968 = vmatpush2.bf16.xpose.msra.mxu0 0
    %1969 = vmatprep.subr.bf16.mxu0 0
    %1970 = vmatpush2.bf16.xpose.msra.mxu0 0
    %1971 = vmatprep.subr.bf16.mxu0 0
    %1972 = vmatpush2.bf16.xpose.msra.mxu0 0
    %1973 = vmatprep.subr.bf16.mxu0 0
    %1974 = vmatpush2.bf16.xpose.msra.mxu0 0
    %1975 = vmatprep.subr.bf16.mxu0 0
    %1976 = vmatpush2.bf16.xpose.msra.mxu0 0
    %1977 = vmatprep.subr.bf16.mxu0 0
    %1978 = vmatpush2.bf16.xpose.msra.mxu0 0
    %1979 = vmatprep.mubr.bf16.mxu0 0
    %1980 = vmatmul.mubr.bf16.gmra.mxu0 %v1936
    %v1981 = vpop.f32.mrf.mxu0
    %v1982 = vadd.f32 0.0, %v1981
    %v1983 = vpop.f32.mrf.mxu0
    %v1984 = vpop.f32.mrf.mxu0
    %v1985 = vadd.f32 0.0, %v1984
    %v1986 = vpop.f32.mrf.mxu0
    %1987 = vmatprep.mubr.bf16.mxu0 0
    %1988 = vmatmul.mubr.bf16.gmra.mxu0 %v1939
    %v1989 = vpop.f32.mrf.mxu0
    %v1990 = vadd.f32 0.0, %v1989
    %v1991 = vpop.f32.mrf.mxu0
    %v1992 = vpop.f32.mrf.mxu0
    %v1993 = vpop.f32.mrf.mxu0
    %1994 = vdwg.mxu0
    %v1995 = vmul.f32 %v1982, 0.17677669
    %v1996 = vmul.f32 %v1985, 0.17677669
    %v1997 = vmul.f32 %v1990, 0.17677669
    %v1998 = vadd.f32 %v1995, %v361
    %v1999 = vadd.f32 %v1996, %v361
    %v2000 = vadd.f32 %v1997, %v361
    %v2001 = vsel %vm850, %v1998, -inf
    %2002 = vmax.xlane.f32.xlu0 %v2001
    %v2003 = vpop.xlane.xlu0 %2002
    %v2004 = vsel %vm850, %v1999, -inf
    %2005 = vmax.xlane.f32.xlu0 %v2004
    %v2006 = vpop.xlane.xlu0 %2005
    %v2007 = vsel %vm850, %v2000, -inf
    %2008 = vmax.xlane.f32.xlu0 %v2007
    %v2009 = vpop.xlane.xlu0 %2008
    %v2010 = vsub.f32 %v1998, %v2003
    %v2011 = vsub.f32 %v1999, %v2006
    %v2012 = vsub.f32 %v2000, %v2009
    %v2013 = vmul.f32 %v2010, 1.442695
    %v2014 = vpow.pop %v2013
    %v2015 = vmul.f32 %v2011, 1.442695
    %v2016 = vpow.pop %v2015
    %v2017 = vmul.f32 %v2012, 1.442695
    %v2018 = vpow.pop %v2017
    %v2019 = vsel %vm850, %v2014, 0.0
    %2020 = vadd.xlane.f32.xlu0 %v2019
    %v2021 = vpop.xlane.xlu0 %2020
    %v2022 = vsel %vm850, %v2016, 0.0
    %2023 = vadd.xlane.f32.xlu0 %v2022
    %v2024 = vpop.xlane.xlu0 %2023
    %v2025 = vsel %vm850, %v2018, 0.0
    %2026 = vadd.xlane.f32.xlu0 %v2025
    %v2027 = vpop.xlane.xlu0 %2026
    %v2028 = vrcp.pop %v2021
    %v2029 = vrcp.pop %v2024
    %v2030 = vrcp.pop %v2027
    %v2031 = vmul.f32 %v2014, %v2028
    %v2032 = vmul.f32 %v2016, %v2029
    %v2033 = vmul.f32 %v2018, %v2030
    %v2034 = vpack.c.bf16 %v2032, %v2031
    %v2035 = vpack.c.bf16 %v2033, %v2033
    %2038 = vrot.lane.b32.xlu0 %v1761, 96
    %v2039 = vpop.permute.xlu0 %2038
    %2040 = vrot.lane.b32.xlu0 %v1762, 96
    %v2041 = vpop.permute.xlu0 %2040
    %v2044 = vsel %vm850, %v2034, 0
    %v2047 = vsel %vm850, %v2035, 0
    %v2050 = vsel %vm892, %v2041, 0
    %2052 = vmatprep.subr.bf16.mxu0 0
    %2053 = vmatpush1.bf16.msra.mxu0 0
    %2054 = vmatprep.subr.bf16.mxu0 0
    %2055 = vmatpush1.bf16.msra.mxu0 0
    %2056 = vmatprep.subr.bf16.mxu0 0
    %2057 = vmatpush1.bf16.msra.mxu0 0
    %2058 = vmatprep.subr.bf16.mxu0 0
    %2059 = vmatpush1.bf16.msra.mxu0 0
    %2060 = vmatprep.subr.bf16.mxu0 0
    %2061 = vmatpush1.bf16.msra.mxu0 0
    %2062 = vmatprep.subr.bf16.mxu0 0
    %2063 = vmatpush1.bf16.msra.mxu0 0
    %2064 = vmatprep.subr.bf16.mxu0 0
    %2065 = vmatpush1.bf16.msra.mxu0 %v2050
    %2066 = vmatprep.subr.bf16.mxu0 0
    %2067 = vmatpush1.bf16.msra.mxu0 %v2039
    %2068 = vmatprep.subr.bf16.mxu0 0
    %2069 = vmatpush2.bf16.msra.mxu0 0
    %2070 = vmatprep.subr.bf16.mxu0 0
    %2071 = vmatpush2.bf16.msra.mxu0 0
    %2072 = vmatprep.subr.bf16.mxu0 0
    %2073 = vmatpush2.bf16.msra.mxu0 0
    %2074 = vmatprep.subr.bf16.mxu0 0
    %2075 = vmatpush2.bf16.msra.mxu0 0
    %2076 = vmatprep.subr.bf16.mxu0 0
    %2077 = vmatpush2.bf16.msra.mxu0 0
    %2078 = vmatprep.subr.bf16.mxu0 0
    %2079 = vmatpush2.bf16.msra.mxu0 0
    %2080 = vmatprep.subr.bf16.mxu0 0
    %2081 = vmatpush2.bf16.msra.mxu0 0
    %2082 = vmatprep.subr.bf16.mxu0 0
    %2083 = vmatpush2.bf16.msra.mxu0 0
    %2084 = vmatprep.mubr.bf16.mxu0 0
    %2085 = vmatmul.mubr.bf16.gmra.mxu0 %v2044
    %v2086 = vpop.f32.mrf.mxu0
    %v2087 = vadd.f32 0.0, %v2086
    %v2088 = vpop.f32.mrf.mxu0
    %v2089 = vpop.f32.mrf.mxu0
    %v2090 = vadd.f32 0.0, %v2089
    %v2091 = vpop.f32.mrf.mxu0
    %2092 = vmatprep.mubr.bf16.mxu0 0
    %2093 = vmatmul.mubr.bf16.gmra.mxu0 %v2047
    %v2094 = vpop.f32.mrf.mxu0
    %v2095 = vadd.f32 0.0, %v2094
    %v2096 = vpop.f32.mrf.mxu0
    %v2097 = vpop.f32.mrf.mxu0
    %v2098 = vpop.f32.mrf.mxu0
    %2099 = vdwg.mxu0
    %v2100 = vpack.c.bf16 %v2090, %v2087
    %v2101 = vpack.c.bf16 %v2095, %v2095
    %v2103 = vsel %vm783, %v2100, 0
    %v2106 = vsel %vm783, %v2101, 0
    %2108 = vmatprep.subr.bf16.mxu0 0
    %2109 = vmatpush1.bf16.msra.mxu0 0
    %2110 = vmatprep.subr.bf16.mxu0 0
    %2111 = vmatpush1.bf16.msra.mxu0 0
    %2112 = vmatprep.subr.bf16.mxu0 0
    %2113 = vmatpush1.bf16.msra.mxu0 0
    %2114 = vmatprep.subr.bf16.mxu0 0
    %2115 = vmatpush1.bf16.msra.mxu0 0
    %2116 = vmatprep.subr.bf16.mxu0 0
    %2117 = vmatpush1.bf16.msra.mxu0 0
    %2118 = vmatprep.subr.bf16.mxu0 0
    %2119 = vmatpush1.bf16.msra.mxu0 0
    %2120 = vmatprep.subr.bf16.mxu0 0
    %2121 = vmatpush1.bf16.msra.mxu0 %v1134
    %2122 = vmatprep.subr.bf16.mxu0 0
    %2123 = vmatpush1.bf16.msra.mxu0 %v1133
    %2124 = vmatprep.subr.bf16.mxu0 0
    %2125 = vmatpush2.bf16.msra.mxu0 0
    %2126 = vmatprep.subr.bf16.mxu0 0
    %2127 = vmatpush2.bf16.msra.mxu0 0
    %2128 = vmatprep.subr.bf16.mxu0 0
    %2129 = vmatpush2.bf16.msra.mxu0 0
    %2130 = vmatprep.subr.bf16.mxu0 0
    %2131 = vmatpush2.bf16.msra.mxu0 0
    %2132 = vmatprep.subr.bf16.mxu0 0
    %2133 = vmatpush2.bf16.msra.mxu0 0
    %2134 = vmatprep.subr.bf16.mxu0 0
    %2135 = vmatpush2.bf16.msra.mxu0 0
    %2136 = vmatprep.subr.bf16.mxu0 0
    %2137 = vmatpush2.bf16.msra.mxu0 0
    %2138 = vmatprep.subr.bf16.mxu0 0
    %2139 = vmatpush2.bf16.msra.mxu0 0
    %2140 = vmatprep.mubr.bf16.mxu0 0
    %2141 = vmatmul.mubr.bf16.gmra.mxu0 %v2103
    %v2142 = vpop.f32.mrf.mxu0
    %v2143 = vadd.f32 0.0, %v2142
    %v2144 = vpop.f32.mrf.mxu0
    %v2145 = vpop.f32.mrf.mxu0
    %v2146 = vadd.f32 0.0, %v2145
    %v2147 = vpop.f32.mrf.mxu0
    %2148 = vmatprep.mubr.bf16.mxu0 0
    %2149 = vmatmul.mubr.bf16.gmra.mxu0 %v2106
    %v2150 = vpop.f32.mrf.mxu0
    %v2151 = vadd.f32 0.0, %v2150
    %v2152 = vpop.f32.mrf.mxu0
    %v2153 = vpop.f32.mrf.mxu0
    %v2154 = vpop.f32.mrf.mxu0
    %2155 = vdwg.mxu0
    %v2157 = vsel %vm783, %v1921, 0
    %v2160 = vsel %vm783, %v1922, 0
    %2162 = vmatprep.subr.bf16.mxu0 0
    %2163 = vmatpush1.bf16.msra.mxu0 0
    %2164 = vmatprep.subr.bf16.mxu0 0
    %2165 = vmatpush1.bf16.msra.mxu0 0
    %2166 = vmatprep.subr.bf16.mxu0 0
    %2167 = vmatpush1.bf16.msra.mxu0 0
    %2168 = vmatprep.subr.bf16.mxu0 0
    %2169 = vmatpush1.bf16.msra.mxu0 0
    %2170 = vmatprep.subr.bf16.mxu0 0
    %2171 = vmatpush1.bf16.msra.mxu0 0
    %2172 = vmatprep.subr.bf16.mxu0 0
    %2173 = vmatpush1.bf16.msra.mxu0 0
    %2174 = vmatprep.subr.bf16.mxu0 0
    %2175 = vmatpush1.bf16.msra.mxu0 %v1200
    %2176 = vmatprep.subr.bf16.mxu0 0
    %2177 = vmatpush1.bf16.msra.mxu0 %v1199
    %2178 = vmatprep.subr.bf16.mxu0 0
    %2179 = vmatpush2.bf16.msra.mxu0 0
    %2180 = vmatprep.subr.bf16.mxu0 0
    %2181 = vmatpush2.bf16.msra.mxu0 0
    %2182 = vmatprep.subr.bf16.mxu0 0
    %2183 = vmatpush2.bf16.msra.mxu0 0
    %2184 = vmatprep.subr.bf16.mxu0 0
    %2185 = vmatpush2.bf16.msra.mxu0 0
    %2186 = vmatprep.subr.bf16.mxu0 0
    %2187 = vmatpush2.bf16.msra.mxu0 0
    %2188 = vmatprep.subr.bf16.mxu0 0
    %2189 = vmatpush2.bf16.msra.mxu0 0
    %2190 = vmatprep.subr.bf16.mxu0 0
    %2191 = vmatpush2.bf16.msra.mxu0 0
    %2192 = vmatprep.subr.bf16.mxu0 0
    %2193 = vmatpush2.bf16.msra.mxu0 0
    %2194 = vmatprep.mubr.bf16.mxu0 0
    %2195 = vmatmul.mubr.bf16.gmra.mxu0 %v2157
    %v2196 = vpop.f32.mrf.mxu0
    %v2197 = vadd.f32 %v2143, %v2196
    %v2198 = vpop.f32.mrf.mxu0
    %v2199 = vpop.f32.mrf.mxu0
    %v2200 = vadd.f32 %v2146, %v2199
    %v2201 = vpop.f32.mrf.mxu0
    %2202 = vmatprep.mubr.bf16.mxu0 0
    %2203 = vmatmul.mubr.bf16.gmra.mxu0 %v2160
    %v2204 = vpop.f32.mrf.mxu0
    %v2205 = vadd.f32 %v2151, %v2204
    %v2206 = vpop.f32.mrf.mxu0
    %v2207 = vpop.f32.mrf.mxu0
    %v2208 = vpop.f32.mrf.mxu0
    %2209 = vdwg.mxu0
    %2210 = vrot.lane.b32.xlu0 %v1757, 64
    %v2211 = vpop.permute.xlu0 %2210
    %2212 = vrot.lane.b32.xlu0 %v1758, 64
    %v2213 = vpop.permute.xlu0 %2212
    %2214 = vrot.lane.b32.xlu0 %v1759, 64
    %v2215 = vpop.permute.xlu0 %2214
    %2216 = vrot.lane.b32.xlu0 %v1760, 64
    %v2217 = vpop.permute.xlu0 %2216
    %v2219 = vsel %vm783, %v2211, 0
    %v2222 = vsel %vm783, %v2213, 0
    %v2225 = vsel %vm783, %v2215, 0
    %v2228 = vsel %vm783, %v2217, 0
    %2230 = vmatprep.subr.bf16.mxu0 0
    %2231 = vmatpush1.bf16.xpose.msra.mxu0 0
    %2232 = vmatprep.subr.bf16.mxu0 0
    %2233 = vmatpush1.bf16.xpose.msra.mxu0 0
    %2234 = vmatprep.subr.bf16.mxu0 0
    %2235 = vmatpush1.bf16.xpose.msra.mxu0 0
    %2236 = vmatprep.subr.bf16.mxu0 0
    %2237 = vmatpush1.bf16.xpose.msra.mxu0 0
    %2238 = vmatprep.subr.bf16.mxu0 0
    %2239 = vmatpush1.bf16.xpose.msra.mxu0 0
    %2240 = vmatprep.subr.bf16.mxu0 0
    %2241 = vmatpush1.bf16.xpose.msra.mxu0 0
    %2242 = vmatprep.subr.bf16.mxu0 0
    %2243 = vmatpush1.bf16.xpose.msra.mxu0 %v2228
    %2244 = vmatprep.subr.bf16.mxu0 0
    %2245 = vmatpush1.bf16.xpose.msra.mxu0 %v2225
    %2246 = vmatprep.subr.bf16.mxu0 0
    %2247 = vmatpush2.bf16.xpose.msra.mxu0 0
    %2248 = vmatprep.subr.bf16.mxu0 0
    %2249 = vmatpush2.bf16.xpose.msra.mxu0 0
    %2250 = vmatprep.subr.bf16.mxu0 0
    %2251 = vmatpush2.bf16.xpose.msra.mxu0 0
    %2252 = vmatprep.subr.bf16.mxu0 0
    %2253 = vmatpush2.bf16.xpose.msra.mxu0 0
    %2254 = vmatprep.subr.bf16.mxu0 0
    %2255 = vmatpush2.bf16.xpose.msra.mxu0 0
    %2256 = vmatprep.subr.bf16.mxu0 0
    %2257 = vmatpush2.bf16.xpose.msra.mxu0 0
    %2258 = vmatprep.subr.bf16.mxu0 0
    %2259 = vmatpush2.bf16.xpose.msra.mxu0 0
    %2260 = vmatprep.subr.bf16.mxu0 0
    %2261 = vmatpush2.bf16.xpose.msra.mxu0 0
    %2262 = vmatprep.mubr.bf16.mxu0 0
    %2263 = vmatmul.mubr.bf16.gmra.mxu0 %v2219
    %v2264 = vpop.f32.mrf.mxu0
    %v2265 = vadd.f32 0.0, %v2264
    %v2266 = vpop.f32.mrf.mxu0
    %v2267 = vpop.f32.mrf.mxu0
    %v2268 = vadd.f32 0.0, %v2267
    %v2269 = vpop.f32.mrf.mxu0
    %2270 = vmatprep.mubr.bf16.mxu0 0
    %2271 = vmatmul.mubr.bf16.gmra.mxu0 %v2222
    %v2272 = vpop.f32.mrf.mxu0
    %v2273 = vadd.f32 0.0, %v2272
    %v2274 = vpop.f32.mrf.mxu0
    %v2275 = vpop.f32.mrf.mxu0
    %v2276 = vpop.f32.mrf.mxu0
    %2277 = vdwg.mxu0
    %v2278 = vmul.f32 %v2265, 0.17677669
    %v2279 = vmul.f32 %v2268, 0.17677669
    %v2280 = vmul.f32 %v2273, 0.17677669
    %v2281 = vadd.f32 %v2278, %v361
    %v2282 = vadd.f32 %v2279, %v361
    %v2283 = vadd.f32 %v2280, %v361
    %v2284 = vsel %vm850, %v2281, -inf
    %2285 = vmax.xlane.f32.xlu0 %v2284
    %v2286 = vpop.xlane.xlu0 %2285
    %v2287 = vsel %vm850, %v2282, -inf
    %2288 = vmax.xlane.f32.xlu0 %v2287
    %v2289 = vpop.xlane.xlu0 %2288
    %v2290 = vsel %vm850, %v2283, -inf
    %2291 = vmax.xlane.f32.xlu0 %v2290
    %v2292 = vpop.xlane.xlu0 %2291
    %v2293 = vsub.f32 %v2281, %v2286
    %v2294 = vsub.f32 %v2282, %v2289
    %v2295 = vsub.f32 %v2283, %v2292
    %v2296 = vmul.f32 %v2293, 1.442695
    %v2297 = vpow.pop %v2296
    %v2298 = vmul.f32 %v2294, 1.442695
    %v2299 = vpow.pop %v2298
    %v2300 = vmul.f32 %v2295, 1.442695
    %v2301 = vpow.pop %v2300
    %v2302 = vsel %vm850, %v2297, 0.0
    %2303 = vadd.xlane.f32.xlu0 %v2302
    %v2304 = vpop.xlane.xlu0 %2303
    %v2305 = vsel %vm850, %v2299, 0.0
    %2306 = vadd.xlane.f32.xlu0 %v2305
    %v2307 = vpop.xlane.xlu0 %2306
    %v2308 = vsel %vm850, %v2301, 0.0
    %2309 = vadd.xlane.f32.xlu0 %v2308
    %v2310 = vpop.xlane.xlu0 %2309
    %v2311 = vrcp.pop %v2304
    %v2312 = vrcp.pop %v2307
    %v2313 = vrcp.pop %v2310
    %v2314 = vmul.f32 %v2297, %v2311
    %v2315 = vmul.f32 %v2299, %v2312
    %v2316 = vmul.f32 %v2301, %v2313
    %v2317 = vpack.c.bf16 %v2315, %v2314
    %v2318 = vpack.c.bf16 %v2316, %v2316
    %2319 = vrot.lane.b32.xlu0 %v1761, 64
    %v2320 = vpop.permute.xlu0 %2319
    %2321 = vrot.lane.b32.xlu0 %v1762, 64
    %v2322 = vpop.permute.xlu0 %2321
    %v2325 = vsel %vm850, %v2317, 0
    %v2328 = vsel %vm850, %v2318, 0
    %v2331 = vsel %vm892, %v2322, 0
    %2333 = vmatprep.subr.bf16.mxu0 0
    %2334 = vmatpush1.bf16.msra.mxu0 0
    %2335 = vmatprep.subr.bf16.mxu0 0
    %2336 = vmatpush1.bf16.msra.mxu0 0
    %2337 = vmatprep.subr.bf16.mxu0 0
    %2338 = vmatpush1.bf16.msra.mxu0 0
    %2339 = vmatprep.subr.bf16.mxu0 0
    %2340 = vmatpush1.bf16.msra.mxu0 0
    %2341 = vmatprep.subr.bf16.mxu0 0
    %2342 = vmatpush1.bf16.msra.mxu0 0
    %2343 = vmatprep.subr.bf16.mxu0 0
    %2344 = vmatpush1.bf16.msra.mxu0 0
    %2345 = vmatprep.subr.bf16.mxu0 0
    %2346 = vmatpush1.bf16.msra.mxu0 %v2331
    %2347 = vmatprep.subr.bf16.mxu0 0
    %2348 = vmatpush1.bf16.msra.mxu0 %v2320
    %2349 = vmatprep.subr.bf16.mxu0 0
    %2350 = vmatpush2.bf16.msra.mxu0 0
    %2351 = vmatprep.subr.bf16.mxu0 0
    %2352 = vmatpush2.bf16.msra.mxu0 0
    %2353 = vmatprep.subr.bf16.mxu0 0
    %2354 = vmatpush2.bf16.msra.mxu0 0
    %2355 = vmatprep.subr.bf16.mxu0 0
    %2356 = vmatpush2.bf16.msra.mxu0 0
    %2357 = vmatprep.subr.bf16.mxu0 0
    %2358 = vmatpush2.bf16.msra.mxu0 0
    %2359 = vmatprep.subr.bf16.mxu0 0
    %2360 = vmatpush2.bf16.msra.mxu0 0
    %2361 = vmatprep.subr.bf16.mxu0 0
    %2362 = vmatpush2.bf16.msra.mxu0 0
    %2363 = vmatprep.subr.bf16.mxu0 0
    %2364 = vmatpush2.bf16.msra.mxu0 0
    %2365 = vmatprep.mubr.bf16.mxu0 0
    %2366 = vmatmul.mubr.bf16.gmra.mxu0 %v2325
    %v2367 = vpop.f32.mrf.mxu0
    %v2368 = vadd.f32 0.0, %v2367
    %v2369 = vpop.f32.mrf.mxu0
    %v2370 = vpop.f32.mrf.mxu0
    %v2371 = vadd.f32 0.0, %v2370
    %v2372 = vpop.f32.mrf.mxu0
    %2373 = vmatprep.mubr.bf16.mxu0 0
    %2374 = vmatmul.mubr.bf16.gmra.mxu0 %v2328
    %v2375 = vpop.f32.mrf.mxu0
    %v2376 = vadd.f32 0.0, %v2375
    %v2377 = vpop.f32.mrf.mxu0
    %v2378 = vpop.f32.mrf.mxu0
    %v2379 = vpop.f32.mrf.mxu0
    %2380 = vdwg.mxu0
    %v2381 = vpack.c.bf16 %v2371, %v2368
    %v2382 = vpack.c.bf16 %v2376, %v2376
    %v2384 = vsel %vm783, %v2381, 0
    %v2387 = vsel %vm783, %v2382, 0
    %2389 = vmatprep.subr.bf16.mxu0 0
    %2390 = vmatpush1.bf16.msra.mxu0 0
    %2391 = vmatprep.subr.bf16.mxu0 0
    %2392 = vmatpush1.bf16.msra.mxu0 0
    %2393 = vmatprep.subr.bf16.mxu0 0
    %2394 = vmatpush1.bf16.msra.mxu0 0
    %2395 = vmatprep.subr.bf16.mxu0 0
    %2396 = vmatpush1.bf16.msra.mxu0 0
    %2397 = vmatprep.subr.bf16.mxu0 0
    %2398 = vmatpush1.bf16.msra.mxu0 0
    %2399 = vmatprep.subr.bf16.mxu0 0
    %2400 = vmatpush1.bf16.msra.mxu0 0
    %2401 = vmatprep.subr.bf16.mxu0 0
    %2402 = vmatpush1.bf16.msra.mxu0 %v1439
    %2403 = vmatprep.subr.bf16.mxu0 0
    %2404 = vmatpush1.bf16.msra.mxu0 %v1438
    %2405 = vmatprep.subr.bf16.mxu0 0
    %2406 = vmatpush2.bf16.msra.mxu0 0
    %2407 = vmatprep.subr.bf16.mxu0 0
    %2408 = vmatpush2.bf16.msra.mxu0 0
    %2409 = vmatprep.subr.bf16.mxu0 0
    %2410 = vmatpush2.bf16.msra.mxu0 0
    %2411 = vmatprep.subr.bf16.mxu0 0
    %2412 = vmatpush2.bf16.msra.mxu0 0
    %2413 = vmatprep.subr.bf16.mxu0 0
    %2414 = vmatpush2.bf16.msra.mxu0 0
    %2415 = vmatprep.subr.bf16.mxu0 0
    %2416 = vmatpush2.bf16.msra.mxu0 0
    %2417 = vmatprep.subr.bf16.mxu0 0
    %2418 = vmatpush2.bf16.msra.mxu0 0
    %2419 = vmatprep.subr.bf16.mxu0 0
    %2420 = vmatpush2.bf16.msra.mxu0 0
    %2421 = vmatprep.mubr.bf16.mxu0 0
    %2422 = vmatmul.mubr.bf16.gmra.mxu0 %v2384
    %v2423 = vpop.f32.mrf.mxu0
    %v2424 = vadd.f32 0.0, %v2423
    %v2425 = vpop.f32.mrf.mxu0
    %v2426 = vpop.f32.mrf.mxu0
    %v2427 = vadd.f32 0.0, %v2426
    %v2428 = vpop.f32.mrf.mxu0
    %2429 = vmatprep.mubr.bf16.mxu0 0
    %2430 = vmatmul.mubr.bf16.gmra.mxu0 %v2387
    %v2431 = vpop.f32.mrf.mxu0
    %v2432 = vadd.f32 0.0, %v2431
    %v2433 = vpop.f32.mrf.mxu0
    %v2434 = vpop.f32.mrf.mxu0
    %v2435 = vpop.f32.mrf.mxu0
    %2436 = vdwg.mxu0
    %v2437 = vadd.f32 %v2197, %v2424
    %v2438 = vadd.f32 %v2200, %v2427
    %v2439 = vadd.f32 %v2205, %v2432
    %2440 = vrot.lane.b32.xlu0 %v1757, 32
    %v2441 = vpop.permute.xlu0 %2440
    %2442 = vrot.lane.b32.xlu0 %v1758, 32
    %v2443 = vpop.permute.xlu0 %2442
    %2444 = vrot.lane.b32.xlu0 %v1759, 32
    %v2445 = vpop.permute.xlu0 %2444
    %2446 = vrot.lane.b32.xlu0 %v1760, 32
    %v2447 = vpop.permute.xlu0 %2446
    %v2449 = vsel %vm783, %v2441, 0
    %v2452 = vsel %vm783, %v2443, 0
    %v2455 = vsel %vm783, %v2445, 0
    %v2458 = vsel %vm783, %v2447, 0
    %2460 = vmatprep.subr.bf16.mxu0 0
    %2461 = vmatpush1.bf16.xpose.msra.mxu0 0
    %2462 = vmatprep.subr.bf16.mxu0 0
    %2463 = vmatpush1.bf16.xpose.msra.mxu0 0
    %2464 = vmatprep.subr.bf16.mxu0 0
    %2465 = vmatpush1.bf16.xpose.msra.mxu0 0
    %2466 = vmatprep.subr.bf16.mxu0 0
    %2467 = vmatpush1.bf16.xpose.msra.mxu0 0
    %2468 = vmatprep.subr.bf16.mxu0 0
    %2469 = vmatpush1.bf16.xpose.msra.mxu0 0
    %2470 = vmatprep.subr.bf16.mxu0 0
    %2471 = vmatpush1.bf16.xpose.msra.mxu0 0
    %2472 = vmatprep.subr.bf16.mxu0 0
    %2473 = vmatpush1.bf16.xpose.msra.mxu0 %v2458
    %2474 = vmatprep.subr.bf16.mxu0 0
    %2475 = vmatpush1.bf16.xpose.msra.mxu0 %v2455
    %2476 = vmatprep.subr.bf16.mxu0 0
    %2477 = vmatpush2.bf16.xpose.msra.mxu0 0
    %2478 = vmatprep.subr.bf16.mxu0 0
    %2479 = vmatpush2.bf16.xpose.msra.mxu0 0
    %2480 = vmatprep.subr.bf16.mxu0 0
    %2481 = vmatpush2.bf16.xpose.msra.mxu0 0
    %2482 = vmatprep.subr.bf16.mxu0 0
    %2483 = vmatpush2.bf16.xpose.msra.mxu0 0
    %2484 = vmatprep.subr.bf16.mxu0 0
    %2485 = vmatpush2.bf16.xpose.msra.mxu0 0
    %2486 = vmatprep.subr.bf16.mxu0 0
    %2487 = vmatpush2.bf16.xpose.msra.mxu0 0
    %2488 = vmatprep.subr.bf16.mxu0 0
    %2489 = vmatpush2.bf16.xpose.msra.mxu0 0
    %2490 = vmatprep.subr.bf16.mxu0 0
    %2491 = vmatpush2.bf16.xpose.msra.mxu0 0
    %2492 = vmatprep.mubr.bf16.mxu0 0
    %2493 = vmatmul.mubr.bf16.gmra.mxu0 %v2449
    %v2494 = vpop.f32.mrf.mxu0
    %v2495 = vadd.f32 0.0, %v2494
    %v2496 = vpop.f32.mrf.mxu0
    %v2497 = vpop.f32.mrf.mxu0
    %v2498 = vadd.f32 0.0, %v2497
    %v2499 = vpop.f32.mrf.mxu0
    %2500 = vmatprep.mubr.bf16.mxu0 0
    %2501 = vmatmul.mubr.bf16.gmra.mxu0 %v2452
    %v2502 = vpop.f32.mrf.mxu0
    %v2503 = vadd.f32 0.0, %v2502
    %v2504 = vpop.f32.mrf.mxu0
    %v2505 = vpop.f32.mrf.mxu0
    %v2506 = vpop.f32.mrf.mxu0
    %2507 = vdwg.mxu0
    %v2508 = vmul.f32 %v2495, 0.17677669
    %v2509 = vmul.f32 %v2498, 0.17677669
    %v2510 = vmul.f32 %v2503, 0.17677669
    %v2511 = vadd.f32 %v2508, %v361
    %v2512 = vadd.f32 %v2509, %v361
    %v2513 = vadd.f32 %v2510, %v361
    %v2514 = vsel %vm850, %v2511, -inf
    %2515 = vmax.xlane.f32.xlu0 %v2514
    %v2516 = vpop.xlane.xlu0 %2515
    %v2517 = vsel %vm850, %v2512, -inf
    %2518 = vmax.xlane.f32.xlu0 %v2517
    %v2519 = vpop.xlane.xlu0 %2518
    %v2520 = vsel %vm850, %v2513, -inf
    %2521 = vmax.xlane.f32.xlu0 %v2520
    %v2522 = vpop.xlane.xlu0 %2521
    %v2523 = vsub.f32 %v2511, %v2516
    %v2524 = vsub.f32 %v2512, %v2519
    %v2525 = vsub.f32 %v2513, %v2522
    %v2526 = vmul.f32 %v2523, 1.442695
    %v2527 = vpow.pop %v2526
    %v2528 = vmul.f32 %v2524, 1.442695
    %v2529 = vpow.pop %v2528
    %v2530 = vmul.f32 %v2525, 1.442695
    %v2531 = vpow.pop %v2530
    %v2532 = vsel %vm850, %v2527, 0.0
    %2533 = vadd.xlane.f32.xlu0 %v2532
    %v2534 = vpop.xlane.xlu0 %2533
    %v2535 = vsel %vm850, %v2529, 0.0
    %2536 = vadd.xlane.f32.xlu0 %v2535
    %v2537 = vpop.xlane.xlu0 %2536
    %v2538 = vsel %vm850, %v2531, 0.0
    %2539 = vadd.xlane.f32.xlu0 %v2538
    %v2540 = vpop.xlane.xlu0 %2539
    %v2541 = vrcp.pop %v2534
    %v2542 = vrcp.pop %v2537
    %v2543 = vrcp.pop %v2540
    %v2544 = vmul.f32 %v2527, %v2541
    %v2545 = vmul.f32 %v2529, %v2542
    %v2546 = vmul.f32 %v2531, %v2543
    %v2547 = vpack.c.bf16 %v2545, %v2544
    %v2548 = vpack.c.bf16 %v2546, %v2546
    %2549 = vrot.lane.b32.xlu0 %v1761, 32
    %v2550 = vpop.permute.xlu0 %2549
    %2551 = vrot.lane.b32.xlu0 %v1762, 32
    %v2552 = vpop.permute.xlu0 %2551
    %v2555 = vsel %vm850, %v2547, 0
    %v2558 = vsel %vm850, %v2548, 0
    %v2561 = vsel %vm892, %v2552, 0
    %2563 = vmatprep.subr.bf16.mxu0 0
    %2564 = vmatpush1.bf16.msra.mxu0 0
    %2565 = vmatprep.subr.bf16.mxu0 0
    %2566 = vmatpush1.bf16.msra.mxu0 0
    %2567 = vmatprep.subr.bf16.mxu0 0
    %2568 = vmatpush1.bf16.msra.mxu0 0
    %2569 = vmatprep.subr.bf16.mxu0 0
    %2570 = vmatpush1.bf16.msra.mxu0 0
    %2571 = vmatprep.subr.bf16.mxu0 0
    %2572 = vmatpush1.bf16.msra.mxu0 0
    %2573 = vmatprep.subr.bf16.mxu0 0
    %2574 = vmatpush1.bf16.msra.mxu0 0
    %2575 = vmatprep.subr.bf16.mxu0 0
    %2576 = vmatpush1.bf16.msra.mxu0 %v2561
    %2577 = vmatprep.subr.bf16.mxu0 0
    %2578 = vmatpush1.bf16.msra.mxu0 %v2550
    %2579 = vmatprep.subr.bf16.mxu0 0
    %2580 = vmatpush2.bf16.msra.mxu0 0
    %2581 = vmatprep.subr.bf16.mxu0 0
    %2582 = vmatpush2.bf16.msra.mxu0 0
    %2583 = vmatprep.subr.bf16.mxu0 0
    %2584 = vmatpush2.bf16.msra.mxu0 0
    %2585 = vmatprep.subr.bf16.mxu0 0
    %2586 = vmatpush2.bf16.msra.mxu0 0
    %2587 = vmatprep.subr.bf16.mxu0 0
    %2588 = vmatpush2.bf16.msra.mxu0 0
    %2589 = vmatprep.subr.bf16.mxu0 0
    %2590 = vmatpush2.bf16.msra.mxu0 0
    %2591 = vmatprep.subr.bf16.mxu0 0
    %2592 = vmatpush2.bf16.msra.mxu0 0
    %2593 = vmatprep.subr.bf16.mxu0 0
    %2594 = vmatpush2.bf16.msra.mxu0 0
    %2595 = vmatprep.mubr.bf16.mxu0 0
    %2596 = vmatmul.mubr.bf16.gmra.mxu0 %v2555
    %v2597 = vpop.f32.mrf.mxu0
    %v2598 = vadd.f32 0.0, %v2597
    %v2599 = vpop.f32.mrf.mxu0
    %v2600 = vpop.f32.mrf.mxu0
    %v2601 = vadd.f32 0.0, %v2600
    %v2602 = vpop.f32.mrf.mxu0
    %2603 = vmatprep.mubr.bf16.mxu0 0
    %2604 = vmatmul.mubr.bf16.gmra.mxu0 %v2558
    %v2605 = vpop.f32.mrf.mxu0
    %v2606 = vadd.f32 0.0, %v2605
    %v2607 = vpop.f32.mrf.mxu0
    %v2608 = vpop.f32.mrf.mxu0
    %v2609 = vpop.f32.mrf.mxu0
    %2610 = vdwg.mxu0
    %v2611 = vpack.c.bf16 %v2601, %v2598
    %v2612 = vpack.c.bf16 %v2606, %v2606
    %v2614 = vsel %vm783, %v2611, 0
    %v2617 = vsel %vm783, %v2612, 0
    %2619 = vmatprep.subr.bf16.mxu0 0
    %2620 = vmatpush1.bf16.msra.mxu0 0
    %2621 = vmatprep.subr.bf16.mxu0 0
    %2622 = vmatpush1.bf16.msra.mxu0 0
    %2623 = vmatprep.subr.bf16.mxu0 0
    %2624 = vmatpush1.bf16.msra.mxu0 0
    %2625 = vmatprep.subr.bf16.mxu0 0
    %2626 = vmatpush1.bf16.msra.mxu0 0
    %2627 = vmatprep.subr.bf16.mxu0 0
    %2628 = vmatpush1.bf16.msra.mxu0 0
    %2629 = vmatprep.subr.bf16.mxu0 0
    %2630 = vmatpush1.bf16.msra.mxu0 0
    %2631 = vmatprep.subr.bf16.mxu0 0
    %2632 = vmatpush1.bf16.msra.mxu0 %v1681
    %2633 = vmatprep.subr.bf16.mxu0 0
    %2634 = vmatpush1.bf16.msra.mxu0 %v1680
    %2635 = vmatprep.subr.bf16.mxu0 0
    %2636 = vmatpush2.bf16.msra.mxu0 0
    %2637 = vmatprep.subr.bf16.mxu0 0
    %2638 = vmatpush2.bf16.msra.mxu0 0
    %2639 = vmatprep.subr.bf16.mxu0 0
    %2640 = vmatpush2.bf16.msra.mxu0 0
    %2641 = vmatprep.subr.bf16.mxu0 0
    %2642 = vmatpush2.bf16.msra.mxu0 0
    %2643 = vmatprep.subr.bf16.mxu0 0
    %2644 = vmatpush2.bf16.msra.mxu0 0
    %2645 = vmatprep.subr.bf16.mxu0 0
    %2646 = vmatpush2.bf16.msra.mxu0 0
    %2647 = vmatprep.subr.bf16.mxu0 0
    %2648 = vmatpush2.bf16.msra.mxu0 0
    %2649 = vmatprep.subr.bf16.mxu0 0
    %2650 = vmatpush2.bf16.msra.mxu0 0
    %2651 = vmatprep.mubr.bf16.mxu0 0
    %2652 = vmatmul.mubr.bf16.gmra.mxu0 %v2614
    %v2653 = vpop.f32.mrf.mxu0
    %v2654 = vadd.f32 0.0, %v2653
    %v2655 = vpop.f32.mrf.mxu0
    %v2656 = vpop.f32.mrf.mxu0
    %v2657 = vadd.f32 0.0, %v2656
    %v2658 = vpop.f32.mrf.mxu0
    %2659 = vmatprep.mubr.bf16.mxu0 0
    %2660 = vmatmul.mubr.bf16.gmra.mxu0 %v2617
    %v2661 = vpop.f32.mrf.mxu0
    %v2662 = vadd.f32 0.0, %v2661
    %v2663 = vpop.f32.mrf.mxu0
    %v2664 = vpop.f32.mrf.mxu0
    %v2665 = vpop.f32.mrf.mxu0
    %2666 = vdwg.mxu0
    %v2667 = vadd.f32 %v2437, %v2654
    %v2668 = vadd.f32 %v2438, %v2657
    %v2669 = vadd.f32 %v2439, %v2662
    %v2670 = vadd.f32 %v365, %v2667
    %v2671 = vadd.f32 %v366, %v2668
    %v2672 = vadd.f32 %v367, %v2669
    %v2673 = vld [vmem:[%s10] sm:$0x1]
    %v2675 = vlaneseq
    %v2676 = vshrl.u32 %v2675, 7
    %v2677 = vsub.s32 0, %v2676
    %v2678 = vrot.slane %v2673, %v2677
    %v2680 = vadd.f32 %v2670, %v2678
    %v2681 = vadd.f32 %v2671, %v2678
    %v2682 = vadd.f32 %v2672, %v2678
    %2683 = vst [vmem:[#allocation2 + $0x18] sm:$0xff] %v2680
    %2684 = vst [vmem:[#allocation2 + $0x20] sm:$0xff] %v2681
    %2685 = vst [vmem:[#allocation2 + $0x28] sm:$0xff] %v2682
    %v2686 = vld [vmem:[#allocation2] sm:$0xff]
    %v2687 = vld [vmem:[#allocation2 + $0x8] sm:$0xff]
    %v2688 = vld [vmem:[#allocation2 + $0x10] sm:$0xff]
    %v2689 = vld [vmem:[#allocation2 + $0x18] sm:$0xff]
    %v2690 = vld [vmem:[#allocation2 + $0x20] sm:$0xff]
    %v2691 = vld [vmem:[#allocation2 + $0x28] sm:$0xff]
    %v2692 = vld [vmem:[%s11] sm:$0x1]
    %v2693 = vld [vmem:[#allocation17] sm:$0x1]
    %2694 = vadd.xlane.f32.xlu0 %v2686
    %v2695 = vpop.xlane.xlu0 %2694
    %2696 = vadd.xlane.f32.xlu0 %v2687
    %v2697 = vpop.xlane.xlu0 %2696
    %2698 = vadd.xlane.f32.xlu0 %v2688
    %v2699 = vpop.xlane.xlu0 %2698
    %2700 = vadd.xlane.f32.xlu0 %v2689
    %v2701 = vpop.xlane.xlu0 %2700
    %2702 = vadd.xlane.f32.xlu0 %v2690
    %v2703 = vpop.xlane.xlu0 %2702
    %2704 = vadd.xlane.f32.xlu0 %v2691
    %v2705 = vpop.xlane.xlu0 %2704
    %v2706 = vmul.f32 %v2695, %v382
    %v2707 = vmul.f32 %v2697, %v382
    %v2708 = vmul.f32 %v2699, %v382
    %v2709 = vmul.f32 %v2701, %v382
    %v2710 = vmul.f32 %v2703, %v382
    %v2711 = vmul.f32 %v2705, %v382
    %v2712 = vsub.f32 %v2686, %v2706
    %v2713 = vsub.f32 %v2687, %v2707
    %v2714 = vsub.f32 %v2688, %v2708
    %v2715 = vsub.f32 %v2689, %v2709
    %v2716 = vsub.f32 %v2690, %v2710
    %v2717 = vsub.f32 %v2691, %v2711
    %v2718 = vmul.f32 %v2712, %v2712
    %v2719 = vmul.f32 %v2713, %v2713
    %v2720 = vmul.f32 %v2714, %v2714
    %v2721 = vmul.f32 %v2715, %v2715
    %v2722 = vmul.f32 %v2716, %v2716
    %v2723 = vmul.f32 %v2717, %v2717
    %2724 = vadd.xlane.f32.xlu0 %v2718
    %v2725 = vpop.xlane.xlu0 %2724
    %2726 = vadd.xlane.f32.xlu0 %v2719
    %v2727 = vpop.xlane.xlu0 %2726
    %2728 = vadd.xlane.f32.xlu0 %v2720
    %v2729 = vpop.xlane.xlu0 %2728
    %2730 = vadd.xlane.f32.xlu0 %v2721
    %v2731 = vpop.xlane.xlu0 %2730
    %2732 = vadd.xlane.f32.xlu0 %v2722
    %v2733 = vpop.xlane.xlu0 %2732
    %2734 = vadd.xlane.f32.xlu0 %v2723
    %v2735 = vpop.xlane.xlu0 %2734
    %v2736 = vmul.f32 %v2725, %v382
    %v2737 = vmul.f32 %v2727, %v382
    %v2738 = vmul.f32 %v2729, %v382
    %v2739 = vmul.f32 %v2731, %v382
    %v2740 = vmul.f32 %v2733, %v382
    %v2741 = vmul.f32 %v2735, %v382
    %v2742 = vadd.f32 %v2736, 1e-06
    %v2743 = vadd.f32 %v2737, 1e-06
    %v2744 = vadd.f32 %v2738, 1e-06
    %v2745 = vadd.f32 %v2739, 1e-06
    %v2746 = vadd.f32 %v2740, 1e-06
    %v2747 = vadd.f32 %v2741, 1e-06
    %v2748 = vrsqrt.pop %v2742
    %v2749 = vrsqrt.pop %v2743
    %v2750 = vrsqrt.pop %v2744
    %v2751 = vrsqrt.pop %v2745
    %v2752 = vrsqrt.pop %v2746
    %v2753 = vrsqrt.pop %v2747
    %v2754 = vmul.f32 %v2712, %v2748
    %v2755 = vmul.f32 %v2713, %v2749
    %v2756 = vmul.f32 %v2714, %v2750
    %v2757 = vmul.f32 %v2715, %v2751
    %v2758 = vmul.f32 %v2716, %v2752
    %v2759 = vmul.f32 %v2717, %v2753
    %v2761 = vlaneseq
    %v2762 = vshrl.u32 %v2761, 7
    %v2763 = vsub.s32 0, %v2762
    %v2764 = vrot.slane %v2692, %v2763
    %v2766 = vmul.f32 %v2754, %v2764
    %v2767 = vmul.f32 %v2755, %v2764
    %v2768 = vmul.f32 %v2756, %v2764
    %v2769 = vmul.f32 %v2757, %v2764
    %v2770 = vmul.f32 %v2758, %v2764
    %v2771 = vmul.f32 %v2759, %v2764
    %v2773 = vlaneseq
    %v2774 = vshrl.u32 %v2773, 7
    %v2775 = vsub.s32 0, %v2774
    %v2776 = vrot.slane %v2693, %v2775
    %v2778 = vadd.f32 %v2766, %v2776
    %v2779 = vadd.f32 %v2767, %v2776
    %v2780 = vadd.f32 %v2768, %v2776
    %v2781 = vadd.f32 %v2769, %v2776
    %v2782 = vadd.f32 %v2770, %v2776
    %v2783 = vadd.f32 %v2771, %v2776
    %v2784 = vpack.c.bf16 %v2779, %v2778
    %v2785 = vpack.c.bf16 %v2781, %v2780
    %v2786 = vpack.c.bf16 %v2783, %v2782
    %v2787 = vld [vmem:[#allocation18] sm:$0xff]
    %v2788 = vld [vmem:[#allocation18 + $0x8] sm:$0xff]
    %v2789 = vld [vmem:[#allocation18 + $0x10] sm:$0xff]
    %v2790 = vld [vmem:[#allocation18 + $0x18] sm:$0xff]
    %v2791 = vld [vmem:[#allocation18 + $0x20] sm:$0xff]
    %v2792 = vld [vmem:[#allocation18 + $0x28] sm:$0xff]
    %v2793 = vld [vmem:[#allocation18 + $0x30] sm:$0xff]
    %v2794 = vld [vmem:[#allocation18 + $0x38] sm:$0xff]
    %v2795 = vld [vmem:[#allocation18 + $0x40] sm:$0xff]
    %v2796 = vld [vmem:[#allocation18 + $0x48] sm:$0xff]
    %v2797 = vld [vmem:[#allocation18 + $0x50] sm:$0xff]
    %v2798 = vld [vmem:[#allocation18 + $0x58] sm:$0xff]
    %v2799 = vld [vmem:[#allocation18 + $0x60] sm:$0xff]
    %v2800 = vld [vmem:[#allocation18 + $0x68] sm:$0xff]
    %v2801 = vld [vmem:[#allocation18 + $0x70] sm:$0xff]
    %v2802 = vld [vmem:[#allocation18 + $0x78] sm:$0xff]
    %v2803 = vld [vmem:[#allocation18 + $0x80] sm:$0xff]
    %v2804 = vld [vmem:[#allocation18 + $0x88] sm:$0xff]
    %v2805 = vld [vmem:[#allocation18 + $0x90] sm:$0xff]
    %v2806 = vld [vmem:[#allocation18 + $0x98] sm:$0xff]
    %v2807 = vld [vmem:[#allocation18 + $0xa0] sm:$0xff]
    %v2808 = vld [vmem:[#allocation18 + $0xa8] sm:$0xff]
    %v2809 = vld [vmem:[#allocation18 + $0xb0] sm:$0xff]
    %v2810 = vld [vmem:[#allocation18 + $0xb8] sm:$0xff]
    %v2811 = vld [vmem:[#allocation18 + $0xc0] sm:$0xff]
    %v2812 = vld [vmem:[#allocation18 + $0xc8] sm:$0xff]
    %v2813 = vld [vmem:[#allocation18 + $0xd0] sm:$0xff]
    %v2814 = vld [vmem:[#allocation18 + $0xd8] sm:$0xff]
    %v2815 = vld [vmem:[#allocation18 + $0xe0] sm:$0xff]
    %v2816 = vld [vmem:[#allocation18 + $0xe8] sm:$0xff]
    %v2817 = vld [vmem:[#allocation18 + $0xf0] sm:$0xff]
    %v2818 = vld [vmem:[#allocation18 + $0xf8] sm:$0xff]
    %v2819 = vld [vmem:[%s14] sm:$0xf]
    %v2821 = vlaneseq
    %v2822 = vshrl.u32 %v2821, 7
    %v2823 = vsub.s32 0, %v2822
    %v2824 = vrot.slane %v2819, %v2823
    %v2825 = vlaneseq
    %v2826 = vshrl.u32 %v2825, 7
    %v2827 = vsub.s32 1, %v2826
    %v2828 = vrot.slane %v2819, %v2827
    %v2829 = vlaneseq
    %v2830 = vshrl.u32 %v2829, 7
    %v2831 = vsub.s32 2, %v2830
    %v2832 = vrot.slane %v2819, %v2831
    %v2833 = vlaneseq
    %v2834 = vshrl.u32 %v2833, 7
    %v2835 = vsub.s32 3, %v2834
    %v2836 = vrot.slane %v2819, %v2835
    %v2873 = vunpack.c.l.b16 %v2787
    %v2874 = vunpack.c.h.b16 %v2787
    %v2875 = vunpack.c.l.b16 %v2788
    %v2876 = vunpack.c.h.b16 %v2788
    %v2877 = vunpack.c.l.b16 %v2789
    %v2878 = vunpack.c.h.b16 %v2789
    %v2879 = vunpack.c.l.b16 %v2790
    %v2880 = vunpack.c.h.b16 %v2790
    %v2881 = vunpack.c.l.b16 %v2791
    %v2882 = vunpack.c.h.b16 %v2791
    %v2883 = vunpack.c.l.b16 %v2792
    %v2884 = vunpack.c.h.b16 %v2792
    %v2885 = vunpack.c.l.b16 %v2793
    %v2886 = vunpack.c.h.b16 %v2793
    %v2887 = vunpack.c.l.b16 %v2794
    %v2888 = vunpack.c.h.b16 %v2794
    %v2889 = vunpack.c.l.b16 %v2795
    %v2890 = vunpack.c.h.b16 %v2795
    %v2891 = vunpack.c.l.b16 %v2796
    %v2892 = vunpack.c.h.b16 %v2796
    %v2893 = vunpack.c.l.b16 %v2797
    %v2894 = vunpack.c.h.b16 %v2797
    %v2895 = vunpack.c.l.b16 %v2798
    %v2896 = vunpack.c.h.b16 %v2798
    %v2897 = vunpack.c.l.b16 %v2799
    %v2898 = vunpack.c.h.b16 %v2799
    %v2899 = vunpack.c.l.b16 %v2800
    %v2900 = vunpack.c.h.b16 %v2800
    %v2901 = vunpack.c.l.b16 %v2801
    %v2902 = vunpack.c.h.b16 %v2801
    %v2903 = vunpack.c.l.b16 %v2802
    %v2904 = vunpack.c.h.b16 %v2802
    %v2905 = vunpack.c.l.b16 %v2803
    %v2906 = vunpack.c.h.b16 %v2803
    %v2907 = vunpack.c.l.b16 %v2804
    %v2908 = vunpack.c.h.b16 %v2804
    %v2909 = vunpack.c.l.b16 %v2805
    %v2910 = vunpack.c.h.b16 %v2805
    %v2911 = vunpack.c.l.b16 %v2806
    %v2912 = vunpack.c.h.b16 %v2806
    %v2913 = vunpack.c.l.b16 %v2807
    %v2914 = vunpack.c.h.b16 %v2807
    %v2915 = vunpack.c.l.b16 %v2808
    %v2916 = vunpack.c.h.b16 %v2808
    %v2917 = vunpack.c.l.b16 %v2809
    %v2918 = vunpack.c.h.b16 %v2809
    %v2919 = vunpack.c.l.b16 %v2810
    %v2920 = vunpack.c.h.b16 %v2810
    %v2921 = vunpack.c.l.b16 %v2811
    %v2922 = vunpack.c.h.b16 %v2811
    %v2923 = vunpack.c.l.b16 %v2812
    %v2924 = vunpack.c.h.b16 %v2812
    %v2925 = vunpack.c.l.b16 %v2813
    %v2926 = vunpack.c.h.b16 %v2813
    %v2927 = vunpack.c.l.b16 %v2814
    %v2928 = vunpack.c.h.b16 %v2814
    %v2929 = vunpack.c.l.b16 %v2815
    %v2930 = vunpack.c.h.b16 %v2815
    %v2931 = vunpack.c.l.b16 %v2816
    %v2932 = vunpack.c.h.b16 %v2816
    %v2933 = vunpack.c.l.b16 %v2817
    %v2934 = vunpack.c.h.b16 %v2817
    %v2935 = vunpack.c.l.b16 %v2818
    %v2936 = vunpack.c.h.b16 %v2818
    %v2937 = vpack.c.b16 %v2877, %v2873
    %v2938 = vpack.c.b16 %v2878, %v2874
    %v2939 = vpack.c.b16 %v2879, %v2875
    %v2940 = vpack.c.b16 %v2880, %v2876
    %v2941 = vpack.c.b16 %v2885, %v2881
    %v2942 = vpack.c.b16 %v2886, %v2882
    %v2943 = vpack.c.b16 %v2887, %v2883
    %v2944 = vpack.c.b16 %v2888, %v2884
    %v2945 = vpack.c.b16 %v2893, %v2889
    %v2946 = vpack.c.b16 %v2894, %v2890
    %v2947 = vpack.c.b16 %v2895, %v2891
    %v2948 = vpack.c.b16 %v2896, %v2892
    %v2949 = vpack.c.b16 %v2901, %v2897
    %v2950 = vpack.c.b16 %v2902, %v2898
    %v2951 = vpack.c.b16 %v2903, %v2899
    %v2952 = vpack.c.b16 %v2904, %v2900
    %v2953 = vpack.c.b16 %v2909, %v2905
    %v2954 = vpack.c.b16 %v2910, %v2906
    %v2955 = vpack.c.b16 %v2911, %v2907
    %v2956 = vpack.c.b16 %v2912, %v2908
    %v2957 = vpack.c.b16 %v2917, %v2913
    %v2958 = vpack.c.b16 %v2918, %v2914
    %v2959 = vpack.c.b16 %v2919, %v2915
    %v2960 = vpack.c.b16 %v2920, %v2916
    %v2961 = vpack.c.b16 %v2925, %v2921
    %v2962 = vpack.c.b16 %v2926, %v2922
    %v2963 = vpack.c.b16 %v2927, %v2923
    %v2964 = vpack.c.b16 %v2928, %v2924
    %v2965 = vpack.c.b16 %v2933, %v2929
    %v2966 = vpack.c.b16 %v2934, %v2930
    %v2967 = vpack.c.b16 %v2935, %v2931
    %v2968 = vpack.c.b16 %v2936, %v2932
    %3001 = vmatprep.subr.bf16.mxu0 %v2966
    %3002 = vmatpush1.bf16.msra.mxu0 %v2965
    %3003 = vmatprep.subr.bf16.mxu0 %v2962
    %3004 = vmatpush1.bf16.msra.mxu0 %v2961
    %3005 = vmatprep.subr.bf16.mxu0 %v2958
    %3006 = vmatpush1.bf16.msra.mxu0 %v2957
    %3007 = vmatprep.subr.bf16.mxu0 %v2954
    %3008 = vmatpush1.bf16.msra.mxu0 %v2953
    %3009 = vmatprep.subr.bf16.mxu0 %v2950
    %3010 = vmatpush1.bf16.msra.mxu0 %v2949
    %3011 = vmatprep.subr.bf16.mxu0 %v2946
    %3012 = vmatpush1.bf16.msra.mxu0 %v2945
    %3013 = vmatprep.subr.bf16.mxu0 %v2942
    %3014 = vmatpush1.bf16.msra.mxu0 %v2941
    %3015 = vmatprep.subr.bf16.mxu0 %v2938
    %3016 = vmatpush1.bf16.msra.mxu0 %v2937
    %3017 = vmatprep.subr.bf16.mxu0 0
    %3018 = vmatpush2.bf16.msra.mxu0 0
    %3019 = vmatprep.subr.bf16.mxu0 0
    %3020 = vmatpush2.bf16.msra.mxu0 0
    %3021 = vmatprep.subr.bf16.mxu0 0
    %3022 = vmatpush2.bf16.msra.mxu0 0
    %3023 = vmatprep.subr.bf16.mxu0 0
    %3024 = vmatpush2.bf16.msra.mxu0 0
    %3025 = vmatprep.subr.bf16.mxu0 0
    %3026 = vmatpush2.bf16.msra.mxu0 0
    %3027 = vmatprep.subr.bf16.mxu0 0
    %3028 = vmatpush2.bf16.msra.mxu0 0
    %3029 = vmatprep.subr.bf16.mxu0 0
    %3030 = vmatpush2.bf16.msra.mxu0 0
    %3031 = vmatprep.subr.bf16.mxu0 0
    %3032 = vmatpush2.bf16.msra.mxu0 0
    %3033 = vmatprep.mubr.bf16.mxu0 0
    %3034 = vmatmul.mubr.bf16.gmra.mxu0 %v2784
    %v3035 = vpop.f32.mrf.mxu0
    %v3036 = vadd.f32 %v2824, %v3035
    %v3037 = vpop.f32.mrf.mxu0
    %v3038 = vadd.f32 %v2828, %v3037
    %v3039 = vpop.f32.mrf.mxu0
    %v3040 = vadd.f32 %v2824, %v3039
    %v3041 = vpop.f32.mrf.mxu0
    %v3042 = vadd.f32 %v2828, %v3041
    %3043 = vmatprep.mubr.bf16.mxu0 0
    %3044 = vmatmul.mubr.bf16.gmra.mxu0 %v2785
    %v3045 = vpop.f32.mrf.mxu0
    %v3046 = vadd.f32 %v2824, %v3045
    %v3047 = vpop.f32.mrf.mxu0
    %v3048 = vadd.f32 %v2828, %v3047
    %v3049 = vpop.f32.mrf.mxu0
    %v3050 = vadd.f32 %v2824, %v3049
    %v3051 = vpop.f32.mrf.mxu0
    %v3052 = vadd.f32 %v2828, %v3051
    %3053 = vmatprep.mubr.bf16.mxu0 0
    %3054 = vmatmul.mubr.bf16.gmra.mxu0 %v2786
    %v3055 = vpop.f32.mrf.mxu0
    %v3056 = vadd.f32 %v2824, %v3055
    %v3057 = vpop.f32.mrf.mxu0
    %v3058 = vadd.f32 %v2828, %v3057
    %v3059 = vpop.f32.mrf.mxu0
    %v3060 = vadd.f32 %v2824, %v3059
    %v3061 = vpop.f32.mrf.mxu0
    %v3062 = vadd.f32 %v2828, %v3061
    %3063 = vdwg.mxu0
    %3064 = vmatprep.subr.bf16.mxu0 %v2968
    %3065 = vmatpush1.bf16.msra.mxu0 %v2967
    %3066 = vmatprep.subr.bf16.mxu0 %v2964
    %3067 = vmatpush1.bf16.msra.mxu0 %v2963
    %3068 = vmatprep.subr.bf16.mxu0 %v2960
    %3069 = vmatpush1.bf16.msra.mxu0 %v2959
    %3070 = vmatprep.subr.bf16.mxu0 %v2956
    %3071 = vmatpush1.bf16.msra.mxu0 %v2955
    %3072 = vmatprep.subr.bf16.mxu0 %v2952
    %3073 = vmatpush1.bf16.msra.mxu0 %v2951
    %3074 = vmatprep.subr.bf16.mxu0 %v2948
    %3075 = vmatpush1.bf16.msra.mxu0 %v2947
    %3076 = vmatprep.subr.bf16.mxu0 %v2944
    %3077 = vmatpush1.bf16.msra.mxu0 %v2943
    %3078 = vmatprep.subr.bf16.mxu0 %v2940
    %3079 = vmatpush1.bf16.msra.mxu0 %v2939
    %3080 = vmatprep.subr.bf16.mxu0 0
    %3081 = vmatpush2.bf16.msra.mxu0 0
    %3082 = vmatprep.subr.bf16.mxu0 0
    %3083 = vmatpush2.bf16.msra.mxu0 0
    %3084 = vmatprep.subr.bf16.mxu0 0
    %3085 = vmatpush2.bf16.msra.mxu0 0
    %3086 = vmatprep.subr.bf16.mxu0 0
    %3087 = vmatpush2.bf16.msra.mxu0 0
    %3088 = vmatprep.subr.bf16.mxu0 0
    %3089 = vmatpush2.bf16.msra.mxu0 0
    %3090 = vmatprep.subr.bf16.mxu0 0
    %3091 = vmatpush2.bf16.msra.mxu0 0
    %3092 = vmatprep.subr.bf16.mxu0 0
    %3093 = vmatpush2.bf16.msra.mxu0 0
    %3094 = vmatprep.subr.bf16.mxu0 0
    %3095 = vmatpush2.bf16.msra.mxu0 0
    %3096 = vmatprep.mubr.bf16.mxu0 0
    %3097 = vmatmul.mubr.bf16.gmra.mxu0 %v2784
    %v3098 = vpop.f32.mrf.mxu0
    %v3099 = vadd.f32 %v2832, %v3098
    %v3100 = vpop.f32.mrf.mxu0
    %v3101 = vadd.f32 %v2836, %v3100
    %v3102 = vpop.f32.mrf.mxu0
    %v3103 = vadd.f32 %v2832, %v3102
    %v3104 = vpop.f32.mrf.mxu0
    %v3105 = vadd.f32 %v2836, %v3104
    %3106 = vmatprep.mubr.bf16.mxu0 0
    %3107 = vmatmul.mubr.bf16.gmra.mxu0 %v2785
    %v3108 = vpop.f32.mrf.mxu0
    %v3109 = vadd.f32 %v2832, %v3108
    %v3110 = vpop.f32.mrf.mxu0
    %v3111 = vadd.f32 %v2836, %v3110
    %v3112 = vpop.f32.mrf.mxu0
    %v3113 = vadd.f32 %v2832, %v3112
    %v3114 = vpop.f32.mrf.mxu0
    %v3115 = vadd.f32 %v2836, %v3114
    %3116 = vmatprep.mubr.bf16.mxu0 0
    %3117 = vmatmul.mubr.bf16.gmra.mxu0 %v2786
    %v3118 = vpop.f32.mrf.mxu0
    %v3119 = vadd.f32 %v2832, %v3118
    %v3120 = vpop.f32.mrf.mxu0
    %v3121 = vadd.f32 %v2836, %v3120
    %v3122 = vpop.f32.mrf.mxu0
    %v3123 = vadd.f32 %v2832, %v3122
    %v3124 = vpop.f32.mrf.mxu0
    %v3125 = vadd.f32 %v2836, %v3124
    %3126 = vdwg.mxu0
    %v3127 = vmul.f32 %v3036, 0.5
    %v3128 = vmul.f32 %v3038, 0.5
    %v3129 = vmul.f32 %v3099, 0.5
    %v3130 = vmul.f32 %v3101, 0.5
    %v3131 = vmul.f32 %v3040, 0.5
    %v3132 = vmul.f32 %v3042, 0.5
    %v3133 = vmul.f32 %v3103, 0.5
    %v3134 = vmul.f32 %v3105, 0.5
    %v3135 = vmul.f32 %v3046, 0.5
    %v3136 = vmul.f32 %v3048, 0.5
    %v3137 = vmul.f32 %v3109, 0.5
    %v3138 = vmul.f32 %v3111, 0.5
    %v3139 = vmul.f32 %v3050, 0.5
    %v3140 = vmul.f32 %v3052, 0.5
    %v3141 = vmul.f32 %v3113, 0.5
    %v3142 = vmul.f32 %v3115, 0.5
    %v3143 = vmul.f32 %v3056, 0.5
    %v3144 = vmul.f32 %v3058, 0.5
    %v3145 = vmul.f32 %v3119, 0.5
    %v3146 = vmul.f32 %v3121, 0.5
    %v3147 = vmul.f32 %v3060, 0.5
    %v3148 = vmul.f32 %v3062, 0.5
    %v3149 = vmul.f32 %v3123, 0.5
    %v3150 = vmul.f32 %v3125, 0.5
    %v3151 = vmul.f32 %v3036, 0.044715
    %v3152 = vmul.f32 %v3038, 0.044715
    %v3153 = vmul.f32 %v3099, 0.044715
    %v3154 = vmul.f32 %v3101, 0.044715
    %v3155 = vmul.f32 %v3040, 0.044715
    %v3156 = vmul.f32 %v3042, 0.044715
    %v3157 = vmul.f32 %v3103, 0.044715
    %v3158 = vmul.f32 %v3105, 0.044715
    %v3159 = vmul.f32 %v3046, 0.044715
    %v3160 = vmul.f32 %v3048, 0.044715
    %v3161 = vmul.f32 %v3109, 0.044715
    %v3162 = vmul.f32 %v3111, 0.044715
    %v3163 = vmul.f32 %v3050, 0.044715
    %v3164 = vmul.f32 %v3052, 0.044715
    %v3165 = vmul.f32 %v3113, 0.044715
    %v3166 = vmul.f32 %v3115, 0.044715
    %v3167 = vmul.f32 %v3056, 0.044715
    %v3168 = vmul.f32 %v3058, 0.044715
    %v3169 = vmul.f32 %v3119, 0.044715
    %v3170 = vmul.f32 %v3121, 0.044715
    %v3171 = vmul.f32 %v3060, 0.044715
    %v3172 = vmul.f32 %v3062, 0.044715
    %v3173 = vmul.f32 %v3123, 0.044715
    %v3174 = vmul.f32 %v3125, 0.044715
    %v3175 = vmul.f32 %v3151, %v3036
    %v3176 = vmul.f32 %v3152, %v3038
    %v3177 = vmul.f32 %v3153, %v3099
    %v3178 = vmul.f32 %v3154, %v3101
    %v3179 = vmul.f32 %v3155, %v3040
    %v3180 = vmul.f32 %v3156, %v3042
    %v3181 = vmul.f32 %v3157, %v3103
    %v3182 = vmul.f32 %v3158, %v3105
    %v3183 = vmul.f32 %v3159, %v3046
    %v3184 = vmul.f32 %v3160, %v3048
    %v3185 = vmul.f32 %v3161, %v3109
    %v3186 = vmul.f32 %v3162, %v3111
    %v3187 = vmul.f32 %v3163, %v3050
    %v3188 = vmul.f32 %v3164, %v3052
    %v3189 = vmul.f32 %v3165, %v3113
    %v3190 = vmul.f32 %v3166, %v3115
    %v3191 = vmul.f32 %v3167, %v3056
    %v3192 = vmul.f32 %v3168, %v3058
    %v3193 = vmul.f32 %v3169, %v3119
    %v3194 = vmul.f32 %v3170, %v3121
    %v3195 = vmul.f32 %v3171, %v3060
    %v3196 = vmul.f32 %v3172, %v3062
    %v3197 = vmul.f32 %v3173, %v3123
    %v3198 = vmul.f32 %v3174, %v3125
    %v3199 = vmul.f32 %v3175, %v3036
    %v3200 = vmul.f32 %v3176, %v3038
    %v3201 = vmul.f32 %v3177, %v3099
    %v3202 = vmul.f32 %v3178, %v3101
    %v3203 = vmul.f32 %v3179, %v3040
    %v3204 = vmul.f32 %v3180, %v3042
    %v3205 = vmul.f32 %v3181, %v3103
    %v3206 = vmul.f32 %v3182, %v3105
    %v3207 = vmul.f32 %v3183, %v3046
    %v3208 = vmul.f32 %v3184, %v3048
    %v3209 = vmul.f32 %v3185, %v3109
    %v3210 = vmul.f32 %v3186, %v3111
    %v3211 = vmul.f32 %v3187, %v3050
    %v3212 = vmul.f32 %v3188, %v3052
    %v3213 = vmul.f32 %v3189, %v3113
    %v3214 = vmul.f32 %v3190, %v3115
    %v3215 = vmul.f32 %v3191, %v3056
    %v3216 = vmul.f32 %v3192, %v3058
    %v3217 = vmul.f32 %v3193, %v3119
    %v3218 = vmul.f32 %v3194, %v3121
    %v3219 = vmul.f32 %v3195, %v3060
    %v3220 = vmul.f32 %v3196, %v3062
    %v3221 = vmul.f32 %v3197, %v3123
    %v3222 = vmul.f32 %v3198, %v3125
    %v3223 = vadd.f32 %v3036, %v3199
    %v3224 = vadd.f32 %v3038, %v3200
    %v3225 = vadd.f32 %v3099, %v3201
    %v3226 = vadd.f32 %v3101, %v3202
    %v3227 = vadd.f32 %v3040, %v3203
    %v3228 = vadd.f32 %v3042, %v3204
    %v3229 = vadd.f32 %v3103, %v3205
    %v3230 = vadd.f32 %v3105, %v3206
    %v3231 = vadd.f32 %v3046, %v3207
    %v3232 = vadd.f32 %v3048, %v3208
    %v3233 = vadd.f32 %v3109, %v3209
    %v3234 = vadd.f32 %v3111, %v3210
    %v3235 = vadd.f32 %v3050, %v3211
    %v3236 = vadd.f32 %v3052, %v3212
    %v3237 = vadd.f32 %v3113, %v3213
    %v3238 = vadd.f32 %v3115, %v3214
    %v3239 = vadd.f32 %v3056, %v3215
    %v3240 = vadd.f32 %v3058, %v3216
    %v3241 = vadd.f32 %v3119, %v3217
    %v3242 = vadd.f32 %v3121, %v3218
    %v3243 = vadd.f32 %v3060, %v3219
    %v3244 = vadd.f32 %v3062, %v3220
    %v3245 = vadd.f32 %v3123, %v3221
    %v3246 = vadd.f32 %v3125, %v3222
    %v3247 = vmul.f32 %v3223, 0.7978846
    %v3248 = vmul.f32 %v3224, 0.7978846
    %v3249 = vmul.f32 %v3225, 0.7978846
    %v3250 = vmul.f32 %v3226, 0.7978846
    %v3251 = vmul.f32 %v3227, 0.7978846
    %v3252 = vmul.f32 %v3228, 0.7978846
    %v3253 = vmul.f32 %v3229, 0.7978846
    %v3254 = vmul.f32 %v3230, 0.7978846
    %v3255 = vmul.f32 %v3231, 0.7978846
    %v3256 = vmul.f32 %v3232, 0.7978846
    %v3257 = vmul.f32 %v3233, 0.7978846
    %v3258 = vmul.f32 %v3234, 0.7978846
    %v3259 = vmul.f32 %v3235, 0.7978846
    %v3260 = vmul.f32 %v3236, 0.7978846
    %v3261 = vmul.f32 %v3237, 0.7978846
    %v3262 = vmul.f32 %v3238, 0.7978846
    %v3263 = vmul.f32 %v3239, 0.7978846
    %v3264 = vmul.f32 %v3240, 0.7978846
    %v3265 = vmul.f32 %v3241, 0.7978846
    %v3266 = vmul.f32 %v3242, 0.7978846
    %v3267 = vmul.f32 %v3243, 0.7978846
    %v3268 = vmul.f32 %v3244, 0.7978846
    %v3269 = vmul.f32 %v3245, 0.7978846
    %v3270 = vmul.f32 %v3246, 0.7978846
    %v3271 = vtanh.pop %v3247
    %v3272 = vtanh.pop %v3248
    %v3273 = vtanh.pop %v3249
    %v3274 = vtanh.pop %v3250
    %v3275 = vtanh.pop %v3251
    %v3276 = vtanh.pop %v3252
    %v3277 = vtanh.pop %v3253
    %v3278 = vtanh.pop %v3254
    %v3279 = vtanh.pop %v3255
    %v3280 = vtanh.pop %v3256
    %v3281 = vtanh.pop %v3257
    %v3282 = vtanh.pop %v3258
    %v3283 = vtanh.pop %v3259
    %v3284 = vtanh.pop %v3260
    %v3285 = vtanh.pop %v3261
    %v3286 = vtanh.pop %v3262
    %v3287 = vtanh.pop %v3263
    %v3288 = vtanh.pop %v3264
    %v3289 = vtanh.pop %v3265
    %v3290 = vtanh.pop %v3266
    %v3291 = vtanh.pop %v3267
    %v3292 = vtanh.pop %v3268
    %v3293 = vtanh.pop %v3269
    %v3294 = vtanh.pop %v3270
    %v3295 = vadd.f32 %v3271, 1.0
    %v3296 = vadd.f32 %v3272, 1.0
    %v3297 = vadd.f32 %v3273, 1.0
    %v3298 = vadd.f32 %v3274, 1.0
    %v3299 = vadd.f32 %v3275, 1.0
    %v3300 = vadd.f32 %v3276, 1.0
    %v3301 = vadd.f32 %v3277, 1.0
    %v3302 = vadd.f32 %v3278, 1.0
    %v3303 = vadd.f32 %v3279, 1.0
    %v3304 = vadd.f32 %v3280, 1.0
    %v3305 = vadd.f32 %v3281, 1.0
    %v3306 = vadd.f32 %v3282, 1.0
    %v3307 = vadd.f32 %v3283, 1.0
    %v3308 = vadd.f32 %v3284, 1.0
    %v3309 = vadd.f32 %v3285, 1.0
    %v3310 = vadd.f32 %v3286, 1.0
    %v3311 = vadd.f32 %v3287, 1.0
    %v3312 = vadd.f32 %v3288, 1.0
    %v3313 = vadd.f32 %v3289, 1.0
    %v3314 = vadd.f32 %v3290, 1.0
    %v3315 = vadd.f32 %v3291, 1.0
    %v3316 = vadd.f32 %v3292, 1.0
    %v3317 = vadd.f32 %v3293, 1.0
    %v3318 = vadd.f32 %v3294, 1.0
    %v3319 = vmul.f32 %v3127, %v3295
    %v3320 = vmul.f32 %v3128, %v3296
    %v3321 = vmul.f32 %v3129, %v3297
    %v3322 = vmul.f32 %v3130, %v3298
    %v3323 = vmul.f32 %v3131, %v3299
    %v3324 = vmul.f32 %v3132, %v3300
    %v3325 = vmul.f32 %v3133, %v3301
    %v3326 = vmul.f32 %v3134, %v3302
    %v3327 = vmul.f32 %v3135, %v3303
    %v3328 = vmul.f32 %v3136, %v3304
    %v3329 = vmul.f32 %v3137, %v3305
    %v3330 = vmul.f32 %v3138, %v3306
    %v3331 = vmul.f32 %v3139, %v3307
    %v3332 = vmul.f32 %v3140, %v3308
    %v3333 = vmul.f32 %v3141, %v3309
    %v3334 = vmul.f32 %v3142, %v3310
    %v3335 = vmul.f32 %v3143, %v3311
    %v3336 = vmul.f32 %v3144, %v3312
    %v3337 = vmul.f32 %v3145, %v3313
    %v3338 = vmul.f32 %v3146, %v3314
    %v3339 = vmul.f32 %v3147, %v3315
    %v3340 = vmul.f32 %v3148, %v3316
    %v3341 = vmul.f32 %v3149, %v3317
    %v3342 = vmul.f32 %v3150, %v3318
    %v3343 = vpack.c.bf16 %v3323, %v3319
    %v3344 = vpack.c.bf16 %v3324, %v3320
    %v3345 = vpack.c.bf16 %v3325, %v3321
    %v3346 = vpack.c.bf16 %v3326, %v3322
    %v3347 = vpack.c.bf16 %v3331, %v3327
    %v3348 = vpack.c.bf16 %v3332, %v3328
    %v3349 = vpack.c.bf16 %v3333, %v3329
    %v3350 = vpack.c.bf16 %v3334, %v3330
    %v3351 = vpack.c.bf16 %v3339, %v3335
    %v3352 = vpack.c.bf16 %v3340, %v3336
    %v3353 = vpack.c.bf16 %v3341, %v3337
    %v3354 = vpack.c.bf16 %v3342, %v3338
    %v3355 = vld [vmem:[#allocation20] sm:$0xf]
    %v3356 = vld [vmem:[#allocation20 + $0x4] sm:$0xf]
    %v3357 = vld [vmem:[#allocation20 + $0x8] sm:$0xf]
    %v3358 = vld [vmem:[#allocation20 + $0xc] sm:$0xf]
    %v3359 = vld [vmem:[#allocation20 + $0x10] sm:$0xf]
    %v3360 = vld [vmem:[#allocation20 + $0x14] sm:$0xf]
    %v3361 = vld [vmem:[#allocation20 + $0x18] sm:$0xf]
    %v3362 = vld [vmem:[#allocation20 + $0x1c] sm:$0xf]
    %v3363 = vld [vmem:[#allocation20 + $0x20] sm:$0xf]
    %v3364 = vld [vmem:[#allocation20 + $0x24] sm:$0xf]
    %v3365 = vld [vmem:[#allocation20 + $0x28] sm:$0xf]
    %v3366 = vld [vmem:[#allocation20 + $0x2c] sm:$0xf]
    %v3367 = vld [vmem:[#allocation20 + $0x30] sm:$0xf]
    %v3368 = vld [vmem:[#allocation20 + $0x34] sm:$0xf]
    %v3369 = vld [vmem:[#allocation20 + $0x38] sm:$0xf]
    %v3370 = vld [vmem:[#allocation20 + $0x3c] sm:$0xf]
    %v3371 = vld [vmem:[#allocation20 + $0x40] sm:$0xf]
    %v3372 = vld [vmem:[#allocation20 + $0x44] sm:$0xf]
    %v3373 = vld [vmem:[#allocation20 + $0x48] sm:$0xf]
    %v3374 = vld [vmem:[#allocation20 + $0x4c] sm:$0xf]
    %v3375 = vld [vmem:[#allocation20 + $0x50] sm:$0xf]
    %v3376 = vld [vmem:[#allocation20 + $0x54] sm:$0xf]
    %v3377 = vld [vmem:[#allocation20 + $0x58] sm:$0xf]
    %v3378 = vld [vmem:[#allocation20 + $0x5c] sm:$0xf]
    %v3379 = vld [vmem:[#allocation20 + $0x60] sm:$0xf]
    %v3380 = vld [vmem:[#allocation20 + $0x64] sm:$0xf]
    %v3381 = vld [vmem:[#allocation20 + $0x68] sm:$0xf]
    %v3382 = vld [vmem:[#allocation20 + $0x6c] sm:$0xf]
    %v3383 = vld [vmem:[#allocation20 + $0x70] sm:$0xf]
    %v3384 = vld [vmem:[#allocation20 + $0x74] sm:$0xf]
    %v3385 = vld [vmem:[#allocation20 + $0x78] sm:$0xf]
    %v3386 = vld [vmem:[#allocation20 + $0x7c] sm:$0xf]
    %v3387 = vld [vmem:[#allocation20 + $0x80] sm:$0xf]
    %v3388 = vld [vmem:[#allocation20 + $0x84] sm:$0xf]
    %v3389 = vld [vmem:[#allocation20 + $0x88] sm:$0xf]
    %v3390 = vld [vmem:[#allocation20 + $0x8c] sm:$0xf]
    %v3391 = vld [vmem:[#allocation20 + $0x90] sm:$0xf]
    %v3392 = vld [vmem:[#allocation20 + $0x94] sm:$0xf]
    %v3393 = vld [vmem:[#allocation20 + $0x98] sm:$0xf]
    %v3394 = vld [vmem:[#allocation20 + $0x9c] sm:$0xf]
    %v3395 = vld [vmem:[#allocation20 + $0xa0] sm:$0xf]
    %v3396 = vld [vmem:[#allocation20 + $0xa4] sm:$0xf]
    %v3397 = vld [vmem:[#allocation20 + $0xa8] sm:$0xf]
    %v3398 = vld [vmem:[#allocation20 + $0xac] sm:$0xf]
    %v3399 = vld [vmem:[#allocation20 + $0xb0] sm:$0xf]
    %v3400 = vld [vmem:[#allocation20 + $0xb4] sm:$0xf]
    %v3401 = vld [vmem:[#allocation20 + $0xb8] sm:$0xf]
    %v3402 = vld [vmem:[#allocation20 + $0xbc] sm:$0xf]
    %v3403 = vld [vmem:[#allocation20 + $0xc0] sm:$0xf]
    %v3404 = vld [vmem:[#allocation20 + $0xc4] sm:$0xf]
    %v3405 = vld [vmem:[#allocation20 + $0xc8] sm:$0xf]
    %v3406 = vld [vmem:[#allocation20 + $0xcc] sm:$0xf]
    %v3407 = vld [vmem:[#allocation20 + $0xd0] sm:$0xf]
    %v3408 = vld [vmem:[#allocation20 + $0xd4] sm:$0xf]
    %v3409 = vld [vmem:[#allocation20 + $0xd8] sm:$0xf]
    %v3410 = vld [vmem:[#allocation20 + $0xdc] sm:$0xf]
    %v3411 = vld [vmem:[#allocation20 + $0xe0] sm:$0xf]
    %v3412 = vld [vmem:[#allocation20 + $0xe4] sm:$0xf]
    %v3413 = vld [vmem:[#allocation20 + $0xe8] sm:$0xf]
    %v3414 = vld [vmem:[#allocation20 + $0xec] sm:$0xf]
    %v3415 = vld [vmem:[#allocation20 + $0xf0] sm:$0xf]
    %v3416 = vld [vmem:[#allocation20 + $0xf4] sm:$0xf]
    %v3417 = vld [vmem:[#allocation20 + $0xf8] sm:$0xf]
    %v3418 = vld [vmem:[#allocation20 + $0xfc] sm:$0xf]
    %v3483 = vunpack.c.l.b16 %v3355
    %v3484 = vunpack.c.l.b16 %v3356
    %v3485 = vunpack.c.l.b16 %v3357
    %v3486 = vunpack.c.l.b16 %v3358
    %v3487 = vunpack.c.l.b16 %v3359
    %v3488 = vunpack.c.l.b16 %v3360
    %v3489 = vunpack.c.l.b16 %v3361
    %v3490 = vunpack.c.l.b16 %v3362
    %v3491 = vunpack.c.l.b16 %v3363
    %v3492 = vunpack.c.l.b16 %v3364
    %v3493 = vunpack.c.l.b16 %v3365
    %v3494 = vunpack.c.l.b16 %v3366
    %v3495 = vunpack.c.l.b16 %v3367
    %v3496 = vunpack.c.l.b16 %v3368
    %v3497 = vunpack.c.l.b16 %v3369
    %v3498 = vunpack.c.l.b16 %v3370
    %v3499 = vunpack.c.l.b16 %v3371
    %v3500 = vunpack.c.l.b16 %v3372
    %v3501 = vunpack.c.l.b16 %v3373
    %v3502 = vunpack.c.l.b16 %v3374
    %v3503 = vunpack.c.l.b16 %v3375
    %v3504 = vunpack.c.l.b16 %v3376
    %v3505 = vunpack.c.l.b16 %v3377
    %v3506 = vunpack.c.l.b16 %v3378
    %v3507 = vunpack.c.l.b16 %v3379
    %v3508 = vunpack.c.l.b16 %v3380
    %v3509 = vunpack.c.l.b16 %v3381
    %v3510 = vunpack.c.l.b16 %v3382
    %v3511 = vunpack.c.l.b16 %v3383
    %v3512 = vunpack.c.l.b16 %v3384
    %v3513 = vunpack.c.l.b16 %v3385
    %v3514 = vunpack.c.l.b16 %v3386
    %v3515 = vunpack.c.l.b16 %v3387
    %v3516 = vunpack.c.l.b16 %v3388
    %v3517 = vunpack.c.l.b16 %v3389
    %v3518 = vunpack.c.l.b16 %v3390
    %v3519 = vunpack.c.l.b16 %v3391
    %v3520 = vunpack.c.l.b16 %v3392
    %v3521 = vunpack.c.l.b16 %v3393
    %v3522 = vunpack.c.l.b16 %v3394
    %v3523 = vunpack.c.l.b16 %v3395
    %v3524 = vunpack.c.l.b16 %v3396
    %v3525 = vunpack.c.l.b16 %v3397
    %v3526 = vunpack.c.l.b16 %v3398
    %v3527 = vunpack.c.l.b16 %v3399
    %v3528 = vunpack.c.l.b16 %v3400
    %v3529 = vunpack.c.l.b16 %v3401
    %v3530 = vunpack.c.l.b16 %v3402
    %v3531 = vunpack.c.l.b16 %v3403
    %v3532 = vunpack.c.l.b16 %v3404
    %v3533 = vunpack.c.l.b16 %v3405
    %v3534 = vunpack.c.l.b16 %v3406
    %v3535 = vunpack.c.l.b16 %v3407
    %v3536 = vunpack.c.l.b16 %v3408
    %v3537 = vunpack.c.l.b16 %v3409
    %v3538 = vunpack.c.l.b16 %v3410
    %v3539 = vunpack.c.l.b16 %v3411
    %v3540 = vunpack.c.l.b16 %v3412
    %v3541 = vunpack.c.l.b16 %v3413
    %v3542 = vunpack.c.l.b16 %v3414
    %v3543 = vunpack.c.l.b16 %v3415
    %v3544 = vunpack.c.l.b16 %v3416
    %v3545 = vunpack.c.l.b16 %v3417
    %v3546 = vunpack.c.l.b16 %v3418
    %v3547 = vpack.c.b16 %v3484, %v3483
    %v3548 = vpack.c.b16 %v3486, %v3485
    %v3549 = vpack.c.b16 %v3488, %v3487
    %v3550 = vpack.c.b16 %v3490, %v3489
    %v3551 = vpack.c.b16 %v3492, %v3491
    %v3552 = vpack.c.b16 %v3494, %v3493
    %v3553 = vpack.c.b16 %v3496, %v3495
    %v3554 = vpack.c.b16 %v3498, %v3497
    %v3555 = vpack.c.b16 %v3500, %v3499
    %v3556 = vpack.c.b16 %v3502, %v3501
    %v3557 = vpack.c.b16 %v3504, %v3503
    %v3558 = vpack.c.b16 %v3506, %v3505
    %v3559 = vpack.c.b16 %v3508, %v3507
    %v3560 = vpack.c.b16 %v3510, %v3509
    %v3561 = vpack.c.b16 %v3512, %v3511
    %v3562 = vpack.c.b16 %v3514, %v3513
    %v3563 = vpack.c.b16 %v3516, %v3515
    %v3564 = vpack.c.b16 %v3518, %v3517
    %v3565 = vpack.c.b16 %v3520, %v3519
    %v3566 = vpack.c.b16 %v3522, %v3521
    %v3567 = vpack.c.b16 %v3524, %v3523
    %v3568 = vpack.c.b16 %v3526, %v3525
    %v3569 = vpack.c.b16 %v3528, %v3527
    %v3570 = vpack.c.b16 %v3530, %v3529
    %v3571 = vpack.c.b16 %v3532, %v3531
    %v3572 = vpack.c.b16 %v3534, %v3533
    %v3573 = vpack.c.b16 %v3536, %v3535
    %v3574 = vpack.c.b16 %v3538, %v3537
    %v3575 = vpack.c.b16 %v3540, %v3539
    %v3576 = vpack.c.b16 %v3542, %v3541
    %v3577 = vpack.c.b16 %v3544, %v3543
    %v3578 = vpack.c.b16 %v3546, %v3545
    %3611 = vmatprep.subr.bf16.mxu0 0
    %3612 = vmatpush1.bf16.msra.mxu0 %v3554
    %3613 = vmatprep.subr.bf16.mxu0 0
    %3614 = vmatpush1.bf16.msra.mxu0 %v3553
    %3615 = vmatprep.subr.bf16.mxu0 0
    %3616 = vmatpush1.bf16.msra.mxu0 %v3552
    %3617 = vmatprep.subr.bf16.mxu0 0
    %3618 = vmatpush1.bf16.msra.mxu0 %v3551
    %3619 = vmatprep.subr.bf16.mxu0 0
    %3620 = vmatpush1.bf16.msra.mxu0 %v3550
    %3621 = vmatprep.subr.bf16.mxu0 0
    %3622 = vmatpush1.bf16.msra.mxu0 %v3549
    %3623 = vmatprep.subr.bf16.mxu0 0
    %3624 = vmatpush1.bf16.msra.mxu0 %v3548
    %3625 = vmatprep.subr.bf16.mxu0 0
    %3626 = vmatpush1.bf16.msra.mxu0 %v3547
    %3627 = vmatprep.subr.bf16.mxu0 0
    %3628 = vmatpush2.bf16.msra.mxu0 %v3562
    %3629 = vmatprep.subr.bf16.mxu0 0
    %3630 = vmatpush2.bf16.msra.mxu0 %v3561
    %3631 = vmatprep.subr.bf16.mxu0 0
    %3632 = vmatpush2.bf16.msra.mxu0 %v3560
    %3633 = vmatprep.subr.bf16.mxu0 0
    %3634 = vmatpush2.bf16.msra.mxu0 %v3559
    %3635 = vmatprep.subr.bf16.mxu0 0
    %3636 = vmatpush2.bf16.msra.mxu0 %v3558
    %3637 = vmatprep.subr.bf16.mxu0 0
    %3638 = vmatpush2.bf16.msra.mxu0 %v3557
    %3639 = vmatprep.subr.bf16.mxu0 0
    %3640 = vmatpush2.bf16.msra.mxu0 %v3556
    %3641 = vmatprep.subr.bf16.mxu0 0
    %3642 = vmatpush2.bf16.msra.mxu0 %v3555
    %3643 = vmatprep.mubr.bf16.mxu0 %v3344
    %3644 = vmatmul.mubr.bf16.gmra.mxu0 %v3343
    %v3645 = vpop.f32.mrf.mxu0
    %v3646 = vadd.f32 0.0, %v3645
    %v3647 = vpop.f32.mrf.mxu0
    %v3648 = vpop.f32.mrf.mxu0
    %v3649 = vadd.f32 0.0, %v3648
    %v3650 = vpop.f32.mrf.mxu0
    %3651 = vmatprep.mubr.bf16.mxu0 %v3348
    %3652 = vmatmul.mubr.bf16.gmra.mxu0 %v3347
    %v3653 = vpop.f32.mrf.mxu0
    %v3654 = vadd.f32 0.0, %v3653
    %v3655 = vpop.f32.mrf.mxu0
    %v3656 = vpop.f32.mrf.mxu0
    %v3657 = vadd.f32 0.0, %v3656
    %v3658 = vpop.f32.mrf.mxu0
    %3659 = vmatprep.mubr.bf16.mxu0 %v3352
    %3660 = vmatmul.mubr.bf16.gmra.mxu0 %v3351
    %v3661 = vpop.f32.mrf.mxu0
    %v3662 = vadd.f32 0.0, %v3661
    %v3663 = vpop.f32.mrf.mxu0
    %v3664 = vpop.f32.mrf.mxu0
    %v3665 = vadd.f32 0.0, %v3664
    %v3666 = vpop.f32.mrf.mxu0
    %3667 = vdwg.mxu0
    %3668 = vmatprep.subr.bf16.mxu0 0
    %3669 = vmatpush1.bf16.msra.mxu0 %v3570
    %3670 = vmatprep.subr.bf16.mxu0 0
    %3671 = vmatpush1.bf16.msra.mxu0 %v3569
    %3672 = vmatprep.subr.bf16.mxu0 0
    %3673 = vmatpush1.bf16.msra.mxu0 %v3568
    %3674 = vmatprep.subr.bf16.mxu0 0
    %3675 = vmatpush1.bf16.msra.mxu0 %v3567
    %3676 = vmatprep.subr.bf16.mxu0 0
    %3677 = vmatpush1.bf16.msra.mxu0 %v3566
    %3678 = vmatprep.subr.bf16.mxu0 0
    %3679 = vmatpush1.bf16.msra.mxu0 %v3565
    %3680 = vmatprep.subr.bf16.mxu0 0
    %3681 = vmatpush1.bf16.msra.mxu0 %v3564
    %3682 = vmatprep.subr.bf16.mxu0 0
    %3683 = vmatpush1.bf16.msra.mxu0 %v3563
    %3684 = vmatprep.subr.bf16.mxu0 0
    %3685 = vmatpush2.bf16.msra.mxu0 %v3578
    %3686 = vmatprep.subr.bf16.mxu0 0
    %3687 = vmatpush2.bf16.msra.mxu0 %v3577
    %3688 = vmatprep.subr.bf16.mxu0 0
    %3689 = vmatpush2.bf16.msra.mxu0 %v3576
    %3690 = vmatprep.subr.bf16.mxu0 0
    %3691 = vmatpush2.bf16.msra.mxu0 %v3575
    %3692 = vmatprep.subr.bf16.mxu0 0
    %3693 = vmatpush2.bf16.msra.mxu0 %v3574
    %3694 = vmatprep.subr.bf16.mxu0 0
    %3695 = vmatpush2.bf16.msra.mxu0 %v3573
    %3696 = vmatprep.subr.bf16.mxu0 0
    %3697 = vmatpush2.bf16.msra.mxu0 %v3572
    %3698 = vmatprep.subr.bf16.mxu0 0
    %3699 = vmatpush2.bf16.msra.mxu0 %v3571
    %3700 = vmatprep.mubr.bf16.mxu0 %v3346
    %3701 = vmatmul.mubr.bf16.gmra.mxu0 %v3345
    %v3702 = vpop.f32.mrf.mxu0
    %v3703 = vadd.f32 %v3646, %v3702
    %v3704 = vpop.f32.mrf.mxu0
    %v3705 = vpop.f32.mrf.mxu0
    %v3706 = vadd.f32 %v3649, %v3705
    %v3707 = vpop.f32.mrf.mxu0
    %3708 = vmatprep.mubr.bf16.mxu0 %v3350
    %3709 = vmatmul.mubr.bf16.gmra.mxu0 %v3349
    %v3710 = vpop.f32.mrf.mxu0
    %v3711 = vadd.f32 %v3654, %v3710
    %v3712 = vpop.f32.mrf.mxu0
    %v3713 = vpop.f32.mrf.mxu0
    %v3714 = vadd.f32 %v3657, %v3713
    %v3715 = vpop.f32.mrf.mxu0
    %3716 = vmatprep.mubr.bf16.mxu0 %v3354
    %3717 = vmatmul.mubr.bf16.gmra.mxu0 %v3353
    %v3718 = vpop.f32.mrf.mxu0
    %v3719 = vadd.f32 %v3662, %v3718
    %v3720 = vpop.f32.mrf.mxu0
    %v3721 = vpop.f32.mrf.mxu0
    %v3722 = vadd.f32 %v3665, %v3721
    %v3723 = vpop.f32.mrf.mxu0
    %3724 = vdwg.mxu0
    %v3725 = vadd.f32 %v2686, %v3703
    %v3726 = vadd.f32 %v2687, %v3706
    %v3727 = vadd.f32 %v2688, %v3711
    %v3728 = vadd.f32 %v2689, %v3714
    %v3729 = vadd.f32 %v2690, %v3719
    %v3730 = vadd.f32 %v2691, %v3722
    %v3731 = vld [vmem:[%s16] sm:$0x1]
    %v3733 = vlaneseq
    %v3734 = vshrl.u32 %v3733, 7
    %v3735 = vsub.s32 0, %v3734
    %v3736 = vrot.slane %v3731, %v3735
    %v3738 = vadd.f32 %v3725, %v3736
    %v3739 = vadd.f32 %v3726, %v3736
    %v3740 = vadd.f32 %v3727, %v3736
    %v3741 = vadd.f32 %v3728, %v3736
    %v3742 = vadd.f32 %v3729, %v3736
    %v3743 = vadd.f32 %v3730, %v3736
    %3744 = vst [vmem:[#allocation2] sm:$0xff] %v3738
    %3745 = vst [vmem:[#allocation2 + $0x8] sm:$0xff] %v3739
    %3746 = vst [vmem:[#allocation2 + $0x10] sm:$0xff] %v3740
    %3747 = vst [vmem:[#allocation2 + $0x18] sm:$0xff] %v3741
    %3748 = vst [vmem:[#allocation2 + $0x20] sm:$0xff] %v3742
    %3749 = vst [vmem:[#allocation2 + $0x28] sm:$0xff] %v3743
    %v3750 = vld [vmem:[#allocation2] sm:$0xff]
    %v3751 = vld [vmem:[#allocation2 + $0x8] sm:$0xff]
    %v3752 = vld [vmem:[#allocation2 + $0x10] sm:$0xff]
    %v3753 = vld [vmem:[#allocation2 + $0x18] sm:$0xff]
    %v3754 = vld [vmem:[#allocation2 + $0x20] sm:$0xff]
    %v3755 = vld [vmem:[#allocation2 + $0x28] sm:$0xff]
    %s3756 = scalar_lea.vmem %s5, 1
    %v3757 = vld [vmem:[%s3756] sm:$0x1]
    %s3758 = scalar_lea.vmem [#allocation12], 1
    %v3759 = vld [vmem:[%s3758] sm:$0x1]
    %3760 = vadd.xlane.f32.xlu0 %v3750
    %v3761 = vpop.xlane.xlu0 %3760
    %3762 = vadd.xlane.f32.xlu0 %v3751
    %v3763 = vpop.xlane.xlu0 %3762
    %3764 = vadd.xlane.f32.xlu0 %v3752
    %v3765 = vpop.xlane.xlu0 %3764
    %3766 = vadd.xlane.f32.xlu0 %v3753
    %v3767 = vpop.xlane.xlu0 %3766
    %3768 = vadd.xlane.f32.xlu0 %v3754
    %v3769 = vpop.xlane.xlu0 %3768
    %3770 = vadd.xlane.f32.xlu0 %v3755
    %v3771 = vpop.xlane.xlu0 %3770
    %v3772 = vmul.f32 %v3761, %v382
    %v3773 = vmul.f32 %v3763, %v382
    %v3774 = vmul.f32 %v3765, %v382
    %v3775 = vmul.f32 %v3767, %v382
    %v3776 = vmul.f32 %v3769, %v382
    %v3777 = vmul.f32 %v3771, %v382
    %v3778 = vsub.f32 %v3750, %v3772
    %v3779 = vsub.f32 %v3751, %v3773
    %v3780 = vsub.f32 %v3752, %v3774
    %v3781 = vsub.f32 %v3753, %v3775
    %v3782 = vsub.f32 %v3754, %v3776
    %v3783 = vsub.f32 %v3755, %v3777
    %v3784 = vmul.f32 %v3778, %v3778
    %v3785 = vmul.f32 %v3779, %v3779
    %v3786 = vmul.f32 %v3780, %v3780
    %v3787 = vmul.f32 %v3781, %v3781
    %v3788 = vmul.f32 %v3782, %v3782
    %v3789 = vmul.f32 %v3783, %v3783
    %3790 = vadd.xlane.f32.xlu0 %v3784
    %v3791 = vpop.xlane.xlu0 %3790
    %3792 = vadd.xlane.f32.xlu0 %v3785
    %v3793 = vpop.xlane.xlu0 %3792
    %3794 = vadd.xlane.f32.xlu0 %v3786
    %v3795 = vpop.xlane.xlu0 %3794
    %3796 = vadd.xlane.f32.xlu0 %v3787
    %v3797 = vpop.xlane.xlu0 %3796
    %3798 = vadd.xlane.f32.xlu0 %v3788
    %v3799 = vpop.xlane.xlu0 %3798
    %3800 = vadd.xlane.f32.xlu0 %v3789
    %v3801 = vpop.xlane.xlu0 %3800
    %v3802 = vmul.f32 %v3791, %v382
    %v3803 = vmul.f32 %v3793, %v382
    %v3804 = vmul.f32 %v3795, %v382
    %v3805 = vmul.f32 %v3797, %v382
    %v3806 = vmul.f32 %v3799, %v382
    %v3807 = vmul.f32 %v3801, %v382
    %v3808 = vadd.f32 %v3802, 1e-06
    %v3809 = vadd.f32 %v3803, 1e-06
    %v3810 = vadd.f32 %v3804, 1e-06
    %v3811 = vadd.f32 %v3805, 1e-06
    %v3812 = vadd.f32 %v3806, 1e-06
    %v3813 = vadd.f32 %v3807, 1e-06
    %v3814 = vrsqrt.pop %v3808
    %v3815 = vrsqrt.pop %v3809
    %v3816 = vrsqrt.pop %v3810
    %v3817 = vrsqrt.pop %v3811
    %v3818 = vrsqrt.pop %v3812
    %v3819 = vrsqrt.pop %v3813
    %v3820 = vmul.f32 %v3778, %v3814
    %v3821 = vmul.f32 %v3779, %v3815
    %v3822 = vmul.f32 %v3780, %v3816
    %v3823 = vmul.f32 %v3781, %v3817
    %v3824 = vmul.f32 %v3782, %v3818
    %v3825 = vmul.f32 %v3783, %v3819
    %v3827 = vlaneseq
    %v3828 = vshrl.u32 %v3827, 7
    %v3829 = vsub.s32 0, %v3828
    %v3830 = vrot.slane %v3757, %v3829
    %v3832 = vmul.f32 %v3820, %v3830
    %v3833 = vmul.f32 %v3821, %v3830
    %v3834 = vmul.f32 %v3822, %v3830
    %v3835 = vmul.f32 %v3823, %v3830
    %v3836 = vmul.f32 %v3824, %v3830
    %v3837 = vmul.f32 %v3825, %v3830
    %v3839 = vlaneseq
    %v3840 = vshrl.u32 %v3839, 7
    %v3841 = vsub.s32 0, %v3840
    %v3842 = vrot.slane %v3759, %v3841
    %v3844 = vadd.f32 %v3832, %v3842
    %v3845 = vadd.f32 %v3833, %v3842
    %v3846 = vadd.f32 %v3834, %v3842
    %v3847 = vadd.f32 %v3835, %v3842
    %v3848 = vadd.f32 %v3836, %v3842
    %v3849 = vadd.f32 %v3837, %v3842
    %v3850 = vpack.c.bf16 %v3845, %v3844
    %v3851 = vpack.c.bf16 %v3847, %v3846
    %v3852 = vpack.c.bf16 %v3849, %v3848
    %s3853 = scalar_lea.vmem [#allocation14], 192
    %v3854 = vld [vmem:[%s3853] sm:$0xff]
    %v3855 = vld [vmem:[%s3853 + $0x8] sm:$0xf]
    %v3856 = vld [vmem:[%s3853 + $0xc] sm:$0xff]
    %v3857 = vld [vmem:[%s3853 + $0x14] sm:$0xf]
    %v3858 = vld [vmem:[%s3853 + $0x18] sm:$0xff]
    %v3859 = vld [vmem:[%s3853 + $0x20] sm:$0xf]
    %v3860 = vld [vmem:[%s3853 + $0x24] sm:$0xff]
    %v3861 = vld [vmem:[%s3853 + $0x2c] sm:$0xf]
    %v3862 = vld [vmem:[%s3853 + $0x30] sm:$0xff]
    %v3863 = vld [vmem:[%s3853 + $0x38] sm:$0xf]
    %v3864 = vld [vmem:[%s3853 + $0x3c] sm:$0xff]
    %v3865 = vld [vmem:[%s3853 + $0x44] sm:$0xf]
    %v3866 = vld [vmem:[%s3853 + $0x48] sm:$0xff]
    %v3867 = vld [vmem:[%s3853 + $0x50] sm:$0xf]
    %v3868 = vld [vmem:[%s3853 + $0x54] sm:$0xff]
    %v3869 = vld [vmem:[%s3853 + $0x5c] sm:$0xf]
    %v3870 = vld [vmem:[%s3853 + $0x60] sm:$0xff]
    %v3871 = vld [vmem:[%s3853 + $0x68] sm:$0xf]
    %v3872 = vld [vmem:[%s3853 + $0x6c] sm:$0xff]
    %v3873 = vld [vmem:[%s3853 + $0x74] sm:$0xf]
    %v3874 = vld [vmem:[%s3853 + $0x78] sm:$0xff]
    %v3875 = vld [vmem:[%s3853 + $0x80] sm:$0xf]
    %v3876 = vld [vmem:[%s3853 + $0x84] sm:$0xff]
    %v3877 = vld [vmem:[%s3853 + $0x8c] sm:$0xf]
    %v3878 = vld [vmem:[%s3853 + $0x90] sm:$0xff]
    %v3879 = vld [vmem:[%s3853 + $0x98] sm:$0xf]
    %v3880 = vld [vmem:[%s3853 + $0x9c] sm:$0xff]
    %v3881 = vld [vmem:[%s3853 + $0xa4] sm:$0xf]
    %v3882 = vld [vmem:[%s3853 + $0xa8] sm:$0xff]
    %v3883 = vld [vmem:[%s3853 + $0xb0] sm:$0xf]
    %v3884 = vld [vmem:[%s3853 + $0xb4] sm:$0xff]
    %v3885 = vld [vmem:[%s3853 + $0xbc] sm:$0xf]
    %s3886 = scalar_lea.vmem %s8, 3
    %v3887 = vld [vmem:[%s3886] sm:$0x7]
    %v3889 = vlaneseq
    %v3890 = vshrl.u32 %v3889, 7
    %v3891 = vsub.s32 0, %v3890
    %v3892 = vrot.slane %v3887, %v3891
    %v3893 = vlaneseq
    %v3894 = vshrl.u32 %v3893, 7
    %v3895 = vsub.s32 1, %v3894
    %v3896 = vrot.slane %v3887, %v3895
    %v3897 = vlaneseq
    %v3898 = vshrl.u32 %v3897, 7
    %v3899 = vsub.s32 2, %v3898
    %v3900 = vrot.slane %v3887, %v3899
    %v3936 = vunpack.c.l.b16 %v3854
    %v3937 = vunpack.c.h.b16 %v3854
    %v3938 = vunpack.c.l.b16 %v3855
    %v3939 = vunpack.c.l.b16 %v3856
    %v3940 = vunpack.c.h.b16 %v3856
    %v3941 = vunpack.c.l.b16 %v3857
    %v3942 = vunpack.c.l.b16 %v3858
    %v3943 = vunpack.c.h.b16 %v3858
    %v3944 = vunpack.c.l.b16 %v3859
    %v3945 = vunpack.c.l.b16 %v3860
    %v3946 = vunpack.c.h.b16 %v3860
    %v3947 = vunpack.c.l.b16 %v3861
    %v3948 = vunpack.c.l.b16 %v3862
    %v3949 = vunpack.c.h.b16 %v3862
    %v3950 = vunpack.c.l.b16 %v3863
    %v3951 = vunpack.c.l.b16 %v3864
    %v3952 = vunpack.c.h.b16 %v3864
    %v3953 = vunpack.c.l.b16 %v3865
    %v3954 = vunpack.c.l.b16 %v3866
    %v3955 = vunpack.c.h.b16 %v3866
    %v3956 = vunpack.c.l.b16 %v3867
    %v3957 = vunpack.c.l.b16 %v3868
    %v3958 = vunpack.c.h.b16 %v3868
    %v3959 = vunpack.c.l.b16 %v3869
    %v3960 = vunpack.c.l.b16 %v3870
    %v3961 = vunpack.c.h.b16 %v3870
    %v3962 = vunpack.c.l.b16 %v3871
    %v3963 = vunpack.c.l.b16 %v3872
    %v3964 = vunpack.c.h.b16 %v3872
    %v3965 = vunpack.c.l.b16 %v3873
    %v3966 = vunpack.c.l.b16 %v3874
    %v3967 = vunpack.c.h.b16 %v3874
    %v3968 = vunpack.c.l.b16 %v3875
    %v3969 = vunpack.c.l.b16 %v3876
    %v3970 = vunpack.c.h.b16 %v3876
    %v3971 = vunpack.c.l.b16 %v3877
    %v3972 = vunpack.c.l.b16 %v3878
    %v3973 = vunpack.c.h.b16 %v3878
    %v3974 = vunpack.c.l.b16 %v3879
    %v3975 = vunpack.c.l.b16 %v3880
    %v3976 = vunpack.c.h.b16 %v3880
    %v3977 = vunpack.c.l.b16 %v3881
    %v3978 = vunpack.c.l.b16 %v3882
    %v3979 = vunpack.c.h.b16 %v3882
    %v3980 = vunpack.c.l.b16 %v3883
    %v3981 = vunpack.c.l.b16 %v3884
    %v3982 = vunpack.c.h.b16 %v3884
    %v3983 = vunpack.c.l.b16 %v3885
    %v3984 = vpack.c.b16 %v3939, %v3936
    %v3985 = vpack.c.b16 %v3940, %v3937
    %v3986 = vpack.c.b16 %v3941, %v3938
    %v3987 = vpack.c.b16 %v3945, %v3942
    %v3988 = vpack.c.b16 %v3946, %v3943
    %v3989 = vpack.c.b16 %v3947, %v3944
    %v3990 = vpack.c.b16 %v3951, %v3948
    %v3991 = vpack.c.b16 %v3952, %v3949
    %v3992 = vpack.c.b16 %v3953, %v3950
    %v3993 = vpack.c.b16 %v3957, %v3954
    %v3994 = vpack.c.b16 %v3958, %v3955
    %v3995 = vpack.c.b16 %v3959, %v3956
    %v3996 = vpack.c.b16 %v3963, %v3960
    %v3997 = vpack.c.b16 %v3964, %v3961
    %v3998 = vpack.c.b16 %v3965, %v3962
    %v3999 = vpack.c.b16 %v3969, %v3966
    %v4000 = vpack.c.b16 %v3970, %v3967
    %v4001 = vpack.c.b16 %v3971, %v3968
    %v4002 = vpack.c.b16 %v3975, %v3972
    %v4003 = vpack.c.b16 %v3976, %v3973
    %v4004 = vpack.c.b16 %v3977, %v3974
    %v4005 = vpack.c.b16 %v3981, %v3978
    %v4006 = vpack.c.b16 %v3982, %v3979
    %v4007 = vpack.c.b16 %v3983, %v3980
    %4032 = vmatprep.subr.bf16.mxu0 %v4006
    %4033 = vmatpush1.bf16.msra.mxu0 %v4005
    %4034 = vmatprep.subr.bf16.mxu0 %v4003
    %4035 = vmatpush1.bf16.msra.mxu0 %v4002
    %4036 = vmatprep.subr.bf16.mxu0 %v4000
    %4037 = vmatpush1.bf16.msra.mxu0 %v3999
    %4038 = vmatprep.subr.bf16.mxu0 %v3997
    %4039 = vmatpush1.bf16.msra.mxu0 %v3996
    %4040 = vmatprep.subr.bf16.mxu0 %v3994
    %4041 = vmatpush1.bf16.msra.mxu0 %v3993
    %4042 = vmatprep.subr.bf16.mxu0 %v3991
    %4043 = vmatpush1.bf16.msra.mxu0 %v3990
    %4044 = vmatprep.subr.bf16.mxu0 %v3988
    %4045 = vmatpush1.bf16.msra.mxu0 %v3987
    %4046 = vmatprep.subr.bf16.mxu0 %v3985
    %4047 = vmatpush1.bf16.msra.mxu0 %v3984
    %4048 = vmatprep.subr.bf16.mxu0 0
    %4049 = vmatpush2.bf16.msra.mxu0 0
    %4050 = vmatprep.subr.bf16.mxu0 0
    %4051 = vmatpush2.bf16.msra.mxu0 0
    %4052 = vmatprep.subr.bf16.mxu0 0
    %4053 = vmatpush2.bf16.msra.mxu0 0
    %4054 = vmatprep.subr.bf16.mxu0 0
    %4055 = vmatpush2.bf16.msra.mxu0 0
    %4056 = vmatprep.subr.bf16.mxu0 0
    %4057 = vmatpush2.bf16.msra.mxu0 0
    %4058 = vmatprep.subr.bf16.mxu0 0
    %4059 = vmatpush2.bf16.msra.mxu0 0
    %4060 = vmatprep.subr.bf16.mxu0 0
    %4061 = vmatpush2.bf16.msra.mxu0 0
    %4062 = vmatprep.subr.bf16.mxu0 0
    %4063 = vmatpush2.bf16.msra.mxu0 0
    %4064 = vmatprep.mubr.bf16.mxu0 0
    %4065 = vmatmul.mubr.bf16.gmra.mxu0 %v3850
    %v4066 = vpop.f32.mrf.mxu0
    %v4067 = vadd.f32 %v3892, %v4066
    %v4068 = vpop.f32.mrf.mxu0
    %v4069 = vadd.f32 %v3896, %v4068
    %v4070 = vpop.f32.mrf.mxu0
    %v4071 = vadd.f32 %v3892, %v4070
    %v4072 = vpop.f32.mrf.mxu0
    %v4073 = vadd.f32 %v3896, %v4072
    %4074 = vmatprep.mubr.bf16.mxu0 0
    %4075 = vmatmul.mubr.bf16.gmra.mxu0 %v3851
    %v4076 = vpop.f32.mrf.mxu0
    %v4077 = vadd.f32 %v3892, %v4076
    %v4078 = vpop.f32.mrf.mxu0
    %v4079 = vadd.f32 %v3896, %v4078
    %v4080 = vpop.f32.mrf.mxu0
    %v4081 = vadd.f32 %v3892, %v4080
    %v4082 = vpop.f32.mrf.mxu0
    %v4083 = vadd.f32 %v3896, %v4082
    %4084 = vmatprep.mubr.bf16.mxu0 0
    %4085 = vmatmul.mubr.bf16.gmra.mxu0 %v3852
    %v4086 = vpop.f32.mrf.mxu0
    %v4087 = vadd.f32 %v3892, %v4086
    %v4088 = vpop.f32.mrf.mxu0
    %v4089 = vadd.f32 %v3896, %v4088
    %v4090 = vpop.f32.mrf.mxu0
    %v4091 = vadd.f32 %v3892, %v4090
    %v4092 = vpop.f32.mrf.mxu0
    %v4093 = vadd.f32 %v3896, %v4092
    %4094 = vdwg.mxu0
    %4095 = vmatprep.subr.bf16.mxu0 0
    %4096 = vmatpush1.bf16.msra.mxu0 %v4007
    %4097 = vmatprep.subr.bf16.mxu0 0
    %4098 = vmatpush1.bf16.msra.mxu0 %v4004
    %4099 = vmatprep.subr.bf16.mxu0 0
    %4100 = vmatpush1.bf16.msra.mxu0 %v4001
    %4101 = vmatprep.subr.bf16.mxu0 0
    %4102 = vmatpush1.bf16.msra.mxu0 %v3998
    %4103 = vmatprep.subr.bf16.mxu0 0
    %4104 = vmatpush1.bf16.msra.mxu0 %v3995
    %4105 = vmatprep.subr.bf16.mxu0 0
    %4106 = vmatpush1.bf16.msra.mxu0 %v3992
    %4107 = vmatprep.subr.bf16.mxu0 0
    %4108 = vmatpush1.bf16.msra.mxu0 %v3989
    %4109 = vmatprep.subr.bf16.mxu0 0
    %4110 = vmatpush1.bf16.msra.mxu0 %v3986
    %4111 = vmatprep.subr.bf16.mxu0 0
    %4112 = vmatpush2.bf16.msra.mxu0 0
    %4113 = vmatprep.subr.bf16.mxu0 0
    %4114 = vmatpush2.bf16.msra.mxu0 0
    %4115 = vmatprep.subr.bf16.mxu0 0
    %4116 = vmatpush2.bf16.msra.mxu0 0
    %4117 = vmatprep.subr.bf16.mxu0 0
    %4118 = vmatpush2.bf16.msra.mxu0 0
    %4119 = vmatprep.subr.bf16.mxu0 0
    %4120 = vmatpush2.bf16.msra.mxu0 0
    %4121 = vmatprep.subr.bf16.mxu0 0
    %4122 = vmatpush2.bf16.msra.mxu0 0
    %4123 = vmatprep.subr.bf16.mxu0 0
    %4124 = vmatpush2.bf16.msra.mxu0 0
    %4125 = vmatprep.subr.bf16.mxu0 0
    %4126 = vmatpush2.bf16.msra.mxu0 0
    %4127 = vmatprep.mubr.bf16.mxu0 0
    %4128 = vmatmul.mubr.bf16.gmra.mxu0 %v3850
    %v4129 = vpop.f32.mrf.mxu0
    %v4130 = vadd.f32 %v3900, %v4129
    %v4131 = vpop.f32.mrf.mxu0
    %v4132 = vpop.f32.mrf.mxu0
    %v4133 = vadd.f32 %v3900, %v4132
    %v4134 = vpop.f32.mrf.mxu0
    %4135 = vmatprep.mubr.bf16.mxu0 0
    %4136 = vmatmul.mubr.bf16.gmra.mxu0 %v3851
    %v4137 = vpop.f32.mrf.mxu0
    %v4138 = vadd.f32 %v3900, %v4137
    %v4139 = vpop.f32.mrf.mxu0
    %v4140 = vpop.f32.mrf.mxu0
    %v4141 = vadd.f32 %v3900, %v4140
    %v4142 = vpop.f32.mrf.mxu0
    %4143 = vmatprep.mubr.bf16.mxu0 0
    %4144 = vmatmul.mubr.bf16.gmra.mxu0 %v3852
    %v4145 = vpop.f32.mrf.mxu0
    %v4146 = vadd.f32 %v3900, %v4145
    %v4147 = vpop.f32.mrf.mxu0
    %v4148 = vpop.f32.mrf.mxu0
    %v4149 = vadd.f32 %v3900, %v4148
    %v4150 = vpop.f32.mrf.mxu0
    %4151 = vdwg.mxu0
    %s4152 = scalar_lea.vmem [#allocation15], 64
    %v4153 = vld [vmem:[%s4152] sm:$0xf]
    %v4154 = vld [vmem:[%s4152 + $0x4] sm:$0xf]
    %v4155 = vld [vmem:[%s4152 + $0x8] sm:$0xf]
    %v4156 = vld [vmem:[%s4152 + $0xc] sm:$0xf]
    %v4157 = vld [vmem:[%s4152 + $0x10] sm:$0xf]
    %v4158 = vld [vmem:[%s4152 + $0x14] sm:$0xf]
    %v4159 = vld [vmem:[%s4152 + $0x18] sm:$0xf]
    %v4160 = vld [vmem:[%s4152 + $0x1c] sm:$0xf]
    %v4161 = vld [vmem:[%s4152 + $0x20] sm:$0xf]
    %v4162 = vld [vmem:[%s4152 + $0x24] sm:$0xf]
    %v4163 = vld [vmem:[%s4152 + $0x28] sm:$0xf]
    %v4164 = vld [vmem:[%s4152 + $0x2c] sm:$0xf]
    %v4165 = vld [vmem:[%s4152 + $0x30] sm:$0xf]
    %v4166 = vld [vmem:[%s4152 + $0x34] sm:$0xf]
    %v4167 = vld [vmem:[%s4152 + $0x38] sm:$0xf]
    %v4168 = vld [vmem:[%s4152 + $0x3c] sm:$0xf]
    %v4169 = vpack.c.bf16 %v4071, %v4067
    %v4170 = vpack.c.bf16 %v4077, %v4077
    %v4171 = vpack.c.bf16 %v4073, %v4069
    %v4172 = vpack.c.bf16 %v4079, %v4079
    %v4173 = vpack.c.bf16 %v4133, %v4130
    %v4174 = vpack.c.bf16 %v4138, %v4138
    %v4176 = vsel %vm783, %v4169, 0
    %v4179 = vsel %vm783, %v4170, 0
    %v4182 = vsel %vm783, %v4171, 0
    %v4185 = vsel %vm783, %v4172, 0
    %4187 = vmatprep.subr.bf16.mxu0 0
    %4188 = vmatpush1.bf16.xpose.msra.mxu0 0
    %4189 = vmatprep.subr.bf16.mxu0 0
    %4190 = vmatpush1.bf16.xpose.msra.mxu0 0
    %4191 = vmatprep.subr.bf16.mxu0 0
    %4192 = vmatpush1.bf16.xpose.msra.mxu0 0
    %4193 = vmatprep.subr.bf16.mxu0 0
    %4194 = vmatpush1.bf16.xpose.msra.mxu0 0
    %4195 = vmatprep.subr.bf16.mxu0 0
    %4196 = vmatpush1.bf16.xpose.msra.mxu0 0
    %4197 = vmatprep.subr.bf16.mxu0 0
    %4198 = vmatpush1.bf16.xpose.msra.mxu0 0
    %4199 = vmatprep.subr.bf16.mxu0 0
    %4200 = vmatpush1.bf16.xpose.msra.mxu0 %v4185
    %4201 = vmatprep.subr.bf16.mxu0 0
    %4202 = vmatpush1.bf16.xpose.msra.mxu0 %v4182
    %4203 = vmatprep.subr.bf16.mxu0 0
    %4204 = vmatpush2.bf16.xpose.msra.mxu0 0
    %4205 = vmatprep.subr.bf16.mxu0 0
    %4206 = vmatpush2.bf16.xpose.msra.mxu0 0
    %4207 = vmatprep.subr.bf16.mxu0 0
    %4208 = vmatpush2.bf16.xpose.msra.mxu0 0
    %4209 = vmatprep.subr.bf16.mxu0 0
    %4210 = vmatpush2.bf16.xpose.msra.mxu0 0
    %4211 = vmatprep.subr.bf16.mxu0 0
    %4212 = vmatpush2.bf16.xpose.msra.mxu0 0
    %4213 = vmatprep.subr.bf16.mxu0 0
    %4214 = vmatpush2.bf16.xpose.msra.mxu0 0
    %4215 = vmatprep.subr.bf16.mxu0 0
    %4216 = vmatpush2.bf16.xpose.msra.mxu0 0
    %4217 = vmatprep.subr.bf16.mxu0 0
    %4218 = vmatpush2.bf16.xpose.msra.mxu0 0
    %4219 = vmatprep.mubr.bf16.mxu0 0
    %4220 = vmatmul.mubr.bf16.gmra.mxu0 %v4176
    %v4221 = vpop.f32.mrf.mxu0
    %v4222 = vadd.f32 0.0, %v4221
    %v4223 = vpop.f32.mrf.mxu0
    %v4224 = vpop.f32.mrf.mxu0
    %v4225 = vadd.f32 0.0, %v4224
    %v4226 = vpop.f32.mrf.mxu0
    %4227 = vmatprep.mubr.bf16.mxu0 0
    %4228 = vmatmul.mubr.bf16.gmra.mxu0 %v4179
    %v4229 = vpop.f32.mrf.mxu0
    %v4230 = vadd.f32 0.0, %v4229
    %v4231 = vpop.f32.mrf.mxu0
    %v4232 = vpop.f32.mrf.mxu0
    %v4233 = vpop.f32.mrf.mxu0
    %4234 = vdwg.mxu0
    %v4235 = vmul.f32 %v4222, 0.17677669
    %v4236 = vmul.f32 %v4225, 0.17677669
    %v4237 = vmul.f32 %v4230, 0.17677669
    %v4238 = vadd.f32 %v4235, %v361
    %v4239 = vadd.f32 %v4236, %v361
    %v4240 = vadd.f32 %v4237, %v361
    %v4241 = vsel %vm850, %v4238, -inf
    %4242 = vmax.xlane.f32.xlu0 %v4241
    %v4243 = vpop.xlane.xlu0 %4242
    %v4244 = vsel %vm850, %v4239, -inf
    %4245 = vmax.xlane.f32.xlu0 %v4244
    %v4246 = vpop.xlane.xlu0 %4245
    %v4247 = vsel %vm850, %v4240, -inf
    %4248 = vmax.xlane.f32.xlu0 %v4247
    %v4249 = vpop.xlane.xlu0 %4248
    %v4250 = vsub.f32 %v4238, %v4243
    %v4251 = vsub.f32 %v4239, %v4246
    %v4252 = vsub.f32 %v4240, %v4249
    %v4253 = vmul.f32 %v4250, 1.442695
    %v4254 = vpow.pop %v4253
    %v4255 = vmul.f32 %v4251, 1.442695
    %v4256 = vpow.pop %v4255
    %v4257 = vmul.f32 %v4252, 1.442695
    %v4258 = vpow.pop %v4257
    %v4259 = vsel %vm850, %v4254, 0.0
    %4260 = vadd.xlane.f32.xlu0 %v4259
    %v4261 = vpop.xlane.xlu0 %4260
    %v4262 = vsel %vm850, %v4256, 0.0
    %4263 = vadd.xlane.f32.xlu0 %v4262
    %v4264 = vpop.xlane.xlu0 %4263
    %v4265 = vsel %vm850, %v4258, 0.0
    %4266 = vadd.xlane.f32.xlu0 %v4265
    %v4267 = vpop.xlane.xlu0 %4266
    %v4268 = vrcp.pop %v4261
    %v4269 = vrcp.pop %v4264
    %v4270 = vrcp.pop %v4267
    %v4271 = vmul.f32 %v4254, %v4268
    %v4272 = vmul.f32 %v4256, %v4269
    %v4273 = vmul.f32 %v4258, %v4270
    %v4274 = vpack.c.bf16 %v4272, %v4271
    %v4275 = vpack.c.bf16 %v4273, %v4273
    %v4277 = vsel %vm850, %v4274, 0
    %v4280 = vsel %vm850, %v4275, 0
    %v4283 = vsel %vm892, %v4174, 0
    %4285 = vmatprep.subr.bf16.mxu0 0
    %4286 = vmatpush1.bf16.msra.mxu0 0
    %4287 = vmatprep.subr.bf16.mxu0 0
    %4288 = vmatpush1.bf16.msra.mxu0 0
    %4289 = vmatprep.subr.bf16.mxu0 0
    %4290 = vmatpush1.bf16.msra.mxu0 0
    %4291 = vmatprep.subr.bf16.mxu0 0
    %4292 = vmatpush1.bf16.msra.mxu0 0
    %4293 = vmatprep.subr.bf16.mxu0 0
    %4294 = vmatpush1.bf16.msra.mxu0 0
    %4295 = vmatprep.subr.bf16.mxu0 0
    %4296 = vmatpush1.bf16.msra.mxu0 0
    %4297 = vmatprep.subr.bf16.mxu0 0
    %4298 = vmatpush1.bf16.msra.mxu0 %v4283
    %4299 = vmatprep.subr.bf16.mxu0 0
    %4300 = vmatpush1.bf16.msra.mxu0 %v4173
    %4301 = vmatprep.subr.bf16.mxu0 0
    %4302 = vmatpush2.bf16.msra.mxu0 0
    %4303 = vmatprep.subr.bf16.mxu0 0
    %4304 = vmatpush2.bf16.msra.mxu0 0
    %4305 = vmatprep.subr.bf16.mxu0 0
    %4306 = vmatpush2.bf16.msra.mxu0 0
    %4307 = vmatprep.subr.bf16.mxu0 0
    %4308 = vmatpush2.bf16.msra.mxu0 0
    %4309 = vmatprep.subr.bf16.mxu0 0
    %4310 = vmatpush2.bf16.msra.mxu0 0
    %4311 = vmatprep.subr.bf16.mxu0 0
    %4312 = vmatpush2.bf16.msra.mxu0 0
    %4313 = vmatprep.subr.bf16.mxu0 0
    %4314 = vmatpush2.bf16.msra.mxu0 0
    %4315 = vmatprep.subr.bf16.mxu0 0
    %4316 = vmatpush2.bf16.msra.mxu0 0
    %4317 = vmatprep.mubr.bf16.mxu0 0
    %4318 = vmatmul.mubr.bf16.gmra.mxu0 %v4277
    %v4319 = vpop.f32.mrf.mxu0
    %v4320 = vadd.f32 0.0, %v4319
    %v4321 = vpop.f32.mrf.mxu0
    %v4322 = vpop.f32.mrf.mxu0
    %v4323 = vadd.f32 0.0, %v4322
    %v4324 = vpop.f32.mrf.mxu0
    %4325 = vmatprep.mubr.bf16.mxu0 0
    %4326 = vmatmul.mubr.bf16.gmra.mxu0 %v4280
    %v4327 = vpop.f32.mrf.mxu0
    %v4328 = vadd.f32 0.0, %v4327
    %v4329 = vpop.f32.mrf.mxu0
    %v4330 = vpop.f32.mrf.mxu0
    %v4331 = vpop.f32.mrf.mxu0
    %4332 = vdwg.mxu0
    %v4333 = vpack.c.bf16 %v4323, %v4320
    %v4334 = vpack.c.bf16 %v4328, %v4328
    %4337 = vrot.lane.b32.xlu0 %v4169, 96
    %v4338 = vpop.permute.xlu0 %4337
    %4339 = vrot.lane.b32.xlu0 %v4170, 96
    %v4340 = vpop.permute.xlu0 %4339
    %4343 = vrot.lane.b32.xlu0 %v4171, 96
    %v4344 = vpop.permute.xlu0 %4343
    %4345 = vrot.lane.b32.xlu0 %v4172, 96
    %v4346 = vpop.permute.xlu0 %4345
    %v4348 = vsel %vm783, %v4338, 0
    %v4351 = vsel %vm783, %v4340, 0
    %v4354 = vsel %vm783, %v4344, 0
    %v4357 = vsel %vm783, %v4346, 0
    %4359 = vmatprep.subr.bf16.mxu0 0
    %4360 = vmatpush1.bf16.xpose.msra.mxu0 0
    %4361 = vmatprep.subr.bf16.mxu0 0
    %4362 = vmatpush1.bf16.xpose.msra.mxu0 0
    %4363 = vmatprep.subr.bf16.mxu0 0
    %4364 = vmatpush1.bf16.xpose.msra.mxu0 0
    %4365 = vmatprep.subr.bf16.mxu0 0
    %4366 = vmatpush1.bf16.xpose.msra.mxu0 0
    %4367 = vmatprep.subr.bf16.mxu0 0
    %4368 = vmatpush1.bf16.xpose.msra.mxu0 0
    %4369 = vmatprep.subr.bf16.mxu0 0
    %4370 = vmatpush1.bf16.xpose.msra.mxu0 0
    %4371 = vmatprep.subr.bf16.mxu0 0
    %4372 = vmatpush1.bf16.xpose.msra.mxu0 %v4357
    %4373 = vmatprep.subr.bf16.mxu0 0
    %4374 = vmatpush1.bf16.xpose.msra.mxu0 %v4354
    %4375 = vmatprep.subr.bf16.mxu0 0
    %4376 = vmatpush2.bf16.xpose.msra.mxu0 0
    %4377 = vmatprep.subr.bf16.mxu0 0
    %4378 = vmatpush2.bf16.xpose.msra.mxu0 0
    %4379 = vmatprep.subr.bf16.mxu0 0
    %4380 = vmatpush2.bf16.xpose.msra.mxu0 0
    %4381 = vmatprep.subr.bf16.mxu0 0
    %4382 = vmatpush2.bf16.xpose.msra.mxu0 0
    %4383 = vmatprep.subr.bf16.mxu0 0
    %4384 = vmatpush2.bf16.xpose.msra.mxu0 0
    %4385 = vmatprep.subr.bf16.mxu0 0
    %4386 = vmatpush2.bf16.xpose.msra.mxu0 0
    %4387 = vmatprep.subr.bf16.mxu0 0
    %4388 = vmatpush2.bf16.xpose.msra.mxu0 0
    %4389 = vmatprep.subr.bf16.mxu0 0
    %4390 = vmatpush2.bf16.xpose.msra.mxu0 0
    %4391 = vmatprep.mubr.bf16.mxu0 0
    %4392 = vmatmul.mubr.bf16.gmra.mxu0 %v4348
    %v4393 = vpop.f32.mrf.mxu0
    %v4394 = vadd.f32 0.0, %v4393
    %v4395 = vpop.f32.mrf.mxu0
    %v4396 = vpop.f32.mrf.mxu0
    %v4397 = vadd.f32 0.0, %v4396
    %v4398 = vpop.f32.mrf.mxu0
    %4399 = vmatprep.mubr.bf16.mxu0 0
    %4400 = vmatmul.mubr.bf16.gmra.mxu0 %v4351
    %v4401 = vpop.f32.mrf.mxu0
    %v4402 = vadd.f32 0.0, %v4401
    %v4403 = vpop.f32.mrf.mxu0
    %v4404 = vpop.f32.mrf.mxu0
    %v4405 = vpop.f32.mrf.mxu0
    %4406 = vdwg.mxu0
    %v4407 = vmul.f32 %v4394, 0.17677669
    %v4408 = vmul.f32 %v4397, 0.17677669
    %v4409 = vmul.f32 %v4402, 0.17677669
    %v4410 = vadd.f32 %v4407, %v361
    %v4411 = vadd.f32 %v4408, %v361
    %v4412 = vadd.f32 %v4409, %v361
    %v4413 = vsel %vm850, %v4410, -inf
    %4414 = vmax.xlane.f32.xlu0 %v4413
    %v4415 = vpop.xlane.xlu0 %4414
    %v4416 = vsel %vm850, %v4411, -inf
    %4417 = vmax.xlane.f32.xlu0 %v4416
    %v4418 = vpop.xlane.xlu0 %4417
    %v4419 = vsel %vm850, %v4412, -inf
    %4420 = vmax.xlane.f32.xlu0 %v4419
    %v4421 = vpop.xlane.xlu0 %4420
    %v4422 = vsub.f32 %v4410, %v4415
    %v4423 = vsub.f32 %v4411, %v4418
    %v4424 = vsub.f32 %v4412, %v4421
    %v4425 = vmul.f32 %v4422, 1.442695
    %v4426 = vpow.pop %v4425
    %v4427 = vmul.f32 %v4423, 1.442695
    %v4428 = vpow.pop %v4427
    %v4429 = vmul.f32 %v4424, 1.442695
    %v4430 = vpow.pop %v4429
    %v4431 = vsel %vm850, %v4426, 0.0
    %4432 = vadd.xlane.f32.xlu0 %v4431
    %v4433 = vpop.xlane.xlu0 %4432
    %v4434 = vsel %vm850, %v4428, 0.0
    %4435 = vadd.xlane.f32.xlu0 %v4434
    %v4436 = vpop.xlane.xlu0 %4435
    %v4437 = vsel %vm850, %v4430, 0.0
    %4438 = vadd.xlane.f32.xlu0 %v4437
    %v4439 = vpop.xlane.xlu0 %4438
    %v4440 = vrcp.pop %v4433
    %v4441 = vrcp.pop %v4436
    %v4442 = vrcp.pop %v4439
    %v4443 = vmul.f32 %v4426, %v4440
    %v4444 = vmul.f32 %v4428, %v4441
    %v4445 = vmul.f32 %v4430, %v4442
    %v4446 = vpack.c.bf16 %v4444, %v4443
    %v4447 = vpack.c.bf16 %v4445, %v4445
    %4450 = vrot.lane.b32.xlu0 %v4173, 96
    %v4451 = vpop.permute.xlu0 %4450
    %4452 = vrot.lane.b32.xlu0 %v4174, 96
    %v4453 = vpop.permute.xlu0 %4452
    %v4456 = vsel %vm850, %v4446, 0
    %v4459 = vsel %vm850, %v4447, 0
    %v4462 = vsel %vm892, %v4453, 0
    %4464 = vmatprep.subr.bf16.mxu0 0
    %4465 = vmatpush1.bf16.msra.mxu0 0
    %4466 = vmatprep.subr.bf16.mxu0 0
    %4467 = vmatpush1.bf16.msra.mxu0 0
    %4468 = vmatprep.subr.bf16.mxu0 0
    %4469 = vmatpush1.bf16.msra.mxu0 0
    %4470 = vmatprep.subr.bf16.mxu0 0
    %4471 = vmatpush1.bf16.msra.mxu0 0
    %4472 = vmatprep.subr.bf16.mxu0 0
    %4473 = vmatpush1.bf16.msra.mxu0 0
    %4474 = vmatprep.subr.bf16.mxu0 0
    %4475 = vmatpush1.bf16.msra.mxu0 0
    %4476 = vmatprep.subr.bf16.mxu0 0
    %4477 = vmatpush1.bf16.msra.mxu0 %v4462
    %4478 = vmatprep.subr.bf16.mxu0 0
    %4479 = vmatpush1.bf16.msra.mxu0 %v4451
    %4480 = vmatprep.subr.bf16.mxu0 0
    %4481 = vmatpush2.bf16.msra.mxu0 0
    %4482 = vmatprep.subr.bf16.mxu0 0
    %4483 = vmatpush2.bf16.msra.mxu0 0
    %4484 = vmatprep.subr.bf16.mxu0 0
    %4485 = vmatpush2.bf16.msra.mxu0 0
    %4486 = vmatprep.subr.bf16.mxu0 0
    %4487 = vmatpush2.bf16.msra.mxu0 0
    %4488 = vmatprep.subr.bf16.mxu0 0
    %4489 = vmatpush2.bf16.msra.mxu0 0
    %4490 = vmatprep.subr.bf16.mxu0 0
    %4491 = vmatpush2.bf16.msra.mxu0 0
    %4492 = vmatprep.subr.bf16.mxu0 0
    %4493 = vmatpush2.bf16.msra.mxu0 0
    %4494 = vmatprep.subr.bf16.mxu0 0
    %4495 = vmatpush2.bf16.msra.mxu0 0
    %4496 = vmatprep.mubr.bf16.mxu0 0
    %4497 = vmatmul.mubr.bf16.gmra.mxu0 %v4456
    %v4498 = vpop.f32.mrf.mxu0
    %v4499 = vadd.f32 0.0, %v4498
    %v4500 = vpop.f32.mrf.mxu0
    %v4501 = vpop.f32.mrf.mxu0
    %v4502 = vadd.f32 0.0, %v4501
    %v4503 = vpop.f32.mrf.mxu0
    %4504 = vmatprep.mubr.bf16.mxu0 0
    %4505 = vmatmul.mubr.bf16.gmra.mxu0 %v4459
    %v4506 = vpop.f32.mrf.mxu0
    %v4507 = vadd.f32 0.0, %v4506
    %v4508 = vpop.f32.mrf.mxu0
    %v4509 = vpop.f32.mrf.mxu0
    %v4510 = vpop.f32.mrf.mxu0
    %4511 = vdwg.mxu0
    %v4512 = vpack.c.bf16 %v4502, %v4499
    %v4513 = vpack.c.bf16 %v4507, %v4507
    %v4518 = vunpack.c.l.b16 %v4157
    %v4519 = vunpack.c.l.b16 %v4158
    %v4520 = vunpack.c.l.b16 %v4159
    %v4521 = vunpack.c.l.b16 %v4160
    %v4522 = vpack.c.b16 %v4519, %v4518
    %v4523 = vpack.c.b16 %v4521, %v4520
    %v4527 = vsel %vm783, %v4512, 0
    %v4530 = vsel %vm783, %v4513, 0
    %4532 = vmatprep.subr.bf16.mxu0 0
    %4533 = vmatpush1.bf16.msra.mxu0 0
    %4534 = vmatprep.subr.bf16.mxu0 0
    %4535 = vmatpush1.bf16.msra.mxu0 0
    %4536 = vmatprep.subr.bf16.mxu0 0
    %4537 = vmatpush1.bf16.msra.mxu0 0
    %4538 = vmatprep.subr.bf16.mxu0 0
    %4539 = vmatpush1.bf16.msra.mxu0 0
    %4540 = vmatprep.subr.bf16.mxu0 0
    %4541 = vmatpush1.bf16.msra.mxu0 0
    %4542 = vmatprep.subr.bf16.mxu0 0
    %4543 = vmatpush1.bf16.msra.mxu0 0
    %4544 = vmatprep.subr.bf16.mxu0 0
    %4545 = vmatpush1.bf16.msra.mxu0 %v4523
    %4546 = vmatprep.subr.bf16.mxu0 0
    %4547 = vmatpush1.bf16.msra.mxu0 %v4522
    %4548 = vmatprep.subr.bf16.mxu0 0
    %4549 = vmatpush2.bf16.msra.mxu0 0
    %4550 = vmatprep.subr.bf16.mxu0 0
    %4551 = vmatpush2.bf16.msra.mxu0 0
    %4552 = vmatprep.subr.bf16.mxu0 0
    %4553 = vmatpush2.bf16.msra.mxu0 0
    %4554 = vmatprep.subr.bf16.mxu0 0
    %4555 = vmatpush2.bf16.msra.mxu0 0
    %4556 = vmatprep.subr.bf16.mxu0 0
    %4557 = vmatpush2.bf16.msra.mxu0 0
    %4558 = vmatprep.subr.bf16.mxu0 0
    %4559 = vmatpush2.bf16.msra.mxu0 0
    %4560 = vmatprep.subr.bf16.mxu0 0
    %4561 = vmatpush2.bf16.msra.mxu0 0
    %4562 = vmatprep.subr.bf16.mxu0 0
    %4563 = vmatpush2.bf16.msra.mxu0 0
    %4564 = vmatprep.mubr.bf16.mxu0 0
    %4565 = vmatmul.mubr.bf16.gmra.mxu0 %v4527
    %v4566 = vpop.f32.mrf.mxu0
    %v4567 = vadd.f32 0.0, %v4566
    %v4568 = vpop.f32.mrf.mxu0
    %v4569 = vpop.f32.mrf.mxu0
    %v4570 = vadd.f32 0.0, %v4569
    %v4571 = vpop.f32.mrf.mxu0
    %4572 = vmatprep.mubr.bf16.mxu0 0
    %4573 = vmatmul.mubr.bf16.gmra.mxu0 %v4530
    %v4574 = vpop.f32.mrf.mxu0
    %v4575 = vadd.f32 0.0, %v4574
    %v4576 = vpop.f32.mrf.mxu0
    %v4577 = vpop.f32.mrf.mxu0
    %v4578 = vpop.f32.mrf.mxu0
    %4579 = vdwg.mxu0
    %v4584 = vunpack.c.l.b16 %v4153
    %v4585 = vunpack.c.l.b16 %v4154
    %v4586 = vunpack.c.l.b16 %v4155
    %v4587 = vunpack.c.l.b16 %v4156
    %v4588 = vpack.c.b16 %v4585, %v4584
    %v4589 = vpack.c.b16 %v4587, %v4586
    %v4593 = vsel %vm783, %v4333, 0
    %v4596 = vsel %vm783, %v4334, 0
    %4598 = vmatprep.subr.bf16.mxu0 0
    %4599 = vmatpush1.bf16.msra.mxu0 0
    %4600 = vmatprep.subr.bf16.mxu0 0
    %4601 = vmatpush1.bf16.msra.mxu0 0
    %4602 = vmatprep.subr.bf16.mxu0 0
    %4603 = vmatpush1.bf16.msra.mxu0 0
    %4604 = vmatprep.subr.bf16.mxu0 0
    %4605 = vmatpush1.bf16.msra.mxu0 0
    %4606 = vmatprep.subr.bf16.mxu0 0
    %4607 = vmatpush1.bf16.msra.mxu0 0
    %4608 = vmatprep.subr.bf16.mxu0 0
    %4609 = vmatpush1.bf16.msra.mxu0 0
    %4610 = vmatprep.subr.bf16.mxu0 0
    %4611 = vmatpush1.bf16.msra.mxu0 %v4589
    %4612 = vmatprep.subr.bf16.mxu0 0
    %4613 = vmatpush1.bf16.msra.mxu0 %v4588
    %4614 = vmatprep.subr.bf16.mxu0 0
    %4615 = vmatpush2.bf16.msra.mxu0 0
    %4616 = vmatprep.subr.bf16.mxu0 0
    %4617 = vmatpush2.bf16.msra.mxu0 0
    %4618 = vmatprep.subr.bf16.mxu0 0
    %4619 = vmatpush2.bf16.msra.mxu0 0
    %4620 = vmatprep.subr.bf16.mxu0 0
    %4621 = vmatpush2.bf16.msra.mxu0 0
    %4622 = vmatprep.subr.bf16.mxu0 0
    %4623 = vmatpush2.bf16.msra.mxu0 0
    %4624 = vmatprep.subr.bf16.mxu0 0
    %4625 = vmatpush2.bf16.msra.mxu0 0
    %4626 = vmatprep.subr.bf16.mxu0 0
    %4627 = vmatpush2.bf16.msra.mxu0 0
    %4628 = vmatprep.subr.bf16.mxu0 0
    %4629 = vmatpush2.bf16.msra.mxu0 0
    %4630 = vmatprep.mubr.bf16.mxu0 0
    %4631 = vmatmul.mubr.bf16.gmra.mxu0 %v4593
    %v4632 = vpop.f32.mrf.mxu0
    %v4633 = vadd.f32 %v4567, %v4632
    %v4634 = vpop.f32.mrf.mxu0
    %v4635 = vpop.f32.mrf.mxu0
    %v4636 = vadd.f32 %v4570, %v4635
    %v4637 = vpop.f32.mrf.mxu0
    %4638 = vmatprep.mubr.bf16.mxu0 0
    %4639 = vmatmul.mubr.bf16.gmra.mxu0 %v4596
    %v4640 = vpop.f32.mrf.mxu0
    %v4641 = vadd.f32 %v4575, %v4640
    %v4642 = vpop.f32.mrf.mxu0
    %v4643 = vpop.f32.mrf.mxu0
    %v4644 = vpop.f32.mrf.mxu0
    %4645 = vdwg.mxu0
    %4646 = vrot.lane.b32.xlu0 %v4169, 64
    %v4647 = vpop.permute.xlu0 %4646
    %4648 = vrot.lane.b32.xlu0 %v4170, 64
    %v4649 = vpop.permute.xlu0 %4648
    %4650 = vrot.lane.b32.xlu0 %v4171, 64
    %v4651 = vpop.permute.xlu0 %4650
    %4652 = vrot.lane.b32.xlu0 %v4172, 64
    %v4653 = vpop.permute.xlu0 %4652
    %v4655 = vsel %vm783, %v4647, 0
    %v4658 = vsel %vm783, %v4649, 0
    %v4661 = vsel %vm783, %v4651, 0
    %v4664 = vsel %vm783, %v4653, 0
    %4666 = vmatprep.subr.bf16.mxu0 0
    %4667 = vmatpush1.bf16.xpose.msra.mxu0 0
    %4668 = vmatprep.subr.bf16.mxu0 0
    %4669 = vmatpush1.bf16.xpose.msra.mxu0 0
    %4670 = vmatprep.subr.bf16.mxu0 0
    %4671 = vmatpush1.bf16.xpose.msra.mxu0 0
    %4672 = vmatprep.subr.bf16.mxu0 0
    %4673 = vmatpush1.bf16.xpose.msra.mxu0 0
    %4674 = vmatprep.subr.bf16.mxu0 0
    %4675 = vmatpush1.bf16.xpose.msra.mxu0 0
    %4676 = vmatprep.subr.bf16.mxu0 0
    %4677 = vmatpush1.bf16.xpose.msra.mxu0 0
    %4678 = vmatprep.subr.bf16.mxu0 0
    %4679 = vmatpush1.bf16.xpose.msra.mxu0 %v4664
    %4680 = vmatprep.subr.bf16.mxu0 0
    %4681 = vmatpush1.bf16.xpose.msra.mxu0 %v4661
    %4682 = vmatprep.subr.bf16.mxu0 0
    %4683 = vmatpush2.bf16.xpose.msra.mxu0 0
    %4684 = vmatprep.subr.bf16.mxu0 0
    %4685 = vmatpush2.bf16.xpose.msra.mxu0 0
    %4686 = vmatprep.subr.bf16.mxu0 0
    %4687 = vmatpush2.bf16.xpose.msra.mxu0 0
    %4688 = vmatprep.subr.bf16.mxu0 0
    %4689 = vmatpush2.bf16.xpose.msra.mxu0 0
    %4690 = vmatprep.subr.bf16.mxu0 0
    %4691 = vmatpush2.bf16.xpose.msra.mxu0 0
    %4692 = vmatprep.subr.bf16.mxu0 0
    %4693 = vmatpush2.bf16.xpose.msra.mxu0 0
    %4694 = vmatprep.subr.bf16.mxu0 0
    %4695 = vmatpush2.bf16.xpose.msra.mxu0 0
    %4696 = vmatprep.subr.bf16.mxu0 0
    %4697 = vmatpush2.bf16.xpose.msra.mxu0 0
    %4698 = vmatprep.mubr.bf16.mxu0 0
    %4699 = vmatmul.mubr.bf16.gmra.mxu0 %v4655
    %v4700 = vpop.f32.mrf.mxu0
    %v4701 = vadd.f32 0.0, %v4700
    %v4702 = vpop.f32.mrf.mxu0
    %v4703 = vpop.f32.mrf.mxu0
    %v4704 = vadd.f32 0.0, %v4703
    %v4705 = vpop.f32.mrf.mxu0
    %4706 = vmatprep.mubr.bf16.mxu0 0
    %4707 = vmatmul.mubr.bf16.gmra.mxu0 %v4658
    %v4708 = vpop.f32.mrf.mxu0
    %v4709 = vadd.f32 0.0, %v4708
    %v4710 = vpop.f32.mrf.mxu0
    %v4711 = vpop.f32.mrf.mxu0
    %v4712 = vpop.f32.mrf.mxu0
    %4713 = vdwg.mxu0
    %v4714 = vmul.f32 %v4701, 0.17677669
    %v4715 = vmul.f32 %v4704, 0.17677669
    %v4716 = vmul.f32 %v4709, 0.17677669
    %v4717 = vadd.f32 %v4714, %v361
    %v4718 = vadd.f32 %v4715, %v361
    %v4719 = vadd.f32 %v4716, %v361
    %v4720 = vsel %vm850, %v4717, -inf
    %4721 = vmax.xlane.f32.xlu0 %v4720
    %v4722 = vpop.xlane.xlu0 %4721
    %v4723 = vsel %vm850, %v4718, -inf
    %4724 = vmax.xlane.f32.xlu0 %v4723
    %v4725 = vpop.xlane.xlu0 %4724
    %v4726 = vsel %vm850, %v4719, -inf
    %4727 = vmax.xlane.f32.xlu0 %v4726
    %v4728 = vpop.xlane.xlu0 %4727
    %v4729 = vsub.f32 %v4717, %v4722
    %v4730 = vsub.f32 %v4718, %v4725
    %v4731 = vsub.f32 %v4719, %v4728
    %v4732 = vmul.f32 %v4729, 1.442695
    %v4733 = vpow.pop %v4732
    %v4734 = vmul.f32 %v4730, 1.442695
    %v4735 = vpow.pop %v4734
    %v4736 = vmul.f32 %v4731, 1.442695
    %v4737 = vpow.pop %v4736
    %v4738 = vsel %vm850, %v4733, 0.0
    %4739 = vadd.xlane.f32.xlu0 %v4738
    %v4740 = vpop.xlane.xlu0 %4739
    %v4741 = vsel %vm850, %v4735, 0.0
    %4742 = vadd.xlane.f32.xlu0 %v4741
    %v4743 = vpop.xlane.xlu0 %4742
    %v4744 = vsel %vm850, %v4737, 0.0
    %4745 = vadd.xlane.f32.xlu0 %v4744
    %v4746 = vpop.xlane.xlu0 %4745
    %v4747 = vrcp.pop %v4740
    %v4748 = vrcp.pop %v4743
    %v4749 = vrcp.pop %v4746
    %v4750 = vmul.f32 %v4733, %v4747
    %v4751 = vmul.f32 %v4735, %v4748
    %v4752 = vmul.f32 %v4737, %v4749
    %v4753 = vpack.c.bf16 %v4751, %v4750
    %v4754 = vpack.c.bf16 %v4752, %v4752
    %4755 = vrot.lane.b32.xlu0 %v4173, 64
    %v4756 = vpop.permute.xlu0 %4755
    %4757 = vrot.lane.b32.xlu0 %v4174, 64
    %v4758 = vpop.permute.xlu0 %4757
    %v4761 = vsel %vm850, %v4753, 0
    %v4764 = vsel %vm850, %v4754, 0
    %v4767 = vsel %vm892, %v4758, 0
    %4769 = vmatprep.subr.bf16.mxu0 0
    %4770 = vmatpush1.bf16.msra.mxu0 0
    %4771 = vmatprep.subr.bf16.mxu0 0
    %4772 = vmatpush1.bf16.msra.mxu0 0
    %4773 = vmatprep.subr.bf16.mxu0 0
    %4774 = vmatpush1.bf16.msra.mxu0 0
    %4775 = vmatprep.subr.bf16.mxu0 0
    %4776 = vmatpush1.bf16.msra.mxu0 0
    %4777 = vmatprep.subr.bf16.mxu0 0
    %4778 = vmatpush1.bf16.msra.mxu0 0
    %4779 = vmatprep.subr.bf16.mxu0 0
    %4780 = vmatpush1.bf16.msra.mxu0 0
    %4781 = vmatprep.subr.bf16.mxu0 0
    %4782 = vmatpush1.bf16.msra.mxu0 %v4767
    %4783 = vmatprep.subr.bf16.mxu0 0
    %4784 = vmatpush1.bf16.msra.mxu0 %v4756
    %4785 = vmatprep.subr.bf16.mxu0 0
    %4786 = vmatpush2.bf16.msra.mxu0 0
    %4787 = vmatprep.subr.bf16.mxu0 0
    %4788 = vmatpush2.bf16.msra.mxu0 0
    %4789 = vmatprep.subr.bf16.mxu0 0
    %4790 = vmatpush2.bf16.msra.mxu0 0
    %4791 = vmatprep.subr.bf16.mxu0 0
    %4792 = vmatpush2.bf16.msra.mxu0 0
    %4793 = vmatprep.subr.bf16.mxu0 0
    %4794 = vmatpush2.bf16.msra.mxu0 0
    %4795 = vmatprep.subr.bf16.mxu0 0
    %4796 = vmatpush2.bf16.msra.mxu0 0
    %4797 = vmatprep.subr.bf16.mxu0 0
    %4798 = vmatpush2.bf16.msra.mxu0 0
    %4799 = vmatprep.subr.bf16.mxu0 0
    %4800 = vmatpush2.bf16.msra.mxu0 0
    %4801 = vmatprep.mubr.bf16.mxu0 0
    %4802 = vmatmul.mubr.bf16.gmra.mxu0 %v4761
    %v4803 = vpop.f32.mrf.mxu0
    %v4804 = vadd.f32 0.0, %v4803
    %v4805 = vpop.f32.mrf.mxu0
    %v4806 = vpop.f32.mrf.mxu0
    %v4807 = vadd.f32 0.0, %v4806
    %v4808 = vpop.f32.mrf.mxu0
    %4809 = vmatprep.mubr.bf16.mxu0 0
    %4810 = vmatmul.mubr.bf16.gmra.mxu0 %v4764
    %v4811 = vpop.f32.mrf.mxu0
    %v4812 = vadd.f32 0.0, %v4811
    %v4813 = vpop.f32.mrf.mxu0
    %v4814 = vpop.f32.mrf.mxu0
    %v4815 = vpop.f32.mrf.mxu0
    %4816 = vdwg.mxu0
    %v4817 = vpack.c.bf16 %v4807, %v4804
    %v4818 = vpack.c.bf16 %v4812, %v4812
    %v4823 = vunpack.c.l.b16 %v4161
    %v4824 = vunpack.c.l.b16 %v4162
    %v4825 = vunpack.c.l.b16 %v4163
    %v4826 = vunpack.c.l.b16 %v4164
    %v4827 = vpack.c.b16 %v4824, %v4823
    %v4828 = vpack.c.b16 %v4826, %v4825
    %v4832 = vsel %vm783, %v4817, 0
    %v4835 = vsel %vm783, %v4818, 0
    %4837 = vmatprep.subr.bf16.mxu0 0
    %4838 = vmatpush1.bf16.msra.mxu0 0
    %4839 = vmatprep.subr.bf16.mxu0 0
    %4840 = vmatpush1.bf16.msra.mxu0 0
    %4841 = vmatprep.subr.bf16.mxu0 0
    %4842 = vmatpush1.bf16.msra.mxu0 0
    %4843 = vmatprep.subr.bf16.mxu0 0
    %4844 = vmatpush1.bf16.msra.mxu0 0
    %4845 = vmatprep.subr.bf16.mxu0 0
    %4846 = vmatpush1.bf16.msra.mxu0 0
    %4847 = vmatprep.subr.bf16.mxu0 0
    %4848 = vmatpush1.bf16.msra.mxu0 0
    %4849 = vmatprep.subr.bf16.mxu0 0
    %4850 = vmatpush1.bf16.msra.mxu0 %v4828
    %4851 = vmatprep.subr.bf16.mxu0 0
    %4852 = vmatpush1.bf16.msra.mxu0 %v4827
    %4853 = vmatprep.subr.bf16.mxu0 0
    %4854 = vmatpush2.bf16.msra.mxu0 0
    %4855 = vmatprep.subr.bf16.mxu0 0
    %4856 = vmatpush2.bf16.msra.mxu0 0
    %4857 = vmatprep.subr.bf16.mxu0 0
    %4858 = vmatpush2.bf16.msra.mxu0 0
    %4859 = vmatprep.subr.bf16.mxu0 0
    %4860 = vmatpush2.bf16.msra.mxu0 0
    %4861 = vmatprep.subr.bf16.mxu0 0
    %4862 = vmatpush2.bf16.msra.mxu0 0
    %4863 = vmatprep.subr.bf16.mxu0 0
    %4864 = vmatpush2.bf16.msra.mxu0 0
    %4865 = vmatprep.subr.bf16.mxu0 0
    %4866 = vmatpush2.bf16.msra.mxu0 0
    %4867 = vmatprep.subr.bf16.mxu0 0
    %4868 = vmatpush2.bf16.msra.mxu0 0
    %4869 = vmatprep.mubr.bf16.mxu0 0
    %4870 = vmatmul.mubr.bf16.gmra.mxu0 %v4832
    %v4871 = vpop.f32.mrf.mxu0
    %v4872 = vadd.f32 0.0, %v4871
    %v4873 = vpop.f32.mrf.mxu0
    %v4874 = vpop.f32.mrf.mxu0
    %v4875 = vadd.f32 0.0, %v4874
    %v4876 = vpop.f32.mrf.mxu0
    %4877 = vmatprep.mubr.bf16.mxu0 0
    %4878 = vmatmul.mubr.bf16.gmra.mxu0 %v4835
    %v4879 = vpop.f32.mrf.mxu0
    %v4880 = vadd.f32 0.0, %v4879
    %v4881 = vpop.f32.mrf.mxu0
    %v4882 = vpop.f32.mrf.mxu0
    %v4883 = vpop.f32.mrf.mxu0
    %4884 = vdwg.mxu0
    %v4885 = vadd.f32 %v4633, %v4872
    %v4886 = vadd.f32 %v4636, %v4875
    %v4887 = vadd.f32 %v4641, %v4880
    %4888 = vrot.lane.b32.xlu0 %v4169, 32
    %v4889 = vpop.permute.xlu0 %4888
    %4890 = vrot.lane.b32.xlu0 %v4170, 32
    %v4891 = vpop.permute.xlu0 %4890
    %4892 = vrot.lane.b32.xlu0 %v4171, 32
    %v4893 = vpop.permute.xlu0 %4892
    %4894 = vrot.lane.b32.xlu0 %v4172, 32
    %v4895 = vpop.permute.xlu0 %4894
    %v4897 = vsel %vm783, %v4889, 0
    %v4900 = vsel %vm783, %v4891, 0
    %v4903 = vsel %vm783, %v4893, 0
    %v4906 = vsel %vm783, %v4895, 0
    %4908 = vmatprep.subr.bf16.mxu0 0
    %4909 = vmatpush1.bf16.xpose.msra.mxu0 0
    %4910 = vmatprep.subr.bf16.mxu0 0
    %4911 = vmatpush1.bf16.xpose.msra.mxu0 0
    %4912 = vmatprep.subr.bf16.mxu0 0
    %4913 = vmatpush1.bf16.xpose.msra.mxu0 0
    %4914 = vmatprep.subr.bf16.mxu0 0
    %4915 = vmatpush1.bf16.xpose.msra.mxu0 0
    %4916 = vmatprep.subr.bf16.mxu0 0
    %4917 = vmatpush1.bf16.xpose.msra.mxu0 0
    %4918 = vmatprep.subr.bf16.mxu0 0
    %4919 = vmatpush1.bf16.xpose.msra.mxu0 0
    %4920 = vmatprep.subr.bf16.mxu0 0
    %4921 = vmatpush1.bf16.xpose.msra.mxu0 %v4906
    %4922 = vmatprep.subr.bf16.mxu0 0
    %4923 = vmatpush1.bf16.xpose.msra.mxu0 %v4903
    %4924 = vmatprep.subr.bf16.mxu0 0
    %4925 = vmatpush2.bf16.xpose.msra.mxu0 0
    %4926 = vmatprep.subr.bf16.mxu0 0
    %4927 = vmatpush2.bf16.xpose.msra.mxu0 0
    %4928 = vmatprep.subr.bf16.mxu0 0
    %4929 = vmatpush2.bf16.xpose.msra.mxu0 0
    %4930 = vmatprep.subr.bf16.mxu0 0
    %4931 = vmatpush2.bf16.xpose.msra.mxu0 0
    %4932 = vmatprep.subr.bf16.mxu0 0
    %4933 = vmatpush2.bf16.xpose.msra.mxu0 0
    %4934 = vmatprep.subr.bf16.mxu0 0
    %4935 = vmatpush2.bf16.xpose.msra.mxu0 0
    %4936 = vmatprep.subr.bf16.mxu0 0
    %4937 = vmatpush2.bf16.xpose.msra.mxu0 0
    %4938 = vmatprep.subr.bf16.mxu0 0
    %4939 = vmatpush2.bf16.xpose.msra.mxu0 0
    %4940 = vmatprep.mubr.bf16.mxu0 0
    %4941 = vmatmul.mubr.bf16.gmra.mxu0 %v4897
    %v4942 = vpop.f32.mrf.mxu0
    %v4943 = vadd.f32 0.0, %v4942
    %v4944 = vpop.f32.mrf.mxu0
    %v4945 = vpop.f32.mrf.mxu0
    %v4946 = vadd.f32 0.0, %v4945
    %v4947 = vpop.f32.mrf.mxu0
    %4948 = vmatprep.mubr.bf16.mxu0 0
    %4949 = vmatmul.mubr.bf16.gmra.mxu0 %v4900
    %v4950 = vpop.f32.mrf.mxu0
    %v4951 = vadd.f32 0.0, %v4950
    %v4952 = vpop.f32.mrf.mxu0
    %v4953 = vpop.f32.mrf.mxu0
    %v4954 = vpop.f32.mrf.mxu0
    %4955 = vdwg.mxu0
    %v4956 = vmul.f32 %v4943, 0.17677669
    %v4957 = vmul.f32 %v4946, 0.17677669
    %v4958 = vmul.f32 %v4951, 0.17677669
    %v4959 = vadd.f32 %v4956, %v361
    %v4960 = vadd.f32 %v4957, %v361
    %v4961 = vadd.f32 %v4958, %v361
    %v4962 = vsel %vm850, %v4959, -inf
    %4963 = vmax.xlane.f32.xlu0 %v4962
    %v4964 = vpop.xlane.xlu0 %4963
    %v4965 = vsel %vm850, %v4960, -inf
    %4966 = vmax.xlane.f32.xlu0 %v4965
    %v4967 = vpop.xlane.xlu0 %4966
    %v4968 = vsel %vm850, %v4961, -inf
    %4969 = vmax.xlane.f32.xlu0 %v4968
    %v4970 = vpop.xlane.xlu0 %4969
    %v4971 = vsub.f32 %v4959, %v4964
    %v4972 = vsub.f32 %v4960, %v4967
    %v4973 = vsub.f32 %v4961, %v4970
    %v4974 = vmul.f32 %v4971, 1.442695
    %v4975 = vpow.pop %v4974
    %v4976 = vmul.f32 %v4972, 1.442695
    %v4977 = vpow.pop %v4976
    %v4978 = vmul.f32 %v4973, 1.442695
    %v4979 = vpow.pop %v4978
    %v4980 = vsel %vm850, %v4975, 0.0
    %4981 = vadd.xlane.f32.xlu0 %v4980
    %v4982 = vpop.xlane.xlu0 %4981
    %v4983 = vsel %vm850, %v4977, 0.0
    %4984 = vadd.xlane.f32.xlu0 %v4983
    %v4985 = vpop.xlane.xlu0 %4984
    %v4986 = vsel %vm850, %v4979, 0.0
    %4987 = vadd.xlane.f32.xlu0 %v4986
    %v4988 = vpop.xlane.xlu0 %4987
    %v4989 = vrcp.pop %v4982
    %v4990 = vrcp.pop %v4985
    %v4991 = vrcp.pop %v4988
    %v4992 = vmul.f32 %v4975, %v4989
    %v4993 = vmul.f32 %v4977, %v4990
    %v4994 = vmul.f32 %v4979, %v4991
    %v4995 = vpack.c.bf16 %v4993, %v4992
    %v4996 = vpack.c.bf16 %v4994, %v4994
    %4997 = vrot.lane.b32.xlu0 %v4173, 32
    %v4998 = vpop.permute.xlu0 %4997
    %4999 = vrot.lane.b32.xlu0 %v4174, 32
    %v5000 = vpop.permute.xlu0 %4999
    %v5003 = vsel %vm850, %v4995, 0
    %v5006 = vsel %vm850, %v4996, 0
    %v5009 = vsel %vm892, %v5000, 0
    %5011 = vmatprep.subr.bf16.mxu0 0
    %5012 = vmatpush1.bf16.msra.mxu0 0
    %5013 = vmatprep.subr.bf16.mxu0 0
    %5014 = vmatpush1.bf16.msra.mxu0 0
    %5015 = vmatprep.subr.bf16.mxu0 0
    %5016 = vmatpush1.bf16.msra.mxu0 0
    %5017 = vmatprep.subr.bf16.mxu0 0
    %5018 = vmatpush1.bf16.msra.mxu0 0
    %5019 = vmatprep.subr.bf16.mxu0 0
    %5020 = vmatpush1.bf16.msra.mxu0 0
    %5021 = vmatprep.subr.bf16.mxu0 0
    %5022 = vmatpush1.bf16.msra.mxu0 0
    %5023 = vmatprep.subr.bf16.mxu0 0
    %5024 = vmatpush1.bf16.msra.mxu0 %v5009
    %5025 = vmatprep.subr.bf16.mxu0 0
    %5026 = vmatpush1.bf16.msra.mxu0 %v4998
    %5027 = vmatprep.subr.bf16.mxu0 0
    %5028 = vmatpush2.bf16.msra.mxu0 0
    %5029 = vmatprep.subr.bf16.mxu0 0
    %5030 = vmatpush2.bf16.msra.mxu0 0
    %5031 = vmatprep.subr.bf16.mxu0 0
    %5032 = vmatpush2.bf16.msra.mxu0 0
    %5033 = vmatprep.subr.bf16.mxu0 0
    %5034 = vmatpush2.bf16.msra.mxu0 0
    %5035 = vmatprep.subr.bf16.mxu0 0
    %5036 = vmatpush2.bf16.msra.mxu0 0
    %5037 = vmatprep.subr.bf16.mxu0 0
    %5038 = vmatpush2.bf16.msra.mxu0 0
    %5039 = vmatprep.subr.bf16.mxu0 0
    %5040 = vmatpush2.bf16.msra.mxu0 0
    %5041 = vmatprep.subr.bf16.mxu0 0
    %5042 = vmatpush2.bf16.msra.mxu0 0
    %5043 = vmatprep.mubr.bf16.mxu0 0
    %5044 = vmatmul.mubr.bf16.gmra.mxu0 %v5003
    %v5045 = vpop.f32.mrf.mxu0
    %v5046 = vadd.f32 0.0, %v5045
    %v5047 = vpop.f32.mrf.mxu0
    %v5048 = vpop.f32.mrf.mxu0
    %v5049 = vadd.f32 0.0, %v5048
    %v5050 = vpop.f32.mrf.mxu0
    %5051 = vmatprep.mubr.bf16.mxu0 0
    %5052 = vmatmul.mubr.bf16.gmra.mxu0 %v5006
    %v5053 = vpop.f32.mrf.mxu0
    %v5054 = vadd.f32 0.0, %v5053
    %v5055 = vpop.f32.mrf.mxu0
    %v5056 = vpop.f32.mrf.mxu0
    %v5057 = vpop.f32.mrf.mxu0
    %5058 = vdwg.mxu0
    %v5059 = vpack.c.bf16 %v5049, %v5046
    %v5060 = vpack.c.bf16 %v5054, %v5054
    %v5065 = vunpack.c.l.b16 %v4165
    %v5066 = vunpack.c.l.b16 %v4166
    %v5067 = vunpack.c.l.b16 %v4167
    %v5068 = vunpack.c.l.b16 %v4168
    %v5069 = vpack.c.b16 %v5066, %v5065
    %v5070 = vpack.c.b16 %v5068, %v5067
    %v5074 = vsel %vm783, %v5059, 0
    %v5077 = vsel %vm783, %v5060, 0
    %5079 = vmatprep.subr.bf16.mxu0 0
    %5080 = vmatpush1.bf16.msra.mxu0 0
    %5081 = vmatprep.subr.bf16.mxu0 0
    %5082 = vmatpush1.bf16.msra.mxu0 0
    %5083 = vmatprep.subr.bf16.mxu0 0
    %5084 = vmatpush1.bf16.msra.mxu0 0
    %5085 = vmatprep.subr.bf16.mxu0 0
    %5086 = vmatpush1.bf16.msra.mxu0 0
    %5087 = vmatprep.subr.bf16.mxu0 0
    %5088 = vmatpush1.bf16.msra.mxu0 0
    %5089 = vmatprep.subr.bf16.mxu0 0
    %5090 = vmatpush1.bf16.msra.mxu0 0
    %5091 = vmatprep.subr.bf16.mxu0 0
    %5092 = vmatpush1.bf16.msra.mxu0 %v5070
    %5093 = vmatprep.subr.bf16.mxu0 0
    %5094 = vmatpush1.bf16.msra.mxu0 %v5069
    %5095 = vmatprep.subr.bf16.mxu0 0
    %5096 = vmatpush2.bf16.msra.mxu0 0
    %5097 = vmatprep.subr.bf16.mxu0 0
    %5098 = vmatpush2.bf16.msra.mxu0 0
    %5099 = vmatprep.subr.bf16.mxu0 0
    %5100 = vmatpush2.bf16.msra.mxu0 0
    %5101 = vmatprep.subr.bf16.mxu0 0
    %5102 = vmatpush2.bf16.msra.mxu0 0
    %5103 = vmatprep.subr.bf16.mxu0 0
    %5104 = vmatpush2.bf16.msra.mxu0 0
    %5105 = vmatprep.subr.bf16.mxu0 0
    %5106 = vmatpush2.bf16.msra.mxu0 0
    %5107 = vmatprep.subr.bf16.mxu0 0
    %5108 = vmatpush2.bf16.msra.mxu0 0
    %5109 = vmatprep.subr.bf16.mxu0 0
    %5110 = vmatpush2.bf16.msra.mxu0 0
    %5111 = vmatprep.mubr.bf16.mxu0 0
    %5112 = vmatmul.mubr.bf16.gmra.mxu0 %v5074
    %v5113 = vpop.f32.mrf.mxu0
    %v5114 = vadd.f32 0.0, %v5113
    %v5115 = vpop.f32.mrf.mxu0
    %v5116 = vpop.f32.mrf.mxu0
    %v5117 = vadd.f32 0.0, %v5116
    %v5118 = vpop.f32.mrf.mxu0
    %5119 = vmatprep.mubr.bf16.mxu0 0
    %5120 = vmatmul.mubr.bf16.gmra.mxu0 %v5077
    %v5121 = vpop.f32.mrf.mxu0
    %v5122 = vadd.f32 0.0, %v5121
    %v5123 = vpop.f32.mrf.mxu0
    %v5124 = vpop.f32.mrf.mxu0
    %v5125 = vpop.f32.mrf.mxu0
    %5126 = vdwg.mxu0
    %v5127 = vadd.f32 %v4885, %v5114
    %v5128 = vadd.f32 %v4886, %v5117
    %v5129 = vadd.f32 %v4887, %v5122
    %v5130 = vadd.f32 %v3750, %v5127
    %v5131 = vadd.f32 %v3751, %v5128
    %v5132 = vadd.f32 %v3752, %v5129
    %s5133 = scalar_lea.vmem %s10, 1
    %v5134 = vld [vmem:[%s5133] sm:$0x1]
    %v5136 = vlaneseq
    %v5137 = vshrl.u32 %v5136, 7
    %v5138 = vsub.s32 0, %v5137
    %v5139 = vrot.slane %v5134, %v5138
    %v5141 = vadd.f32 %v5130, %v5139
    %v5142 = vadd.f32 %v5131, %v5139
    %v5143 = vadd.f32 %v5132, %v5139
    %5144 = vst [vmem:[#allocation2] sm:$0xff] %v5141
    %5145 = vst [vmem:[#allocation2 + $0x8] sm:$0xff] %v5142
    %5146 = vst [vmem:[#allocation2 + $0x10] sm:$0xff] %v5143
    %v5147 = vpack.c.bf16 %v4087, %v4081
    %v5148 = vpack.c.bf16 %v4091, %v4091
    %v5149 = vpack.c.bf16 %v4089, %v4083
    %v5150 = vpack.c.bf16 %v4093, %v4093
    %v5151 = vpack.c.bf16 %v4146, %v4141
    %v5152 = vpack.c.bf16 %v4149, %v4149
    %v5154 = vsel %vm783, %v5147, 0
    %v5157 = vsel %vm783, %v5148, 0
    %v5160 = vsel %vm783, %v5149, 0
    %v5163 = vsel %vm783, %v5150, 0
    %5165 = vmatprep.subr.bf16.mxu0 0
    %5166 = vmatpush1.bf16.xpose.msra.mxu0 0
    %5167 = vmatprep.subr.bf16.mxu0 0
    %5168 = vmatpush1.bf16.xpose.msra.mxu0 0
    %5169 = vmatprep.subr.bf16.mxu0 0
    %5170 = vmatpush1.bf16.xpose.msra.mxu0 0
    %5171 = vmatprep.subr.bf16.mxu0 0
    %5172 = vmatpush1.bf16.xpose.msra.mxu0 0
    %5173 = vmatprep.subr.bf16.mxu0 0
    %5174 = vmatpush1.bf16.xpose.msra.mxu0 0
    %5175 = vmatprep.subr.bf16.mxu0 0
    %5176 = vmatpush1.bf16.xpose.msra.mxu0 0
    %5177 = vmatprep.subr.bf16.mxu0 0
    %5178 = vmatpush1.bf16.xpose.msra.mxu0 %v5163
    %5179 = vmatprep.subr.bf16.mxu0 0
    %5180 = vmatpush1.bf16.xpose.msra.mxu0 %v5160
    %5181 = vmatprep.subr.bf16.mxu0 0
    %5182 = vmatpush2.bf16.xpose.msra.mxu0 0
    %5183 = vmatprep.subr.bf16.mxu0 0
    %5184 = vmatpush2.bf16.xpose.msra.mxu0 0
    %5185 = vmatprep.subr.bf16.mxu0 0
    %5186 = vmatpush2.bf16.xpose.msra.mxu0 0
    %5187 = vmatprep.subr.bf16.mxu0 0
    %5188 = vmatpush2.bf16.xpose.msra.mxu0 0
    %5189 = vmatprep.subr.bf16.mxu0 0
    %5190 = vmatpush2.bf16.xpose.msra.mxu0 0
    %5191 = vmatprep.subr.bf16.mxu0 0
    %5192 = vmatpush2.bf16.xpose.msra.mxu0 0
    %5193 = vmatprep.subr.bf16.mxu0 0
    %5194 = vmatpush2.bf16.xpose.msra.mxu0 0
    %5195 = vmatprep.subr.bf16.mxu0 0
    %5196 = vmatpush2.bf16.xpose.msra.mxu0 0
    %5197 = vmatprep.mubr.bf16.mxu0 0
    %5198 = vmatmul.mubr.bf16.gmra.mxu0 %v5154
    %v5199 = vpop.f32.mrf.mxu0
    %v5200 = vadd.f32 0.0, %v5199
    %v5201 = vpop.f32.mrf.mxu0
    %v5202 = vpop.f32.mrf.mxu0
    %v5203 = vadd.f32 0.0, %v5202
    %v5204 = vpop.f32.mrf.mxu0
    %5205 = vmatprep.mubr.bf16.mxu0 0
    %5206 = vmatmul.mubr.bf16.gmra.mxu0 %v5157
    %v5207 = vpop.f32.mrf.mxu0
    %v5208 = vadd.f32 0.0, %v5207
    %v5209 = vpop.f32.mrf.mxu0
    %v5210 = vpop.f32.mrf.mxu0
    %v5211 = vpop.f32.mrf.mxu0
    %5212 = vdwg.mxu0
    %v5213 = vmul.f32 %v5200, 0.17677669
    %v5214 = vmul.f32 %v5203, 0.17677669
    %v5215 = vmul.f32 %v5208, 0.17677669
    %v5216 = vadd.f32 %v5213, %v361
    %v5217 = vadd.f32 %v5214, %v361
    %v5218 = vadd.f32 %v5215, %v361
    %v5219 = vsel %vm850, %v5216, -inf
    %5220 = vmax.xlane.f32.xlu0 %v5219
    %v5221 = vpop.xlane.xlu0 %5220
    %v5222 = vsel %vm850, %v5217, -inf
    %5223 = vmax.xlane.f32.xlu0 %v5222
    %v5224 = vpop.xlane.xlu0 %5223
    %v5225 = vsel %vm850, %v5218, -inf
    %5226 = vmax.xlane.f32.xlu0 %v5225
    %v5227 = vpop.xlane.xlu0 %5226
    %v5228 = vsub.f32 %v5216, %v5221
    %v5229 = vsub.f32 %v5217, %v5224
    %v5230 = vsub.f32 %v5218, %v5227
    %v5231 = vmul.f32 %v5228, 1.442695
    %v5232 = vpow.pop %v5231
    %v5233 = vmul.f32 %v5229, 1.442695
    %v5234 = vpow.pop %v5233
    %v5235 = vmul.f32 %v5230, 1.442695
    %v5236 = vpow.pop %v5235
    %v5237 = vsel %vm850, %v5232, 0.0
    %5238 = vadd.xlane.f32.xlu0 %v5237
    %v5239 = vpop.xlane.xlu0 %5238
    %v5240 = vsel %vm850, %v5234, 0.0
    %5241 = vadd.xlane.f32.xlu0 %v5240
    %v5242 = vpop.xlane.xlu0 %5241
    %v5243 = vsel %vm850, %v5236, 0.0
    %5244 = vadd.xlane.f32.xlu0 %v5243
    %v5245 = vpop.xlane.xlu0 %5244
    %v5246 = vrcp.pop %v5239
    %v5247 = vrcp.pop %v5242
    %v5248 = vrcp.pop %v5245
    %v5249 = vmul.f32 %v5232, %v5246
    %v5250 = vmul.f32 %v5234, %v5247
    %v5251 = vmul.f32 %v5236, %v5248
    %v5252 = vpack.c.bf16 %v5250, %v5249
    %v5253 = vpack.c.bf16 %v5251, %v5251
    %v5255 = vsel %vm850, %v5252, 0
    %v5258 = vsel %vm850, %v5253, 0
    %v5261 = vsel %vm892, %v5152, 0
    %5263 = vmatprep.subr.bf16.mxu0 0
    %5264 = vmatpush1.bf16.msra.mxu0 0
    %5265 = vmatprep.subr.bf16.mxu0 0
    %5266 = vmatpush1.bf16.msra.mxu0 0
    %5267 = vmatprep.subr.bf16.mxu0 0
    %5268 = vmatpush1.bf16.msra.mxu0 0
    %5269 = vmatprep.subr.bf16.mxu0 0
    %5270 = vmatpush1.bf16.msra.mxu0 0
    %5271 = vmatprep.subr.bf16.mxu0 0
    %5272 = vmatpush1.bf16.msra.mxu0 0
    %5273 = vmatprep.subr.bf16.mxu0 0
    %5274 = vmatpush1.bf16.msra.mxu0 0
    %5275 = vmatprep.subr.bf16.mxu0 0
    %5276 = vmatpush1.bf16.msra.mxu0 %v5261
    %5277 = vmatprep.subr.bf16.mxu0 0
    %5278 = vmatpush1.bf16.msra.mxu0 %v5151
    %5279 = vmatprep.subr.bf16.mxu0 0
    %5280 = vmatpush2.bf16.msra.mxu0 0
    %5281 = vmatprep.subr.bf16.mxu0 0
    %5282 = vmatpush2.bf16.msra.mxu0 0
    %5283 = vmatprep.subr.bf16.mxu0 0
    %5284 = vmatpush2.bf16.msra.mxu0 0
    %5285 = vmatprep.subr.bf16.mxu0 0
    %5286 = vmatpush2.bf16.msra.mxu0 0
    %5287 = vmatprep.subr.bf16.mxu0 0
    %5288 = vmatpush2.bf16.msra.mxu0 0
    %5289 = vmatprep.subr.bf16.mxu0 0
    %5290 = vmatpush2.bf16.msra.mxu0 0
    %5291 = vmatprep.subr.bf16.mxu0 0
    %5292 = vmatpush2.bf16.msra.mxu0 0
    %5293 = vmatprep.subr.bf16.mxu0 0
    %5294 = vmatpush2.bf16.msra.mxu0 0
    %5295 = vmatprep.mubr.bf16.mxu0 0
    %5296 = vmatmul.mubr.bf16.gmra.mxu0 %v5255
    %v5297 = vpop.f32.mrf.mxu0
    %v5298 = vadd.f32 0.0, %v5297
    %v5299 = vpop.f32.mrf.mxu0
    %v5300 = vpop.f32.mrf.mxu0
    %v5301 = vadd.f32 0.0, %v5300
    %v5302 = vpop.f32.mrf.mxu0
    %5303 = vmatprep.mubr.bf16.mxu0 0
    %5304 = vmatmul.mubr.bf16.gmra.mxu0 %v5258
    %v5305 = vpop.f32.mrf.mxu0
    %v5306 = vadd.f32 0.0, %v5305
    %v5307 = vpop.f32.mrf.mxu0
    %v5308 = vpop.f32.mrf.mxu0
    %v5309 = vpop.f32.mrf.mxu0
    %5310 = vdwg.mxu0
    %v5311 = vpack.c.bf16 %v5301, %v5298
    %v5312 = vpack.c.bf16 %v5306, %v5306
    %5315 = vrot.lane.b32.xlu0 %v5147, 96
    %v5316 = vpop.permute.xlu0 %5315
    %5317 = vrot.lane.b32.xlu0 %v5148, 96
    %v5318 = vpop.permute.xlu0 %5317
    %5321 = vrot.lane.b32.xlu0 %v5149, 96
    %v5322 = vpop.permute.xlu0 %5321
    %5323 = vrot.lane.b32.xlu0 %v5150, 96
    %v5324 = vpop.permute.xlu0 %5323
    %v5326 = vsel %vm783, %v5316, 0
    %v5329 = vsel %vm783, %v5318, 0
    %v5332 = vsel %vm783, %v5322, 0
    %v5335 = vsel %vm783, %v5324, 0
    %5337 = vmatprep.subr.bf16.mxu0 0
    %5338 = vmatpush1.bf16.xpose.msra.mxu0 0
    %5339 = vmatprep.subr.bf16.mxu0 0
    %5340 = vmatpush1.bf16.xpose.msra.mxu0 0
    %5341 = vmatprep.subr.bf16.mxu0 0
    %5342 = vmatpush1.bf16.xpose.msra.mxu0 0
    %5343 = vmatprep.subr.bf16.mxu0 0
    %5344 = vmatpush1.bf16.xpose.msra.mxu0 0
    %5345 = vmatprep.subr.bf16.mxu0 0
    %5346 = vmatpush1.bf16.xpose.msra.mxu0 0
    %5347 = vmatprep.subr.bf16.mxu0 0
    %5348 = vmatpush1.bf16.xpose.msra.mxu0 0
    %5349 = vmatprep.subr.bf16.mxu0 0
    %5350 = vmatpush1.bf16.xpose.msra.mxu0 %v5335
    %5351 = vmatprep.subr.bf16.mxu0 0
    %5352 = vmatpush1.bf16.xpose.msra.mxu0 %v5332
    %5353 = vmatprep.subr.bf16.mxu0 0
    %5354 = vmatpush2.bf16.xpose.msra.mxu0 0
    %5355 = vmatprep.subr.bf16.mxu0 0
    %5356 = vmatpush2.bf16.xpose.msra.mxu0 0
    %5357 = vmatprep.subr.bf16.mxu0 0
    %5358 = vmatpush2.bf16.xpose.msra.mxu0 0
    %5359 = vmatprep.subr.bf16.mxu0 0
    %5360 = vmatpush2.bf16.xpose.msra.mxu0 0
    %5361 = vmatprep.subr.bf16.mxu0 0
    %5362 = vmatpush2.bf16.xpose.msra.mxu0 0
    %5363 = vmatprep.subr.bf16.mxu0 0
    %5364 = vmatpush2.bf16.xpose.msra.mxu0 0
    %5365 = vmatprep.subr.bf16.mxu0 0
    %5366 = vmatpush2.bf16.xpose.msra.mxu0 0
    %5367 = vmatprep.subr.bf16.mxu0 0
    %5368 = vmatpush2.bf16.xpose.msra.mxu0 0
    %5369 = vmatprep.mubr.bf16.mxu0 0
    %5370 = vmatmul.mubr.bf16.gmra.mxu0 %v5326
    %v5371 = vpop.f32.mrf.mxu0
    %v5372 = vadd.f32 0.0, %v5371
    %v5373 = vpop.f32.mrf.mxu0
    %v5374 = vpop.f32.mrf.mxu0
    %v5375 = vadd.f32 0.0, %v5374
    %v5376 = vpop.f32.mrf.mxu0
    %5377 = vmatprep.mubr.bf16.mxu0 0
    %5378 = vmatmul.mubr.bf16.gmra.mxu0 %v5329
    %v5379 = vpop.f32.mrf.mxu0
    %v5380 = vadd.f32 0.0, %v5379
    %v5381 = vpop.f32.mrf.mxu0
    %v5382 = vpop.f32.mrf.mxu0
    %v5383 = vpop.f32.mrf.mxu0
    %5384 = vdwg.mxu0
    %v5385 = vmul.f32 %v5372, 0.17677669
    %v5386 = vmul.f32 %v5375, 0.17677669
    %v5387 = vmul.f32 %v5380, 0.17677669
    %v5388 = vadd.f32 %v5385, %v361
    %v5389 = vadd.f32 %v5386, %v361
    %v5390 = vadd.f32 %v5387, %v361
    %v5391 = vsel %vm850, %v5388, -inf
    %5392 = vmax.xlane.f32.xlu0 %v5391
    %v5393 = vpop.xlane.xlu0 %5392
    %v5394 = vsel %vm850, %v5389, -inf
    %5395 = vmax.xlane.f32.xlu0 %v5394
    %v5396 = vpop.xlane.xlu0 %5395
    %v5397 = vsel %vm850, %v5390, -inf
    %5398 = vmax.xlane.f32.xlu0 %v5397
    %v5399 = vpop.xlane.xlu0 %5398
    %v5400 = vsub.f32 %v5388, %v5393
    %v5401 = vsub.f32 %v5389, %v5396
    %v5402 = vsub.f32 %v5390, %v5399
    %v5403 = vmul.f32 %v5400, 1.442695
    %v5404 = vpow.pop %v5403
    %v5405 = vmul.f32 %v5401, 1.442695
    %v5406 = vpow.pop %v5405
    %v5407 = vmul.f32 %v5402, 1.442695
    %v5408 = vpow.pop %v5407
    %v5409 = vsel %vm850, %v5404, 0.0
    %5410 = vadd.xlane.f32.xlu0 %v5409
    %v5411 = vpop.xlane.xlu0 %5410
    %v5412 = vsel %vm850, %v5406, 0.0
    %5413 = vadd.xlane.f32.xlu0 %v5412
    %v5414 = vpop.xlane.xlu0 %5413
    %v5415 = vsel %vm850, %v5408, 0.0
    %5416 = vadd.xlane.f32.xlu0 %v5415
    %v5417 = vpop.xlane.xlu0 %5416
    %v5418 = vrcp.pop %v5411
    %v5419 = vrcp.pop %v5414
    %v5420 = vrcp.pop %v5417
    %v5421 = vmul.f32 %v5404, %v5418
    %v5422 = vmul.f32 %v5406, %v5419
    %v5423 = vmul.f32 %v5408, %v5420
    %v5424 = vpack.c.bf16 %v5422, %v5421
    %v5425 = vpack.c.bf16 %v5423, %v5423
    %5428 = vrot.lane.b32.xlu0 %v5151, 96
    %v5429 = vpop.permute.xlu0 %5428
    %5430 = vrot.lane.b32.xlu0 %v5152, 96
    %v5431 = vpop.permute.xlu0 %5430
    %v5434 = vsel %vm850, %v5424, 0
    %v5437 = vsel %vm850, %v5425, 0
    %v5440 = vsel %vm892, %v5431, 0
    %5442 = vmatprep.subr.bf16.mxu0 0
    %5443 = vmatpush1.bf16.msra.mxu0 0
    %5444 = vmatprep.subr.bf16.mxu0 0
    %5445 = vmatpush1.bf16.msra.mxu0 0
    %5446 = vmatprep.subr.bf16.mxu0 0
    %5447 = vmatpush1.bf16.msra.mxu0 0
    %5448 = vmatprep.subr.bf16.mxu0 0
    %5449 = vmatpush1.bf16.msra.mxu0 0
    %5450 = vmatprep.subr.bf16.mxu0 0
    %5451 = vmatpush1.bf16.msra.mxu0 0
    %5452 = vmatprep.subr.bf16.mxu0 0
    %5453 = vmatpush1.bf16.msra.mxu0 0
    %5454 = vmatprep.subr.bf16.mxu0 0
    %5455 = vmatpush1.bf16.msra.mxu0 %v5440
    %5456 = vmatprep.subr.bf16.mxu0 0
    %5457 = vmatpush1.bf16.msra.mxu0 %v5429
    %5458 = vmatprep.subr.bf16.mxu0 0
    %5459 = vmatpush2.bf16.msra.mxu0 0
    %5460 = vmatprep.subr.bf16.mxu0 0
    %5461 = vmatpush2.bf16.msra.mxu0 0
    %5462 = vmatprep.subr.bf16.mxu0 0
    %5463 = vmatpush2.bf16.msra.mxu0 0
    %5464 = vmatprep.subr.bf16.mxu0 0
    %5465 = vmatpush2.bf16.msra.mxu0 0
    %5466 = vmatprep.subr.bf16.mxu0 0
    %5467 = vmatpush2.bf16.msra.mxu0 0
    %5468 = vmatprep.subr.bf16.mxu0 0
    %5469 = vmatpush2.bf16.msra.mxu0 0
    %5470 = vmatprep.subr.bf16.mxu0 0
    %5471 = vmatpush2.bf16.msra.mxu0 0
    %5472 = vmatprep.subr.bf16.mxu0 0
    %5473 = vmatpush2.bf16.msra.mxu0 0
    %5474 = vmatprep.mubr.bf16.mxu0 0
    %5475 = vmatmul.mubr.bf16.gmra.mxu0 %v5434
    %v5476 = vpop.f32.mrf.mxu0
    %v5477 = vadd.f32 0.0, %v5476
    %v5478 = vpop.f32.mrf.mxu0
    %v5479 = vpop.f32.mrf.mxu0
    %v5480 = vadd.f32 0.0, %v5479
    %v5481 = vpop.f32.mrf.mxu0
    %5482 = vmatprep.mubr.bf16.mxu0 0
    %5483 = vmatmul.mubr.bf16.gmra.mxu0 %v5437
    %v5484 = vpop.f32.mrf.mxu0
    %v5485 = vadd.f32 0.0, %v5484
    %v5486 = vpop.f32.mrf.mxu0
    %v5487 = vpop.f32.mrf.mxu0
    %v5488 = vpop.f32.mrf.mxu0
    %5489 = vdwg.mxu0
    %v5490 = vpack.c.bf16 %v5480, %v5477
    %v5491 = vpack.c.bf16 %v5485, %v5485
    %v5493 = vsel %vm783, %v5490, 0
    %v5496 = vsel %vm783, %v5491, 0
    %5498 = vmatprep.subr.bf16.mxu0 0
    %5499 = vmatpush1.bf16.msra.mxu0 0
    %5500 = vmatprep.subr.bf16.mxu0 0
    %5501 = vmatpush1.bf16.msra.mxu0 0
    %5502 = vmatprep.subr.bf16.mxu0 0
    %5503 = vmatpush1.bf16.msra.mxu0 0
    %5504 = vmatprep.subr.bf16.mxu0 0
    %5505 = vmatpush1.bf16.msra.mxu0 0
    %5506 = vmatprep.subr.bf16.mxu0 0
    %5507 = vmatpush1.bf16.msra.mxu0 0
    %5508 = vmatprep.subr.bf16.mxu0 0
    %5509 = vmatpush1.bf16.msra.mxu0 0
    %5510 = vmatprep.subr.bf16.mxu0 0
    %5511 = vmatpush1.bf16.msra.mxu0 %v4523
    %5512 = vmatprep.subr.bf16.mxu0 0
    %5513 = vmatpush1.bf16.msra.mxu0 %v4522
    %5514 = vmatprep.subr.bf16.mxu0 0
    %5515 = vmatpush2.bf16.msra.mxu0 0
    %5516 = vmatprep.subr.bf16.mxu0 0
    %5517 = vmatpush2.bf16.msra.mxu0 0
    %5518 = vmatprep.subr.bf16.mxu0 0
    %5519 = vmatpush2.bf16.msra.mxu0 0
    %5520 = vmatprep.subr.bf16.mxu0 0
    %5521 = vmatpush2.bf16.msra.mxu0 0
    %5522 = vmatprep.subr.bf16.mxu0 0
    %5523 = vmatpush2.bf16.msra.mxu0 0
    %5524 = vmatprep.subr.bf16.mxu0 0
    %5525 = vmatpush2.bf16.msra.mxu0 0
    %5526 = vmatprep.subr.bf16.mxu0 0
    %5527 = vmatpush2.bf16.msra.mxu0 0
    %5528 = vmatprep.subr.bf16.mxu0 0
    %5529 = vmatpush2.bf16.msra.mxu0 0
    %5530 = vmatprep.mubr.bf16.mxu0 0
    %5531 = vmatmul.mubr.bf16.gmra.mxu0 %v5493
    %v5532 = vpop.f32.mrf.mxu0
    %v5533 = vadd.f32 0.0, %v5532
    %v5534 = vpop.f32.mrf.mxu0
    %v5535 = vpop.f32.mrf.mxu0
    %v5536 = vadd.f32 0.0, %v5535
    %v5537 = vpop.f32.mrf.mxu0
    %5538 = vmatprep.mubr.bf16.mxu0 0
    %5539 = vmatmul.mubr.bf16.gmra.mxu0 %v5496
    %v5540 = vpop.f32.mrf.mxu0
    %v5541 = vadd.f32 0.0, %v5540
    %v5542 = vpop.f32.mrf.mxu0
    %v5543 = vpop.f32.mrf.mxu0
    %v5544 = vpop.f32.mrf.mxu0
    %5545 = vdwg.mxu0
    %v5547 = vsel %vm783, %v5311, 0
    %v5550 = vsel %vm783, %v5312, 0
    %5552 = vmatprep.subr.bf16.mxu0 0
    %5553 = vmatpush1.bf16.msra.mxu0 0
    %5554 = vmatprep.subr.bf16.mxu0 0
    %5555 = vmatpush1.bf16.msra.mxu0 0
    %5556 = vmatprep.subr.bf16.mxu0 0
    %5557 = vmatpush1.bf16.msra.mxu0 0
    %5558 = vmatprep.subr.bf16.mxu0 0
    %5559 = vmatpush1.bf16.msra.mxu0 0
    %5560 = vmatprep.subr.bf16.mxu0 0
    %5561 = vmatpush1.bf16.msra.mxu0 0
    %5562 = vmatprep.subr.bf16.mxu0 0
    %5563 = vmatpush1.bf16.msra.mxu0 0
    %5564 = vmatprep.subr.bf16.mxu0 0
    %5565 = vmatpush1.bf16.msra.mxu0 %v4589
    %5566 = vmatprep.subr.bf16.mxu0 0
    %5567 = vmatpush1.bf16.msra.mxu0 %v4588
    %5568 = vmatprep.subr.bf16.mxu0 0
    %5569 = vmatpush2.bf16.msra.mxu0 0
    %5570 = vmatprep.subr.bf16.mxu0 0
    %5571 = vmatpush2.bf16.msra.mxu0 0
    %5572 = vmatprep.subr.bf16.mxu0 0
    %5573 = vmatpush2.bf16.msra.mxu0 0
    %5574 = vmatprep.subr.bf16.mxu0 0
    %5575 = vmatpush2.bf16.msra.mxu0 0
    %5576 = vmatprep.subr.bf16.mxu0 0
    %5577 = vmatpush2.bf16.msra.mxu0 0
    %5578 = vmatprep.subr.bf16.mxu0 0
    %5579 = vmatpush2.bf16.msra.mxu0 0
    %5580 = vmatprep.subr.bf16.mxu0 0
    %5581 = vmatpush2.bf16.msra.mxu0 0
    %5582 = vmatprep.subr.bf16.mxu0 0
    %5583 = vmatpush2.bf16.msra.mxu0 0
    %5584 = vmatprep.mubr.bf16.mxu0 0
    %5585 = vmatmul.mubr.bf16.gmra.mxu0 %v5547
    %v5586 = vpop.f32.mrf.mxu0
    %v5587 = vadd.f32 %v5533, %v5586
    %v5588 = vpop.f32.mrf.mxu0
    %v5589 = vpop.f32.mrf.mxu0
    %v5590 = vadd.f32 %v5536, %v5589
    %v5591 = vpop.f32.mrf.mxu0
    %5592 = vmatprep.mubr.bf16.mxu0 0
    %5593 = vmatmul.mubr.bf16.gmra.mxu0 %v5550
    %v5594 = vpop.f32.mrf.mxu0
    %v5595 = vadd.f32 %v5541, %v5594
    %v5596 = vpop.f32.mrf.mxu0
    %v5597 = vpop.f32.mrf.mxu0
    %v5598 = vpop.f32.mrf.mxu0
    %5599 = vdwg.mxu0
    %5600 = vrot.lane.b32.xlu0 %v5147, 64
    %v5601 = vpop.permute.xlu0 %5600
    %5602 = vrot.lane.b32.xlu0 %v5148, 64
    %v5603 = vpop.permute.xlu0 %5602
    %5604 = vrot.lane.b32.xlu0 %v5149, 64
    %v5605 = vpop.permute.xlu0 %5604
    %5606 = vrot.lane.b32.xlu0 %v5150, 64
    %v5607 = vpop.permute.xlu0 %5606
    %v5609 = vsel %vm783, %v5601, 0
    %v5612 = vsel %vm783, %v5603, 0
    %v5615 = vsel %vm783, %v5605, 0
    %v5618 = vsel %vm783, %v5607, 0
    %5620 = vmatprep.subr.bf16.mxu0 0
    %5621 = vmatpush1.bf16.xpose.msra.mxu0 0
    %5622 = vmatprep.subr.bf16.mxu0 0
    %5623 = vmatpush1.bf16.xpose.msra.mxu0 0
    %5624 = vmatprep.subr.bf16.mxu0 0
    %5625 = vmatpush1.bf16.xpose.msra.mxu0 0
    %5626 = vmatprep.subr.bf16.mxu0 0
    %5627 = vmatpush1.bf16.xpose.msra.mxu0 0
    %5628 = vmatprep.subr.bf16.mxu0 0
    %5629 = vmatpush1.bf16.xpose.msra.mxu0 0
    %5630 = vmatprep.subr.bf16.mxu0 0
    %5631 = vmatpush1.bf16.xpose.msra.mxu0 0
    %5632 = vmatprep.subr.bf16.mxu0 0
    %5633 = vmatpush1.bf16.xpose.msra.mxu0 %v5618
    %5634 = vmatprep.subr.bf16.mxu0 0
    %5635 = vmatpush1.bf16.xpose.msra.mxu0 %v5615
    %5636 = vmatprep.subr.bf16.mxu0 0
    %5637 = vmatpush2.bf16.xpose.msra.mxu0 0
    %5638 = vmatprep.subr.bf16.mxu0 0
    %5639 = vmatpush2.bf16.xpose.msra.mxu0 0
    %5640 = vmatprep.subr.bf16.mxu0 0
    %5641 = vmatpush2.bf16.xpose.msra.mxu0 0
    %5642 = vmatprep.subr.bf16.mxu0 0
    %5643 = vmatpush2.bf16.xpose.msra.mxu0 0
    %5644 = vmatprep.subr.bf16.mxu0 0
    %5645 = vmatpush2.bf16.xpose.msra.mxu0 0
    %5646 = vmatprep.subr.bf16.mxu0 0
    %5647 = vmatpush2.bf16.xpose.msra.mxu0 0
    %5648 = vmatprep.subr.bf16.mxu0 0
    %5649 = vmatpush2.bf16.xpose.msra.mxu0 0
    %5650 = vmatprep.subr.bf16.mxu0 0
    %5651 = vmatpush2.bf16.xpose.msra.mxu0 0
    %5652 = vmatprep.mubr.bf16.mxu0 0
    %5653 = vmatmul.mubr.bf16.gmra.mxu0 %v5609
    %v5654 = vpop.f32.mrf.mxu0
    %v5655 = vadd.f32 0.0, %v5654
    %v5656 = vpop.f32.mrf.mxu0
    %v5657 = vpop.f32.mrf.mxu0
    %v5658 = vadd.f32 0.0, %v5657
    %v5659 = vpop.f32.mrf.mxu0
    %5660 = vmatprep.mubr.bf16.mxu0 0
    %5661 = vmatmul.mubr.bf16.gmra.mxu0 %v5612
    %v5662 = vpop.f32.mrf.mxu0
    %v5663 = vadd.f32 0.0, %v5662
    %v5664 = vpop.f32.mrf.mxu0
    %v5665 = vpop.f32.mrf.mxu0
    %v5666 = vpop.f32.mrf.mxu0
    %5667 = vdwg.mxu0
    %v5668 = vmul.f32 %v5655, 0.17677669
    %v5669 = vmul.f32 %v5658, 0.17677669
    %v5670 = vmul.f32 %v5663, 0.17677669
    %v5671 = vadd.f32 %v5668, %v361
    %v5672 = vadd.f32 %v5669, %v361
    %v5673 = vadd.f32 %v5670, %v361
    %v5674 = vsel %vm850, %v5671, -inf
    %5675 = vmax.xlane.f32.xlu0 %v5674
    %v5676 = vpop.xlane.xlu0 %5675
    %v5677 = vsel %vm850, %v5672, -inf
    %5678 = vmax.xlane.f32.xlu0 %v5677
    %v5679 = vpop.xlane.xlu0 %5678
    %v5680 = vsel %vm850, %v5673, -inf
    %5681 = vmax.xlane.f32.xlu0 %v5680
    %v5682 = vpop.xlane.xlu0 %5681
    %v5683 = vsub.f32 %v5671, %v5676
    %v5684 = vsub.f32 %v5672, %v5679
    %v5685 = vsub.f32 %v5673, %v5682
    %v5686 = vmul.f32 %v5683, 1.442695
    %v5687 = vpow.pop %v5686
    %v5688 = vmul.f32 %v5684, 1.442695
    %v5689 = vpow.pop %v5688
    %v5690 = vmul.f32 %v5685, 1.442695
    %v5691 = vpow.pop %v5690
    %v5692 = vsel %vm850, %v5687, 0.0
    %5693 = vadd.xlane.f32.xlu0 %v5692
    %v5694 = vpop.xlane.xlu0 %5693
    %v5695 = vsel %vm850, %v5689, 0.0
    %5696 = vadd.xlane.f32.xlu0 %v5695
    %v5697 = vpop.xlane.xlu0 %5696
    %v5698 = vsel %vm850, %v5691, 0.0
    %5699 = vadd.xlane.f32.xlu0 %v5698
    %v5700 = vpop.xlane.xlu0 %5699
    %v5701 = vrcp.pop %v5694
    %v5702 = vrcp.pop %v5697
    %v5703 = vrcp.pop %v5700
    %v5704 = vmul.f32 %v5687, %v5701
    %v5705 = vmul.f32 %v5689, %v5702
    %v5706 = vmul.f32 %v5691, %v5703
    %v5707 = vpack.c.bf16 %v5705, %v5704
    %v5708 = vpack.c.bf16 %v5706, %v5706
    %5709 = vrot.lane.b32.xlu0 %v5151, 64
    %v5710 = vpop.permute.xlu0 %5709
    %5711 = vrot.lane.b32.xlu0 %v5152, 64
    %v5712 = vpop.permute.xlu0 %5711
    %v5715 = vsel %vm850, %v5707, 0
    %v5718 = vsel %vm850, %v5708, 0
    %v5721 = vsel %vm892, %v5712, 0
    %5723 = vmatprep.subr.bf16.mxu0 0
    %5724 = vmatpush1.bf16.msra.mxu0 0
    %5725 = vmatprep.subr.bf16.mxu0 0
    %5726 = vmatpush1.bf16.msra.mxu0 0
    %5727 = vmatprep.subr.bf16.mxu0 0
    %5728 = vmatpush1.bf16.msra.mxu0 0
    %5729 = vmatprep.subr.bf16.mxu0 0
    %5730 = vmatpush1.bf16.msra.mxu0 0
    %5731 = vmatprep.subr.bf16.mxu0 0
    %5732 = vmatpush1.bf16.msra.mxu0 0
    %5733 = vmatprep.subr.bf16.mxu0 0
    %5734 = vmatpush1.bf16.msra.mxu0 0
    %5735 = vmatprep.subr.bf16.mxu0 0
    %5736 = vmatpush1.bf16.msra.mxu0 %v5721
    %5737 = vmatprep.subr.bf16.mxu0 0
    %5738 = vmatpush1.bf16.msra.mxu0 %v5710
    %5739 = vmatprep.subr.bf16.mxu0 0
    %5740 = vmatpush2.bf16.msra.mxu0 0
    %5741 = vmatprep.subr.bf16.mxu0 0
    %5742 = vmatpush2.bf16.msra.mxu0 0
    %5743 = vmatprep.subr.bf16.mxu0 0
    %5744 = vmatpush2.bf16.msra.mxu0 0
    %5745 = vmatprep.subr.bf16.mxu0 0
    %5746 = vmatpush2.bf16.msra.mxu0 0
    %5747 = vmatprep.subr.bf16.mxu0 0
    %5748 = vmatpush2.bf16.msra.mxu0 0
    %5749 = vmatprep.subr.bf16.mxu0 0
    %5750 = vmatpush2.bf16.msra.mxu0 0
    %5751 = vmatprep.subr.bf16.mxu0 0
    %5752 = vmatpush2.bf16.msra.mxu0 0
    %5753 = vmatprep.subr.bf16.mxu0 0
    %5754 = vmatpush2.bf16.msra.mxu0 0
    %5755 = vmatprep.mubr.bf16.mxu0 0
    %5756 = vmatmul.mubr.bf16.gmra.mxu0 %v5715
    %v5757 = vpop.f32.mrf.mxu0
    %v5758 = vadd.f32 0.0, %v5757
    %v5759 = vpop.f32.mrf.mxu0
    %v5760 = vpop.f32.mrf.mxu0
    %v5761 = vadd.f32 0.0, %v5760
    %v5762 = vpop.f32.mrf.mxu0
    %5763 = vmatprep.mubr.bf16.mxu0 0
    %5764 = vmatmul.mubr.bf16.gmra.mxu0 %v5718
    %v5765 = vpop.f32.mrf.mxu0
    %v5766 = vadd.f32 0.0, %v5765
    %v5767 = vpop.f32.mrf.mxu0
    %v5768 = vpop.f32.mrf.mxu0
    %v5769 = vpop.f32.mrf.mxu0
    %5770 = vdwg.mxu0
    %v5771 = vpack.c.bf16 %v5761, %v5758
    %v5772 = vpack.c.bf16 %v5766, %v5766
    %v5774 = vsel %vm783, %v5771, 0
    %v5777 = vsel %vm783, %v5772, 0
    %5779 = vmatprep.subr.bf16.mxu0 0
    %5780 = vmatpush1.bf16.msra.mxu0 0
    %5781 = vmatprep.subr.bf16.mxu0 0
    %5782 = vmatpush1.bf16.msra.mxu0 0
    %5783 = vmatprep.subr.bf16.mxu0 0
    %5784 = vmatpush1.bf16.msra.mxu0 0
    %5785 = vmatprep.subr.bf16.mxu0 0
    %5786 = vmatpush1.bf16.msra.mxu0 0
    %5787 = vmatprep.subr.bf16.mxu0 0
    %5788 = vmatpush1.bf16.msra.mxu0 0
    %5789 = vmatprep.subr.bf16.mxu0 0
    %5790 = vmatpush1.bf16.msra.mxu0 0
    %5791 = vmatprep.subr.bf16.mxu0 0
    %5792 = vmatpush1.bf16.msra.mxu0 %v4828
    %5793 = vmatprep.subr.bf16.mxu0 0
    %5794 = vmatpush1.bf16.msra.mxu0 %v4827
    %5795 = vmatprep.subr.bf16.mxu0 0
    %5796 = vmatpush2.bf16.msra.mxu0 0
    %5797 = vmatprep.subr.bf16.mxu0 0
    %5798 = vmatpush2.bf16.msra.mxu0 0
    %5799 = vmatprep.subr.bf16.mxu0 0
    %5800 = vmatpush2.bf16.msra.mxu0 0
    %5801 = vmatprep.subr.bf16.mxu0 0
    %5802 = vmatpush2.bf16.msra.mxu0 0
    %5803 = vmatprep.subr.bf16.mxu0 0
    %5804 = vmatpush2.bf16.msra.mxu0 0
    %5805 = vmatprep.subr.bf16.mxu0 0
    %5806 = vmatpush2.bf16.msra.mxu0 0
    %5807 = vmatprep.subr.bf16.mxu0 0
    %5808 = vmatpush2.bf16.msra.mxu0 0
    %5809 = vmatprep.subr.bf16.mxu0 0
    %5810 = vmatpush2.bf16.msra.mxu0 0
    %5811 = vmatprep.mubr.bf16.mxu0 0
    %5812 = vmatmul.mubr.bf16.gmra.mxu0 %v5774
    %v5813 = vpop.f32.mrf.mxu0
    %v5814 = vadd.f32 0.0, %v5813
    %v5815 = vpop.f32.mrf.mxu0
    %v5816 = vpop.f32.mrf.mxu0
    %v5817 = vadd.f32 0.0, %v5816
    %v5818 = vpop.f32.mrf.mxu0
    %5819 = vmatprep.mubr.bf16.mxu0 0
    %5820 = vmatmul.mubr.bf16.gmra.mxu0 %v5777
    %v5821 = vpop.f32.mrf.mxu0
    %v5822 = vadd.f32 0.0, %v5821
    %v5823 = vpop.f32.mrf.mxu0
    %v5824 = vpop.f32.mrf.mxu0
    %v5825 = vpop.f32.mrf.mxu0
    %5826 = vdwg.mxu0
    %v5827 = vadd.f32 %v5587, %v5814
    %v5828 = vadd.f32 %v5590, %v5817
    %v5829 = vadd.f32 %v5595, %v5822
    %5830 = vrot.lane.b32.xlu0 %v5147, 32
    %v5831 = vpop.permute.xlu0 %5830
    %5832 = vrot.lane.b32.xlu0 %v5148, 32
    %v5833 = vpop.permute.xlu0 %5832
    %5834 = vrot.lane.b32.xlu0 %v5149, 32
    %v5835 = vpop.permute.xlu0 %5834
    %5836 = vrot.lane.b32.xlu0 %v5150, 32
    %v5837 = vpop.permute.xlu0 %5836
    %v5839 = vsel %vm783, %v5831, 0
    %v5842 = vsel %vm783, %v5833, 0
    %v5845 = vsel %vm783, %v5835, 0
    %v5848 = vsel %vm783, %v5837, 0
    %5850 = vmatprep.subr.bf16.mxu0 0
    %5851 = vmatpush1.bf16.xpose.msra.mxu0 0
    %5852 = vmatprep.subr.bf16.mxu0 0
    %5853 = vmatpush1.bf16.xpose.msra.mxu0 0
    %5854 = vmatprep.subr.bf16.mxu0 0
    %5855 = vmatpush1.bf16.xpose.msra.mxu0 0
    %5856 = vmatprep.subr.bf16.mxu0 0
    %5857 = vmatpush1.bf16.xpose.msra.mxu0 0
    %5858 = vmatprep.subr.bf16.mxu0 0
    %5859 = vmatpush1.bf16.xpose.msra.mxu0 0
    %5860 = vmatprep.subr.bf16.mxu0 0
    %5861 = vmatpush1.bf16.xpose.msra.mxu0 0
    %5862 = vmatprep.subr.bf16.mxu0 0
    %5863 = vmatpush1.bf16.xpose.msra.mxu0 %v5848
    %5864 = vmatprep.subr.bf16.mxu0 0
    %5865 = vmatpush1.bf16.xpose.msra.mxu0 %v5845
    %5866 = vmatprep.subr.bf16.mxu0 0
    %5867 = vmatpush2.bf16.xpose.msra.mxu0 0
    %5868 = vmatprep.subr.bf16.mxu0 0
    %5869 = vmatpush2.bf16.xpose.msra.mxu0 0
    %5870 = vmatprep.subr.bf16.mxu0 0
    %5871 = vmatpush2.bf16.xpose.msra.mxu0 0
    %5872 = vmatprep.subr.bf16.mxu0 0
    %5873 = vmatpush2.bf16.xpose.msra.mxu0 0
    %5874 = vmatprep.subr.bf16.mxu0 0
    %5875 = vmatpush2.bf16.xpose.msra.mxu0 0
    %5876 = vmatprep.subr.bf16.mxu0 0
    %5877 = vmatpush2.bf16.xpose.msra.mxu0 0
    %5878 = vmatprep.subr.bf16.mxu0 0
    %5879 = vmatpush2.bf16.xpose.msra.mxu0 0
    %5880 = vmatprep.subr.bf16.mxu0 0
    %5881 = vmatpush2.bf16.xpose.msra.mxu0 0
    %5882 = vmatprep.mubr.bf16.mxu0 0
    %5883 = vmatmul.mubr.bf16.gmra.mxu0 %v5839
    %v5884 = vpop.f32.mrf.mxu0
    %v5885 = vadd.f32 0.0, %v5884
    %v5886 = vpop.f32.mrf.mxu0
    %v5887 = vpop.f32.mrf.mxu0
    %v5888 = vadd.f32 0.0, %v5887
    %v5889 = vpop.f32.mrf.mxu0
    %5890 = vmatprep.mubr.bf16.mxu0 0
    %5891 = vmatmul.mubr.bf16.gmra.mxu0 %v5842
    %v5892 = vpop.f32.mrf.mxu0
    %v5893 = vadd.f32 0.0, %v5892
    %v5894 = vpop.f32.mrf.mxu0
    %v5895 = vpop.f32.mrf.mxu0
    %v5896 = vpop.f32.mrf.mxu0
    %5897 = vdwg.mxu0
    %v5898 = vmul.f32 %v5885, 0.17677669
    %v5899 = vmul.f32 %v5888, 0.17677669
    %v5900 = vmul.f32 %v5893, 0.17677669
    %v5901 = vadd.f32 %v5898, %v361
    %v5902 = vadd.f32 %v5899, %v361
    %v5903 = vadd.f32 %v5900, %v361
    %v5904 = vsel %vm850, %v5901, -inf
    %5905 = vmax.xlane.f32.xlu0 %v5904
    %v5906 = vpop.xlane.xlu0 %5905
    %v5907 = vsel %vm850, %v5902, -inf
    %5908 = vmax.xlane.f32.xlu0 %v5907
    %v5909 = vpop.xlane.xlu0 %5908
    %v5910 = vsel %vm850, %v5903, -inf
    %5911 = vmax.xlane.f32.xlu0 %v5910
    %v5912 = vpop.xlane.xlu0 %5911
    %v5913 = vsub.f32 %v5901, %v5906
    %v5914 = vsub.f32 %v5902, %v5909
    %v5915 = vsub.f32 %v5903, %v5912
    %v5916 = vmul.f32 %v5913, 1.442695
    %v5917 = vpow.pop %v5916
    %v5918 = vmul.f32 %v5914, 1.442695
    %v5919 = vpow.pop %v5918
    %v5920 = vmul.f32 %v5915, 1.442695
    %v5921 = vpow.pop %v5920
    %v5922 = vsel %vm850, %v5917, 0.0
    %5923 = vadd.xlane.f32.xlu0 %v5922
    %v5924 = vpop.xlane.xlu0 %5923
    %v5925 = vsel %vm850, %v5919, 0.0
    %5926 = vadd.xlane.f32.xlu0 %v5925
    %v5927 = vpop.xlane.xlu0 %5926
    %v5928 = vsel %vm850, %v5921, 0.0
    %5929 = vadd.xlane.f32.xlu0 %v5928
    %v5930 = vpop.xlane.xlu0 %5929
    %v5931 = vrcp.pop %v5924
    %v5932 = vrcp.pop %v5927
    %v5933 = vrcp.pop %v5930
    %v5934 = vmul.f32 %v5917, %v5931
    %v5935 = vmul.f32 %v5919, %v5932
    %v5936 = vmul.f32 %v5921, %v5933
    %v5937 = vpack.c.bf16 %v5935, %v5934
    %v5938 = vpack.c.bf16 %v5936, %v5936
    %5939 = vrot.lane.b32.xlu0 %v5151, 32
    %v5940 = vpop.permute.xlu0 %5939
    %5941 = vrot.lane.b32.xlu0 %v5152, 32
    %v5942 = vpop.permute.xlu0 %5941
    %v5945 = vsel %vm850, %v5937, 0
    %v5948 = vsel %vm850, %v5938, 0
    %v5951 = vsel %vm892, %v5942, 0
    %5953 = vmatprep.subr.bf16.mxu0 0
    %5954 = vmatpush1.bf16.msra.mxu0 0
    %5955 = vmatprep.subr.bf16.mxu0 0
    %5956 = vmatpush1.bf16.msra.mxu0 0
    %5957 = vmatprep.subr.bf16.mxu0 0
    %5958 = vmatpush1.bf16.msra.mxu0 0
    %5959 = vmatprep.subr.bf16.mxu0 0
    %5960 = vmatpush1.bf16.msra.mxu0 0
    %5961 = vmatprep.subr.bf16.mxu0 0
    %5962 = vmatpush1.bf16.msra.mxu0 0
    %5963 = vmatprep.subr.bf16.mxu0 0
    %5964 = vmatpush1.bf16.msra.mxu0 0
    %5965 = vmatprep.subr.bf16.mxu0 0
    %5966 = vmatpush1.bf16.msra.mxu0 %v5951
    %5967 = vmatprep.subr.bf16.mxu0 0
    %5968 = vmatpush1.bf16.msra.mxu0 %v5940
    %5969 = vmatprep.subr.bf16.mxu0 0
    %5970 = vmatpush2.bf16.msra.mxu0 0
    %5971 = vmatprep.subr.bf16.mxu0 0
    %5972 = vmatpush2.bf16.msra.mxu0 0
    %5973 = vmatprep.subr.bf16.mxu0 0
    %5974 = vmatpush2.bf16.msra.mxu0 0
    %5975 = vmatprep.subr.bf16.mxu0 0
    %5976 = vmatpush2.bf16.msra.mxu0 0
    %5977 = vmatprep.subr.bf16.mxu0 0
    %5978 = vmatpush2.bf16.msra.mxu0 0
    %5979 = vmatprep.subr.bf16.mxu0 0
    %5980 = vmatpush2.bf16.msra.mxu0 0
    %5981 = vmatprep.subr.bf16.mxu0 0
    %5982 = vmatpush2.bf16.msra.mxu0 0
    %5983 = vmatprep.subr.bf16.mxu0 0
    %5984 = vmatpush2.bf16.msra.mxu0 0
    %5985 = vmatprep.mubr.bf16.mxu0 0
    %5986 = vmatmul.mubr.bf16.gmra.mxu0 %v5945
    %v5987 = vpop.f32.mrf.mxu0
    %v5988 = vadd.f32 0.0, %v5987
    %v5989 = vpop.f32.mrf.mxu0
    %v5990 = vpop.f32.mrf.mxu0
    %v5991 = vadd.f32 0.0, %v5990
    %v5992 = vpop.f32.mrf.mxu0
    %5993 = vmatprep.mubr.bf16.mxu0 0
    %5994 = vmatmul.mubr.bf16.gmra.mxu0 %v5948
    %v5995 = vpop.f32.mrf.mxu0
    %v5996 = vadd.f32 0.0, %v5995
    %v5997 = vpop.f32.mrf.mxu0
    %v5998 = vpop.f32.mrf.mxu0
    %v5999 = vpop.f32.mrf.mxu0
    %6000 = vdwg.mxu0
    %v6001 = vpack.c.bf16 %v5991, %v5988
    %v6002 = vpack.c.bf16 %v5996, %v5996
    %v6004 = vsel %vm783, %v6001, 0
    %v6007 = vsel %vm783, %v6002, 0
    %6009 = vmatprep.subr.bf16.mxu0 0
    %6010 = vmatpush1.bf16.msra.mxu0 0
    %6011 = vmatprep.subr.bf16.mxu0 0
    %6012 = vmatpush1.bf16.msra.mxu0 0
    %6013 = vmatprep.subr.bf16.mxu0 0
    %6014 = vmatpush1.bf16.msra.mxu0 0
    %6015 = vmatprep.subr.bf16.mxu0 0
    %6016 = vmatpush1.bf16.msra.mxu0 0
    %6017 = vmatprep.subr.bf16.mxu0 0
    %6018 = vmatpush1.bf16.msra.mxu0 0
    %6019 = vmatprep.subr.bf16.mxu0 0
    %6020 = vmatpush1.bf16.msra.mxu0 0
    %6021 = vmatprep.subr.bf16.mxu0 0
    %6022 = vmatpush1.bf16.msra.mxu0 %v5070
    %6023 = vmatprep.subr.bf16.mxu0 0
    %6024 = vmatpush1.bf16.msra.mxu0 %v5069
    %6025 = vmatprep.subr.bf16.mxu0 0
    %6026 = vmatpush2.bf16.msra.mxu0 0
    %6027 = vmatprep.subr.bf16.mxu0 0
    %6028 = vmatpush2.bf16.msra.mxu0 0
    %6029 = vmatprep.subr.bf16.mxu0 0
    %6030 = vmatpush2.bf16.msra.mxu0 0
    %6031 = vmatprep.subr.bf16.mxu0 0
    %6032 = vmatpush2.bf16.msra.mxu0 0
    %6033 = vmatprep.subr.bf16.mxu0 0
    %6034 = vmatpush2.bf16.msra.mxu0 0
    %6035 = vmatprep.subr.bf16.mxu0 0
    %6036 = vmatpush2.bf16.msra.mxu0 0
    %6037 = vmatprep.subr.bf16.mxu0 0
    %6038 = vmatpush2.bf16.msra.mxu0 0
    %6039 = vmatprep.subr.bf16.mxu0 0
    %6040 = vmatpush2.bf16.msra.mxu0 0
    %6041 = vmatprep.mubr.bf16.mxu0 0
    %6042 = vmatmul.mubr.bf16.gmra.mxu0 %v6004
    %v6043 = vpop.f32.mrf.mxu0
    %v6044 = vadd.f32 0.0, %v6043
    %v6045 = vpop.f32.mrf.mxu0
    %v6046 = vpop.f32.mrf.mxu0
    %v6047 = vadd.f32 0.0, %v6046
    %v6048 = vpop.f32.mrf.mxu0
    %6049 = vmatprep.mubr.bf16.mxu0 0
    %6050 = vmatmul.mubr.bf16.gmra.mxu0 %v6007
    %v6051 = vpop.f32.mrf.mxu0
    %v6052 = vadd.f32 0.0, %v6051
    %v6053 = vpop.f32.mrf.mxu0
    %v6054 = vpop.f32.mrf.mxu0
    %v6055 = vpop.f32.mrf.mxu0
    %6056 = vdwg.mxu0
    %v6057 = vadd.f32 %v5827, %v6044
    %v6058 = vadd.f32 %v5828, %v6047
    %v6059 = vadd.f32 %v5829, %v6052
    %v6060 = vadd.f32 %v3753, %v6057
    %v6061 = vadd.f32 %v3754, %v6058
    %v6062 = vadd.f32 %v3755, %v6059
    %v6063 = vld [vmem:[%s5133] sm:$0x1]
    %v6065 = vlaneseq
    %v6066 = vshrl.u32 %v6065, 7
    %v6067 = vsub.s32 0, %v6066
    %v6068 = vrot.slane %v6063, %v6067
    %v6070 = vadd.f32 %v6060, %v6068
    %v6071 = vadd.f32 %v6061, %v6068
    %v6072 = vadd.f32 %v6062, %v6068
    %6073 = vst [vmem:[#allocation2 + $0x18] sm:$0xff] %v6070
    %6074 = vst [vmem:[#allocation2 + $0x20] sm:$0xff] %v6071
    %6075 = vst [vmem:[#allocation2 + $0x28] sm:$0xff] %v6072
    %v6076 = vld [vmem:[#allocation2] sm:$0xff]
    %v6077 = vld [vmem:[#allocation2 + $0x8] sm:$0xff]
    %v6078 = vld [vmem:[#allocation2 + $0x10] sm:$0xff]
    %v6079 = vld [vmem:[#allocation2 + $0x18] sm:$0xff]
    %v6080 = vld [vmem:[#allocation2 + $0x20] sm:$0xff]
    %v6081 = vld [vmem:[#allocation2 + $0x28] sm:$0xff]
    %s6082 = scalar_lea.vmem %s11, 1
    %v6083 = vld [vmem:[%s6082] sm:$0x1]
    %s6084 = scalar_lea.vmem [#allocation17], 1
    %v6085 = vld [vmem:[%s6084] sm:$0x1]
    %6086 = vadd.xlane.f32.xlu0 %v6076
    %v6087 = vpop.xlane.xlu0 %6086
    %6088 = vadd.xlane.f32.xlu0 %v6077
    %v6089 = vpop.xlane.xlu0 %6088
    %6090 = vadd.xlane.f32.xlu0 %v6078
    %v6091 = vpop.xlane.xlu0 %6090
    %6092 = vadd.xlane.f32.xlu0 %v6079
    %v6093 = vpop.xlane.xlu0 %6092
    %6094 = vadd.xlane.f32.xlu0 %v6080
    %v6095 = vpop.xlane.xlu0 %6094
    %6096 = vadd.xlane.f32.xlu0 %v6081
    %v6097 = vpop.xlane.xlu0 %6096
    %v6098 = vmul.f32 %v6087, %v382
    %v6099 = vmul.f32 %v6089, %v382
    %v6100 = vmul.f32 %v6091, %v382
    %v6101 = vmul.f32 %v6093, %v382
    %v6102 = vmul.f32 %v6095, %v382
    %v6103 = vmul.f32 %v6097, %v382
    %v6104 = vsub.f32 %v6076, %v6098
    %v6105 = vsub.f32 %v6077, %v6099
    %v6106 = vsub.f32 %v6078, %v6100
    %v6107 = vsub.f32 %v6079, %v6101
    %v6108 = vsub.f32 %v6080, %v6102
    %v6109 = vsub.f32 %v6081, %v6103
    %v6110 = vmul.f32 %v6104, %v6104
    %v6111 = vmul.f32 %v6105, %v6105
    %v6112 = vmul.f32 %v6106, %v6106
    %v6113 = vmul.f32 %v6107, %v6107
    %v6114 = vmul.f32 %v6108, %v6108
    %v6115 = vmul.f32 %v6109, %v6109
    %6116 = vadd.xlane.f32.xlu0 %v6110
    %v6117 = vpop.xlane.xlu0 %6116
    %6118 = vadd.xlane.f32.xlu0 %v6111
    %v6119 = vpop.xlane.xlu0 %6118
    %6120 = vadd.xlane.f32.xlu0 %v6112
    %v6121 = vpop.xlane.xlu0 %6120
    %6122 = vadd.xlane.f32.xlu0 %v6113
    %v6123 = vpop.xlane.xlu0 %6122
    %6124 = vadd.xlane.f32.xlu0 %v6114
    %v6125 = vpop.xlane.xlu0 %6124
    %6126 = vadd.xlane.f32.xlu0 %v6115
    %v6127 = vpop.xlane.xlu0 %6126
    %v6128 = vmul.f32 %v6117, %v382
    %v6129 = vmul.f32 %v6119, %v382
    %v6130 = vmul.f32 %v6121, %v382
    %v6131 = vmul.f32 %v6123, %v382
    %v6132 = vmul.f32 %v6125, %v382
    %v6133 = vmul.f32 %v6127, %v382
    %v6134 = vadd.f32 %v6128, 1e-06
    %v6135 = vadd.f32 %v6129, 1e-06
    %v6136 = vadd.f32 %v6130, 1e-06
    %v6137 = vadd.f32 %v6131, 1e-06
    %v6138 = vadd.f32 %v6132, 1e-06
    %v6139 = vadd.f32 %v6133, 1e-06
    %v6140 = vrsqrt.pop %v6134
    %v6141 = vrsqrt.pop %v6135
    %v6142 = vrsqrt.pop %v6136
    %v6143 = vrsqrt.pop %v6137
    %v6144 = vrsqrt.pop %v6138
    %v6145 = vrsqrt.pop %v6139
    %v6146 = vmul.f32 %v6104, %v6140
    %v6147 = vmul.f32 %v6105, %v6141
    %v6148 = vmul.f32 %v6106, %v6142
    %v6149 = vmul.f32 %v6107, %v6143
    %v6150 = vmul.f32 %v6108, %v6144
    %v6151 = vmul.f32 %v6109, %v6145
    %v6153 = vlaneseq
    %v6154 = vshrl.u32 %v6153, 7
    %v6155 = vsub.s32 0, %v6154
    %v6156 = vrot.slane %v6083, %v6155
    %v6158 = vmul.f32 %v6146, %v6156
    %v6159 = vmul.f32 %v6147, %v6156
    %v6160 = vmul.f32 %v6148, %v6156
    %v6161 = vmul.f32 %v6149, %v6156
    %v6162 = vmul.f32 %v6150, %v6156
    %v6163 = vmul.f32 %v6151, %v6156
    %v6165 = vlaneseq
    %v6166 = vshrl.u32 %v6165, 7
    %v6167 = vsub.s32 0, %v6166
    %v6168 = vrot.slane %v6085, %v6167
    %v6170 = vadd.f32 %v6158, %v6168
    %v6171 = vadd.f32 %v6159, %v6168
    %v6172 = vadd.f32 %v6160, %v6168
    %v6173 = vadd.f32 %v6161, %v6168
    %v6174 = vadd.f32 %v6162, %v6168
    %v6175 = vadd.f32 %v6163, %v6168
    %v6176 = vpack.c.bf16 %v6171, %v6170
    %v6177 = vpack.c.bf16 %v6173, %v6172
    %v6178 = vpack.c.bf16 %v6175, %v6174
    %s6179 = scalar_lea.vmem [#allocation18], 256
    %v6180 = vld [vmem:[%s6179] sm:$0xff]
    %v6181 = vld [vmem:[%s6179 + $0x8] sm:$0xff]
    %v6182 = vld [vmem:[%s6179 + $0x10] sm:$0xff]
    %v6183 = vld [vmem:[%s6179 + $0x18] sm:$0xff]
    %v6184 = vld [vmem:[%s6179 + $0x20] sm:$0xff]
    %v6185 = vld [vmem:[%s6179 + $0x28] sm:$0xff]
    %v6186 = vld [vmem:[%s6179 + $0x30] sm:$0xff]
    %v6187 = vld [vmem:[%s6179 + $0x38] sm:$0xff]
    %v6188 = vld [vmem:[%s6179 + $0x40] sm:$0xff]
    %v6189 = vld [vmem:[%s6179 + $0x48] sm:$0xff]
    %v6190 = vld [vmem:[%s6179 + $0x50] sm:$0xff]
    %v6191 = vld [vmem:[%s6179 + $0x58] sm:$0xff]
    %v6192 = vld [vmem:[%s6179 + $0x60] sm:$0xff]
    %v6193 = vld [vmem:[%s6179 + $0x68] sm:$0xff]
    %v6194 = vld [vmem:[%s6179 + $0x70] sm:$0xff]
    %v6195 = vld [vmem:[%s6179 + $0x78] sm:$0xff]
    %v6196 = vld [vmem:[%s6179 + $0x80] sm:$0xff]
    %v6197 = vld [vmem:[%s6179 + $0x88] sm:$0xff]
    %v6198 = vld [vmem:[%s6179 + $0x90] sm:$0xff]
    %v6199 = vld [vmem:[%s6179 + $0x98] sm:$0xff]
    %v6200 = vld [vmem:[%s6179 + $0xa0] sm:$0xff]
    %v6201 = vld [vmem:[%s6179 + $0xa8] sm:$0xff]
    %v6202 = vld [vmem:[%s6179 + $0xb0] sm:$0xff]
    %v6203 = vld [vmem:[%s6179 + $0xb8] sm:$0xff]
    %v6204 = vld [vmem:[%s6179 + $0xc0] sm:$0xff]
    %v6205 = vld [vmem:[%s6179 + $0xc8] sm:$0xff]
    %v6206 = vld [vmem:[%s6179 + $0xd0] sm:$0xff]
    %v6207 = vld [vmem:[%s6179 + $0xd8] sm:$0xff]
    %v6208 = vld [vmem:[%s6179 + $0xe0] sm:$0xff]
    %v6209 = vld [vmem:[%s6179 + $0xe8] sm:$0xff]
    %v6210 = vld [vmem:[%s6179 + $0xf0] sm:$0xff]
    %v6211 = vld [vmem:[%s6179 + $0xf8] sm:$0xff]
    %s6212 = scalar_lea.vmem %s14, 4
    %v6213 = vld [vmem:[%s6212] sm:$0xf]
    %v6215 = vlaneseq
    %v6216 = vshrl.u32 %v6215, 7
    %v6217 = vsub.s32 0, %v6216
    %v6218 = vrot.slane %v6213, %v6217
    %v6219 = vlaneseq
    %v6220 = vshrl.u32 %v6219, 7
    %v6221 = vsub.s32 1, %v6220
    %v6222 = vrot.slane %v6213, %v6221
    %v6223 = vlaneseq
    %v6224 = vshrl.u32 %v6223, 7
    %v6225 = vsub.s32 2, %v6224
    %v6226 = vrot.slane %v6213, %v6225
    %v6227 = vlaneseq
    %v6228 = vshrl.u32 %v6227, 7
    %v6229 = vsub.s32 3, %v6228
    %v6230 = vrot.slane %v6213, %v6229
    %v6267 = vunpack.c.l.b16 %v6180
    %v6268 = vunpack.c.h.b16 %v6180
    %v6269 = vunpack.c.l.b16 %v6181
    %v6270 = vunpack.c.h.b16 %v6181
    %v6271 = vunpack.c.l.b16 %v6182
    %v6272 = vunpack.c.h.b16 %v6182
    %v6273 = vunpack.c.l.b16 %v6183
    %v6274 = vunpack.c.h.b16 %v6183
    %v6275 = vunpack.c.l.b16 %v6184
    %v6276 = vunpack.c.h.b16 %v6184
    %v6277 = vunpack.c.l.b16 %v6185
    %v6278 = vunpack.c.h.b16 %v6185
    %v6279 = vunpack.c.l.b16 %v6186
    %v6280 = vunpack.c.h.b16 %v6186
    %v6281 = vunpack.c.l.b16 %v6187
    %v6282 = vunpack.c.h.b16 %v6187
    %v6283 = vunpack.c.l.b16 %v6188
    %v6284 = vunpack.c.h.b16 %v6188
    %v6285 = vunpack.c.l.b16 %v6189
    %v6286 = vunpack.c.h.b16 %v6189
    %v6287 = vunpack.c.l.b16 %v6190
    %v6288 = vunpack.c.h.b16 %v6190
    %v6289 = vunpack.c.l.b16 %v6191
    %v6290 = vunpack.c.h.b16 %v6191
    %v6291 = vunpack.c.l.b16 %v6192
    %v6292 = vunpack.c.h.b16 %v6192
    %v6293 = vunpack.c.l.b16 %v6193
    %v6294 = vunpack.c.h.b16 %v6193
    %v6295 = vunpack.c.l.b16 %v6194
    %v6296 = vunpack.c.h.b16 %v6194
    %v6297 = vunpack.c.l.b16 %v6195
    %v6298 = vunpack.c.h.b16 %v6195
    %v6299 = vunpack.c.l.b16 %v6196
    %v6300 = vunpack.c.h.b16 %v6196
    %v6301 = vunpack.c.l.b16 %v6197
    %v6302 = vunpack.c.h.b16 %v6197
    %v6303 = vunpack.c.l.b16 %v6198
    %v6304 = vunpack.c.h.b16 %v6198
    %v6305 = vunpack.c.l.b16 %v6199
    %v6306 = vunpack.c.h.b16 %v6199
    %v6307 = vunpack.c.l.b16 %v6200
    %v6308 = vunpack.c.h.b16 %v6200
    %v6309 = vunpack.c.l.b16 %v6201
    %v6310 = vunpack.c.h.b16 %v6201
    %v6311 = vunpack.c.l.b16 %v6202
    %v6312 = vunpack.c.h.b16 %v6202
    %v6313 = vunpack.c.l.b16 %v6203
    %v6314 = vunpack.c.h.b16 %v6203
    %v6315 = vunpack.c.l.b16 %v6204
    %v6316 = vunpack.c.h.b16 %v6204
    %v6317 = vunpack.c.l.b16 %v6205
    %v6318 = vunpack.c.h.b16 %v6205
    %v6319 = vunpack.c.l.b16 %v6206
    %v6320 = vunpack.c.h.b16 %v6206
    %v6321 = vunpack.c.l.b16 %v6207
    %v6322 = vunpack.c.h.b16 %v6207
    %v6323 = vunpack.c.l.b16 %v6208
    %v6324 = vunpack.c.h.b16 %v6208
    %v6325 = vunpack.c.l.b16 %v6209
    %v6326 = vunpack.c.h.b16 %v6209
    %v6327 = vunpack.c.l.b16 %v6210
    %v6328 = vunpack.c.h.b16 %v6210
    %v6329 = vunpack.c.l.b16 %v6211
    %v6330 = vunpack.c.h.b16 %v6211
    %v6331 = vpack.c.b16 %v6271, %v6267
    %v6332 = vpack.c.b16 %v6272, %v6268
    %v6333 = vpack.c.b16 %v6273, %v6269
    %v6334 = vpack.c.b16 %v6274, %v6270
    %v6335 = vpack.c.b16 %v6279, %v6275
    %v6336 = vpack.c.b16 %v6280, %v6276
    %v6337 = vpack.c.b16 %v6281, %v6277
    %v6338 = vpack.c.b16 %v6282, %v6278
    %v6339 = vpack.c.b16 %v6287, %v6283
    %v6340 = vpack.c.b16 %v6288, %v6284
    %v6341 = vpack.c.b16 %v6289, %v6285
    %v6342 = vpack.c.b16 %v6290, %v6286
    %v6343 = vpack.c.b16 %v6295, %v6291
    %v6344 = vpack.c.b16 %v6296, %v6292
    %v6345 = vpack.c.b16 %v6297, %v6293
    %v6346 = vpack.c.b16 %v6298, %v6294
    %v6347 = vpack.c.b16 %v6303, %v6299
    %v6348 = vpack.c.b16 %v6304, %v6300
    %v6349 = vpack.c.b16 %v6305, %v6301
    %v6350 = vpack.c.b16 %v6306, %v6302
    %v6351 = vpack.c.b16 %v6311, %v6307
    %v6352 = vpack.c.b16 %v6312, %v6308
    %v6353 = vpack.c.b16 %v6313, %v6309
    %v6354 = vpack.c.b16 %v6314, %v6310
    %v6355 = vpack.c.b16 %v6319, %v6315
    %v6356 = vpack.c.b16 %v6320, %v6316
    %v6357 = vpack.c.b16 %v6321, %v6317
    %v6358 = vpack.c.b16 %v6322, %v6318
    %v6359 = vpack.c.b16 %v6327, %v6323
    %v6360 = vpack.c.b16 %v6328, %v6324
    %v6361 = vpack.c.b16 %v6329, %v6325
    %v6362 = vpack.c.b16 %v6330, %v6326
    %6395 = vmatprep.subr.bf16.mxu0 %v6360
    %6396 = vmatpush1.bf16.msra.mxu0 %v6359
    %6397 = vmatprep.subr.bf16.mxu0 %v6356
    %6398 = vmatpush1.bf16.msra.mxu0 %v6355
    %6399 = vmatprep.subr.bf16.mxu0 %v6352
    %6400 = vmatpush1.bf16.msra.mxu0 %v6351
    %6401 = vmatprep.subr.bf16.mxu0 %v6348
    %6402 = vmatpush1.bf16.msra.mxu0 %v6347
    %6403 = vmatprep.subr.bf16.mxu0 %v6344
    %6404 = vmatpush1.bf16.msra.mxu0 %v6343
    %6405 = vmatprep.subr.bf16.mxu0 %v6340
    %6406 = vmatpush1.bf16.msra.mxu0 %v6339
    %6407 = vmatprep.subr.bf16.mxu0 %v6336
    %6408 = vmatpush1.bf16.msra.mxu0 %v6335
    %6409 = vmatprep.subr.bf16.mxu0 %v6332
    %6410 = vmatpush1.bf16.msra.mxu0 %v6331
    %6411 = vmatprep.subr.bf16.mxu0 0
    %6412 = vmatpush2.bf16.msra.mxu0 0
    %6413 = vmatprep.subr.bf16.mxu0 0
    %6414 = vmatpush2.bf16.msra.mxu0 0
    %6415 = vmatprep.subr.bf16.mxu0 0
    %6416 = vmatpush2.bf16.msra.mxu0 0
    %6417 = vmatprep.subr.bf16.mxu0 0
    %6418 = vmatpush2.bf16.msra.mxu0 0
    %6419 = vmatprep.subr.bf16.mxu0 0
    %6420 = vmatpush2.bf16.msra.mxu0 0
    %6421 = vmatprep.subr.bf16.mxu0 0
    %6422 = vmatpush2.bf16.msra.mxu0 0
    %6423 = vmatprep.subr.bf16.mxu0 0
    %6424 = vmatpush2.bf16.msra.mxu0 0
    %6425 = vmatprep.subr.bf16.mxu0 0
    %6426 = vmatpush2.bf16.msra.mxu0 0
    %6427 = vmatprep.mubr.bf16.mxu0 0
    %6428 = vmatmul.mubr.bf16.gmra.mxu0 %v6176
    %v6429 = vpop.f32.mrf.mxu0
    %v6430 = vadd.f32 %v6218, %v6429
    %v6431 = vpop.f32.mrf.mxu0
    %v6432 = vadd.f32 %v6222, %v6431
    %v6433 = vpop.f32.mrf.mxu0
    %v6434 = vadd.f32 %v6218, %v6433
    %v6435 = vpop.f32.mrf.mxu0
    %v6436 = vadd.f32 %v6222, %v6435
    %6437 = vmatprep.mubr.bf16.mxu0 0
    %6438 = vmatmul.mubr.bf16.gmra.mxu0 %v6177
    %v6439 = vpop.f32.mrf.mxu0
    %v6440 = vadd.f32 %v6218, %v6439
    %v6441 = vpop.f32.mrf.mxu0
    %v6442 = vadd.f32 %v6222, %v6441
    %v6443 = vpop.f32.mrf.mxu0
    %v6444 = vadd.f32 %v6218, %v6443
    %v6445 = vpop.f32.mrf.mxu0
    %v6446 = vadd.f32 %v6222, %v6445
    %6447 = vmatprep.mubr.bf16.mxu0 0
    %6448 = vmatmul.mubr.bf16.gmra.mxu0 %v6178
    %v6449 = vpop.f32.mrf.mxu0
    %v6450 = vadd.f32 %v6218, %v6449
    %v6451 = vpop.f32.mrf.mxu0
    %v6452 = vadd.f32 %v6222, %v6451
    %v6453 = vpop.f32.mrf.mxu0
    %v6454 = vadd.f32 %v6218, %v6453
    %v6455 = vpop.f32.mrf.mxu0
    %v6456 = vadd.f32 %v6222, %v6455
    %6457 = vdwg.mxu0
    %6458 = vmatprep.subr.bf16.mxu0 %v6362
    %6459 = vmatpush1.bf16.msra.mxu0 %v6361
    %6460 = vmatprep.subr.bf16.mxu0 %v6358
    %6461 = vmatpush1.bf16.msra.mxu0 %v6357
    %6462 = vmatprep.subr.bf16.mxu0 %v6354
    %6463 = vmatpush1.bf16.msra.mxu0 %v6353
    %6464 = vmatprep.subr.bf16.mxu0 %v6350
    %6465 = vmatpush1.bf16.msra.mxu0 %v6349
    %6466 = vmatprep.subr.bf16.mxu0 %v6346
    %6467 = vmatpush1.bf16.msra.mxu0 %v6345
    %6468 = vmatprep.subr.bf16.mxu0 %v6342
    %6469 = vmatpush1.bf16.msra.mxu0 %v6341
    %6470 = vmatprep.subr.bf16.mxu0 %v6338
    %6471 = vmatpush1.bf16.msra.mxu0 %v6337
    %6472 = vmatprep.subr.bf16.mxu0 %v6334
    %6473 = vmatpush1.bf16.msra.mxu0 %v6333
    %6474 = vmatprep.subr.bf16.mxu0 0
    %6475 = vmatpush2.bf16.msra.mxu0 0
    %6476 = vmatprep.subr.bf16.mxu0 0
    %6477 = vmatpush2.bf16.msra.mxu0 0
    %6478 = vmatprep.subr.bf16.mxu0 0
    %6479 = vmatpush2.bf16.msra.mxu0 0
    %6480 = vmatprep.subr.bf16.mxu0 0
    %6481 = vmatpush2.bf16.msra.mxu0 0
    %6482 = vmatprep.subr.bf16.mxu0 0
    %6483 = vmatpush2.bf16.msra.mxu0 0
    %6484 = vmatprep.subr.bf16.mxu0 0
    %6485 = vmatpush2.bf16.msra.mxu0 0
    %6486 = vmatprep.subr.bf16.mxu0 0
    %6487 = vmatpush2.bf16.msra.mxu0 0
    %6488 = vmatprep.subr.bf16.mxu0 0
    %6489 = vmatpush2.bf16.msra.mxu0 0
    %6490 = vmatprep.mubr.bf16.mxu0 0
    %6491 = vmatmul.mubr.bf16.gmra.mxu0 %v6176
    %v6492 = vpop.f32.mrf.mxu0
    %v6493 = vadd.f32 %v6226, %v6492
    %v6494 = vpop.f32.mrf.mxu0
    %v6495 = vadd.f32 %v6230, %v6494
    %v6496 = vpop.f32.mrf.mxu0
    %v6497 = vadd.f32 %v6226, %v6496
    %v6498 = vpop.f32.mrf.mxu0
    %v6499 = vadd.f32 %v6230, %v6498
    %6500 = vmatprep.mubr.bf16.mxu0 0
    %6501 = vmatmul.mubr.bf16.gmra.mxu0 %v6177
    %v6502 = vpop.f32.mrf.mxu0
    %v6503 = vadd.f32 %v6226, %v6502
    %v6504 = vpop.f32.mrf.mxu0
    %v6505 = vadd.f32 %v6230, %v6504
    %v6506 = vpop.f32.mrf.mxu0
    %v6507 = vadd.f32 %v6226, %v6506
    %v6508 = vpop.f32.mrf.mxu0
    %v6509 = vadd.f32 %v6230, %v6508
    %6510 = vmatprep.mubr.bf16.mxu0 0
    %6511 = vmatmul.mubr.bf16.gmra.mxu0 %v6178
    %v6512 = vpop.f32.mrf.mxu0
    %v6513 = vadd.f32 %v6226, %v6512
    %v6514 = vpop.f32.mrf.mxu0
    %v6515 = vadd.f32 %v6230, %v6514
    %v6516 = vpop.f32.mrf.mxu0
    %v6517 = vadd.f32 %v6226, %v6516
    %v6518 = vpop.f32.mrf.mxu0
    %v6519 = vadd.f32 %v6230, %v6518
    %6520 = vdwg.mxu0
    %v6521 = vmul.f32 %v6430, 0.5
    %v6522 = vmul.f32 %v6432, 0.5
    %v6523 = vmul.f32 %v6493, 0.5
    %v6524 = vmul.f32 %v6495, 0.5
    %v6525 = vmul.f32 %v6434, 0.5
    %v6526 = vmul.f32 %v6436, 0.5
    %v6527 = vmul.f32 %v6497, 0.5
    %v6528 = vmul.f32 %v6499, 0.5
    %v6529 = vmul.f32 %v6440, 0.5
    %v6530 = vmul.f32 %v6442, 0.5
    %v6531 = vmul.f32 %v6503, 0.5
    %v6532 = vmul.f32 %v6505, 0.5
    %v6533 = vmul.f32 %v6444, 0.5
    %v6534 = vmul.f32 %v6446, 0.5
    %v6535 = vmul.f32 %v6507, 0.5
    %v6536 = vmul.f32 %v6509, 0.5
    %v6537 = vmul.f32 %v6450, 0.5
    %v6538 = vmul.f32 %v6452, 0.5
    %v6539 = vmul.f32 %v6513, 0.5
    %v6540 = vmul.f32 %v6515, 0.5
    %v6541 = vmul.f32 %v6454, 0.5
    %v6542 = vmul.f32 %v6456, 0.5
    %v6543 = vmul.f32 %v6517, 0.5
    %v6544 = vmul.f32 %v6519, 0.5
    %v6545 = vmul.f32 %v6430, 0.044715
    %v6546 = vmul.f32 %v6432, 0.044715
    %v6547 = vmul.f32 %v6493, 0.044715
    %v6548 = vmul.f32 %v6495, 0.044715
    %v6549 = vmul.f32 %v6434, 0.044715
    %v6550 = vmul.f32 %v6436, 0.044715
    %v6551 = vmul.f32 %v6497, 0.044715
    %v6552 = vmul.f32 %v6499, 0.044715
    %v6553 = vmul.f32 %v6440, 0.044715
    %v6554 = vmul.f32 %v6442, 0.044715
    %v6555 = vmul.f32 %v6503, 0.044715
    %v6556 = vmul.f32 %v6505, 0.044715
    %v6557 = vmul.f32 %v6444, 0.044715
    %v6558 = vmul.f32 %v6446, 0.044715
    %v6559 = vmul.f32 %v6507, 0.044715
    %v6560 = vmul.f32 %v6509, 0.044715
    %v6561 = vmul.f32 %v6450, 0.044715
    %v6562 = vmul.f32 %v6452, 0.044715
    %v6563 = vmul.f32 %v6513, 0.044715
    %v6564 = vmul.f32 %v6515, 0.044715
    %v6565 = vmul.f32 %v6454, 0.044715
    %v6566 = vmul.f32 %v6456, 0.044715
    %v6567 = vmul.f32 %v6517, 0.044715
    %v6568 = vmul.f32 %v6519, 0.044715
    %v6569 = vmul.f32 %v6545, %v6430
    %v6570 = vmul.f32 %v6546, %v6432
    %v6571 = vmul.f32 %v6547, %v6493
    %v6572 = vmul.f32 %v6548, %v6495
    %v6573 = vmul.f32 %v6549, %v6434
    %v6574 = vmul.f32 %v6550, %v6436
    %v6575 = vmul.f32 %v6551, %v6497
    %v6576 = vmul.f32 %v6552, %v6499
    %v6577 = vmul.f32 %v6553, %v6440
    %v6578 = vmul.f32 %v6554, %v6442
    %v6579 = vmul.f32 %v6555, %v6503
    %v6580 = vmul.f32 %v6556, %v6505
    %v6581 = vmul.f32 %v6557, %v6444
    %v6582 = vmul.f32 %v6558, %v6446
    %v6583 = vmul.f32 %v6559, %v6507
    %v6584 = vmul.f32 %v6560, %v6509
    %v6585 = vmul.f32 %v6561, %v6450
    %v6586 = vmul.f32 %v6562, %v6452
    %v6587 = vmul.f32 %v6563, %v6513
    %v6588 = vmul.f32 %v6564, %v6515
    %v6589 = vmul.f32 %v6565, %v6454
    %v6590 = vmul.f32 %v6566, %v6456
    %v6591 = vmul.f32 %v6567, %v6517
    %v6592 = vmul.f32 %v6568, %v6519
    %v6593 = vmul.f32 %v6569, %v6430
    %v6594 = vmul.f32 %v6570, %v6432
    %v6595 = vmul.f32 %v6571, %v6493
    %v6596 = vmul.f32 %v6572, %v6495
    %v6597 = vmul.f32 %v6573, %v6434
    %v6598 = vmul.f32 %v6574, %v6436
    %v6599 = vmul.f32 %v6575, %v6497
    %v6600 = vmul.f32 %v6576, %v6499
    %v6601 = vmul.f32 %v6577, %v6440
    %v6602 = vmul.f32 %v6578, %v6442
    %v6603 = vmul.f32 %v6579, %v6503
    %v6604 = vmul.f32 %v6580, %v6505
    %v6605 = vmul.f32 %v6581, %v6444
    %v6606 = vmul.f32 %v6582, %v6446
    %v6607 = vmul.f32 %v6583, %v6507
    %v6608 = vmul.f32 %v6584, %v6509
    %v6609 = vmul.f32 %v6585, %v6450
    %v6610 = vmul.f32 %v6586, %v6452
    %v6611 = vmul.f32 %v6587, %v6513
    %v6612 = vmul.f32 %v6588, %v6515
    %v6613 = vmul.f32 %v6589, %v6454
    %v6614 = vmul.f32 %v6590, %v6456
    %v6615 = vmul.f32 %v6591, %v6517
    %v6616 = vmul.f32 %v6592, %v6519
    %v6617 = vadd.f32 %v6430, %v6593
    %v6618 = vadd.f32 %v6432, %v6594
    %v6619 = vadd.f32 %v6493, %v6595
    %v6620 = vadd.f32 %v6495, %v6596
    %v6621 = vadd.f32 %v6434, %v6597
    %v6622 = vadd.f32 %v6436, %v6598
    %v6623 = vadd.f32 %v6497, %v6599
    %v6624 = vadd.f32 %v6499, %v6600
    %v6625 = vadd.f32 %v6440, %v6601
    %v6626 = vadd.f32 %v6442, %v6602
    %v6627 = vadd.f32 %v6503, %v6603
    %v6628 = vadd.f32 %v6505, %v6604
    %v6629 = vadd.f32 %v6444, %v6605
    %v6630 = vadd.f32 %v6446, %v6606
    %v6631 = vadd.f32 %v6507, %v6607
    %v6632 = vadd.f32 %v6509, %v6608
    %v6633 = vadd.f32 %v6450, %v6609
    %v6634 = vadd.f32 %v6452, %v6610
    %v6635 = vadd.f32 %v6513, %v6611
    %v6636 = vadd.f32 %v6515, %v6612
    %v6637 = vadd.f32 %v6454, %v6613
    %v6638 = vadd.f32 %v6456, %v6614
    %v6639 = vadd.f32 %v6517, %v6615
    %v6640 = vadd.f32 %v6519, %v6616
    %v6641 = vmul.f32 %v6617, 0.7978846
    %v6642 = vmul.f32 %v6618, 0.7978846
    %v6643 = vmul.f32 %v6619, 0.7978846
    %v6644 = vmul.f32 %v6620, 0.7978846
    %v6645 = vmul.f32 %v6621, 0.7978846
    %v6646 = vmul.f32 %v6622, 0.7978846
    %v6647 = vmul.f32 %v6623, 0.7978846
    %v6648 = vmul.f32 %v6624, 0.7978846
    %v6649 = vmul.f32 %v6625, 0.7978846
    %v6650 = vmul.f32 %v6626, 0.7978846
    %v6651 = vmul.f32 %v6627, 0.7978846
    %v6652 = vmul.f32 %v6628, 0.7978846
    %v6653 = vmul.f32 %v6629, 0.7978846
    %v6654 = vmul.f32 %v6630, 0.7978846
    %v6655 = vmul.f32 %v6631, 0.7978846
    %v6656 = vmul.f32 %v6632, 0.7978846
    %v6657 = vmul.f32 %v6633, 0.7978846
    %v6658 = vmul.f32 %v6634, 0.7978846
    %v6659 = vmul.f32 %v6635, 0.7978846
    %v6660 = vmul.f32 %v6636, 0.7978846
    %v6661 = vmul.f32 %v6637, 0.7978846
    %v6662 = vmul.f32 %v6638, 0.7978846
    %v6663 = vmul.f32 %v6639, 0.7978846
    %v6664 = vmul.f32 %v6640, 0.7978846
    %v6665 = vtanh.pop %v6641
    %v6666 = vtanh.pop %v6642
    %v6667 = vtanh.pop %v6643
    %v6668 = vtanh.pop %v6644
    %v6669 = vtanh.pop %v6645
    %v6670 = vtanh.pop %v6646
    %v6671 = vtanh.pop %v6647
    %v6672 = vtanh.pop %v6648
    %v6673 = vtanh.pop %v6649
    %v6674 = vtanh.pop %v6650
    %v6675 = vtanh.pop %v6651
    %v6676 = vtanh.pop %v6652
    %v6677 = vtanh.pop %v6653
    %v6678 = vtanh.pop %v6654
    %v6679 = vtanh.pop %v6655
    %v6680 = vtanh.pop %v6656
    %v6681 = vtanh.pop %v6657
    %v6682 = vtanh.pop %v6658
    %v6683 = vtanh.pop %v6659
    %v6684 = vtanh.pop %v6660
    %v6685 = vtanh.pop %v6661
    %v6686 = vtanh.pop %v6662
    %v6687 = vtanh.pop %v6663
    %v6688 = vtanh.pop %v6664
    %v6689 = vadd.f32 %v6665, 1.0
    %v6690 = vadd.f32 %v6666, 1.0
    %v6691 = vadd.f32 %v6667, 1.0
    %v6692 = vadd.f32 %v6668, 1.0
    %v6693 = vadd.f32 %v6669, 1.0
    %v6694 = vadd.f32 %v6670, 1.0
    %v6695 = vadd.f32 %v6671, 1.0
    %v6696 = vadd.f32 %v6672, 1.0
    %v6697 = vadd.f32 %v6673, 1.0
    %v6698 = vadd.f32 %v6674, 1.0
    %v6699 = vadd.f32 %v6675, 1.0
    %v6700 = vadd.f32 %v6676, 1.0
    %v6701 = vadd.f32 %v6677, 1.0
    %v6702 = vadd.f32 %v6678, 1.0
    %v6703 = vadd.f32 %v6679, 1.0
    %v6704 = vadd.f32 %v6680, 1.0
    %v6705 = vadd.f32 %v6681, 1.0
    %v6706 = vadd.f32 %v6682, 1.0
    %v6707 = vadd.f32 %v6683, 1.0
    %v6708 = vadd.f32 %v6684, 1.0
    %v6709 = vadd.f32 %v6685, 1.0
    %v6710 = vadd.f32 %v6686, 1.0
    %v6711 = vadd.f32 %v6687, 1.0
    %v6712 = vadd.f32 %v6688, 1.0
    %v6713 = vmul.f32 %v6521, %v6689
    %v6714 = vmul.f32 %v6522, %v6690
    %v6715 = vmul.f32 %v6523, %v6691
    %v6716 = vmul.f32 %v6524, %v6692
    %v6717 = vmul.f32 %v6525, %v6693
    %v6718 = vmul.f32 %v6526, %v6694
    %v6719 = vmul.f32 %v6527, %v6695
    %v6720 = vmul.f32 %v6528, %v6696
    %v6721 = vmul.f32 %v6529, %v6697
    %v6722 = vmul.f32 %v6530, %v6698
    %v6723 = vmul.f32 %v6531, %v6699
    %v6724 = vmul.f32 %v6532, %v6700
    %v6725 = vmul.f32 %v6533, %v6701
    %v6726 = vmul.f32 %v6534, %v6702
    %v6727 = vmul.f32 %v6535, %v6703
    %v6728 = vmul.f32 %v6536, %v6704
    %v6729 = vmul.f32 %v6537, %v6705
    %v6730 = vmul.f32 %v6538, %v6706
    %v6731 = vmul.f32 %v6539, %v6707
    %v6732 = vmul.f32 %v6540, %v6708
    %v6733 = vmul.f32 %v6541, %v6709
    %v6734 = vmul.f32 %v6542, %v6710
    %v6735 = vmul.f32 %v6543, %v6711
    %v6736 = vmul.f32 %v6544, %v6712
    %v6737 = vpack.c.bf16 %v6717, %v6713
    %v6738 = vpack.c.bf16 %v6718, %v6714
    %v6739 = vpack.c.bf16 %v6719, %v6715
    %v6740 = vpack.c.bf16 %v6720, %v6716
    %v6741 = vpack.c.bf16 %v6725, %v6721
    %v6742 = vpack.c.bf16 %v6726, %v6722
    %v6743 = vpack.c.bf16 %v6727, %v6723
    %v6744 = vpack.c.bf16 %v6728, %v6724
    %v6745 = vpack.c.bf16 %v6733, %v6729
    %v6746 = vpack.c.bf16 %v6734, %v6730
    %v6747 = vpack.c.bf16 %v6735, %v6731
    %v6748 = vpack.c.bf16 %v6736, %v6732
    %s6749 = scalar_lea.vmem [#allocation20], 256
    %v6750 = vld [vmem:[%s6749] sm:$0xf]
    %v6751 = vld [vmem:[%s6749 + $0x4] sm:$0xf]
    %v6752 = vld [vmem:[%s6749 + $0x8] sm:$0xf]
    %v6753 = vld [vmem:[%s6749 + $0xc] sm:$0xf]
    %v6754 = vld [vmem:[%s6749 + $0x10] sm:$0xf]
    %v6755 = vld [vmem:[%s6749 + $0x14] sm:$0xf]
    %v6756 = vld [vmem:[%s6749 + $0x18] sm:$0xf]
    %v6757 = vld [vmem:[%s6749 + $0x1c] sm:$0xf]
    %v6758 = vld [vmem:[%s6749 + $0x20] sm:$0xf]
    %v6759 = vld [vmem:[%s6749 + $0x24] sm:$0xf]
    %v6760 = vld [vmem:[%s6749 + $0x28] sm:$0xf]
    %v6761 = vld [vmem:[%s6749 + $0x2c] sm:$0xf]
    %v6762 = vld [vmem:[%s6749 + $0x30] sm:$0xf]
    %v6763 = vld [vmem:[%s6749 + $0x34] sm:$0xf]
    %v6764 = vld [vmem:[%s6749 + $0x38] sm:$0xf]
    %v6765 = vld [vmem:[%s6749 + $0x3c] sm:$0xf]
    %v6766 = vld [vmem:[%s6749 + $0x40] sm:$0xf]
    %v6767 = vld [vmem:[%s6749 + $0x44] sm:$0xf]
    %v6768 = vld [vmem:[%s6749 + $0x48] sm:$0xf]
    %v6769 = vld [vmem:[%s6749 + $0x4c] sm:$0xf]
    %v6770 = vld [vmem:[%s6749 + $0x50] sm:$0xf]
    %v6771 = vld [vmem:[%s6749 + $0x54] sm:$0xf]
    %v6772 = vld [vmem:[%s6749 + $0x58] sm:$0xf]
    %v6773 = vld [vmem:[%s6749 + $0x5c] sm:$0xf]
    %v6774 = vld [vmem:[%s6749 + $0x60] sm:$0xf]
    %v6775 = vld [vmem:[%s6749 + $0x64] sm:$0xf]
    %v6776 = vld [vmem:[%s6749 + $0x68] sm:$0xf]
    %v6777 = vld [vmem:[%s6749 + $0x6c] sm:$0xf]
    %v6778 = vld [vmem:[%s6749 + $0x70] sm:$0xf]
    %v6779 = vld [vmem:[%s6749 + $0x74] sm:$0xf]
    %v6780 = vld [vmem:[%s6749 + $0x78] sm:$0xf]
    %v6781 = vld [vmem:[%s6749 + $0x7c] sm:$0xf]
    %v6782 = vld [vmem:[%s6749 + $0x80] sm:$0xf]
    %v6783 = vld [vmem:[%s6749 + $0x84] sm:$0xf]
    %v6784 = vld [vmem:[%s6749 + $0x88] sm:$0xf]
    %v6785 = vld [vmem:[%s6749 + $0x8c] sm:$0xf]
    %v6786 = vld [vmem:[%s6749 + $0x90] sm:$0xf]
    %v6787 = vld [vmem:[%s6749 + $0x94] sm:$0xf]
    %v6788 = vld [vmem:[%s6749 + $0x98] sm:$0xf]
    %v6789 = vld [vmem:[%s6749 + $0x9c] sm:$0xf]
    %v6790 = vld [vmem:[%s6749 + $0xa0] sm:$0xf]
    %v6791 = vld [vmem:[%s6749 + $0xa4] sm:$0xf]
    %v6792 = vld [vmem:[%s6749 + $0xa8] sm:$0xf]
    %v6793 = vld [vmem:[%s6749 + $0xac] sm:$0xf]
    %v6794 = vld [vmem:[%s6749 + $0xb0] sm:$0xf]
    %v6795 = vld [vmem:[%s6749 + $0xb4] sm:$0xf]
    %v6796 = vld [vmem:[%s6749 + $0xb8] sm:$0xf]
    %v6797 = vld [vmem:[%s6749 + $0xbc] sm:$0xf]
    %v6798 = vld [vmem:[%s6749 + $0xc0] sm:$0xf]
    %v6799 = vld [vmem:[%s6749 + $0xc4] sm:$0xf]
    %v6800 = vld [vmem:[%s6749 + $0xc8] sm:$0xf]
    %v6801 = vld [vmem:[%s6749 + $0xcc] sm:$0xf]
    %v6802 = vld [vmem:[%s6749 + $0xd0] sm:$0xf]
    %v6803 = vld [vmem:[%s6749 + $0xd4] sm:$0xf]
    %v6804 = vld [vmem:[%s6749 + $0xd8] sm:$0xf]
    %v6805 = vld [vmem:[%s6749 + $0xdc] sm:$0xf]
    %v6806 = vld [vmem:[%s6749 + $0xe0] sm:$0xf]
    %v6807 = vld [vmem:[%s6749 + $0xe4] sm:$0xf]
    %v6808 = vld [vmem:[%s6749 + $0xe8] sm:$0xf]
    %v6809 = vld [vmem:[%s6749 + $0xec] sm:$0xf]
    %v6810 = vld [vmem:[%s6749 + $0xf0] sm:$0xf]
    %v6811 = vld [vmem:[%s6749 + $0xf4] sm:$0xf]
    %v6812 = vld [vmem:[%s6749 + $0xf8] sm:$0xf]
    %v6813 = vld [vmem:[%s6749 + $0xfc] sm:$0xf]
    %v6878 = vunpack.c.l.b16 %v6750
    %v6879 = vunpack.c.l.b16 %v6751
    %v6880 = vunpack.c.l.b16 %v6752
    %v6881 = vunpack.c.l.b16 %v6753
    %v6882 = vunpack.c.l.b16 %v6754
    %v6883 = vunpack.c.l.b16 %v6755
    %v6884 = vunpack.c.l.b16 %v6756
    %v6885 = vunpack.c.l.b16 %v6757
    %v6886 = vunpack.c.l.b16 %v6758
    %v6887 = vunpack.c.l.b16 %v6759
    %v6888 = vunpack.c.l.b16 %v6760
    %v6889 = vunpack.c.l.b16 %v6761
    %v6890 = vunpack.c.l.b16 %v6762
    %v6891 = vunpack.c.l.b16 %v6763
    %v6892 = vunpack.c.l.b16 %v6764
    %v6893 = vunpack.c.l.b16 %v6765
    %v6894 = vunpack.c.l.b16 %v6766
    %v6895 = vunpack.c.l.b16 %v6767
    %v6896 = vunpack.c.l.b16 %v6768
    %v6897 = vunpack.c.l.b16 %v6769
    %v6898 = vunpack.c.l.b16 %v6770
    %v6899 = vunpack.c.l.b16 %v6771
    %v6900 = vunpack.c.l.b16 %v6772
    %v6901 = vunpack.c.l.b16 %v6773
    %v6902 = vunpack.c.l.b16 %v6774
    %v6903 = vunpack.c.l.b16 %v6775
    %v6904 = vunpack.c.l.b16 %v6776
    %v6905 = vunpack.c.l.b16 %v6777
    %v6906 = vunpack.c.l.b16 %v6778
    %v6907 = vunpack.c.l.b16 %v6779
    %v6908 = vunpack.c.l.b16 %v6780
    %v6909 = vunpack.c.l.b16 %v6781
    %v6910 = vunpack.c.l.b16 %v6782
    %v6911 = vunpack.c.l.b16 %v6783
    %v6912 = vunpack.c.l.b16 %v6784
    %v6913 = vunpack.c.l.b16 %v6785
    %v6914 = vunpack.c.l.b16 %v6786
    %v6915 = vunpack.c.l.b16 %v6787
    %v6916 = vunpack.c.l.b16 %v6788
    %v6917 = vunpack.c.l.b16 %v6789
    %v6918 = vunpack.c.l.b16 %v6790
    %v6919 = vunpack.c.l.b16 %v6791
    %v6920 = vunpack.c.l.b16 %v6792
    %v6921 = vunpack.c.l.b16 %v6793
    %v6922 = vunpack.c.l.b16 %v6794
    %v6923 = vunpack.c.l.b16 %v6795
    %v6924 = vunpack.c.l.b16 %v6796
    %v6925 = vunpack.c.l.b16 %v6797
    %v6926 = vunpack.c.l.b16 %v6798
    %v6927 = vunpack.c.l.b16 %v6799
    %v6928 = vunpack.c.l.b16 %v6800
    %v6929 = vunpack.c.l.b16 %v6801
    %v6930 = vunpack.c.l.b16 %v6802
    %v6931 = vunpack.c.l.b16 %v6803
    %v6932 = vunpack.c.l.b16 %v6804
    %v6933 = vunpack.c.l.b16 %v6805
    %v6934 = vunpack.c.l.b16 %v6806
    %v6935 = vunpack.c.l.b16 %v6807
    %v6936 = vunpack.c.l.b16 %v6808
    %v6937 = vunpack.c.l.b16 %v6809
    %v6938 = vunpack.c.l.b16 %v6810
    %v6939 = vunpack.c.l.b16 %v6811
    %v6940 = vunpack.c.l.b16 %v6812
    %v6941 = vunpack.c.l.b16 %v6813
    %v6942 = vpack.c.b16 %v6879, %v6878
    %v6943 = vpack.c.b16 %v6881, %v6880
    %v6944 = vpack.c.b16 %v6883, %v6882
    %v6945 = vpack.c.b16 %v6885, %v6884
    %v6946 = vpack.c.b16 %v6887, %v6886
    %v6947 = vpack.c.b16 %v6889, %v6888
    %v6948 = vpack.c.b16 %v6891, %v6890
    %v6949 = vpack.c.b16 %v6893, %v6892
    %v6950 = vpack.c.b16 %v6895, %v6894
    %v6951 = vpack.c.b16 %v6897, %v6896
    %v6952 = vpack.c.b16 %v6899, %v6898
    %v6953 = vpack.c.b16 %v6901, %v6900
    %v6954 = vpack.c.b16 %v6903, %v6902
    %v6955 = vpack.c.b16 %v6905, %v6904
    %v6956 = vpack.c.b16 %v6907, %v6906
    %v6957 = vpack.c.b16 %v6909, %v6908
    %v6958 = vpack.c.b16 %v6911, %v6910
    %v6959 = vpack.c.b16 %v6913, %v6912
    %v6960 = vpack.c.b16 %v6915, %v6914
    %v6961 = vpack.c.b16 %v6917, %v6916
    %v6962 = vpack.c.b16 %v6919, %v6918
    %v6963 = vpack.c.b16 %v6921, %v6920
    %v6964 = vpack.c.b16 %v6923, %v6922
    %v6965 = vpack.c.b16 %v6925, %v6924
    %v6966 = vpack.c.b16 %v6927, %v6926
    %v6967 = vpack.c.b16 %v6929, %v6928
    %v6968 = vpack.c.b16 %v6931, %v6930
    %v6969 = vpack.c.b16 %v6933, %v6932
    %v6970 = vpack.c.b16 %v6935, %v6934
    %v6971 = vpack.c.b16 %v6937, %v6936
    %v6972 = vpack.c.b16 %v6939, %v6938
    %v6973 = vpack.c.b16 %v6941, %v6940
    %7006 = vmatprep.subr.bf16.mxu0 0
    %7007 = vmatpush1.bf16.msra.mxu0 %v6949
    %7008 = vmatprep.subr.bf16.mxu0 0
    %7009 = vmatpush1.bf16.msra.mxu0 %v6948
    %7010 = vmatprep.subr.bf16.mxu0 0
    %7011 = vmatpush1.bf16.msra.mxu0 %v6947
    %7012 = vmatprep.subr.bf16.mxu0 0
    %7013 = vmatpush1.bf16.msra.mxu0 %v6946
    %7014 = vmatprep.subr.bf16.mxu0 0
    %7015 = vmatpush1.bf16.msra.mxu0 %v6945
    %7016 = vmatprep.subr.bf16.mxu0 0
    %7017 = vmatpush1.bf16.msra.mxu0 %v6944
    %7018 = vmatprep.subr.bf16.mxu0 0
    %7019 = vmatpush1.bf16.msra.mxu0 %v6943
    %7020 = vmatprep.subr.bf16.mxu0 0
    %7021 = vmatpush1.bf16.msra.mxu0 %v6942
    %7022 = vmatprep.subr.bf16.mxu0 0
    %7023 = vmatpush2.bf16.msra.mxu0 %v6957
    %7024 = vmatprep.subr.bf16.mxu0 0
    %7025 = vmatpush2.bf16.msra.mxu0 %v6956
    %7026 = vmatprep.subr.bf16.mxu0 0
    %7027 = vmatpush2.bf16.msra.mxu0 %v6955
    %7028 = vmatprep.subr.bf16.mxu0 0
    %7029 = vmatpush2.bf16.msra.mxu0 %v6954
    %7030 = vmatprep.subr.bf16.mxu0 0
    %7031 = vmatpush2.bf16.msra.mxu0 %v6953
    %7032 = vmatprep.subr.bf16.mxu0 0
    %7033 = vmatpush2.bf16.msra.mxu0 %v6952
    %7034 = vmatprep.subr.bf16.mxu0 0
    %7035 = vmatpush2.bf16.msra.mxu0 %v6951
    %7036 = vmatprep.subr.bf16.mxu0 0
    %7037 = vmatpush2.bf16.msra.mxu0 %v6950
    %7038 = vmatprep.mubr.bf16.mxu0 %v6738
    %7039 = vmatmul.mubr.bf16.gmra.mxu0 %v6737
    %v7040 = vpop.f32.mrf.mxu0
    %v7041 = vadd.f32 0.0, %v7040
    %v7042 = vpop.f32.mrf.mxu0
    %v7043 = vpop.f32.mrf.mxu0
    %v7044 = vadd.f32 0.0, %v7043
    %v7045 = vpop.f32.mrf.mxu0
    %7046 = vmatprep.mubr.bf16.mxu0 %v6742
    %7047 = vmatmul.mubr.bf16.gmra.mxu0 %v6741
    %v7048 = vpop.f32.mrf.mxu0
    %v7049 = vadd.f32 0.0, %v7048
    %v7050 = vpop.f32.mrf.mxu0
    %v7051 = vpop.f32.mrf.mxu0
    %v7052 = vadd.f32 0.0, %v7051
    %v7053 = vpop.f32.mrf.mxu0
    %7054 = vmatprep.mubr.bf16.mxu0 %v6746
    %7055 = vmatmul.mubr.bf16.gmra.mxu0 %v6745
    %v7056 = vpop.f32.mrf.mxu0
    %v7057 = vadd.f32 0.0, %v7056
    %v7058 = vpop.f32.mrf.mxu0
    %v7059 = vpop.f32.mrf.mxu0
    %v7060 = vadd.f32 0.0, %v7059
    %v7061 = vpop.f32.mrf.mxu0
    %7062 = vdwg.mxu0
    %7063 = vmatprep.subr.bf16.mxu0 0
    %7064 = vmatpush1.bf16.msra.mxu0 %v6965
    %7065 = vmatprep.subr.bf16.mxu0 0
    %7066 = vmatpush1.bf16.msra.mxu0 %v6964
    %7067 = vmatprep.subr.bf16.mxu0 0
    %7068 = vmatpush1.bf16.msra.mxu0 %v6963
    %7069 = vmatprep.subr.bf16.mxu0 0
    %7070 = vmatpush1.bf16.msra.mxu0 %v6962
    %7071 = vmatprep.subr.bf16.mxu0 0
    %7072 = vmatpush1.bf16.msra.mxu0 %v6961
    %7073 = vmatprep.subr.bf16.mxu0 0
    %7074 = vmatpush1.bf16.msra.mxu0 %v6960
    %7075 = vmatprep.subr.bf16.mxu0 0
    %7076 = vmatpush1.bf16.msra.mxu0 %v6959
    %7077 = vmatprep.subr.bf16.mxu0 0
    %7078 = vmatpush1.bf16.msra.mxu0 %v6958
    %7079 = vmatprep.subr.bf16.mxu0 0
    %7080 = vmatpush2.bf16.msra.mxu0 %v6973
    %7081 = vmatprep.subr.bf16.mxu0 0
    %7082 = vmatpush2.bf16.msra.mxu0 %v6972
    %7083 = vmatprep.subr.bf16.mxu0 0
    %7084 = vmatpush2.bf16.msra.mxu0 %v6971
    %7085 = vmatprep.subr.bf16.mxu0 0
    %7086 = vmatpush2.bf16.msra.mxu0 %v6970
    %7087 = vmatprep.subr.bf16.mxu0 0
    %7088 = vmatpush2.bf16.msra.mxu0 %v6969
    %7089 = vmatprep.subr.bf16.mxu0 0
    %7090 = vmatpush2.bf16.msra.mxu0 %v6968
    %7091 = vmatprep.subr.bf16.mxu0 0
    %7092 = vmatpush2.bf16.msra.mxu0 %v6967
    %7093 = vmatprep.subr.bf16.mxu0 0
    %7094 = vmatpush2.bf16.msra.mxu0 %v6966
    %7095 = vmatprep.mubr.bf16.mxu0 %v6740
    %7096 = vmatmul.mubr.bf16.gmra.mxu0 %v6739
    %v7097 = vpop.f32.mrf.mxu0
    %v7098 = vadd.f32 %v7041, %v7097
    %v7099 = vpop.f32.mrf.mxu0
    %v7100 = vpop.f32.mrf.mxu0
    %v7101 = vadd.f32 %v7044, %v7100
    %v7102 = vpop.f32.mrf.mxu0
    %7103 = vmatprep.mubr.bf16.mxu0 %v6744
    %7104 = vmatmul.mubr.bf16.gmra.mxu0 %v6743
    %v7105 = vpop.f32.mrf.mxu0
    %v7106 = vadd.f32 %v7049, %v7105
    %v7107 = vpop.f32.mrf.mxu0
    %v7108 = vpop.f32.mrf.mxu0
    %v7109 = vadd.f32 %v7052, %v7108
    %v7110 = vpop.f32.mrf.mxu0
    %7111 = vmatprep.mubr.bf16.mxu0 %v6748
    %7112 = vmatmul.mubr.bf16.gmra.mxu0 %v6747
    %v7113 = vpop.f32.mrf.mxu0
    %v7114 = vadd.f32 %v7057, %v7113
    %v7115 = vpop.f32.mrf.mxu0
    %v7116 = vpop.f32.mrf.mxu0
    %v7117 = vadd.f32 %v7060, %v7116
    %v7118 = vpop.f32.mrf.mxu0
    %7119 = vdwg.mxu0
    %v7120 = vadd.f32 %v6076, %v7098
    %v7121 = vadd.f32 %v6077, %v7101
    %v7122 = vadd.f32 %v6078, %v7106
    %v7123 = vadd.f32 %v6079, %v7109
    %v7124 = vadd.f32 %v6080, %v7114
    %v7125 = vadd.f32 %v6081, %v7117
    %s7126 = scalar_lea.vmem %s16, 1
    %v7127 = vld [vmem:[%s7126] sm:$0x1]
    %v7129 = vlaneseq
    %v7130 = vshrl.u32 %v7129, 7
    %v7131 = vsub.s32 0, %v7130
    %v7132 = vrot.slane %v7127, %v7131
    %v7134 = vadd.f32 %v7120, %v7132
    %v7135 = vadd.f32 %v7121, %v7132
    %v7136 = vadd.f32 %v7122, %v7132
    %v7137 = vadd.f32 %v7123, %v7132
    %v7138 = vadd.f32 %v7124, %v7132
    %v7139 = vadd.f32 %v7125, %v7132
    %7140 = vst [vmem:[#allocation2] sm:$0xff] %v7134
    %7141 = vst [vmem:[#allocation2 + $0x8] sm:$0xff] %v7135
    %7142 = vst [vmem:[#allocation2 + $0x10] sm:$0xff] %v7136
    %7143 = vst [vmem:[#allocation2 + $0x18] sm:$0xff] %v7137
    %7144 = vst [vmem:[#allocation2 + $0x20] sm:$0xff] %v7138
    %7145 = vst [vmem:[#allocation2 + $0x28] sm:$0xff] %v7139
    %v7146 = vld [vmem:[#allocation2] sm:$0xff]
    %v7147 = vld [vmem:[#allocation2 + $0x8] sm:$0xff]
    %v7148 = vld [vmem:[#allocation2 + $0x18] sm:$0xff]
    %v7149 = vld [vmem:[#allocation2 + $0x20] sm:$0xff]
    %v7150 = vld [vmem:[%s17] sm:$0x1]
    %v7151 = vld [vmem:[%s18] sm:$0x1]
    %7152 = vadd.xlane.f32.xlu0 %v7146
    %v7153 = vpop.xlane.xlu0 %7152
    %7154 = vadd.xlane.f32.xlu0 %v7147
    %v7155 = vpop.xlane.xlu0 %7154
    %7156 = vadd.xlane.f32.xlu0 %v7148
    %v7157 = vpop.xlane.xlu0 %7156
    %7158 = vadd.xlane.f32.xlu0 %v7149
    %v7159 = vpop.xlane.xlu0 %7158
    %v7160 = vmul.f32 %v7153, %v382
    %v7161 = vmul.f32 %v7155, %v382
    %v7162 = vmul.f32 %v7157, %v382
    %v7163 = vmul.f32 %v7159, %v382
    %v7164 = vsub.f32 %v7146, %v7160
    %v7165 = vsub.f32 %v7147, %v7161
    %v7166 = vsub.f32 %v7148, %v7162
    %v7167 = vsub.f32 %v7149, %v7163
    %v7168 = vmul.f32 %v7164, %v7164
    %v7169 = vmul.f32 %v7165, %v7165
    %v7170 = vmul.f32 %v7166, %v7166
    %v7171 = vmul.f32 %v7167, %v7167
    %7172 = vadd.xlane.f32.xlu0 %v7168
    %v7173 = vpop.xlane.xlu0 %7172
    %7174 = vadd.xlane.f32.xlu0 %v7169
    %v7175 = vpop.xlane.xlu0 %7174
    %7176 = vadd.xlane.f32.xlu0 %v7170
    %v7177 = vpop.xlane.xlu0 %7176
    %7178 = vadd.xlane.f32.xlu0 %v7171
    %v7179 = vpop.xlane.xlu0 %7178
    %v7180 = vmul.f32 %v7173, %v382
    %v7181 = vmul.f32 %v7175, %v382
    %v7182 = vmul.f32 %v7177, %v382
    %v7183 = vmul.f32 %v7179, %v382
    %v7184 = vadd.f32 %v7180, 1e-06
    %v7185 = vadd.f32 %v7181, 1e-06
    %v7186 = vadd.f32 %v7182, 1e-06
    %v7187 = vadd.f32 %v7183, 1e-06
    %v7188 = vrsqrt.pop %v7184
    %v7189 = vrsqrt.pop %v7185
    %v7190 = vrsqrt.pop %v7186
    %v7191 = vrsqrt.pop %v7187
    %v7192 = vmul.f32 %v7164, %v7188
    %v7193 = vmul.f32 %v7165, %v7189
    %v7194 = vmul.f32 %v7166, %v7190
    %v7195 = vmul.f32 %v7167, %v7191
    %v7197 = vlaneseq
    %v7198 = vshrl.u32 %v7197, 7
    %v7199 = vsub.s32 0, %v7198
    %v7200 = vrot.slane %v7150, %v7199
    %v7202 = vmul.f32 %v7192, %v7200
    %v7203 = vmul.f32 %v7193, %v7200
    %v7204 = vmul.f32 %v7194, %v7200
    %v7205 = vmul.f32 %v7195, %v7200
    %v7207 = vlaneseq
    %v7208 = vshrl.u32 %v7207, 7
    %v7209 = vsub.s32 0, %v7208
    %v7210 = vrot.slane %v7151, %v7209
    %v7212 = vadd.f32 %v7202, %v7210
    %v7213 = vadd.f32 %v7203, %v7210
    %v7214 = vadd.f32 %v7204, %v7210
    %v7215 = vadd.f32 %v7205, %v7210
    %v7216 = vadd.f32 %v7212, %v7213
    %v7217 = vrot.slane %v7216, 4
    %v7218 = vadd.f32 %v7216, %v7217
    %v7219 = vrot.slane %v7218, 2
    %v7220 = vadd.f32 %v7218, %v7219
    %v7221 = vrot.slane %v7220, 1
    %v7222 = vadd.f32 %v7220, %v7221
    %v7223 = vrcp.pop 16.0
    %v7224 = vmul.f32 %v7222, %v7223
    %7225 = vst [vmem:[#allocation21] sm:$0x1] %v7224
    %v7226 = vadd.f32 %v7214, %v7215
    %v7227 = vrot.slane %v7226, 4
    %v7228 = vadd.f32 %v7226, %v7227
    %v7229 = vrot.slane %v7228, 2
    %v7230 = vadd.f32 %v7228, %v7229
    %v7231 = vrot.slane %v7230, 1
    %v7232 = vadd.f32 %v7230, %v7231
    %v7233 = vmul.f32 %v7232, %v7223
    %s7234 = scalar_lea.vmem [#allocation21], 1
    %7235 = vst [vmem:[%s7234] sm:$0x1] %v7233
    // Predicated region
    $region122: #{tpu_custom_call.1} parent=1 // pred_check
      _
    $region123: #{tpu_custom_call.1} parent=1 // pred_check_branch
      %7237 = sbr.rel (0) target = $region125
    $region124: #{tpu_custom_call.1} parent=1 // pred_region
      %s7239 = ssub.s32 32, 32
      %7240 = vsyncadd [#allocation5], %s7239
      %s7241 = sshll.u32 [#allocation21], 4
      %s7242 = int_to_ptr.vmem [resolvable:$true] %s7241
      %7247 = dma.vmem_to_hbm [thread:$0]  %s7242, 32, %s19, [#allocation5], 16, 16, 1
    $region125: #{tpu_custom_call.1} parent=1 // pred_fallthru
      _
    // Predicated region
    $region126: #{tpu_custom_call.1} parent=1 // pred_check
      _
    $region127: #{tpu_custom_call.1} parent=1 // pred_check_branch
      %7249 = sbr.rel (0) target = $region129
    $region128: #{tpu_custom_call.1} parent=1 // pred_region
      %7250 = dma.done [#allocation5], 32
    $region129: #{tpu_custom_call.1} parent=1 // pred_fallthru
      _
    %7251 = vsyncpa [#allocation4], 1
    %7252 = vsyncpa [#allocation7], 1
    %7253 = vsyncpa [#allocation10], 1
    %7254 = vsyncpa [#allocation13], 1
    %7255 = vsyncpa [#allocation16], 1
    %7256 = vsyncpa [#allocation19], 1
    %7257 = vsyncpa [#allocation5], 1

</llo_original>
